<compile_context>
chip_gen: v5e
topology: v5e:2x2
jax: 0.10.0
libtpu: 0.0.40
codegen_flags: <defaults>
</compile_context>

<pallas_src>
import math

import jax
import jax.numpy as jnp
from jax.experimental import pallas as pl
from jax.experimental.pallas import tpu as pltpu

EPS_LN = 1e-5   # PyTorch LayerNorm default


# ----------------------------------------------------------------------------
# Parameter init (deterministic, synthetic).  Weights are pre-packed for the
# fused kernel: block-diagonal grouped convs, replicated q/k/v, bf16 matmul
# operands, lane-padded (128) output head.
# ----------------------------------------------------------------------------
def _bdiag(blocks):
    """(C, fin, fout) -> block-diagonal (C*fin, C*fout)."""
    C, fin, fout = blocks.shape
    out = jnp.zeros((C * fin, C * fout), blocks.dtype)
    for c in range(C):
        out = out.at[c * fin:(c + 1) * fin, c * fout:(c + 1) * fout].set(blocks[c])
    return out


def init_params(key, nfeat, hidden, nclass, num_feats, num_label_feats):
    keys = iter(jax.random.split(key, 64))
    bf16 = jnp.bfloat16

    def nrm(shape, scale=0.1):
        return (scale * jax.random.normal(next(keys), shape)).astype(jnp.float32)

    def bn_fold(dim, pad_to=None):   # eval-mode BatchNorm1d folded to scale/shift
        g = 1.0 + 0.1 * jax.random.normal(next(keys), (1, dim))
        b = 0.05 * jax.random.normal(next(keys), (1, dim))
        m = 0.1 * jax.random.normal(next(keys), (1, dim))
        v = jnp.ones((1, dim))
        s = g / jnp.sqrt(v + 1e-5)
        sh = b - m * s
        if pad_to is not None and pad_to > dim:
            s = jnp.pad(s, ((0, 0), (0, pad_to - dim)), constant_values=1.0)
            sh = jnp.pad(sh, ((0, 0), (0, pad_to - dim)))
        return s.astype(jnp.float32), sh.astype(jnp.float32)

    Cf, Cl = num_feats, num_label_feats
    M = Cf + Cl
    Hq = hidden // 4
    Npad = ((nclass + 127) // 128) * 128   # lane-dense logits slab

    p = {}
    # feat_project_layers: grouped 1x1 convs as block-diagonal matmuls
    p["f_w1"] = _bdiag(nrm((Cf, nfeat, hidden))).astype(bf16)
    p["f_b1"] = jnp.zeros((1, Cf * hidden), jnp.float32)
    p["f_ln1w"] = jnp.ones((1, Cf * hidden), jnp.float32)
    p["f_ln1b"] = jnp.zeros((1, Cf * hidden), jnp.float32)
    p["f_w2"] = _bdiag(nrm((Cf, hidden, hidden))).astype(bf16)
    p["f_b2"] = jnp.zeros((1, Cf * hidden), jnp.float32)
    p["f_ln2w"] = jnp.ones((1, Cf * hidden), jnp.float32)
    p["f_ln2b"] = jnp.zeros((1, Cf * hidden), jnp.float32)
    # label_feat_project_layers
    p["l_w1"] = _bdiag(nrm((Cl, nclass, hidden))).astype(bf16)
    p["l_b1"] = jnp.zeros((1, Cl * hidden), jnp.float32)
    p["l_ln1w"] = jnp.ones((1, Cl * hidden), jnp.float32)
    p["l_ln1b"] = jnp.zeros((1, Cl * hidden), jnp.float32)
    p["l_w2"] = _bdiag(nrm((Cl, hidden, hidden))).astype(bf16)
    p["l_b2"] = jnp.zeros((1, Cl * hidden), jnp.float32)
    p["l_ln2w"] = jnp.ones((1, Cl * hidden), jnp.float32)
    p["l_ln2b"] = jnp.zeros((1, Cl * hidden), jnp.float32)
    # semantic_aggr_layers (single head); q/k/v Linear shared across channels,
    # replicated block-diagonally so Q/K/V for all channels come from one matmul
    wq = nrm((hidden, Hq)); wk = nrm((hidden, Hq)); wv = nrm((hidden, hidden))
    p["wq_bd"] = _bdiag(jnp.stack([wq] * M)).astype(bf16)
    p["wk_bd"] = _bdiag(jnp.stack([wk] * M)).astype(bf16)
    p["wv_bd"] = _bdiag(jnp.stack([wv] * M)).astype(bf16)
    p["bq"] = jnp.zeros((1, M * Hq), jnp.float32)
    p["bk"] = jnp.zeros((1, M * Hq), jnp.float32)
    p["bv"] = jnp.zeros((1, M * hidden), jnp.float32)
    # constant segment-sum matrix: (M*Hq, M), rows [n*Hq:(n+1)*Hq] -> column n
    p["segsum"] = jnp.repeat(jnp.eye(M, dtype=jnp.float32), Hq, axis=0).astype(bf16)
    # concat projection, residual fc, lr_output, label_fc (output dims padded)
    p["wcat"] = nrm((M * hidden, hidden)).astype(bf16)
    p["bcat"] = jnp.zeros((1, hidden), jnp.float32)
    p["wres"] = nrm((nfeat, hidden)).astype(bf16)
    p["wl1"] = nrm((hidden, hidden)).astype(bf16)
    p["bn1_s"], p["bn1_b"] = bn_fold(hidden)
    p["wl2"] = jnp.pad(nrm((hidden, nclass)), ((0, 0), (0, Npad - nclass))).astype(bf16)
    p["bn2_s"], p["bn2_b"] = bn_fold(nclass, pad_to=Npad)
    p["wf1"] = nrm((nclass, hidden)).astype(bf16)
    p["bnl_s"], p["bnl_b"] = bn_fold(hidden)
    p["wf2"] = jnp.pad(nrm((hidden, nclass)), ((0, 0), (0, Npad - nclass))).astype(bf16)
    p["bf2"] = jnp.zeros((1, Npad), jnp.float32)
    # SMEM scalars: [feat PReLU1, feat PReLU2, label PReLU1, label PReLU2,
    #                transformer gamma (torch init = 0.0),
    #                head PReLU, lr_output PReLU, label_fc PReLU]
    p["scalars"] = jnp.array([0.25, 0.25, 0.25, 0.25, 0.0, 0.25, 0.25, 0.25],
                             jnp.float32)
    return p


# ----------------------------------------------------------------------------
# Fused forward
# ----------------------------------------------------------------------------
def sehgnn_forward(params, feats_dict, layer_feats_dict, label_emb, tgt_key):
    tgt = feats_dict[tgt_key]
    B, F = tgt.shape
    nclass = label_emb.shape[-1]
    Cf = len(feats_dict)
    Cl = len(layer_feats_dict)
    M = Cf + Cl
    H = params["wcat"].shape[-1]
    Hq = params["wq_bd"].shape[-1] // M
    Npad = params["wl2"].shape[-1]
    scale = 1.0 / math.sqrt(Hq)

    # channel-major lane-dense slabs: [B, C*feat]
    xf = jnp.stack(list(feats_dict.values()), axis=1).reshape(B, Cf * F)
    xl = jnp.stack(list(layer_feats_dict.values()), axis=1).reshape(B, Cl * nclass)

    # batch tile: 128 saturates the MXU M-dim; 256 for large node batches
    tb = 128 if B <= 256 else 256
    Bp = ((B + tb - 1) // tb) * tb

    def prep(a):
        if Bp > B:
            a = jnp.pad(a, ((0, Bp - B), (0, 0)))
        return a.astype(jnp.bfloat16)

    batch_inputs = [prep(xf), prep(xl), prep(tgt), prep(label_emb)]

    weights = [
        params["f_w1"], params["f_b1"], params["f_ln1w"], params["f_ln1b"],
        params["f_w2"], params["f_b2"], params["f_ln2w"], params["f_ln2b"],
        params["l_w1"], params["l_b1"], params["l_ln1w"], params["l_ln1b"],
        params["l_w2"], params["l_b2"], params["l_ln2w"], params["l_ln2b"],
        params["wq_bd"], params["bq"], params["wk_bd"], params["bk"],
        params["wv_bd"], params["bv"], params["segsum"],
        params["wcat"], params["bcat"], params["wres"],
        params["wl1"], params["bn1_s"], params["bn1_b"],
        params["wl2"], params["bn2_s"], params["bn2_b"],
        params["wf1"], params["bnl_s"], params["bnl_b"],
        params["wf2"], params["bf2"],
    ]

    def kernel(xf_ref, xl_ref, tgt_ref, lab_ref,
               w1f, b1f, g1f, be1f, w2f, b2f, g2f, be2f,
               w1l, b1l, g1l, be1l, w2l, b2l, g2l, be2l,
               wq, bq, wk, bk, wv, bv, seg,
               wcat, bcat, wres,
               wl1, bn1s, bn1b, wl2, bn2s, bn2b,
               wf1, bnls, bnlb, wf2, bf2,
               sc, o_ref):

        def bdot(x, w_ref):                      # bf16 operands, f32 accumulate
            return jnp.dot(x.astype(jnp.bfloat16), w_ref[...],
                           preferred_element_type=jnp.float32)

        def ln_prelu(h, g_ref, b_ref, alpha):    # joint LN over (C, H), one-pass var
            n = float(h.shape[-1])
            mu = jnp.sum(h, axis=-1, keepdims=True) * (1.0 / n)
            ex2 = jnp.sum(h * h, axis=-1, keepdims=True) * (1.0 / n)
            var = jnp.maximum(ex2 - mu * mu, 0.0)
            inv = jax.lax.rsqrt(var + EPS_LN)
            y = (h - mu) * inv * g_ref[...] + b_ref[...]
            return jnp.where(y >= 0, y, alpha * y)

        fa1 = sc[0]; fa2 = sc[1]; la1 = sc[2]; la2 = sc[3]
        gam = sc[4]; ha0 = sc[5]; ha1 = sc[6]; hal = sc[7]

        # ---- feat_project_layers (block-diag grouped convs, LN, PReLU) ----
        hf = bdot(xf_ref[...], w1f) + b1f[...]
        hf = ln_prelu(hf, g1f, be1f, fa1)
        hf = bdot(hf, w2f) + b2f[...]
        hf = ln_prelu(hf, g2f, be2f, fa2)

        # ---- label_feat_project_layers ----
        hl = bdot(xl_ref[...], w1l) + b1l[...]
        hl = ln_prelu(hl, g1l, be1l, la1)
        hl = bdot(hl, w2l) + b2l[...]
        hl = ln_prelu(hl, g2l, be2l, la2)

        xcat = jnp.concatenate([hf, hl], axis=-1)          # [tb, M*H] f32
        xb = xcat.astype(jnp.bfloat16)

        # ---- semantic transformer: packed Q/K/V slabs ----
        Qc = jnp.dot(xb, wq[...], preferred_element_type=jnp.float32) + bq[...]
        Kc = jnp.dot(xb, wk[...], preferred_element_type=jnp.float32) + bk[...]
        Vc = jnp.dot(xb, wv[...], preferred_element_type=jnp.float32) + bv[...]
        segw = seg[...]

        outs = []
        for m in range(M):
            qm = Qc[:, m * Hq:(m + 1) * Hq]
            qt = jnp.concatenate([qm] * M, axis=-1)        # [tb, M*Hq]
            prod = (Kc * qt).astype(jnp.bfloat16)
            # all M scores for query channel m via one constant MXU matmul
            s = jnp.dot(prod, segw, preferred_element_type=jnp.float32) * scale
            s = s - jnp.max(s, axis=-1, keepdims=True)
            e = jnp.exp(s)
            attn = e * pl.reciprocal(jnp.sum(e, axis=-1, keepdims=True),
                                     approx=True)
            agg = attn[:, 0:1] * Vc[:, 0:H]
            for n in range(1, M):
                agg = agg + attn[:, n:n + 1] * Vc[:, n * H:(n + 1) * H]
            outs.append(gam * agg + xcat[:, m * H:(m + 1) * H])
        xsem = jnp.concatenate(outs, axis=-1)              # [tb, M*H]

        # ---- concat projection + residual + PReLU + lr_output ----
        x = bdot(xsem, wcat) + bcat[...] + bdot(tgt_ref[...], wres)
        x = jnp.where(x >= 0, x, ha0 * x)
        x = bdot(x, wl1)
        x = x * bn1s[...] + bn1b[...]
        x = jnp.where(x >= 0, x, ha1 * x)
        x = bdot(x, wl2)                                   # [tb, Npad]
        x = x * bn2s[...] + bn2b[...]

        # ---- label_fc(label_emb) ----
        y = bdot(lab_ref[...], wf1)
        y = y * bnls[...] + bnlb[...]
        y = jnp.where(y >= 0, y, hal * y)
        y = bdot(y, wf2) + bf2[...]                        # [tb, Npad]

        o_ref[...] = x + y                                 # lane-dense store

    in_specs = (
        [pl.BlockSpec((tb, a.shape[1]), lambda i: (i, 0)) for a in batch_inputs]
        + [pl.BlockSpec(w.shape, lambda i: (0, 0)) for w in weights]
        + [pl.BlockSpec(memory_space=pltpu.MemorySpace.SMEM)]
    )

    out = pl.pallas_call(
        kernel,
        out_shape=jax.ShapeDtypeStruct((Bp, Npad), jnp.float32),
        grid=(Bp // tb,),
        in_specs=in_specs,
        out_specs=pl.BlockSpec((tb, Npad), lambda i: (i, 0)),
        compiler_params=pltpu.CompilerParams(
            dimension_semantics=("parallel",),
            vmem_limit_bytes=48 * 1024 * 1024),
    )(*batch_inputs, *weights, params["scalars"])

    return out[:B, :nclass]


# ----------------------------------------------------------------------------
if __name__ == "__main__":
    B = 16
    nfeat = 32
    hidden = 32
    nclass = 8
    num_feats = 3          # n_layers_2 = 2, n_layers_3 = 2, bns = True
    num_label_feats = 2
    tgt_key = "P"

    key = jax.random.PRNGKey(0)
    kp, kf, kl, ke = jax.random.split(key, 4)
    params = init_params(kp, nfeat, hidden, nclass, num_feats, num_label_feats)

    fkeys = jax.random.split(kf, num_feats)
    feats_dict = {name: jax.random.normal(fkeys[i], (B, nfeat), jnp.float32)
                  for i, name in enumerate(["P", "PA", "PF"])}
    lkeys = jax.random.split(kl, num_label_feats)
    layer_feats_dict = {name: jax.random.normal(lkeys[i], (B, nclass), jnp.float32)
                        for i, name in enumerate(["PPP", "PAP"])}
    label_emb = jax.random.normal(ke, (B, nclass), jnp.float32)

    out = sehgnn_forward(params, feats_dict, layer_feats_dict, label_emb, tgt_key)
    out = jax.block_until_ready(out)
    assert out.shape == (B, nclass) and out.dtype == jnp.float32
    assert bool(jnp.all(jnp.isfinite(out)))
    print("KERNEL_OK")
</pallas_src>

<mosaic_0001>
module attributes {stable_mosaic.version = 11 : i64} {
  func.func @kernel(%arg0: i32, %arg1: memref<128x96xbf16, #tpu.memory_space<vmem>>, %arg2: memref<128x16xbf16, #tpu.memory_space<vmem>>, %arg3: memref<128x32xbf16, #tpu.memory_space<vmem>>, %arg4: memref<128x8xbf16, #tpu.memory_space<vmem>>, %arg5: memref<96x96xbf16, #tpu.memory_space<vmem>>, %arg6: memref<1x96xf32, #tpu.memory_space<vmem>>, %arg7: memref<1x96xf32, #tpu.memory_space<vmem>>, %arg8: memref<1x96xf32, #tpu.memory_space<vmem>>, %arg9: memref<96x96xbf16, #tpu.memory_space<vmem>>, %arg10: memref<1x96xf32, #tpu.memory_space<vmem>>, %arg11: memref<1x96xf32, #tpu.memory_space<vmem>>, %arg12: memref<1x96xf32, #tpu.memory_space<vmem>>, %arg13: memref<16x64xbf16, #tpu.memory_space<vmem>>, %arg14: memref<1x64xf32, #tpu.memory_space<vmem>>, %arg15: memref<1x64xf32, #tpu.memory_space<vmem>>, %arg16: memref<1x64xf32, #tpu.memory_space<vmem>>, %arg17: memref<64x64xbf16, #tpu.memory_space<vmem>>, %arg18: memref<1x64xf32, #tpu.memory_space<vmem>>, %arg19: memref<1x64xf32, #tpu.memory_space<vmem>>, %arg20: memref<1x64xf32, #tpu.memory_space<vmem>>, %arg21: memref<160x40xbf16, #tpu.memory_space<vmem>>, %arg22: memref<1x40xf32, #tpu.memory_space<vmem>>, %arg23: memref<160x40xbf16, #tpu.memory_space<vmem>>, %arg24: memref<1x40xf32, #tpu.memory_space<vmem>>, %arg25: memref<160x160xbf16, #tpu.memory_space<vmem>>, %arg26: memref<1x160xf32, #tpu.memory_space<vmem>>, %arg27: memref<40x5xbf16, #tpu.memory_space<vmem>>, %arg28: memref<160x32xbf16, #tpu.memory_space<vmem>>, %arg29: memref<1x32xf32, #tpu.memory_space<vmem>>, %arg30: memref<32x32xbf16, #tpu.memory_space<vmem>>, %arg31: memref<32x32xbf16, #tpu.memory_space<vmem>>, %arg32: memref<1x32xf32, #tpu.memory_space<vmem>>, %arg33: memref<1x32xf32, #tpu.memory_space<vmem>>, %arg34: memref<32x128xbf16, #tpu.memory_space<vmem>>, %arg35: memref<1x128xf32, #tpu.memory_space<vmem>>, %arg36: memref<1x128xf32, #tpu.memory_space<vmem>>, %arg37: memref<8x32xbf16, #tpu.memory_space<vmem>>, %arg38: memref<1x32xf32, #tpu.memory_space<vmem>>, %arg39: memref<1x32xf32, #tpu.memory_space<vmem>>, %arg40: memref<32x128xbf16, #tpu.memory_space<vmem>>, %arg41: memref<1x128xf32, #tpu.memory_space<vmem>>, %arg42: memref<8xf32, #tpu.memory_space<smem>>, %arg43: memref<128x128xf32, #tpu.memory_space<vmem>>) attributes {dimension_semantics = [#tpu.dimension_semantics<parallel>], iteration_bounds = array<i64: 1>, scalar_prefetch = 0 : i64, scratch_operands = 0 : i64, tpu.core_type = #tpu.core_type<tc>, window_params = [{transform_indices = @transform_0, window_bounds = array<i64: 128, 96>}, {transform_indices = @transform_1, window_bounds = array<i64: 128, 16>}, {transform_indices = @transform_2, window_bounds = array<i64: 128, 32>}, {transform_indices = @transform_3, window_bounds = array<i64: 128, 8>}, {pipeline_mode = #tpu.pipeline_mode<synchronous>, transform_indices = @transform_4, window_bounds = array<i64: 96, 96>}, {pipeline_mode = #tpu.pipeline_mode<synchronous>, transform_indices = @transform_5, window_bounds = array<i64: 1, 96>}, {pipeline_mode = #tpu.pipeline_mode<synchronous>, transform_indices = @transform_6, window_bounds = array<i64: 1, 96>}, {pipeline_mode = #tpu.pipeline_mode<synchronous>, transform_indices = @transform_7, window_bounds = array<i64: 1, 96>}, {pipeline_mode = #tpu.pipeline_mode<synchronous>, transform_indices = @transform_8, window_bounds = array<i64: 96, 96>}, {pipeline_mode = #tpu.pipeline_mode<synchronous>, transform_indices = @transform_9, window_bounds = array<i64: 1, 96>}, {pipeline_mode = #tpu.pipeline_mode<synchronous>, transform_indices = @transform_10, window_bounds = array<i64: 1, 96>}, {pipeline_mode = #tpu.pipeline_mode<synchronous>, transform_indices = @transform_11, window_bounds = array<i64: 1, 96>}, {pipeline_mode = #tpu.pipeline_mode<synchronous>, transform_indices = @transform_12, window_bounds = array<i64: 16, 64>}, {pipeline_mode = #tpu.pipeline_mode<synchronous>, transform_indices = @transform_13, window_bounds = array<i64: 1, 64>}, {pipeline_mode = #tpu.pipeline_mode<synchronous>, transform_indices = @transform_14, window_bounds = array<i64: 1, 64>}, {pipeline_mode = #tpu.pipeline_mode<synchronous>, transform_indices = @transform_15, window_bounds = array<i64: 1, 64>}, {pipeline_mode = #tpu.pipeline_mode<synchronous>, transform_indices = @transform_16, window_bounds = array<i64: 64, 64>}, {pipeline_mode = #tpu.pipeline_mode<synchronous>, transform_indices = @transform_17, window_bounds = array<i64: 1, 64>}, {pipeline_mode = #tpu.pipeline_mode<synchronous>, transform_indices = @transform_18, window_bounds = array<i64: 1, 64>}, {pipeline_mode = #tpu.pipeline_mode<synchronous>, transform_indices = @transform_19, window_bounds = array<i64: 1, 64>}, {pipeline_mode = #tpu.pipeline_mode<synchronous>, transform_indices = @transform_20, window_bounds = array<i64: 160, 40>}, {pipeline_mode = #tpu.pipeline_mode<synchronous>, transform_indices = @transform_21, window_bounds = array<i64: 1, 40>}, {pipeline_mode = #tpu.pipeline_mode<synchronous>, transform_indices = @transform_22, window_bounds = array<i64: 160, 40>}, {pipeline_mode = #tpu.pipeline_mode<synchronous>, transform_indices = @transform_23, window_bounds = array<i64: 1, 40>}, {pipeline_mode = #tpu.pipeline_mode<synchronous>, transform_indices = @transform_24, window_bounds = array<i64: 160, 160>}, {pipeline_mode = #tpu.pipeline_mode<synchronous>, transform_indices = @transform_25, window_bounds = array<i64: 1, 160>}, {pipeline_mode = #tpu.pipeline_mode<synchronous>, transform_indices = @transform_26, window_bounds = array<i64: 40, 5>}, {pipeline_mode = #tpu.pipeline_mode<synchronous>, transform_indices = @transform_27, window_bounds = array<i64: 160, 32>}, {pipeline_mode = #tpu.pipeline_mode<synchronous>, transform_indices = @transform_28, window_bounds = array<i64: 1, 32>}, {pipeline_mode = #tpu.pipeline_mode<synchronous>, transform_indices = @transform_29, window_bounds = array<i64: 32, 32>}, {pipeline_mode = #tpu.pipeline_mode<synchronous>, transform_indices = @transform_30, window_bounds = array<i64: 32, 32>}, {pipeline_mode = #tpu.pipeline_mode<synchronous>, transform_indices = @transform_31, window_bounds = array<i64: 1, 32>}, {pipeline_mode = #tpu.pipeline_mode<synchronous>, transform_indices = @transform_32, window_bounds = array<i64: 1, 32>}, {pipeline_mode = #tpu.pipeline_mode<synchronous>, transform_indices = @transform_33, window_bounds = array<i64: 32, 128>}, {pipeline_mode = #tpu.pipeline_mode<synchronous>, transform_indices = @transform_34, window_bounds = array<i64: 1, 128>}, {pipeline_mode = #tpu.pipeline_mode<synchronous>, transform_indices = @transform_35, window_bounds = array<i64: 1, 128>}, {pipeline_mode = #tpu.pipeline_mode<synchronous>, transform_indices = @transform_36, window_bounds = array<i64: 8, 32>}, {pipeline_mode = #tpu.pipeline_mode<synchronous>, transform_indices = @transform_37, window_bounds = array<i64: 1, 32>}, {pipeline_mode = #tpu.pipeline_mode<synchronous>, transform_indices = @transform_38, window_bounds = array<i64: 1, 32>}, {pipeline_mode = #tpu.pipeline_mode<synchronous>, transform_indices = @transform_39, window_bounds = array<i64: 32, 128>}, {pipeline_mode = #tpu.pipeline_mode<synchronous>, transform_indices = @transform_40, window_bounds = array<i64: 1, 128>}, {transform_indices = @transform_41, window_bounds = array<i64: 8>}, {transform_indices = @transform_42, window_bounds = array<i64: 128, 128>}]} {
    %c0 = arith.constant 0 : index
    %0 = memref.load %arg42[%c0] : memref<8xf32, #tpu.memory_space<smem>>
    %c1 = arith.constant 1 : index
    %1 = memref.load %arg42[%c1] : memref<8xf32, #tpu.memory_space<smem>>
    %c2 = arith.constant 2 : index
    %2 = memref.load %arg42[%c2] : memref<8xf32, #tpu.memory_space<smem>>
    %c3 = arith.constant 3 : index
    %3 = memref.load %arg42[%c3] : memref<8xf32, #tpu.memory_space<smem>>
    %c4 = arith.constant 4 : index
    %4 = memref.load %arg42[%c4] : memref<8xf32, #tpu.memory_space<smem>>
    %c5 = arith.constant 5 : index
    %5 = memref.load %arg42[%c5] : memref<8xf32, #tpu.memory_space<smem>>
    %c6 = arith.constant 6 : index
    %6 = memref.load %arg42[%c6] : memref<8xf32, #tpu.memory_space<smem>>
    %c7 = arith.constant 7 : index
    %7 = memref.load %arg42[%c7] : memref<8xf32, #tpu.memory_space<smem>>
    %c0_0 = arith.constant 0 : index
    %c0_1 = arith.constant 0 : index
    %8 = vector.load %arg1[%c0_0, %c0_1] : memref<128x96xbf16, #tpu.memory_space<vmem>>, vector<128x96xbf16>
    %c0_2 = arith.constant 0 : index
    %c0_3 = arith.constant 0 : index
    %9 = vector.load %arg5[%c0_2, %c0_3] : memref<96x96xbf16, #tpu.memory_space<vmem>>, vector<96x96xbf16>
    %cst = arith.constant dense<0.000000e+00> : vector<128x96xf32>
    %10 = tpu.matmul %8, %9, %cst {dimension_numbers = #tpu.dot_dimension_numbers<[1], [0], [0], [1], [0, 0, 1, 1], [], []>} : vector<128x96xbf16>, vector<96x96xbf16>, vector<128x96xf32> -> vector<128x96xf32>
    %c0_4 = arith.constant 0 : index
    %c0_5 = arith.constant 0 : index
    %11 = vector.load %arg6[%c0_4, %c0_5] : memref<1x96xf32, #tpu.memory_space<vmem>>, vector<1x96xf32>
    %12 = vector.broadcast %11 : vector<1x96xf32> to vector<128x96xf32>
    %13 = arith.addf %10, %12 : vector<128x96xf32>
    %cst_6 = arith.constant dense<0.000000e+00> : vector<128xf32>
    %14 = vector.multi_reduction <add>, %13, %cst_6 [1] : vector<128x96xf32> to vector<128xf32>
    %15 = vector.shape_cast %14 : vector<128xf32> to vector<128x1xf32>
    %cst_7 = arith.constant 0.010416667 : f32
    %16 = vector.broadcast %cst_7 : f32 to vector<128x1xf32>
    %17 = arith.mulf %15, %16 : vector<128x1xf32>
    %18 = arith.mulf %13, %13 : vector<128x96xf32>
    %cst_8 = arith.constant dense<0.000000e+00> : vector<128xf32>
    %19 = vector.multi_reduction <add>, %18, %cst_8 [1] : vector<128x96xf32> to vector<128xf32>
    %20 = vector.shape_cast %19 : vector<128xf32> to vector<128x1xf32>
    %cst_9 = arith.constant 0.010416667 : f32
    %21 = vector.broadcast %cst_9 : f32 to vector<128x1xf32>
    %22 = arith.mulf %20, %21 : vector<128x1xf32>
    %23 = arith.mulf %17, %17 : vector<128x1xf32>
    %24 = arith.subf %22, %23 : vector<128x1xf32>
    %cst_10 = arith.constant 0.000000e+00 : f32
    %25 = vector.broadcast %cst_10 : f32 to vector<128x1xf32>
    %26 = arith.maximumf %24, %25 : vector<128x1xf32>
    %cst_11 = arith.constant 9.99999974E-6 : f32
    %27 = vector.broadcast %cst_11 : f32 to vector<128x1xf32>
    %28 = arith.addf %26, %27 : vector<128x1xf32>
    %29 = math.rsqrt %28 : vector<128x1xf32>
    %30 = vector.broadcast %17 : vector<128x1xf32> to vector<128x96xf32>
    %31 = arith.subf %13, %30 : vector<128x96xf32>
    %32 = vector.broadcast %29 : vector<128x1xf32> to vector<128x96xf32>
    %33 = arith.mulf %31, %32 : vector<128x96xf32>
    %c0_12 = arith.constant 0 : index
    %c0_13 = arith.constant 0 : index
    %34 = vector.load %arg7[%c0_12, %c0_13] : memref<1x96xf32, #tpu.memory_space<vmem>>, vector<1x96xf32>
    %35 = vector.broadcast %34 : vector<1x96xf32> to vector<128x96xf32>
    %36 = arith.mulf %33, %35 : vector<128x96xf32>
    %c0_14 = arith.constant 0 : index
    %c0_15 = arith.constant 0 : index
    %37 = vector.load %arg8[%c0_14, %c0_15] : memref<1x96xf32, #tpu.memory_space<vmem>>, vector<1x96xf32>
    %38 = vector.broadcast %37 : vector<1x96xf32> to vector<128x96xf32>
    %39 = arith.addf %36, %38 : vector<128x96xf32>
    %cst_16 = arith.constant 0.000000e+00 : f32
    %40 = vector.broadcast %cst_16 : f32 to vector<128x96xf32>
    %41 = arith.cmpf oge, %39, %40 : vector<128x96xf32>
    %42 = vector.broadcast %0 : f32 to vector<128x96xf32>
    %43 = arith.mulf %42, %39 : vector<128x96xf32>
    %44 = arith.select %41, %39, %43 : vector<128x96xi1>, vector<128x96xf32>
    %45 = arith.truncf %44 : vector<128x96xf32> to vector<128x96xbf16>
    %c0_17 = arith.constant 0 : index
    %c0_18 = arith.constant 0 : index
    %46 = vector.load %arg9[%c0_17, %c0_18] : memref<96x96xbf16, #tpu.memory_space<vmem>>, vector<96x96xbf16>
    %cst_19 = arith.constant dense<0.000000e+00> : vector<128x96xf32>
    %47 = tpu.matmul %45, %46, %cst_19 {dimension_numbers = #tpu.dot_dimension_numbers<[1], [0], [0], [1], [0, 0, 1, 1], [], []>} : vector<128x96xbf16>, vector<96x96xbf16>, vector<128x96xf32> -> vector<128x96xf32>
    %c0_20 = arith.constant 0 : index
    %c0_21 = arith.constant 0 : index
    %48 = vector.load %arg10[%c0_20, %c0_21] : memref<1x96xf32, #tpu.memory_space<vmem>>, vector<1x96xf32>
    %49 = vector.broadcast %48 : vector<1x96xf32> to vector<128x96xf32>
    %50 = arith.addf %47, %49 : vector<128x96xf32>
    %cst_22 = arith.constant dense<0.000000e+00> : vector<128xf32>
    %51 = vector.multi_reduction <add>, %50, %cst_22 [1] : vector<128x96xf32> to vector<128xf32>
    %52 = vector.shape_cast %51 : vector<128xf32> to vector<128x1xf32>
    %cst_23 = arith.constant 0.010416667 : f32
    %53 = vector.broadcast %cst_23 : f32 to vector<128x1xf32>
    %54 = arith.mulf %52, %53 : vector<128x1xf32>
    %55 = arith.mulf %50, %50 : vector<128x96xf32>
    %cst_24 = arith.constant dense<0.000000e+00> : vector<128xf32>
    %56 = vector.multi_reduction <add>, %55, %cst_24 [1] : vector<128x96xf32> to vector<128xf32>
    %57 = vector.shape_cast %56 : vector<128xf32> to vector<128x1xf32>
    %cst_25 = arith.constant 0.010416667 : f32
    %58 = vector.broadcast %cst_25 : f32 to vector<128x1xf32>
    %59 = arith.mulf %57, %58 : vector<128x1xf32>
    %60 = arith.mulf %54, %54 : vector<128x1xf32>
    %61 = arith.subf %59, %60 : vector<128x1xf32>
    %cst_26 = arith.constant 0.000000e+00 : f32
    %62 = vector.broadcast %cst_26 : f32 to vector<128x1xf32>
    %63 = arith.maximumf %61, %62 : vector<128x1xf32>
    %cst_27 = arith.constant 9.99999974E-6 : f32
    %64 = vector.broadcast %cst_27 : f32 to vector<128x1xf32>
    %65 = arith.addf %63, %64 : vector<128x1xf32>
    %66 = math.rsqrt %65 : vector<128x1xf32>
    %67 = vector.broadcast %54 : vector<128x1xf32> to vector<128x96xf32>
    %68 = arith.subf %50, %67 : vector<128x96xf32>
    %69 = vector.broadcast %66 : vector<128x1xf32> to vector<128x96xf32>
    %70 = arith.mulf %68, %69 : vector<128x96xf32>
    %c0_28 = arith.constant 0 : index
    %c0_29 = arith.constant 0 : index
    %71 = vector.load %arg11[%c0_28, %c0_29] : memref<1x96xf32, #tpu.memory_space<vmem>>, vector<1x96xf32>
    %72 = vector.broadcast %71 : vector<1x96xf32> to vector<128x96xf32>
    %73 = arith.mulf %70, %72 : vector<128x96xf32>
    %c0_30 = arith.constant 0 : index
    %c0_31 = arith.constant 0 : index
    %74 = vector.load %arg12[%c0_30, %c0_31] : memref<1x96xf32, #tpu.memory_space<vmem>>, vector<1x96xf32>
    %75 = vector.broadcast %74 : vector<1x96xf32> to vector<128x96xf32>
    %76 = arith.addf %73, %75 : vector<128x96xf32>
    %cst_32 = arith.constant 0.000000e+00 : f32
    %77 = vector.broadcast %cst_32 : f32 to vector<128x96xf32>
    %78 = arith.cmpf oge, %76, %77 : vector<128x96xf32>
    %79 = vector.broadcast %1 : f32 to vector<128x96xf32>
    %80 = arith.mulf %79, %76 : vector<128x96xf32>
    %81 = arith.select %78, %76, %80 : vector<128x96xi1>, vector<128x96xf32>
    %c0_33 = arith.constant 0 : index
    %c0_34 = arith.constant 0 : index
    %82 = vector.load %arg2[%c0_33, %c0_34] : memref<128x16xbf16, #tpu.memory_space<vmem>>, vector<128x16xbf16>
    %c0_35 = arith.constant 0 : index
    %c0_36 = arith.constant 0 : index
    %83 = vector.load %arg13[%c0_35, %c0_36] : memref<16x64xbf16, #tpu.memory_space<vmem>>, vector<16x64xbf16>
    %cst_37 = arith.constant dense<0.000000e+00> : vector<128x64xf32>
    %84 = tpu.matmul %82, %83, %cst_37 {dimension_numbers = #tpu.dot_dimension_numbers<[1], [0], [0], [1], [0, 0, 1, 1], [], []>} : vector<128x16xbf16>, vector<16x64xbf16>, vector<128x64xf32> -> vector<128x64xf32>
    %c0_38 = arith.constant 0 : index
    %c0_39 = arith.constant 0 : index
    %85 = vector.load %arg14[%c0_38, %c0_39] : memref<1x64xf32, #tpu.memory_space<vmem>>, vector<1x64xf32>
    %86 = vector.broadcast %85 : vector<1x64xf32> to vector<128x64xf32>
    %87 = arith.addf %84, %86 : vector<128x64xf32>
    %cst_40 = arith.constant dense<0.000000e+00> : vector<128xf32>
    %88 = vector.multi_reduction <add>, %87, %cst_40 [1] : vector<128x64xf32> to vector<128xf32>
    %89 = vector.shape_cast %88 : vector<128xf32> to vector<128x1xf32>
    %cst_41 = arith.constant 1.562500e-02 : f32
    %90 = vector.broadcast %cst_41 : f32 to vector<128x1xf32>
    %91 = arith.mulf %89, %90 : vector<128x1xf32>
    %92 = arith.mulf %87, %87 : vector<128x64xf32>
    %cst_42 = arith.constant dense<0.000000e+00> : vector<128xf32>
    %93 = vector.multi_reduction <add>, %92, %cst_42 [1] : vector<128x64xf32> to vector<128xf32>
    %94 = vector.shape_cast %93 : vector<128xf32> to vector<128x1xf32>
    %cst_43 = arith.constant 1.562500e-02 : f32
    %95 = vector.broadcast %cst_43 : f32 to vector<128x1xf32>
    %96 = arith.mulf %94, %95 : vector<128x1xf32>
    %97 = arith.mulf %91, %91 : vector<128x1xf32>
    %98 = arith.subf %96, %97 : vector<128x1xf32>
    %cst_44 = arith.constant 0.000000e+00 : f32
    %99 = vector.broadcast %cst_44 : f32 to vector<128x1xf32>
    %100 = arith.maximumf %98, %99 : vector<128x1xf32>
    %cst_45 = arith.constant 9.99999974E-6 : f32
    %101 = vector.broadcast %cst_45 : f32 to vector<128x1xf32>
    %102 = arith.addf %100, %101 : vector<128x1xf32>
    %103 = math.rsqrt %102 : vector<128x1xf32>
    %104 = vector.broadcast %91 : vector<128x1xf32> to vector<128x64xf32>
    %105 = arith.subf %87, %104 : vector<128x64xf32>
    %106 = vector.broadcast %103 : vector<128x1xf32> to vector<128x64xf32>
    %107 = arith.mulf %105, %106 : vector<128x64xf32>
    %c0_46 = arith.constant 0 : index
    %c0_47 = arith.constant 0 : index
    %108 = vector.load %arg15[%c0_46, %c0_47] : memref<1x64xf32, #tpu.memory_space<vmem>>, vector<1x64xf32>
    %109 = vector.broadcast %108 : vector<1x64xf32> to vector<128x64xf32>
    %110 = arith.mulf %107, %109 : vector<128x64xf32>
    %c0_48 = arith.constant 0 : index
    %c0_49 = arith.constant 0 : index
    %111 = vector.load %arg16[%c0_48, %c0_49] : memref<1x64xf32, #tpu.memory_space<vmem>>, vector<1x64xf32>
    %112 = vector.broadcast %111 : vector<1x64xf32> to vector<128x64xf32>
    %113 = arith.addf %110, %112 : vector<128x64xf32>
    %cst_50 = arith.constant 0.000000e+00 : f32
    %114 = vector.broadcast %cst_50 : f32 to vector<128x64xf32>
    %115 = arith.cmpf oge, %113, %114 : vector<128x64xf32>
    %116 = vector.broadcast %2 : f32 to vector<128x64xf32>
    %117 = arith.mulf %116, %113 : vector<128x64xf32>
    %118 = arith.select %115, %113, %117 : vector<128x64xi1>, vector<128x64xf32>
    %119 = arith.truncf %118 : vector<128x64xf32> to vector<128x64xbf16>
    %c0_51 = arith.constant 0 : index
    %c0_52 = arith.constant 0 : index
    %120 = vector.load %arg17[%c0_51, %c0_52] : memref<64x64xbf16, #tpu.memory_space<vmem>>, vector<64x64xbf16>
    %cst_53 = arith.constant dense<0.000000e+00> : vector<128x64xf32>
    %121 = tpu.matmul %119, %120, %cst_53 {dimension_numbers = #tpu.dot_dimension_numbers<[1], [0], [0], [1], [0, 0, 1, 1], [], []>} : vector<128x64xbf16>, vector<64x64xbf16>, vector<128x64xf32> -> vector<128x64xf32>
    %c0_54 = arith.constant 0 : index
    %c0_55 = arith.constant 0 : index
    %122 = vector.load %arg18[%c0_54, %c0_55] : memref<1x64xf32, #tpu.memory_space<vmem>>, vector<1x64xf32>
    %123 = vector.broadcast %122 : vector<1x64xf32> to vector<128x64xf32>
    %124 = arith.addf %121, %123 : vector<128x64xf32>
    %cst_56 = arith.constant dense<0.000000e+00> : vector<128xf32>
    %125 = vector.multi_reduction <add>, %124, %cst_56 [1] : vector<128x64xf32> to vector<128xf32>
    %126 = vector.shape_cast %125 : vector<128xf32> to vector<128x1xf32>
    %cst_57 = arith.constant 1.562500e-02 : f32
    %127 = vector.broadcast %cst_57 : f32 to vector<128x1xf32>
    %128 = arith.mulf %126, %127 : vector<128x1xf32>
    %129 = arith.mulf %124, %124 : vector<128x64xf32>
    %cst_58 = arith.constant dense<0.000000e+00> : vector<128xf32>
    %130 = vector.multi_reduction <add>, %129, %cst_58 [1] : vector<128x64xf32> to vector<128xf32>
    %131 = vector.shape_cast %130 : vector<128xf32> to vector<128x1xf32>
    %cst_59 = arith.constant 1.562500e-02 : f32
    %132 = vector.broadcast %cst_59 : f32 to vector<128x1xf32>
    %133 = arith.mulf %131, %132 : vector<128x1xf32>
    %134 = arith.mulf %128, %128 : vector<128x1xf32>
    %135 = arith.subf %133, %134 : vector<128x1xf32>
    %cst_60 = arith.constant 0.000000e+00 : f32
    %136 = vector.broadcast %cst_60 : f32 to vector<128x1xf32>
    %137 = arith.maximumf %135, %136 : vector<128x1xf32>
    %cst_61 = arith.constant 9.99999974E-6 : f32
    %138 = vector.broadcast %cst_61 : f32 to vector<128x1xf32>
    %139 = arith.addf %137, %138 : vector<128x1xf32>
    %140 = math.rsqrt %139 : vector<128x1xf32>
    %141 = vector.broadcast %128 : vector<128x1xf32> to vector<128x64xf32>
    %142 = arith.subf %124, %141 : vector<128x64xf32>
    %143 = vector.broadcast %140 : vector<128x1xf32> to vector<128x64xf32>
    %144 = arith.mulf %142, %143 : vector<128x64xf32>
    %c0_62 = arith.constant 0 : index
    %c0_63 = arith.constant 0 : index
    %145 = vector.load %arg19[%c0_62, %c0_63] : memref<1x64xf32, #tpu.memory_space<vmem>>, vector<1x64xf32>
    %146 = vector.broadcast %145 : vector<1x64xf32> to vector<128x64xf32>
    %147 = arith.mulf %144, %146 : vector<128x64xf32>
    %c0_64 = arith.constant 0 : index
    %c0_65 = arith.constant 0 : index
    %148 = vector.load %arg20[%c0_64, %c0_65] : memref<1x64xf32, #tpu.memory_space<vmem>>, vector<1x64xf32>
    %149 = vector.broadcast %148 : vector<1x64xf32> to vector<128x64xf32>
    %150 = arith.addf %147, %149 : vector<128x64xf32>
    %cst_66 = arith.constant 0.000000e+00 : f32
    %151 = vector.broadcast %cst_66 : f32 to vector<128x64xf32>
    %152 = arith.cmpf oge, %150, %151 : vector<128x64xf32>
    %153 = vector.broadcast %3 : f32 to vector<128x64xf32>
    %154 = arith.mulf %153, %150 : vector<128x64xf32>
    %155 = arith.select %152, %150, %154 : vector<128x64xi1>, vector<128x64xf32>
    %156 = tpu.concatenate %81, %155 in 1 : vector<128x96xf32>, vector<128x64xf32> -> vector<128x160xf32>
    %157 = arith.truncf %156 : vector<128x160xf32> to vector<128x160xbf16>
    %c0_67 = arith.constant 0 : index
    %c0_68 = arith.constant 0 : index
    %158 = vector.load %arg21[%c0_67, %c0_68] : memref<160x40xbf16, #tpu.memory_space<vmem>>, vector<160x40xbf16>
    %cst_69 = arith.constant dense<0.000000e+00> : vector<128x40xf32>
    %159 = tpu.matmul %157, %158, %cst_69 {dimension_numbers = #tpu.dot_dimension_numbers<[1], [0], [0], [1], [0, 0, 1, 1], [], []>} : vector<128x160xbf16>, vector<160x40xbf16>, vector<128x40xf32> -> vector<128x40xf32>
    %c0_70 = arith.constant 0 : index
    %c0_71 = arith.constant 0 : index
    %160 = vector.load %arg22[%c0_70, %c0_71] : memref<1x40xf32, #tpu.memory_space<vmem>>, vector<1x40xf32>
    %161 = vector.broadcast %160 : vector<1x40xf32> to vector<128x40xf32>
    %162 = arith.addf %159, %161 : vector<128x40xf32>
    %c0_72 = arith.constant 0 : index
    %c0_73 = arith.constant 0 : index
    %163 = vector.load %arg23[%c0_72, %c0_73] : memref<160x40xbf16, #tpu.memory_space<vmem>>, vector<160x40xbf16>
    %cst_74 = arith.constant dense<0.000000e+00> : vector<128x40xf32>
    %164 = tpu.matmul %157, %163, %cst_74 {dimension_numbers = #tpu.dot_dimension_numbers<[1], [0], [0], [1], [0, 0, 1, 1], [], []>} : vector<128x160xbf16>, vector<160x40xbf16>, vector<128x40xf32> -> vector<128x40xf32>
    %c0_75 = arith.constant 0 : index
    %c0_76 = arith.constant 0 : index
    %165 = vector.load %arg24[%c0_75, %c0_76] : memref<1x40xf32, #tpu.memory_space<vmem>>, vector<1x40xf32>
    %166 = vector.broadcast %165 : vector<1x40xf32> to vector<128x40xf32>
    %167 = arith.addf %164, %166 : vector<128x40xf32>
    %c0_77 = arith.constant 0 : index
    %c0_78 = arith.constant 0 : index
    %168 = vector.load %arg25[%c0_77, %c0_78] : memref<160x160xbf16, #tpu.memory_space<vmem>>, vector<160x160xbf16>
    %cst_79 = arith.constant dense<0.000000e+00> : vector<128x160xf32>
    %169 = tpu.matmul %157, %168, %cst_79 {dimension_numbers = #tpu.dot_dimension_numbers<[1], [0], [0], [1], [0, 0, 1, 1], [], []>} : vector<128x160xbf16>, vector<160x160xbf16>, vector<128x160xf32> -> vector<128x160xf32>
    %c0_80 = arith.constant 0 : index
    %c0_81 = arith.constant 0 : index
    %170 = vector.load %arg26[%c0_80, %c0_81] : memref<1x160xf32, #tpu.memory_space<vmem>>, vector<1x160xf32>
    %171 = vector.broadcast %170 : vector<1x160xf32> to vector<128x160xf32>
    %172 = arith.addf %169, %171 : vector<128x160xf32>
    %c0_82 = arith.constant 0 : index
    %c0_83 = arith.constant 0 : index
    %173 = vector.load %arg27[%c0_82, %c0_83] : memref<40x5xbf16, #tpu.memory_space<vmem>>, vector<40x5xbf16>
    %174 = vector.extract_strided_slice %162 {offsets = [0, 0], sizes = [128, 8], strides = [1, 1]} : vector<128x40xf32> to vector<128x8xf32>
    %175 = tpu.concatenate %174, %174, %174, %174, %174 in 1 : vector<128x8xf32>, vector<128x8xf32>, vector<128x8xf32>, vector<128x8xf32>, vector<128x8xf32> -> vector<128x40xf32>
    %176 = arith.mulf %167, %175 : vector<128x40xf32>
    %177 = arith.truncf %176 : vector<128x40xf32> to vector<128x40xbf16>
    %cst_84 = arith.constant dense<0.000000e+00> : vector<128x5xf32>
    %178 = tpu.matmul %177, %173, %cst_84 {dimension_numbers = #tpu.dot_dimension_numbers<[1], [0], [0], [1], [0, 0, 1, 1], [], []>} : vector<128x40xbf16>, vector<40x5xbf16>, vector<128x5xf32> -> vector<128x5xf32>
    %cst_85 = arith.constant 0.353553385 : f32
    %179 = vector.broadcast %cst_85 : f32 to vector<128x5xf32>
    %180 = arith.mulf %178, %179 : vector<128x5xf32>
    %cst_86 = arith.constant dense<0xFF800000> : vector<128xf32>
    %181 = vector.multi_reduction <maximumf>, %180, %cst_86 [1] : vector<128x5xf32> to vector<128xf32>
    %182 = vector.shape_cast %181 : vector<128xf32> to vector<128x1xf32>
    %183 = vector.broadcast %182 : vector<128x1xf32> to vector<128x5xf32>
    %184 = arith.subf %180, %183 : vector<128x5xf32>
    %185 = math.exp %184 : vector<128x5xf32>
    %cst_87 = arith.constant dense<0.000000e+00> : vector<128xf32>
    %186 = vector.multi_reduction <add>, %185, %cst_87 [1] : vector<128x5xf32> to vector<128xf32>
    %187 = vector.shape_cast %186 : vector<128xf32> to vector<128x1xf32>
    %188 = tpu.reciprocal %187 {approx = true} : vector<128x1xf32> -> vector<128x1xf32>
    %189 = vector.broadcast %188 : vector<128x1xf32> to vector<128x5xf32>
    %190 = arith.mulf %185, %189 : vector<128x5xf32>
    %191 = vector.extract_strided_slice %190 {offsets = [0, 0], sizes = [128, 1], strides = [1, 1]} : vector<128x5xf32> to vector<128x1xf32>
    %192 = vector.extract_strided_slice %172 {offsets = [0, 0], sizes = [128, 32], strides = [1, 1]} : vector<128x160xf32> to vector<128x32xf32>
    %193 = vector.broadcast %191 : vector<128x1xf32> to vector<128x32xf32>
    %194 = arith.mulf %193, %192 : vector<128x32xf32>
    %195 = vector.extract_strided_slice %190 {offsets = [0, 1], sizes = [128, 1], strides = [1, 1]} : vector<128x5xf32> to vector<128x1xf32>
    %196 = vector.extract_strided_slice %172 {offsets = [0, 32], sizes = [128, 32], strides = [1, 1]} : vector<128x160xf32> to vector<128x32xf32>
    %197 = vector.broadcast %195 : vector<128x1xf32> to vector<128x32xf32>
    %198 = arith.mulf %197, %196 : vector<128x32xf32>
    %199 = arith.addf %194, %198 : vector<128x32xf32>
    %200 = vector.extract_strided_slice %190 {offsets = [0, 2], sizes = [128, 1], strides = [1, 1]} : vector<128x5xf32> to vector<128x1xf32>
    %201 = vector.extract_strided_slice %172 {offsets = [0, 64], sizes = [128, 32], strides = [1, 1]} : vector<128x160xf32> to vector<128x32xf32>
    %202 = vector.broadcast %200 : vector<128x1xf32> to vector<128x32xf32>
    %203 = arith.mulf %202, %201 : vector<128x32xf32>
    %204 = arith.addf %199, %203 : vector<128x32xf32>
    %205 = vector.extract_strided_slice %190 {offsets = [0, 3], sizes = [128, 1], strides = [1, 1]} : vector<128x5xf32> to vector<128x1xf32>
    %206 = vector.extract_strided_slice %172 {offsets = [0, 96], sizes = [128, 32], strides = [1, 1]} : vector<128x160xf32> to vector<128x32xf32>
    %207 = vector.broadcast %205 : vector<128x1xf32> to vector<128x32xf32>
    %208 = arith.mulf %207, %206 : vector<128x32xf32>
    %209 = arith.addf %204, %208 : vector<128x32xf32>
    %210 = vector.extract_strided_slice %190 {offsets = [0, 4], sizes = [128, 1], strides = [1, 1]} : vector<128x5xf32> to vector<128x1xf32>
    %211 = vector.extract_strided_slice %172 {offsets = [0, 128], sizes = [128, 32], strides = [1, 1]} : vector<128x160xf32> to vector<128x32xf32>
    %212 = vector.broadcast %210 : vector<128x1xf32> to vector<128x32xf32>
    %213 = arith.mulf %212, %211 : vector<128x32xf32>
    %214 = arith.addf %209, %213 : vector<128x32xf32>
    %215 = vector.broadcast %4 : f32 to vector<128x32xf32>
    %216 = arith.mulf %215, %214 : vector<128x32xf32>
    %217 = vector.extract_strided_slice %156 {offsets = [0, 0], sizes = [128, 32], strides = [1, 1]} : vector<128x160xf32> to vector<128x32xf32>
    %218 = arith.addf %216, %217 : vector<128x32xf32>
    %219 = vector.extract_strided_slice %162 {offsets = [0, 8], sizes = [128, 8], strides = [1, 1]} : vector<128x40xf32> to vector<128x8xf32>
    %220 = tpu.concatenate %219, %219, %219, %219, %219 in 1 : vector<128x8xf32>, vector<128x8xf32>, vector<128x8xf32>, vector<128x8xf32>, vector<128x8xf32> -> vector<128x40xf32>
    %221 = arith.mulf %167, %220 : vector<128x40xf32>
    %222 = arith.truncf %221 : vector<128x40xf32> to vector<128x40xbf16>
    %cst_88 = arith.constant dense<0.000000e+00> : vector<128x5xf32>
    %223 = tpu.matmul %222, %173, %cst_88 {dimension_numbers = #tpu.dot_dimension_numbers<[1], [0], [0], [1], [0, 0, 1, 1], [], []>} : vector<128x40xbf16>, vector<40x5xbf16>, vector<128x5xf32> -> vector<128x5xf32>
    %cst_89 = arith.constant 0.353553385 : f32
    %224 = vector.broadcast %cst_89 : f32 to vector<128x5xf32>
    %225 = arith.mulf %223, %224 : vector<128x5xf32>
    %cst_90 = arith.constant dense<0xFF800000> : vector<128xf32>
    %226 = vector.multi_reduction <maximumf>, %225, %cst_90 [1] : vector<128x5xf32> to vector<128xf32>
    %227 = vector.shape_cast %226 : vector<128xf32> to vector<128x1xf32>
    %228 = vector.broadcast %227 : vector<128x1xf32> to vector<128x5xf32>
    %229 = arith.subf %225, %228 : vector<128x5xf32>
    %230 = math.exp %229 : vector<128x5xf32>
    %cst_91 = arith.constant dense<0.000000e+00> : vector<128xf32>
    %231 = vector.multi_reduction <add>, %230, %cst_91 [1] : vector<128x5xf32> to vector<128xf32>
    %232 = vector.shape_cast %231 : vector<128xf32> to vector<128x1xf32>
    %233 = tpu.reciprocal %232 {approx = true} : vector<128x1xf32> -> vector<128x1xf32>
    %234 = vector.broadcast %233 : vector<128x1xf32> to vector<128x5xf32>
    %235 = arith.mulf %230, %234 : vector<128x5xf32>
    %236 = vector.extract_strided_slice %235 {offsets = [0, 0], sizes = [128, 1], strides = [1, 1]} : vector<128x5xf32> to vector<128x1xf32>
    %237 = vector.extract_strided_slice %172 {offsets = [0, 0], sizes = [128, 32], strides = [1, 1]} : vector<128x160xf32> to vector<128x32xf32>
    %238 = vector.broadcast %236 : vector<128x1xf32> to vector<128x32xf32>
    %239 = arith.mulf %238, %237 : vector<128x32xf32>
    %240 = vector.extract_strided_slice %235 {offsets = [0, 1], sizes = [128, 1], strides = [1, 1]} : vector<128x5xf32> to vector<128x1xf32>
    %241 = vector.extract_strided_slice %172 {offsets = [0, 32], sizes = [128, 32], strides = [1, 1]} : vector<128x160xf32> to vector<128x32xf32>
    %242 = vector.broadcast %240 : vector<128x1xf32> to vector<128x32xf32>
    %243 = arith.mulf %242, %241 : vector<128x32xf32>
    %244 = arith.addf %239, %243 : vector<128x32xf32>
    %245 = vector.extract_strided_slice %235 {offsets = [0, 2], sizes = [128, 1], strides = [1, 1]} : vector<128x5xf32> to vector<128x1xf32>
    %246 = vector.extract_strided_slice %172 {offsets = [0, 64], sizes = [128, 32], strides = [1, 1]} : vector<128x160xf32> to vector<128x32xf32>
    %247 = vector.broadcast %245 : vector<128x1xf32> to vector<128x32xf32>
    %248 = arith.mulf %247, %246 : vector<128x32xf32>
    %249 = arith.addf %244, %248 : vector<128x32xf32>
    %250 = vector.extract_strided_slice %235 {offsets = [0, 3], sizes = [128, 1], strides = [1, 1]} : vector<128x5xf32> to vector<128x1xf32>
    %251 = vector.extract_strided_slice %172 {offsets = [0, 96], sizes = [128, 32], strides = [1, 1]} : vector<128x160xf32> to vector<128x32xf32>
    %252 = vector.broadcast %250 : vector<128x1xf32> to vector<128x32xf32>
    %253 = arith.mulf %252, %251 : vector<128x32xf32>
    %254 = arith.addf %249, %253 : vector<128x32xf32>
    %255 = vector.extract_strided_slice %235 {offsets = [0, 4], sizes = [128, 1], strides = [1, 1]} : vector<128x5xf32> to vector<128x1xf32>
    %256 = vector.extract_strided_slice %172 {offsets = [0, 128], sizes = [128, 32], strides = [1, 1]} : vector<128x160xf32> to vector<128x32xf32>
    %257 = vector.broadcast %255 : vector<128x1xf32> to vector<128x32xf32>
    %258 = arith.mulf %257, %256 : vector<128x32xf32>
    %259 = arith.addf %254, %258 : vector<128x32xf32>
    %260 = vector.broadcast %4 : f32 to vector<128x32xf32>
    %261 = arith.mulf %260, %259 : vector<128x32xf32>
    %262 = vector.extract_strided_slice %156 {offsets = [0, 32], sizes = [128, 32], strides = [1, 1]} : vector<128x160xf32> to vector<128x32xf32>
    %263 = arith.addf %261, %262 : vector<128x32xf32>
    %264 = vector.extract_strided_slice %162 {offsets = [0, 16], sizes = [128, 8], strides = [1, 1]} : vector<128x40xf32> to vector<128x8xf32>
    %265 = tpu.concatenate %264, %264, %264, %264, %264 in 1 : vector<128x8xf32>, vector<128x8xf32>, vector<128x8xf32>, vector<128x8xf32>, vector<128x8xf32> -> vector<128x40xf32>
    %266 = arith.mulf %167, %265 : vector<128x40xf32>
    %267 = arith.truncf %266 : vector<128x40xf32> to vector<128x40xbf16>
    %cst_92 = arith.constant dense<0.000000e+00> : vector<128x5xf32>
    %268 = tpu.matmul %267, %173, %cst_92 {dimension_numbers = #tpu.dot_dimension_numbers<[1], [0], [0], [1], [0, 0, 1, 1], [], []>} : vector<128x40xbf16>, vector<40x5xbf16>, vector<128x5xf32> -> vector<128x5xf32>
    %cst_93 = arith.constant 0.353553385 : f32
    %269 = vector.broadcast %cst_93 : f32 to vector<128x5xf32>
    %270 = arith.mulf %268, %269 : vector<128x5xf32>
    %cst_94 = arith.constant dense<0xFF800000> : vector<128xf32>
    %271 = vector.multi_reduction <maximumf>, %270, %cst_94 [1] : vector<128x5xf32> to vector<128xf32>
    %272 = vector.shape_cast %271 : vector<128xf32> to vector<128x1xf32>
    %273 = vector.broadcast %272 : vector<128x1xf32> to vector<128x5xf32>
    %274 = arith.subf %270, %273 : vector<128x5xf32>
    %275 = math.exp %274 : vector<128x5xf32>
    %cst_95 = arith.constant dense<0.000000e+00> : vector<128xf32>
    %276 = vector.multi_reduction <add>, %275, %cst_95 [1] : vector<128x5xf32> to vector<128xf32>
    %277 = vector.shape_cast %276 : vector<128xf32> to vector<128x1xf32>
    %278 = tpu.reciprocal %277 {approx = true} : vector<128x1xf32> -> vector<128x1xf32>
    %279 = vector.broadcast %278 : vector<128x1xf32> to vector<128x5xf32>
    %280 = arith.mulf %275, %279 : vector<128x5xf32>
    %281 = vector.extract_strided_slice %280 {offsets = [0, 0], sizes = [128, 1], strides = [1, 1]} : vector<128x5xf32> to vector<128x1xf32>
    %282 = vector.extract_strided_slice %172 {offsets = [0, 0], sizes = [128, 32], strides = [1, 1]} : vector<128x160xf32> to vector<128x32xf32>
    %283 = vector.broadcast %281 : vector<128x1xf32> to vector<128x32xf32>
    %284 = arith.mulf %283, %282 : vector<128x32xf32>
    %285 = vector.extract_strided_slice %280 {offsets = [0, 1], sizes = [128, 1], strides = [1, 1]} : vector<128x5xf32> to vector<128x1xf32>
    %286 = vector.extract_strided_slice %172 {offsets = [0, 32], sizes = [128, 32], strides = [1, 1]} : vector<128x160xf32> to vector<128x32xf32>
    %287 = vector.broadcast %285 : vector<128x1xf32> to vector<128x32xf32>
    %288 = arith.mulf %287, %286 : vector<128x32xf32>
    %289 = arith.addf %284, %288 : vector<128x32xf32>
    %290 = vector.extract_strided_slice %280 {offsets = [0, 2], sizes = [128, 1], strides = [1, 1]} : vector<128x5xf32> to vector<128x1xf32>
    %291 = vector.extract_strided_slice %172 {offsets = [0, 64], sizes = [128, 32], strides = [1, 1]} : vector<128x160xf32> to vector<128x32xf32>
    %292 = vector.broadcast %290 : vector<128x1xf32> to vector<128x32xf32>
    %293 = arith.mulf %292, %291 : vector<128x32xf32>
    %294 = arith.addf %289, %293 : vector<128x32xf32>
    %295 = vector.extract_strided_slice %280 {offsets = [0, 3], sizes = [128, 1], strides = [1, 1]} : vector<128x5xf32> to vector<128x1xf32>
    %296 = vector.extract_strided_slice %172 {offsets = [0, 96], sizes = [128, 32], strides = [1, 1]} : vector<128x160xf32> to vector<128x32xf32>
    %297 = vector.broadcast %295 : vector<128x1xf32> to vector<128x32xf32>
    %298 = arith.mulf %297, %296 : vector<128x32xf32>
    %299 = arith.addf %294, %298 : vector<128x32xf32>
    %300 = vector.extract_strided_slice %280 {offsets = [0, 4], sizes = [128, 1], strides = [1, 1]} : vector<128x5xf32> to vector<128x1xf32>
    %301 = vector.extract_strided_slice %172 {offsets = [0, 128], sizes = [128, 32], strides = [1, 1]} : vector<128x160xf32> to vector<128x32xf32>
    %302 = vector.broadcast %300 : vector<128x1xf32> to vector<128x32xf32>
    %303 = arith.mulf %302, %301 : vector<128x32xf32>
    %304 = arith.addf %299, %303 : vector<128x32xf32>
    %305 = vector.broadcast %4 : f32 to vector<128x32xf32>
    %306 = arith.mulf %305, %304 : vector<128x32xf32>
    %307 = vector.extract_strided_slice %156 {offsets = [0, 64], sizes = [128, 32], strides = [1, 1]} : vector<128x160xf32> to vector<128x32xf32>
    %308 = arith.addf %306, %307 : vector<128x32xf32>
    %309 = vector.extract_strided_slice %162 {offsets = [0, 24], sizes = [128, 8], strides = [1, 1]} : vector<128x40xf32> to vector<128x8xf32>
    %310 = tpu.concatenate %309, %309, %309, %309, %309 in 1 : vector<128x8xf32>, vector<128x8xf32>, vector<128x8xf32>, vector<128x8xf32>, vector<128x8xf32> -> vector<128x40xf32>
    %311 = arith.mulf %167, %310 : vector<128x40xf32>
    %312 = arith.truncf %311 : vector<128x40xf32> to vector<128x40xbf16>
    %cst_96 = arith.constant dense<0.000000e+00> : vector<128x5xf32>
    %313 = tpu.matmul %312, %173, %cst_96 {dimension_numbers = #tpu.dot_dimension_numbers<[1], [0], [0], [1], [0, 0, 1, 1], [], []>} : vector<128x40xbf16>, vector<40x5xbf16>, vector<128x5xf32> -> vector<128x5xf32>
    %cst_97 = arith.constant 0.353553385 : f32
    %314 = vector.broadcast %cst_97 : f32 to vector<128x5xf32>
    %315 = arith.mulf %313, %314 : vector<128x5xf32>
    %cst_98 = arith.constant dense<0xFF800000> : vector<128xf32>
    %316 = vector.multi_reduction <maximumf>, %315, %cst_98 [1] : vector<128x5xf32> to vector<128xf32>
    %317 = vector.shape_cast %316 : vector<128xf32> to vector<128x1xf32>
    %318 = vector.broadcast %317 : vector<128x1xf32> to vector<128x5xf32>
    %319 = arith.subf %315, %318 : vector<128x5xf32>
    %320 = math.exp %319 : vector<128x5xf32>
    %cst_99 = arith.constant dense<0.000000e+00> : vector<128xf32>
    %321 = vector.multi_reduction <add>, %320, %cst_99 [1] : vector<128x5xf32> to vector<128xf32>
    %322 = vector.shape_cast %321 : vector<128xf32> to vector<128x1xf32>
    %323 = tpu.reciprocal %322 {approx = true} : vector<128x1xf32> -> vector<128x1xf32>
    %324 = vector.broadcast %323 : vector<128x1xf32> to vector<128x5xf32>
    %325 = arith.mulf %320, %324 : vector<128x5xf32>
    %326 = vector.extract_strided_slice %325 {offsets = [0, 0], sizes = [128, 1], strides = [1, 1]} : vector<128x5xf32> to vector<128x1xf32>
    %327 = vector.extract_strided_slice %172 {offsets = [0, 0], sizes = [128, 32], strides = [1, 1]} : vector<128x160xf32> to vector<128x32xf32>
    %328 = vector.broadcast %326 : vector<128x1xf32> to vector<128x32xf32>
    %329 = arith.mulf %328, %327 : vector<128x32xf32>
    %330 = vector.extract_strided_slice %325 {offsets = [0, 1], sizes = [128, 1], strides = [1, 1]} : vector<128x5xf32> to vector<128x1xf32>
    %331 = vector.extract_strided_slice %172 {offsets = [0, 32], sizes = [128, 32], strides = [1, 1]} : vector<128x160xf32> to vector<128x32xf32>
    %332 = vector.broadcast %330 : vector<128x1xf32> to vector<128x32xf32>
    %333 = arith.mulf %332, %331 : vector<128x32xf32>
    %334 = arith.addf %329, %333 : vector<128x32xf32>
    %335 = vector.extract_strided_slice %325 {offsets = [0, 2], sizes = [128, 1], strides = [1, 1]} : vector<128x5xf32> to vector<128x1xf32>
    %336 = vector.extract_strided_slice %172 {offsets = [0, 64], sizes = [128, 32], strides = [1, 1]} : vector<128x160xf32> to vector<128x32xf32>
    %337 = vector.broadcast %335 : vector<128x1xf32> to vector<128x32xf32>
    %338 = arith.mulf %337, %336 : vector<128x32xf32>
    %339 = arith.addf %334, %338 : vector<128x32xf32>
    %340 = vector.extract_strided_slice %325 {offsets = [0, 3], sizes = [128, 1], strides = [1, 1]} : vector<128x5xf32> to vector<128x1xf32>
    %341 = vector.extract_strided_slice %172 {offsets = [0, 96], sizes = [128, 32], strides = [1, 1]} : vector<128x160xf32> to vector<128x32xf32>
    %342 = vector.broadcast %340 : vector<128x1xf32> to vector<128x32xf32>
    %343 = arith.mulf %342, %341 : vector<128x32xf32>
    %344 = arith.addf %339, %343 : vector<128x32xf32>
    %345 = vector.extract_strided_slice %325 {offsets = [0, 4], sizes = [128, 1], strides = [1, 1]} : vector<128x5xf32> to vector<128x1xf32>
    %346 = vector.extract_strided_slice %172 {offsets = [0, 128], sizes = [128, 32], strides = [1, 1]} : vector<128x160xf32> to vector<128x32xf32>
    %347 = vector.broadcast %345 : vector<128x1xf32> to vector<128x32xf32>
    %348 = arith.mulf %347, %346 : vector<128x32xf32>
    %349 = arith.addf %344, %348 : vector<128x32xf32>
    %350 = vector.broadcast %4 : f32 to vector<128x32xf32>
    %351 = arith.mulf %350, %349 : vector<128x32xf32>
    %352 = vector.extract_strided_slice %156 {offsets = [0, 96], sizes = [128, 32], strides = [1, 1]} : vector<128x160xf32> to vector<128x32xf32>
    %353 = arith.addf %351, %352 : vector<128x32xf32>
    %354 = vector.extract_strided_slice %162 {offsets = [0, 32], sizes = [128, 8], strides = [1, 1]} : vector<128x40xf32> to vector<128x8xf32>
    %355 = tpu.concatenate %354, %354, %354, %354, %354 in 1 : vector<128x8xf32>, vector<128x8xf32>, vector<128x8xf32>, vector<128x8xf32>, vector<128x8xf32> -> vector<128x40xf32>
    %356 = arith.mulf %167, %355 : vector<128x40xf32>
    %357 = arith.truncf %356 : vector<128x40xf32> to vector<128x40xbf16>
    %cst_100 = arith.constant dense<0.000000e+00> : vector<128x5xf32>
    %358 = tpu.matmul %357, %173, %cst_100 {dimension_numbers = #tpu.dot_dimension_numbers<[1], [0], [0], [1], [0, 0, 1, 1], [], []>} : vector<128x40xbf16>, vector<40x5xbf16>, vector<128x5xf32> -> vector<128x5xf32>
    %cst_101 = arith.constant 0.353553385 : f32
    %359 = vector.broadcast %cst_101 : f32 to vector<128x5xf32>
    %360 = arith.mulf %358, %359 : vector<128x5xf32>
    %cst_102 = arith.constant dense<0xFF800000> : vector<128xf32>
    %361 = vector.multi_reduction <maximumf>, %360, %cst_102 [1] : vector<128x5xf32> to vector<128xf32>
    %362 = vector.shape_cast %361 : vector<128xf32> to vector<128x1xf32>
    %363 = vector.broadcast %362 : vector<128x1xf32> to vector<128x5xf32>
    %364 = arith.subf %360, %363 : vector<128x5xf32>
    %365 = math.exp %364 : vector<128x5xf32>
    %cst_103 = arith.constant dense<0.000000e+00> : vector<128xf32>
    %366 = vector.multi_reduction <add>, %365, %cst_103 [1] : vector<128x5xf32> to vector<128xf32>
    %367 = vector.shape_cast %366 : vector<128xf32> to vector<128x1xf32>
    %368 = tpu.reciprocal %367 {approx = true} : vector<128x1xf32> -> vector<128x1xf32>
    %369 = vector.broadcast %368 : vector<128x1xf32> to vector<128x5xf32>
    %370 = arith.mulf %365, %369 : vector<128x5xf32>
    %371 = vector.extract_strided_slice %370 {offsets = [0, 0], sizes = [128, 1], strides = [1, 1]} : vector<128x5xf32> to vector<128x1xf32>
    %372 = vector.extract_strided_slice %172 {offsets = [0, 0], sizes = [128, 32], strides = [1, 1]} : vector<128x160xf32> to vector<128x32xf32>
    %373 = vector.broadcast %371 : vector<128x1xf32> to vector<128x32xf32>
    %374 = arith.mulf %373, %372 : vector<128x32xf32>
    %375 = vector.extract_strided_slice %370 {offsets = [0, 1], sizes = [128, 1], strides = [1, 1]} : vector<128x5xf32> to vector<128x1xf32>
    %376 = vector.extract_strided_slice %172 {offsets = [0, 32], sizes = [128, 32], strides = [1, 1]} : vector<128x160xf32> to vector<128x32xf32>
    %377 = vector.broadcast %375 : vector<128x1xf32> to vector<128x32xf32>
    %378 = arith.mulf %377, %376 : vector<128x32xf32>
    %379 = arith.addf %374, %378 : vector<128x32xf32>
    %380 = vector.extract_strided_slice %370 {offsets = [0, 2], sizes = [128, 1], strides = [1, 1]} : vector<128x5xf32> to vector<128x1xf32>
    %381 = vector.extract_strided_slice %172 {offsets = [0, 64], sizes = [128, 32], strides = [1, 1]} : vector<128x160xf32> to vector<128x32xf32>
    %382 = vector.broadcast %380 : vector<128x1xf32> to vector<128x32xf32>
    %383 = arith.mulf %382, %381 : vector<128x32xf32>
    %384 = arith.addf %379, %383 : vector<128x32xf32>
    %385 = vector.extract_strided_slice %370 {offsets = [0, 3], sizes = [128, 1], strides = [1, 1]} : vector<128x5xf32> to vector<128x1xf32>
    %386 = vector.extract_strided_slice %172 {offsets = [0, 96], sizes = [128, 32], strides = [1, 1]} : vector<128x160xf32> to vector<128x32xf32>
    %387 = vector.broadcast %385 : vector<128x1xf32> to vector<128x32xf32>
    %388 = arith.mulf %387, %386 : vector<128x32xf32>
    %389 = arith.addf %384, %388 : vector<128x32xf32>
    %390 = vector.extract_strided_slice %370 {offsets = [0, 4], sizes = [128, 1], strides = [1, 1]} : vector<128x5xf32> to vector<128x1xf32>
    %391 = vector.extract_strided_slice %172 {offsets = [0, 128], sizes = [128, 32], strides = [1, 1]} : vector<128x160xf32> to vector<128x32xf32>
    %392 = vector.broadcast %390 : vector<128x1xf32> to vector<128x32xf32>
    %393 = arith.mulf %392, %391 : vector<128x32xf32>
    %394 = arith.addf %389, %393 : vector<128x32xf32>
    %395 = vector.broadcast %4 : f32 to vector<128x32xf32>
    %396 = arith.mulf %395, %394 : vector<128x32xf32>
    %397 = vector.extract_strided_slice %156 {offsets = [0, 128], sizes = [128, 32], strides = [1, 1]} : vector<128x160xf32> to vector<128x32xf32>
    %398 = arith.addf %396, %397 : vector<128x32xf32>
    %399 = tpu.concatenate %218, %263, %308, %353, %398 in 1 : vector<128x32xf32>, vector<128x32xf32>, vector<128x32xf32>, vector<128x32xf32>, vector<128x32xf32> -> vector<128x160xf32>
    %400 = arith.truncf %399 : vector<128x160xf32> to vector<128x160xbf16>
    %c0_104 = arith.constant 0 : index
    %c0_105 = arith.constant 0 : index
    %401 = vector.load %arg28[%c0_104, %c0_105] : memref<160x32xbf16, #tpu.memory_space<vmem>>, vector<160x32xbf16>
    %cst_106 = arith.constant dense<0.000000e+00> : vector<128x32xf32>
    %402 = tpu.matmul %400, %401, %cst_106 {dimension_numbers = #tpu.dot_dimension_numbers<[1], [0], [0], [1], [0, 0, 1, 1], [], []>} : vector<128x160xbf16>, vector<160x32xbf16>, vector<128x32xf32> -> vector<128x32xf32>
    %c0_107 = arith.constant 0 : index
    %c0_108 = arith.constant 0 : index
    %403 = vector.load %arg29[%c0_107, %c0_108] : memref<1x32xf32, #tpu.memory_space<vmem>>, vector<1x32xf32>
    %404 = vector.broadcast %403 : vector<1x32xf32> to vector<128x32xf32>
    %405 = arith.addf %402, %404 : vector<128x32xf32>
    %c0_109 = arith.constant 0 : index
    %c0_110 = arith.constant 0 : index
    %406 = vector.load %arg3[%c0_109, %c0_110] : memref<128x32xbf16, #tpu.memory_space<vmem>>, vector<128x32xbf16>
    %c0_111 = arith.constant 0 : index
    %c0_112 = arith.constant 0 : index
    %407 = vector.load %arg30[%c0_111, %c0_112] : memref<32x32xbf16, #tpu.memory_space<vmem>>, vector<32x32xbf16>
    %cst_113 = arith.constant dense<0.000000e+00> : vector<128x32xf32>
    %408 = tpu.matmul %406, %407, %cst_113 {dimension_numbers = #tpu.dot_dimension_numbers<[1], [0], [0], [1], [0, 0, 1, 1], [], []>} : vector<128x32xbf16>, vector<32x32xbf16>, vector<128x32xf32> -> vector<128x32xf32>
    %409 = arith.addf %405, %408 : vector<128x32xf32>
    %cst_114 = arith.constant 0.000000e+00 : f32
    %410 = vector.broadcast %cst_114 : f32 to vector<128x32xf32>
    %411 = arith.cmpf oge, %409, %410 : vector<128x32xf32>
    %412 = vector.broadcast %5 : f32 to vector<128x32xf32>
    %413 = arith.mulf %412, %409 : vector<128x32xf32>
    %414 = arith.select %411, %409, %413 : vector<128x32xi1>, vector<128x32xf32>
    %415 = arith.truncf %414 : vector<128x32xf32> to vector<128x32xbf16>
    %c0_115 = arith.constant 0 : index
    %c0_116 = arith.constant 0 : index
    %416 = vector.load %arg31[%c0_115, %c0_116] : memref<32x32xbf16, #tpu.memory_space<vmem>>, vector<32x32xbf16>
    %cst_117 = arith.constant dense<0.000000e+00> : vector<128x32xf32>
    %417 = tpu.matmul %415, %416, %cst_117 {dimension_numbers = #tpu.dot_dimension_numbers<[1], [0], [0], [1], [0, 0, 1, 1], [], []>} : vector<128x32xbf16>, vector<32x32xbf16>, vector<128x32xf32> -> vector<128x32xf32>
    %c0_118 = arith.constant 0 : index
    %c0_119 = arith.constant 0 : index
    %418 = vector.load %arg32[%c0_118, %c0_119] : memref<1x32xf32, #tpu.memory_space<vmem>>, vector<1x32xf32>
    %419 = vector.broadcast %418 : vector<1x32xf32> to vector<128x32xf32>
    %420 = arith.mulf %417, %419 : vector<128x32xf32>
    %c0_120 = arith.constant 0 : index
    %c0_121 = arith.constant 0 : index
    %421 = vector.load %arg33[%c0_120, %c0_121] : memref<1x32xf32, #tpu.memory_space<vmem>>, vector<1x32xf32>
    %422 = vector.broadcast %421 : vector<1x32xf32> to vector<128x32xf32>
    %423 = arith.addf %420, %422 : vector<128x32xf32>
    %cst_122 = arith.constant 0.000000e+00 : f32
    %424 = vector.broadcast %cst_122 : f32 to vector<128x32xf32>
    %425 = arith.cmpf oge, %423, %424 : vector<128x32xf32>
    %426 = vector.broadcast %6 : f32 to vector<128x32xf32>
    %427 = arith.mulf %426, %423 : vector<128x32xf32>
    %428 = arith.select %425, %423, %427 : vector<128x32xi1>, vector<128x32xf32>
    %429 = arith.truncf %428 : vector<128x32xf32> to vector<128x32xbf16>
    %c0_123 = arith.constant 0 : index
    %c0_124 = arith.constant 0 : index
    %430 = vector.load %arg34[%c0_123, %c0_124] : memref<32x128xbf16, #tpu.memory_space<vmem>>, vector<32x128xbf16>
    %cst_125 = arith.constant dense<0.000000e+00> : vector<128x128xf32>
    %431 = tpu.matmul %429, %430, %cst_125 {dimension_numbers = #tpu.dot_dimension_numbers<[1], [0], [0], [1], [0, 0, 1, 1], [], []>} : vector<128x32xbf16>, vector<32x128xbf16>, vector<128x128xf32> -> vector<128x128xf32>
    %c0_126 = arith.constant 0 : index
    %c0_127 = arith.constant 0 : index
    %432 = vector.load %arg35[%c0_126, %c0_127] : memref<1x128xf32, #tpu.memory_space<vmem>>, vector<1x128xf32>
    %433 = vector.broadcast %432 : vector<1x128xf32> to vector<128x128xf32>
    %434 = arith.mulf %431, %433 : vector<128x128xf32>
    %c0_128 = arith.constant 0 : index
    %c0_129 = arith.constant 0 : index
    %435 = vector.load %arg36[%c0_128, %c0_129] : memref<1x128xf32, #tpu.memory_space<vmem>>, vector<1x128xf32>
    %436 = vector.broadcast %435 : vector<1x128xf32> to vector<128x128xf32>
    %437 = arith.addf %434, %436 : vector<128x128xf32>
    %c0_130 = arith.constant 0 : index
    %c0_131 = arith.constant 0 : index
    %438 = vector.load %arg4[%c0_130, %c0_131] : memref<128x8xbf16, #tpu.memory_space<vmem>>, vector<128x8xbf16>
    %c0_132 = arith.constant 0 : index
    %c0_133 = arith.constant 0 : index
    %439 = vector.load %arg37[%c0_132, %c0_133] : memref<8x32xbf16, #tpu.memory_space<vmem>>, vector<8x32xbf16>
    %cst_134 = arith.constant dense<0.000000e+00> : vector<128x32xf32>
    %440 = tpu.matmul %438, %439, %cst_134 {dimension_numbers = #tpu.dot_dimension_numbers<[1], [0], [0], [1], [0, 0, 1, 1], [], []>} : vector<128x8xbf16>, vector<8x32xbf16>, vector<128x32xf32> -> vector<128x32xf32>
    %c0_135 = arith.constant 0 : index
    %c0_136 = arith.constant 0 : index
    %441 = vector.load %arg38[%c0_135, %c0_136] : memref<1x32xf32, #tpu.memory_space<vmem>>, vector<1x32xf32>
    %442 = vector.broadcast %441 : vector<1x32xf32> to vector<128x32xf32>
    %443 = arith.mulf %440, %442 : vector<128x32xf32>
    %c0_137 = arith.constant 0 : index
    %c0_138 = arith.constant 0 : index
    %444 = vector.load %arg39[%c0_137, %c0_138] : memref<1x32xf32, #tpu.memory_space<vmem>>, vector<1x32xf32>
    %445 = vector.broadcast %444 : vector<1x32xf32> to vector<128x32xf32>
    %446 = arith.addf %443, %445 : vector<128x32xf32>
    %cst_139 = arith.constant 0.000000e+00 : f32
    %447 = vector.broadcast %cst_139 : f32 to vector<128x32xf32>
    %448 = arith.cmpf oge, %446, %447 : vector<128x32xf32>
    %449 = vector.broadcast %7 : f32 to vector<128x32xf32>
    %450 = arith.mulf %449, %446 : vector<128x32xf32>
    %451 = arith.select %448, %446, %450 : vector<128x32xi1>, vector<128x32xf32>
    %452 = arith.truncf %451 : vector<128x32xf32> to vector<128x32xbf16>
    %c0_140 = arith.constant 0 : index
    %c0_141 = arith.constant 0 : index
    %453 = vector.load %arg40[%c0_140, %c0_141] : memref<32x128xbf16, #tpu.memory_space<vmem>>, vector<32x128xbf16>
    %cst_142 = arith.constant dense<0.000000e+00> : vector<128x128xf32>
    %454 = tpu.matmul %452, %453, %cst_142 {dimension_numbers = #tpu.dot_dimension_numbers<[1], [0], [0], [1], [0, 0, 1, 1], [], []>} : vector<128x32xbf16>, vector<32x128xbf16>, vector<128x128xf32> -> vector<128x128xf32>
    %c0_143 = arith.constant 0 : index
    %c0_144 = arith.constant 0 : index
    %455 = vector.load %arg41[%c0_143, %c0_144] : memref<1x128xf32, #tpu.memory_space<vmem>>, vector<1x128xf32>
    %456 = vector.broadcast %455 : vector<1x128xf32> to vector<128x128xf32>
    %457 = arith.addf %454, %456 : vector<128x128xf32>
    %458 = arith.addf %437, %457 : vector<128x128xf32>
    %c0_145 = arith.constant 0 : index
    %c0_146 = arith.constant 0 : index
    %459 = vector.load %arg43[%c0_145, %c0_146] : memref<128x128xf32, #tpu.memory_space<vmem>>, vector<128x128xf32>
    tpu.vector_store %arg43[%c0_145, %c0_146], %458 {strides = array<i32>} : memref<128x128xf32, #tpu.memory_space<vmem>>, vector<128x128xf32>,
    return
  }
  func.func @transform_0(%arg0: i32) -> (i32, i32) {
    %c0_i32 = arith.constant 0 : i32
    %c0_i32_0 = arith.constant 0 : i32
    return %arg0, %c0_i32 : i32, i32
  }
  func.func @transform_1(%arg0: i32) -> (i32, i32) {
    %c0_i32 = arith.constant 0 : i32
    %c0_i32_0 = arith.constant 0 : i32
    return %arg0, %c0_i32 : i32, i32
  }
  func.func @transform_2(%arg0: i32) -> (i32, i32) {
    %c0_i32 = arith.constant 0 : i32
    %c0_i32_0 = arith.constant 0 : i32
    return %arg0, %c0_i32 : i32, i32
  }
  func.func @transform_3(%arg0: i32) -> (i32, i32) {
    %c0_i32 = arith.constant 0 : i32
    %c0_i32_0 = arith.constant 0 : i32
    return %arg0, %c0_i32 : i32, i32
  }
  func.func @transform_4(%arg0: i32) -> (i32, i32) {
    %c0_i32 = arith.constant 0 : i32
    %c0_i32_0 = arith.constant 0 : i32
    %c0_i32_1 = arith.constant 0 : i32
    return %c0_i32, %c0_i32_0 : i32, i32
  }
  func.func @transform_5(%arg0: i32) -> (i32, i32) {
    %c0_i32 = arith.constant 0 : i32
    %c0_i32_0 = arith.constant 0 : i32
    %c0_i32_1 = arith.constant 0 : i32
    return %c0_i32, %c0_i32_0 : i32, i32
  }
  func.func @transform_6(%arg0: i32) -> (i32, i32) {
    %c0_i32 = arith.constant 0 : i32
    %c0_i32_0 = arith.constant 0 : i32
    %c0_i32_1 = arith.constant 0 : i32
    return %c0_i32, %c0_i32_0 : i32, i32
  }
  func.func @transform_7(%arg0: i32) -> (i32, i32) {
    %c0_i32 = arith.constant 0 : i32
    %c0_i32_0 = arith.constant 0 : i32
    %c0_i32_1 = arith.constant 0 : i32
    return %c0_i32, %c0_i32_0 : i32, i32
  }
  func.func @transform_8(%arg0: i32) -> (i32, i32) {
    %c0_i32 = arith.constant 0 : i32
    %c0_i32_0 = arith.constant 0 : i32
    %c0_i32_1 = arith.constant 0 : i32
    return %c0_i32, %c0_i32_0 : i32, i32
  }
  func.func @transform_9(%arg0: i32) -> (i32, i32) {
    %c0_i32 = arith.constant 0 : i32
    %c0_i32_0 = arith.constant 0 : i32
    %c0_i32_1 = arith.constant 0 : i32
    return %c0_i32, %c0_i32_0 : i32, i32
  }
  func.func @transform_10(%arg0: i32) -> (i32, i32) {
    %c0_i32 = arith.constant 0 : i32
    %c0_i32_0 = arith.constant 0 : i32
    %c0_i32_1 = arith.constant 0 : i32
    return %c0_i32, %c0_i32_0 : i32, i32
  }
  func.func @transform_11(%arg0: i32) -> (i32, i32) {
    %c0_i32 = arith.constant 0 : i32
    %c0_i32_0 = arith.constant 0 : i32
    %c0_i32_1 = arith.constant 0 : i32
    return %c0_i32, %c0_i32_0 : i32, i32
  }
  func.func @transform_12(%arg0: i32) -> (i32, i32) {
    %c0_i32 = arith.constant 0 : i32
    %c0_i32_0 = arith.constant 0 : i32
    %c0_i32_1 = arith.constant 0 : i32
    return %c0_i32, %c0_i32_0 : i32, i32
  }
  func.func @transform_13(%arg0: i32) -> (i32, i32) {
    %c0_i32 = arith.constant 0 : i32
    %c0_i32_0 = arith.constant 0 : i32
    %c0_i32_1 = arith.constant 0 : i32
    return %c0_i32, %c0_i32_0 : i32, i32
  }
  func.func @transform_14(%arg0: i32) -> (i32, i32) {
    %c0_i32 = arith.constant 0 : i32
    %c0_i32_0 = arith.constant 0 : i32
    %c0_i32_1 = arith.constant 0 : i32
    return %c0_i32, %c0_i32_0 : i32, i32
  }
  func.func @transform_15(%arg0: i32) -> (i32, i32) {
    %c0_i32 = arith.constant 0 : i32
    %c0_i32_0 = arith.constant 0 : i32
    %c0_i32_1 = arith.constant 0 : i32
    return %c0_i32, %c0_i32_0 : i32, i32
  }
  func.func @transform_16(%arg0: i32) -> (i32, i32) {
    %c0_i32 = arith.constant 0 : i32
    %c0_i32_0 = arith.constant 0 : i32
    %c0_i32_1 = arith.constant 0 : i32
    return %c0_i32, %c0_i32_0 : i32, i32
  }
  func.func @transform_17(%arg0: i32) -> (i32, i32) {
    %c0_i32 = arith.constant 0 : i32
    %c0_i32_0 = arith.constant 0 : i32
    %c0_i32_1 = arith.constant 0 : i32
    return %c0_i32, %c0_i32_0 : i32, i32
  }
  func.func @transform_18(%arg0: i32) -> (i32, i32) {
    %c0_i32 = arith.constant 0 : i32
    %c0_i32_0 = arith.constant 0 : i32
    %c0_i32_1 = arith.constant 0 : i32
    return %c0_i32, %c0_i32_0 : i32, i32
  }
  func.func @transform_19(%arg0: i32) -> (i32, i32) {
    %c0_i32 = arith.constant 0 : i32
    %c0_i32_0 = arith.constant 0 : i32
    %c0_i32_1 = arith.constant 0 : i32
    return %c0_i32, %c0_i32_0 : i32, i32
  }
  func.func @transform_20(%arg0: i32) -> (i32, i32) {
    %c0_i32 = arith.constant 0 : i32
    %c0_i32_0 = arith.constant 0 : i32
    %c0_i32_1 = arith.constant 0 : i32
    return %c0_i32, %c0_i32_0 : i32, i32
  }
  func.func @transform_21(%arg0: i32) -> (i32, i32) {
    %c0_i32 = arith.constant 0 : i32
    %c0_i32_0 = arith.constant 0 : i32
    %c0_i32_1 = arith.constant 0 : i32
    return %c0_i32, %c0_i32_0 : i32, i32
  }
  func.func @transform_22(%arg0: i32) -> (i32, i32) {
    %c0_i32 = arith.constant 0 : i32
    %c0_i32_0 = arith.constant 0 : i32
    %c0_i32_1 = arith.constant 0 : i32
    return %c0_i32, %c0_i32_0 : i32, i32
  }
  func.func @transform_23(%arg0: i32) -> (i32, i32) {
    %c0_i32 = arith.constant 0 : i32
    %c0_i32_0 = arith.constant 0 : i32
    %c0_i32_1 = arith.constant 0 : i32
    return %c0_i32, %c0_i32_0 : i32, i32
  }
  func.func @transform_24(%arg0: i32) -> (i32, i32) {
    %c0_i32 = arith.constant 0 : i32
    %c0_i32_0 = arith.constant 0 : i32
    %c0_i32_1 = arith.constant 0 : i32
    return %c0_i32, %c0_i32_0 : i32, i32
  }
  func.func @transform_25(%arg0: i32) -> (i32, i32) {
    %c0_i32 = arith.constant 0 : i32
    %c0_i32_0 = arith.constant 0 : i32
    %c0_i32_1 = arith.constant 0 : i32
    return %c0_i32, %c0_i32_0 : i32, i32
  }
  func.func @transform_26(%arg0: i32) -> (i32, i32) {
    %c0_i32 = arith.constant 0 : i32
    %c0_i32_0 = arith.constant 0 : i32
    %c0_i32_1 = arith.constant 0 : i32
    return %c0_i32, %c0_i32_0 : i32, i32
  }
  func.func @transform_27(%arg0: i32) -> (i32, i32) {
    %c0_i32 = arith.constant 0 : i32
    %c0_i32_0 = arith.constant 0 : i32
    %c0_i32_1 = arith.constant 0 : i32
    return %c0_i32, %c0_i32_0 : i32, i32
  }
  func.func @transform_28(%arg0: i32) -> (i32, i32) {
    %c0_i32 = arith.constant 0 : i32
    %c0_i32_0 = arith.constant 0 : i32
    %c0_i32_1 = arith.constant 0 : i32
    return %c0_i32, %c0_i32_0 : i32, i32
  }
  func.func @transform_29(%arg0: i32) -> (i32, i32) {
    %c0_i32 = arith.constant 0 : i32
    %c0_i32_0 = arith.constant 0 : i32
    %c0_i32_1 = arith.constant 0 : i32
    return %c0_i32, %c0_i32_0 : i32, i32
  }
  func.func @transform_30(%arg0: i32) -> (i32, i32) {
    %c0_i32 = arith.constant 0 : i32
    %c0_i32_0 = arith.constant 0 : i32
    %c0_i32_1 = arith.constant 0 : i32
    return %c0_i32, %c0_i32_0 : i32, i32
  }
  func.func @transform_31(%arg0: i32) -> (i32, i32) {
    %c0_i32 = arith.constant 0 : i32
    %c0_i32_0 = arith.constant 0 : i32
    %c0_i32_1 = arith.constant 0 : i32
    return %c0_i32, %c0_i32_0 : i32, i32
  }
  func.func @transform_32(%arg0: i32) -> (i32, i32) {
    %c0_i32 = arith.constant 0 : i32
    %c0_i32_0 = arith.constant 0 : i32
    %c0_i32_1 = arith.constant 0 : i32
    return %c0_i32, %c0_i32_0 : i32, i32
  }
  func.func @transform_33(%arg0: i32) -> (i32, i32) {
    %c0_i32 = arith.constant 0 : i32
    %c0_i32_0 = arith.constant 0 : i32
    %c0_i32_1 = arith.constant 0 : i32
    return %c0_i32, %c0_i32_0 : i32, i32
  }
  func.func @transform_34(%arg0: i32) -> (i32, i32) {
    %c0_i32 = arith.constant 0 : i32
    %c0_i32_0 = arith.constant 0 : i32
    %c0_i32_1 = arith.constant 0 : i32
    return %c0_i32, %c0_i32_0 : i32, i32
  }
  func.func @transform_35(%arg0: i32) -> (i32, i32) {
    %c0_i32 = arith.constant 0 : i32
    %c0_i32_0 = arith.constant 0 : i32
    %c0_i32_1 = arith.constant 0 : i32
    return %c0_i32, %c0_i32_0 : i32, i32
  }
  func.func @transform_36(%arg0: i32) -> (i32, i32) {
    %c0_i32 = arith.constant 0 : i32
    %c0_i32_0 = arith.constant 0 : i32
    %c0_i32_1 = arith.constant 0 : i32
    return %c0_i32, %c0_i32_0 : i32, i32
  }
  func.func @transform_37(%arg0: i32) -> (i32, i32) {
    %c0_i32 = arith.constant 0 : i32
    %c0_i32_0 = arith.constant 0 : i32
    %c0_i32_1 = arith.constant 0 : i32
    return %c0_i32, %c0_i32_0 : i32, i32
  }
  func.func @transform_38(%arg0: i32) -> (i32, i32) {
    %c0_i32 = arith.constant 0 : i32
    %c0_i32_0 = arith.constant 0 : i32
    %c0_i32_1 = arith.constant 0 : i32
    return %c0_i32, %c0_i32_0 : i32, i32
  }
  func.func @transform_39(%arg0: i32) -> (i32, i32) {
    %c0_i32 = arith.constant 0 : i32
    %c0_i32_0 = arith.constant 0 : i32
    %c0_i32_1 = arith.constant 0 : i32
    return %c0_i32, %c0_i32_0 : i32, i32
  }
  func.func @transform_40(%arg0: i32) -> (i32, i32) {
    %c0_i32 = arith.constant 0 : i32
    %c0_i32_0 = arith.constant 0 : i32
    %c0_i32_1 = arith.constant 0 : i32
    return %c0_i32, %c0_i32_0 : i32, i32
  }
  func.func @transform_41(%arg0: i32) -> i32 {
    %c0_i32 = arith.constant 0 : i32
    %c0_i32_0 = arith.constant 0 : i32
    return %c0_i32 : i32
  }
  func.func @transform_42(%arg0: i32) -> (i32, i32) {
    %c0_i32 = arith.constant 0 : i32
    %c0_i32_0 = arith.constant 0 : i32
    return %arg0, %c0_i32 : i32, i32
  }
}

</mosaic_0001>

<llo_original>
// kernel: tpu_custom_call.1
$region0: #{tpu_custom_call.1}
  #allocation0 [shape = 'u32[]', space=smem, size = 0x4, offset = 0x4, fixed_abs, tag = 'smem constant byte address 0x4 - core index']
  #allocation1 [shape = 'u32[72,128]{1,0:T(1,128)}', space=vmem, size = 0x9000, scoped, tag = 'internal scratch']
  %s0 = inlined_call_operand.smem [shape: u32[43], index: -1, kind: input, shape index: {}]
  %s1 = sld [smem:[%s0]]
  %s2 = scalar_lea.smem %s0, 1
  %s3 = sld [smem:[%s2]]
  %s4 = scalar_lea.smem %s0, 2
  %s5 = sld [smem:[%s4]]
  %s6 = scalar_lea.smem %s0, 3
  %s7 = sld [smem:[%s6]]
  %s8 = scalar_lea.smem %s0, 4
  %s9 = sld [smem:[%s8]]
  %s10 = scalar_lea.smem %s0, 5
  %s11 = sld [smem:[%s10]]
  %s12 = scalar_lea.smem %s0, 6
  %s13 = sld [smem:[%s12]]
  %s14 = scalar_lea.smem %s0, 7
  %s15 = sld [smem:[%s14]]
  %s16 = scalar_lea.smem %s0, 8
  %s17 = sld [smem:[%s16]]
  %s18 = scalar_lea.smem %s0, 9
  %s19 = sld [smem:[%s18]]
  %s20 = scalar_lea.smem %s0, 10
  %s21 = sld [smem:[%s20]]
  %s22 = scalar_lea.smem %s0, 11
  %s23 = sld [smem:[%s22]]
  %s24 = scalar_lea.smem %s0, 12
  %s25 = sld [smem:[%s24]]
  %s26 = scalar_lea.smem %s0, 13
  %s27 = sld [smem:[%s26]]
  %s28 = scalar_lea.smem %s0, 14
  %s29 = sld [smem:[%s28]]
  %s30 = scalar_lea.smem %s0, 15
  %s31 = sld [smem:[%s30]]
  %s32 = scalar_lea.smem %s0, 16
  %s33 = sld [smem:[%s32]]
  %s34 = scalar_lea.smem %s0, 17
  %s35 = sld [smem:[%s34]]
  %s36 = scalar_lea.smem %s0, 18
  %s37 = sld [smem:[%s36]]
  %s38 = scalar_lea.smem %s0, 19
  %s39 = sld [smem:[%s38]]
  %s40 = scalar_lea.smem %s0, 20
  %s41 = sld [smem:[%s40]]
  %s42 = scalar_lea.smem %s0, 21
  %s43 = sld [smem:[%s42]]
  %s44 = scalar_lea.smem %s0, 22
  %s45 = sld [smem:[%s44]]
  %s46 = scalar_lea.smem %s0, 23
  %s47 = sld [smem:[%s46]]
  %s48 = scalar_lea.smem %s0, 24
  %s49 = sld [smem:[%s48]]
  %s50 = scalar_lea.smem %s0, 25
  %s51 = sld [smem:[%s50]]
  %s52 = scalar_lea.smem %s0, 26
  %s53 = sld [smem:[%s52]]
  %s54 = scalar_lea.smem %s0, 27
  %s55 = sld [smem:[%s54]]
  %s56 = scalar_lea.smem %s0, 28
  %s57 = sld [smem:[%s56]]
  %s58 = scalar_lea.smem %s0, 29
  %s59 = sld [smem:[%s58]]
  %s60 = scalar_lea.smem %s0, 30
  %s61 = sld [smem:[%s60]]
  %s62 = scalar_lea.smem %s0, 31
  %s63 = sld [smem:[%s62]]
  %s64 = scalar_lea.smem %s0, 32
  %s65 = sld [smem:[%s64]]
  %s66 = scalar_lea.smem %s0, 33
  %s67 = sld [smem:[%s66]]
  %s68 = scalar_lea.smem %s0, 34
  %s69 = sld [smem:[%s68]]
  %s70 = scalar_lea.smem %s0, 35
  %s71 = sld [smem:[%s70]]
  %s72 = scalar_lea.smem %s0, 36
  %s73 = sld [smem:[%s72]]
  %s74 = scalar_lea.smem %s0, 37
  %s75 = sld [smem:[%s74]]
  %s76 = scalar_lea.smem %s0, 38
  %s77 = sld [smem:[%s76]]
  %s78 = scalar_lea.smem %s0, 39
  %s79 = sld [smem:[%s78]]
  %s80 = scalar_lea.smem %s0, 40
  %s81 = sld [smem:[%s80]]
  %s82 = scalar_lea.smem %s0, 41
  %s83 = sld [smem:[%s82]]
  %s84 = scalar_lea.smem %s0, 42
  %s85 = sld [smem:[%s84]]
  %s86 = sld [smem:[#allocation0]]
  $region182: #{tpu_custom_call.1} parent=0
    _
  %s88 = ssub.s32 1, %s86
  %s89 = scalar_select 0, %s88, %s86
  $region1: #{tpu_custom_call.1} parent=0
    #allocation2 [shape = 'u8[512]{0}', space=smem, size = 0x200, scoped, tag = 'input window, operand 41, single buffered']
    #allocation3 [shape = 's32[1]{0}', space=sflag, size = 0x4, scoped, tag = 'scoped memory for tpu_custom_call.1']
    #allocation4 [shape = 's32[1]{0}', space=sflag, size = 0x4, scoped, tag = 'scoped memory for tpu_custom_call.1']
    #allocation5 [shape = 'u8[65536]{0}', space=vmem, size = 0x10000, scoped, tag = 'output window, operand 0, single buffered']
    %90 = vsyncpa [#allocation4], 0
    %91 = vsyncpa [#allocation3], 0
    // Predicated region
    $region2: #{tpu_custom_call.1} parent=1 // pred_check
      _
    $region3: #{tpu_custom_call.1} parent=1 // pred_check_branch
      %93 = sbr.rel (0) target = $region5
    $region4: #{tpu_custom_call.1} parent=1 // pred_region
      _
    $region5: #{tpu_custom_call.1} parent=1 // pred_fallthru
      _
    // Predicated region
    $region6: #{tpu_custom_call.1} parent=1 // pred_check
      _
    $region7: #{tpu_custom_call.1} parent=1 // pred_check_branch
      %95 = sbr.rel (0) target = $region9
    $region8: #{tpu_custom_call.1} parent=1 // pred_region
      _
    $region9: #{tpu_custom_call.1} parent=1 // pred_fallthru
      _
    // Predicated region
    $region10: #{tpu_custom_call.1} parent=1 // pred_check
      _
    $region11: #{tpu_custom_call.1} parent=1 // pred_check_branch
      %97 = sbr.rel (0) target = $region13
    $region12: #{tpu_custom_call.1} parent=1 // pred_region
      _
    $region13: #{tpu_custom_call.1} parent=1 // pred_fallthru
      _
    // Predicated region
    $region14: #{tpu_custom_call.1} parent=1 // pred_check
      _
    $region15: #{tpu_custom_call.1} parent=1 // pred_check_branch
      %99 = sbr.rel (0) target = $region17
    $region16: #{tpu_custom_call.1} parent=1 // pred_region
      _
    $region17: #{tpu_custom_call.1} parent=1 // pred_fallthru
      _
    // Predicated region
    $region18: #{tpu_custom_call.1} parent=1 // pred_check
      _
    $region19: #{tpu_custom_call.1} parent=1 // pred_check_branch
      %101 = sbr.rel (0) target = $region21
    $region20: #{tpu_custom_call.1} parent=1 // pred_region
      _
    $region21: #{tpu_custom_call.1} parent=1 // pred_fallthru
      _
    // Predicated region
    $region22: #{tpu_custom_call.1} parent=1 // pred_check
      _
    $region23: #{tpu_custom_call.1} parent=1 // pred_check_branch
      %103 = sbr.rel (0) target = $region25
    $region24: #{tpu_custom_call.1} parent=1 // pred_region
      _
    $region25: #{tpu_custom_call.1} parent=1 // pred_fallthru
      _
    // Predicated region
    $region26: #{tpu_custom_call.1} parent=1 // pred_check
      _
    $region27: #{tpu_custom_call.1} parent=1 // pred_check_branch
      %105 = sbr.rel (0) target = $region29
    $region28: #{tpu_custom_call.1} parent=1 // pred_region
      _
    $region29: #{tpu_custom_call.1} parent=1 // pred_fallthru
      _
    // Predicated region
    $region30: #{tpu_custom_call.1} parent=1 // pred_check
      _
    $region31: #{tpu_custom_call.1} parent=1 // pred_check_branch
      %107 = sbr.rel (0) target = $region33
    $region32: #{tpu_custom_call.1} parent=1 // pred_region
      _
    $region33: #{tpu_custom_call.1} parent=1 // pred_fallthru
      _
    // Predicated region
    $region34: #{tpu_custom_call.1} parent=1 // pred_check
      _
    $region35: #{tpu_custom_call.1} parent=1 // pred_check_branch
      %109 = sbr.rel (0) target = $region37
    $region36: #{tpu_custom_call.1} parent=1 // pred_region
      _
    $region37: #{tpu_custom_call.1} parent=1 // pred_fallthru
      _
    // Predicated region
    $region38: #{tpu_custom_call.1} parent=1 // pred_check
      _
    $region39: #{tpu_custom_call.1} parent=1 // pred_check_branch
      %111 = sbr.rel (0) target = $region41
    $region40: #{tpu_custom_call.1} parent=1 // pred_region
      _
    $region41: #{tpu_custom_call.1} parent=1 // pred_fallthru
      _
    // Predicated region
    $region42: #{tpu_custom_call.1} parent=1 // pred_check
      _
    $region43: #{tpu_custom_call.1} parent=1 // pred_check_branch
      %113 = sbr.rel (0) target = $region45
    $region44: #{tpu_custom_call.1} parent=1 // pred_region
      _
    $region45: #{tpu_custom_call.1} parent=1 // pred_fallthru
      _
    // Predicated region
    $region46: #{tpu_custom_call.1} parent=1 // pred_check
      _
    $region47: #{tpu_custom_call.1} parent=1 // pred_check_branch
      %115 = sbr.rel (0) target = $region49
    $region48: #{tpu_custom_call.1} parent=1 // pred_region
      _
    $region49: #{tpu_custom_call.1} parent=1 // pred_fallthru
      _
    // Predicated region
    $region50: #{tpu_custom_call.1} parent=1 // pred_check
      _
    $region51: #{tpu_custom_call.1} parent=1 // pred_check_branch
      %117 = sbr.rel (0) target = $region53
    $region52: #{tpu_custom_call.1} parent=1 // pred_region
      _
    $region53: #{tpu_custom_call.1} parent=1 // pred_fallthru
      _
    // Predicated region
    $region54: #{tpu_custom_call.1} parent=1 // pred_check
      _
    $region55: #{tpu_custom_call.1} parent=1 // pred_check_branch
      %119 = sbr.rel (0) target = $region57
    $region56: #{tpu_custom_call.1} parent=1 // pred_region
      _
    $region57: #{tpu_custom_call.1} parent=1 // pred_fallthru
      _
    // Predicated region
    $region58: #{tpu_custom_call.1} parent=1 // pred_check
      _
    $region59: #{tpu_custom_call.1} parent=1 // pred_check_branch
      %121 = sbr.rel (0) target = $region61
    $region60: #{tpu_custom_call.1} parent=1 // pred_region
      _
    $region61: #{tpu_custom_call.1} parent=1 // pred_fallthru
      _
    // Predicated region
    $region62: #{tpu_custom_call.1} parent=1 // pred_check
      _
    $region63: #{tpu_custom_call.1} parent=1 // pred_check_branch
      %123 = sbr.rel (0) target = $region65
    $region64: #{tpu_custom_call.1} parent=1 // pred_region
      _
    $region65: #{tpu_custom_call.1} parent=1 // pred_fallthru
      _
    // Predicated region
    $region66: #{tpu_custom_call.1} parent=1 // pred_check
      _
    $region67: #{tpu_custom_call.1} parent=1 // pred_check_branch
      %125 = sbr.rel (0) target = $region69
    $region68: #{tpu_custom_call.1} parent=1 // pred_region
      _
    $region69: #{tpu_custom_call.1} parent=1 // pred_fallthru
      _
    // Predicated region
    $region70: #{tpu_custom_call.1} parent=1 // pred_check
      _
    $region71: #{tpu_custom_call.1} parent=1 // pred_check_branch
      %127 = sbr.rel (0) target = $region73
    $region72: #{tpu_custom_call.1} parent=1 // pred_region
      _
    $region73: #{tpu_custom_call.1} parent=1 // pred_fallthru
      _
    // Predicated region
    $region74: #{tpu_custom_call.1} parent=1 // pred_check
      _
    $region75: #{tpu_custom_call.1} parent=1 // pred_check_branch
      %129 = sbr.rel (0) target = $region77
    $region76: #{tpu_custom_call.1} parent=1 // pred_region
      _
    $region77: #{tpu_custom_call.1} parent=1 // pred_fallthru
      _
    // Predicated region
    $region78: #{tpu_custom_call.1} parent=1 // pred_check
      _
    $region79: #{tpu_custom_call.1} parent=1 // pred_check_branch
      %131 = sbr.rel (0) target = $region81
    $region80: #{tpu_custom_call.1} parent=1 // pred_region
      _
    $region81: #{tpu_custom_call.1} parent=1 // pred_fallthru
      _
    // Predicated region
    $region82: #{tpu_custom_call.1} parent=1 // pred_check
      _
    $region83: #{tpu_custom_call.1} parent=1 // pred_check_branch
      %133 = sbr.rel (0) target = $region85
    $region84: #{tpu_custom_call.1} parent=1 // pred_region
      _
    $region85: #{tpu_custom_call.1} parent=1 // pred_fallthru
      _
    // Predicated region
    $region86: #{tpu_custom_call.1} parent=1 // pred_check
      _
    $region87: #{tpu_custom_call.1} parent=1 // pred_check_branch
      %135 = sbr.rel (0) target = $region89
    $region88: #{tpu_custom_call.1} parent=1 // pred_region
      _
    $region89: #{tpu_custom_call.1} parent=1 // pred_fallthru
      _
    // Predicated region
    $region90: #{tpu_custom_call.1} parent=1 // pred_check
      _
    $region91: #{tpu_custom_call.1} parent=1 // pred_check_branch
      %137 = sbr.rel (0) target = $region93
    $region92: #{tpu_custom_call.1} parent=1 // pred_region
      _
    $region93: #{tpu_custom_call.1} parent=1 // pred_fallthru
      _
    // Predicated region
    $region94: #{tpu_custom_call.1} parent=1 // pred_check
      _
    $region95: #{tpu_custom_call.1} parent=1 // pred_check_branch
      %139 = sbr.rel (0) target = $region97
    $region96: #{tpu_custom_call.1} parent=1 // pred_region
      _
    $region97: #{tpu_custom_call.1} parent=1 // pred_fallthru
      _
    // Predicated region
    $region98: #{tpu_custom_call.1} parent=1 // pred_check
      _
    $region99: #{tpu_custom_call.1} parent=1 // pred_check_branch
      %141 = sbr.rel (0) target = $region101
    $region100: #{tpu_custom_call.1} parent=1 // pred_region
      _
    $region101: #{tpu_custom_call.1} parent=1 // pred_fallthru
      _
    // Predicated region
    $region102: #{tpu_custom_call.1} parent=1 // pred_check
      _
    $region103: #{tpu_custom_call.1} parent=1 // pred_check_branch
      %143 = sbr.rel (0) target = $region105
    $region104: #{tpu_custom_call.1} parent=1 // pred_region
      _
    $region105: #{tpu_custom_call.1} parent=1 // pred_fallthru
      _
    // Predicated region
    $region106: #{tpu_custom_call.1} parent=1 // pred_check
      _
    $region107: #{tpu_custom_call.1} parent=1 // pred_check_branch
      %145 = sbr.rel (0) target = $region109
    $region108: #{tpu_custom_call.1} parent=1 // pred_region
      _
    $region109: #{tpu_custom_call.1} parent=1 // pred_fallthru
      _
    // Predicated region
    $region110: #{tpu_custom_call.1} parent=1 // pred_check
      _
    $region111: #{tpu_custom_call.1} parent=1 // pred_check_branch
      %147 = sbr.rel (0) target = $region113
    $region112: #{tpu_custom_call.1} parent=1 // pred_region
      _
    $region113: #{tpu_custom_call.1} parent=1 // pred_fallthru
      _
    // Predicated region
    $region114: #{tpu_custom_call.1} parent=1 // pred_check
      _
    $region115: #{tpu_custom_call.1} parent=1 // pred_check_branch
      %149 = sbr.rel (0) target = $region117
    $region116: #{tpu_custom_call.1} parent=1 // pred_region
      _
    $region117: #{tpu_custom_call.1} parent=1 // pred_fallthru
      _
    // Predicated region
    $region118: #{tpu_custom_call.1} parent=1 // pred_check
      _
    $region119: #{tpu_custom_call.1} parent=1 // pred_check_branch
      %151 = sbr.rel (0) target = $region121
    $region120: #{tpu_custom_call.1} parent=1 // pred_region
      _
    $region121: #{tpu_custom_call.1} parent=1 // pred_fallthru
      _
    // Predicated region
    $region122: #{tpu_custom_call.1} parent=1 // pred_check
      _
    $region123: #{tpu_custom_call.1} parent=1 // pred_check_branch
      %153 = sbr.rel (0) target = $region125
    $region124: #{tpu_custom_call.1} parent=1 // pred_region
      _
    $region125: #{tpu_custom_call.1} parent=1 // pred_fallthru
      _
    // Predicated region
    $region126: #{tpu_custom_call.1} parent=1 // pred_check
      _
    $region127: #{tpu_custom_call.1} parent=1 // pred_check_branch
      %155 = sbr.rel (0) target = $region129
    $region128: #{tpu_custom_call.1} parent=1 // pred_region
      _
    $region129: #{tpu_custom_call.1} parent=1 // pred_fallthru
      _
    // Predicated region
    $region130: #{tpu_custom_call.1} parent=1 // pred_check
      _
    $region131: #{tpu_custom_call.1} parent=1 // pred_check_branch
      %157 = sbr.rel (0) target = $region133
    $region132: #{tpu_custom_call.1} parent=1 // pred_region
      _
    $region133: #{tpu_custom_call.1} parent=1 // pred_fallthru
      _
    // Predicated region
    $region134: #{tpu_custom_call.1} parent=1 // pred_check
      _
    $region135: #{tpu_custom_call.1} parent=1 // pred_check_branch
      %159 = sbr.rel (0) target = $region137
    $region136: #{tpu_custom_call.1} parent=1 // pred_region
      _
    $region137: #{tpu_custom_call.1} parent=1 // pred_fallthru
      _
    // Predicated region
    $region138: #{tpu_custom_call.1} parent=1 // pred_check
      _
    $region139: #{tpu_custom_call.1} parent=1 // pred_check_branch
      %161 = sbr.rel (0) target = $region141
    $region140: #{tpu_custom_call.1} parent=1 // pred_region
      _
    $region141: #{tpu_custom_call.1} parent=1 // pred_fallthru
      _
    // Predicated region
    $region142: #{tpu_custom_call.1} parent=1 // pred_check
      _
    $region143: #{tpu_custom_call.1} parent=1 // pred_check_branch
      %163 = sbr.rel (0) target = $region145
    $region144: #{tpu_custom_call.1} parent=1 // pred_region
      _
    $region145: #{tpu_custom_call.1} parent=1 // pred_fallthru
      _
    // Predicated region
    $region146: #{tpu_custom_call.1} parent=1 // pred_check
      _
    $region147: #{tpu_custom_call.1} parent=1 // pred_check_branch
      %165 = sbr.rel (0) target = $region149
    $region148: #{tpu_custom_call.1} parent=1 // pred_region
      _
    $region149: #{tpu_custom_call.1} parent=1 // pred_fallthru
      _
    // Predicated region
    $region150: #{tpu_custom_call.1} parent=1 // pred_check
      _
    $region151: #{tpu_custom_call.1} parent=1 // pred_check_branch
      %167 = sbr.rel (0) target = $region153
    $region152: #{tpu_custom_call.1} parent=1 // pred_region
      _
    $region153: #{tpu_custom_call.1} parent=1 // pred_fallthru
      _
    // Predicated region
    $region154: #{tpu_custom_call.1} parent=1 // pred_check
      _
    $region155: #{tpu_custom_call.1} parent=1 // pred_check_branch
      %169 = sbr.rel (0) target = $region157
    $region156: #{tpu_custom_call.1} parent=1 // pred_region
      _
    $region157: #{tpu_custom_call.1} parent=1 // pred_fallthru
      _
    // Predicated region
    $region158: #{tpu_custom_call.1} parent=1 // pred_check
      _
    $region159: #{tpu_custom_call.1} parent=1 // pred_check_branch
      %171 = sbr.rel (0) target = $region161
    $region160: #{tpu_custom_call.1} parent=1 // pred_region
      _
    $region161: #{tpu_custom_call.1} parent=1 // pred_fallthru
      _
    // Predicated region
    $region162: #{tpu_custom_call.1} parent=1 // pred_check
      _
    $region163: #{tpu_custom_call.1} parent=1 // pred_check_branch
      %173 = sbr.rel (0) target = $region165
    $region164: #{tpu_custom_call.1} parent=1 // pred_region
      _
    $region165: #{tpu_custom_call.1} parent=1 // pred_fallthru
      _
    // Predicated region
    $region166: #{tpu_custom_call.1} parent=1 // pred_check
      _
    $region167: #{tpu_custom_call.1} parent=1 // pred_check_branch
      %175 = sbr.rel (0) target = $region169
    $region168: #{tpu_custom_call.1} parent=1 // pred_region
      %177 = vsyncadd [#allocation4], 0
      %s179 = sshll.u32 %s83, 4
      %s180 = int_to_ptr.vmem [resolvable:$true] %s179
      %182 = dma.vmem_to_smem %s180, 16, [#allocation2], [#allocation4]
    $region169: #{tpu_custom_call.1} parent=1 // pred_fallthru
      _
    // Predicated region
    $region170: #{tpu_custom_call.1} parent=1 // pred_check
      _
    $region171: #{tpu_custom_call.1} parent=1 // pred_check_branch
      %184 = sbr.rel (0) target = $region173
    $region172: #{tpu_custom_call.1} parent=1 // pred_region
      %186 = dma.done [#allocation4], 16
    $region173: #{tpu_custom_call.1} parent=1 // pred_fallthru
      _
    %187 = sfence
    %s189 = sld [smem:[#allocation2]]
    %s190 = sld [smem:[#allocation2 + $0x1]]
    %s191 = sld [smem:[#allocation2 + $0x2]]
    %s192 = sld [smem:[#allocation2 + $0x3]]
    %s193 = sld [smem:[#allocation2 + $0x4]]
    %s194 = sld [smem:[#allocation2 + $0x5]]
    %s195 = sld [smem:[#allocation2 + $0x6]]
    %s196 = sld [smem:[#allocation2 + $0x7]]
    %v197 = vld [vmem:[%s1] sm:$0xf]
    %v198 = vld [vmem:[%s1 + $0x4] sm:$0xf]
    %v199 = vld [vmem:[%s1 + $0x8] sm:$0xf]
    %v200 = vld [vmem:[%s1 + $0xc] sm:$0xf]
    %v201 = vld [vmem:[%s1 + $0x10] sm:$0xf]
    %v202 = vld [vmem:[%s1 + $0x14] sm:$0xf]
    %v203 = vld [vmem:[%s1 + $0x18] sm:$0xf]
    %v204 = vld [vmem:[%s1 + $0x1c] sm:$0xf]
    %v205 = vld [vmem:[%s1 + $0x20] sm:$0xf]
    %v206 = vld [vmem:[%s1 + $0x24] sm:$0xf]
    %v207 = vld [vmem:[%s1 + $0x28] sm:$0xf]
    %v208 = vld [vmem:[%s1 + $0x2c] sm:$0xf]
    %v209 = vld [vmem:[%s1 + $0x30] sm:$0xf]
    %v210 = vld [vmem:[%s1 + $0x34] sm:$0xf]
    %v211 = vld [vmem:[%s1 + $0x38] sm:$0xf]
    %v212 = vld [vmem:[%s1 + $0x3c] sm:$0xf]
    %v213 = vld [vmem:[%s9] sm:$0xf]
    %v214 = vld [vmem:[%s9 + $0x4] sm:$0xf]
    %v215 = vld [vmem:[%s9 + $0x8] sm:$0xf]
    %v216 = vld [vmem:[%s9 + $0xc] sm:$0xf]
    %v217 = vld [vmem:[%s9 + $0x10] sm:$0xf]
    %v218 = vld [vmem:[%s9 + $0x14] sm:$0xf]
    %v219 = vld [vmem:[%s9 + $0x18] sm:$0xf]
    %v220 = vld [vmem:[%s9 + $0x1c] sm:$0xf]
    %v221 = vld [vmem:[%s9 + $0x20] sm:$0xf]
    %v222 = vld [vmem:[%s9 + $0x24] sm:$0xf]
    %v223 = vld [vmem:[%s9 + $0x28] sm:$0xf]
    %v224 = vld [vmem:[%s9 + $0x2c] sm:$0xf]
    %v225 = vld [vmem:[%s11] sm:$0x1]
    %v227 = vperm.slane %v225, 0
    %v245 = vunpack.c.l.b16 %v197
    %v246 = vunpack.c.l.b16 %v198
    %v247 = vunpack.c.l.b16 %v199
    %v248 = vunpack.c.l.b16 %v200
    %v249 = vunpack.c.l.b16 %v201
    %v250 = vunpack.c.l.b16 %v202
    %v251 = vunpack.c.l.b16 %v203
    %v252 = vunpack.c.l.b16 %v204
    %v253 = vunpack.c.l.b16 %v205
    %v254 = vunpack.c.l.b16 %v206
    %v255 = vunpack.c.l.b16 %v207
    %v256 = vunpack.c.l.b16 %v208
    %v257 = vunpack.c.l.b16 %v209
    %v258 = vunpack.c.l.b16 %v210
    %v259 = vunpack.c.l.b16 %v211
    %v260 = vunpack.c.l.b16 %v212
    %v261 = vpack.c.b16 %v246, %v245
    %v262 = vpack.c.b16 %v248, %v247
    %v263 = vpack.c.b16 %v250, %v249
    %v264 = vpack.c.b16 %v252, %v251
    %v265 = vpack.c.b16 %v254, %v253
    %v266 = vpack.c.b16 %v256, %v255
    %v267 = vpack.c.b16 %v258, %v257
    %v268 = vpack.c.b16 %v260, %v259
    %v281 = vunpack.c.l.b16 %v213
    %v282 = vunpack.c.l.b16 %v214
    %v283 = vunpack.c.l.b16 %v215
    %v284 = vunpack.c.l.b16 %v216
    %v285 = vunpack.c.l.b16 %v217
    %v286 = vunpack.c.l.b16 %v218
    %v287 = vunpack.c.l.b16 %v219
    %v288 = vunpack.c.l.b16 %v220
    %v289 = vunpack.c.l.b16 %v221
    %v290 = vunpack.c.l.b16 %v222
    %v291 = vunpack.c.l.b16 %v223
    %v292 = vunpack.c.l.b16 %v224
    %v293 = vpack.c.b16 %v282, %v281
    %v294 = vpack.c.b16 %v284, %v283
    %v295 = vpack.c.b16 %v286, %v285
    %v296 = vpack.c.b16 %v288, %v287
    %v297 = vpack.c.b16 %v290, %v289
    %v298 = vpack.c.b16 %v292, %v291
    %vm305 = vcmask 785408
    %v307 = vsel %vm305, %v261, 0
    %v310 = vsel %vm305, %v262, 0
    %v313 = vsel %vm305, %v263, 0
    %v316 = vsel %vm305, %v264, 0
    %v319 = vsel %vm305, %v265, 0
    %v322 = vsel %vm305, %v266, 0
    %v325 = vsel %vm305, %v267, 0
    %v328 = vsel %vm305, %v268, 0
    %330 = vmatpush.bf16.msra.mxu0 0
    %331 = vmatpush.bf16.msra.mxu0 0
    %332 = vmatpush.bf16.msra.mxu0 %v298
    %333 = vmatpush.bf16.msra.mxu0 %v297
    %334 = vmatpush.bf16.msra.mxu0 %v296
    %335 = vmatpush.bf16.msra.mxu0 %v295
    %336 = vmatpush.bf16.msra.mxu0 %v294
    %337 = vmatpush.bf16.msra.mxu0 %v293
    %338 = vmatmul.bf16.gmra.mxu0 %v307
    %v339 = vpop.f32.mrf.mxu0
    %v340 = vadd.f32 %v227, %v339
    %v341 = vpop.f32.mrf.mxu0
    %v342 = vadd.f32 %v227, %v341
    %343 = vmatmul.bf16.gmra.mxu0 %v310
    %v344 = vpop.f32.mrf.mxu0
    %v345 = vadd.f32 %v227, %v344
    %v346 = vpop.f32.mrf.mxu0
    %v347 = vadd.f32 %v227, %v346
    %348 = vmatmul.bf16.gmra.mxu0 %v313
    %v349 = vpop.f32.mrf.mxu0
    %v350 = vadd.f32 %v227, %v349
    %v351 = vpop.f32.mrf.mxu0
    %v352 = vadd.f32 %v227, %v351
    %353 = vmatmul.bf16.gmra.mxu0 %v316
    %v354 = vpop.f32.mrf.mxu0
    %v355 = vadd.f32 %v227, %v354
    %v356 = vpop.f32.mrf.mxu0
    %v357 = vadd.f32 %v227, %v356
    %358 = vmatmul.bf16.gmra.mxu0 %v319
    %v359 = vpop.f32.mrf.mxu0
    %v360 = vadd.f32 %v227, %v359
    %v361 = vpop.f32.mrf.mxu0
    %v362 = vadd.f32 %v227, %v361
    %363 = vmatmul.bf16.gmra.mxu0 %v322
    %v364 = vpop.f32.mrf.mxu0
    %v365 = vadd.f32 %v227, %v364
    %v366 = vpop.f32.mrf.mxu0
    %v367 = vadd.f32 %v227, %v366
    %368 = vmatmul.bf16.gmra.mxu0 %v325
    %v369 = vpop.f32.mrf.mxu0
    %v370 = vadd.f32 %v227, %v369
    %v371 = vpop.f32.mrf.mxu0
    %v372 = vadd.f32 %v227, %v371
    %373 = vmatmul.bf16.gmra.mxu0 %v328
    %v374 = vpop.f32.mrf.mxu0
    %v375 = vadd.f32 %v227, %v374
    %v376 = vpop.f32.mrf.mxu0
    %v377 = vadd.f32 %v227, %v376
    %378 = vdwg.mxu0
    %v379 = vsel %vm305, %v340, 0.0
    %380 = vadd.xlane.f32.xlu0 %v379
    %v381 = vpop.xlane.xlu0 %380
    %v382 = vsel %vm305, %v342, 0.0
    %383 = vadd.xlane.f32.xlu0 %v382
    %v384 = vpop.xlane.xlu0 %383
    %v385 = vsel %vm305, %v345, 0.0
    %386 = vadd.xlane.f32.xlu0 %v385
    %v387 = vpop.xlane.xlu0 %386
    %v388 = vsel %vm305, %v347, 0.0
    %389 = vadd.xlane.f32.xlu0 %v388
    %v390 = vpop.xlane.xlu0 %389
    %v391 = vsel %vm305, %v350, 0.0
    %392 = vadd.xlane.f32.xlu0 %v391
    %v393 = vpop.xlane.xlu0 %392
    %v394 = vsel %vm305, %v352, 0.0
    %395 = vadd.xlane.f32.xlu0 %v394
    %v396 = vpop.xlane.xlu0 %395
    %v397 = vsel %vm305, %v355, 0.0
    %398 = vadd.xlane.f32.xlu0 %v397
    %v399 = vpop.xlane.xlu0 %398
    %v400 = vsel %vm305, %v357, 0.0
    %401 = vadd.xlane.f32.xlu0 %v400
    %v402 = vpop.xlane.xlu0 %401
    %v403 = vsel %vm305, %v360, 0.0
    %404 = vadd.xlane.f32.xlu0 %v403
    %v405 = vpop.xlane.xlu0 %404
    %v406 = vsel %vm305, %v362, 0.0
    %407 = vadd.xlane.f32.xlu0 %v406
    %v408 = vpop.xlane.xlu0 %407
    %v409 = vsel %vm305, %v365, 0.0
    %410 = vadd.xlane.f32.xlu0 %v409
    %v411 = vpop.xlane.xlu0 %410
    %v412 = vsel %vm305, %v367, 0.0
    %413 = vadd.xlane.f32.xlu0 %v412
    %v414 = vpop.xlane.xlu0 %413
    %v415 = vsel %vm305, %v370, 0.0
    %416 = vadd.xlane.f32.xlu0 %v415
    %v417 = vpop.xlane.xlu0 %416
    %v418 = vsel %vm305, %v372, 0.0
    %419 = vadd.xlane.f32.xlu0 %v418
    %v420 = vpop.xlane.xlu0 %419
    %v421 = vsel %vm305, %v375, 0.0
    %422 = vadd.xlane.f32.xlu0 %v421
    %v423 = vpop.xlane.xlu0 %422
    %v424 = vsel %vm305, %v377, 0.0
    %425 = vadd.xlane.f32.xlu0 %v424
    %v426 = vpop.xlane.xlu0 %425
    %v427 = vmul.f32 %v381, 0.010416667
    %v428 = vmul.f32 %v384, 0.010416667
    %v429 = vmul.f32 %v387, 0.010416667
    %v430 = vmul.f32 %v390, 0.010416667
    %v431 = vmul.f32 %v393, 0.010416667
    %v432 = vmul.f32 %v396, 0.010416667
    %v433 = vmul.f32 %v399, 0.010416667
    %v434 = vmul.f32 %v402, 0.010416667
    %v435 = vmul.f32 %v405, 0.010416667
    %v436 = vmul.f32 %v408, 0.010416667
    %v437 = vmul.f32 %v411, 0.010416667
    %v438 = vmul.f32 %v414, 0.010416667
    %v439 = vmul.f32 %v417, 0.010416667
    %v440 = vmul.f32 %v420, 0.010416667
    %v441 = vmul.f32 %v423, 0.010416667
    %v442 = vmul.f32 %v426, 0.010416667
    %v443 = vmul.f32 %v340, %v340
    %v444 = vmul.f32 %v342, %v342
    %v445 = vmul.f32 %v345, %v345
    %v446 = vmul.f32 %v347, %v347
    %v447 = vmul.f32 %v350, %v350
    %v448 = vmul.f32 %v352, %v352
    %v449 = vmul.f32 %v355, %v355
    %v450 = vmul.f32 %v357, %v357
    %v451 = vmul.f32 %v360, %v360
    %v452 = vmul.f32 %v362, %v362
    %v453 = vmul.f32 %v365, %v365
    %v454 = vmul.f32 %v367, %v367
    %v455 = vmul.f32 %v370, %v370
    %v456 = vmul.f32 %v372, %v372
    %v457 = vmul.f32 %v375, %v375
    %v458 = vmul.f32 %v377, %v377
    %v459 = vsel %vm305, %v443, 0.0
    %460 = vadd.xlane.f32.xlu0 %v459
    %v461 = vpop.xlane.xlu0 %460
    %v462 = vsel %vm305, %v444, 0.0
    %463 = vadd.xlane.f32.xlu0 %v462
    %v464 = vpop.xlane.xlu0 %463
    %v465 = vsel %vm305, %v445, 0.0
    %466 = vadd.xlane.f32.xlu0 %v465
    %v467 = vpop.xlane.xlu0 %466
    %v468 = vsel %vm305, %v446, 0.0
    %469 = vadd.xlane.f32.xlu0 %v468
    %v470 = vpop.xlane.xlu0 %469
    %v471 = vsel %vm305, %v447, 0.0
    %472 = vadd.xlane.f32.xlu0 %v471
    %v473 = vpop.xlane.xlu0 %472
    %v474 = vsel %vm305, %v448, 0.0
    %475 = vadd.xlane.f32.xlu0 %v474
    %v476 = vpop.xlane.xlu0 %475
    %v477 = vsel %vm305, %v449, 0.0
    %478 = vadd.xlane.f32.xlu0 %v477
    %v479 = vpop.xlane.xlu0 %478
    %v480 = vsel %vm305, %v450, 0.0
    %481 = vadd.xlane.f32.xlu0 %v480
    %v482 = vpop.xlane.xlu0 %481
    %v483 = vsel %vm305, %v451, 0.0
    %484 = vadd.xlane.f32.xlu0 %v483
    %v485 = vpop.xlane.xlu0 %484
    %v486 = vsel %vm305, %v452, 0.0
    %487 = vadd.xlane.f32.xlu0 %v486
    %v488 = vpop.xlane.xlu0 %487
    %v489 = vsel %vm305, %v453, 0.0
    %490 = vadd.xlane.f32.xlu0 %v489
    %v491 = vpop.xlane.xlu0 %490
    %v492 = vsel %vm305, %v454, 0.0
    %493 = vadd.xlane.f32.xlu0 %v492
    %v494 = vpop.xlane.xlu0 %493
    %v495 = vsel %vm305, %v455, 0.0
    %496 = vadd.xlane.f32.xlu0 %v495
    %v497 = vpop.xlane.xlu0 %496
    %v498 = vsel %vm305, %v456, 0.0
    %499 = vadd.xlane.f32.xlu0 %v498
    %v500 = vpop.xlane.xlu0 %499
    %v501 = vsel %vm305, %v457, 0.0
    %502 = vadd.xlane.f32.xlu0 %v501
    %v503 = vpop.xlane.xlu0 %502
    %v504 = vsel %vm305, %v458, 0.0
    %505 = vadd.xlane.f32.xlu0 %v504
    %v506 = vpop.xlane.xlu0 %505
    %v507 = vmul.f32 %v461, 0.010416667
    %v508 = vmul.f32 %v464, 0.010416667
    %v509 = vmul.f32 %v467, 0.010416667
    %v510 = vmul.f32 %v470, 0.010416667
    %v511 = vmul.f32 %v473, 0.010416667
    %v512 = vmul.f32 %v476, 0.010416667
    %v513 = vmul.f32 %v479, 0.010416667
    %v514 = vmul.f32 %v482, 0.010416667
    %v515 = vmul.f32 %v485, 0.010416667
    %v516 = vmul.f32 %v488, 0.010416667
    %v517 = vmul.f32 %v491, 0.010416667
    %v518 = vmul.f32 %v494, 0.010416667
    %v519 = vmul.f32 %v497, 0.010416667
    %v520 = vmul.f32 %v500, 0.010416667
    %v521 = vmul.f32 %v503, 0.010416667
    %v522 = vmul.f32 %v506, 0.010416667
    %v523 = vmul.f32 %v427, %v427
    %v524 = vmul.f32 %v428, %v428
    %v525 = vmul.f32 %v429, %v429
    %v526 = vmul.f32 %v430, %v430
    %v527 = vmul.f32 %v431, %v431
    %v528 = vmul.f32 %v432, %v432
    %v529 = vmul.f32 %v433, %v433
    %v530 = vmul.f32 %v434, %v434
    %v531 = vmul.f32 %v435, %v435
    %v532 = vmul.f32 %v436, %v436
    %v533 = vmul.f32 %v437, %v437
    %v534 = vmul.f32 %v438, %v438
    %v535 = vmul.f32 %v439, %v439
    %v536 = vmul.f32 %v440, %v440
    %v537 = vmul.f32 %v441, %v441
    %v538 = vmul.f32 %v442, %v442
    %v539 = vsub.f32 %v507, %v523
    %v540 = vsub.f32 %v508, %v524
    %v541 = vsub.f32 %v509, %v525
    %v542 = vsub.f32 %v510, %v526
    %v543 = vsub.f32 %v511, %v527
    %v544 = vsub.f32 %v512, %v528
    %v545 = vsub.f32 %v513, %v529
    %v546 = vsub.f32 %v514, %v530
    %v547 = vsub.f32 %v515, %v531
    %v548 = vsub.f32 %v516, %v532
    %v549 = vsub.f32 %v517, %v533
    %v550 = vsub.f32 %v518, %v534
    %v551 = vsub.f32 %v519, %v535
    %v552 = vsub.f32 %v520, %v536
    %v553 = vsub.f32 %v521, %v537
    %v554 = vsub.f32 %v522, %v538
    %v555 = vmax.f32 %v539, 0.0
    %v556 = vmax.f32 %v540, 0.0
    %v557 = vmax.f32 %v541, 0.0
    %v558 = vmax.f32 %v542, 0.0
    %v559 = vmax.f32 %v543, 0.0
    %v560 = vmax.f32 %v544, 0.0
    %v561 = vmax.f32 %v545, 0.0
    %v562 = vmax.f32 %v546, 0.0
    %v563 = vmax.f32 %v547, 0.0
    %v564 = vmax.f32 %v548, 0.0
    %v565 = vmax.f32 %v549, 0.0
    %v566 = vmax.f32 %v550, 0.0
    %v567 = vmax.f32 %v551, 0.0
    %v568 = vmax.f32 %v552, 0.0
    %v569 = vmax.f32 %v553, 0.0
    %v570 = vmax.f32 %v554, 0.0
    %v571 = vadd.f32 %v555, 1e-05
    %v572 = vadd.f32 %v556, 1e-05
    %v573 = vadd.f32 %v557, 1e-05
    %v574 = vadd.f32 %v558, 1e-05
    %v575 = vadd.f32 %v559, 1e-05
    %v576 = vadd.f32 %v560, 1e-05
    %v577 = vadd.f32 %v561, 1e-05
    %v578 = vadd.f32 %v562, 1e-05
    %v579 = vadd.f32 %v563, 1e-05
    %v580 = vadd.f32 %v564, 1e-05
    %v581 = vadd.f32 %v565, 1e-05
    %v582 = vadd.f32 %v566, 1e-05
    %v583 = vadd.f32 %v567, 1e-05
    %v584 = vadd.f32 %v568, 1e-05
    %v585 = vadd.f32 %v569, 1e-05
    %v586 = vadd.f32 %v570, 1e-05
    %v587 = vrsqrt.pop %v571
    %v588 = vmul.f32 %v587, %v571
    %v589 = vmul.f32 %v588, %v587
    %v590 = vmul.f32 0.5, %v589
    %v591 = vsub.f32 1.5, %v590
    %v592 = vmul.f32 %v587, %v591
    %vm593 = vweird.f32 %v571
    %vm594 = vweird.f32 %v587
    %vm595 = vmor %vm593, %vm594
    %v596 = vsel %vm595, %v587, %v592
    %v597 = vrsqrt.pop %v572
    %v598 = vmul.f32 %v597, %v572
    %v599 = vmul.f32 %v598, %v597
    %v600 = vmul.f32 0.5, %v599
    %v601 = vsub.f32 1.5, %v600
    %v602 = vmul.f32 %v597, %v601
    %vm603 = vweird.f32 %v572
    %vm604 = vweird.f32 %v597
    %vm605 = vmor %vm603, %vm604
    %v606 = vsel %vm605, %v597, %v602
    %v607 = vrsqrt.pop %v573
    %v608 = vmul.f32 %v607, %v573
    %v609 = vmul.f32 %v608, %v607
    %v610 = vmul.f32 0.5, %v609
    %v611 = vsub.f32 1.5, %v610
    %v612 = vmul.f32 %v607, %v611
    %vm613 = vweird.f32 %v573
    %vm614 = vweird.f32 %v607
    %vm615 = vmor %vm613, %vm614
    %v616 = vsel %vm615, %v607, %v612
    %v617 = vrsqrt.pop %v574
    %v618 = vmul.f32 %v617, %v574
    %v619 = vmul.f32 %v618, %v617
    %v620 = vmul.f32 0.5, %v619
    %v621 = vsub.f32 1.5, %v620
    %v622 = vmul.f32 %v617, %v621
    %vm623 = vweird.f32 %v574
    %vm624 = vweird.f32 %v617
    %vm625 = vmor %vm623, %vm624
    %v626 = vsel %vm625, %v617, %v622
    %v627 = vrsqrt.pop %v575
    %v628 = vmul.f32 %v627, %v575
    %v629 = vmul.f32 %v628, %v627
    %v630 = vmul.f32 0.5, %v629
    %v631 = vsub.f32 1.5, %v630
    %v632 = vmul.f32 %v627, %v631
    %vm633 = vweird.f32 %v575
    %vm634 = vweird.f32 %v627
    %vm635 = vmor %vm633, %vm634
    %v636 = vsel %vm635, %v627, %v632
    %v637 = vrsqrt.pop %v576
    %v638 = vmul.f32 %v637, %v576
    %v639 = vmul.f32 %v638, %v637
    %v640 = vmul.f32 0.5, %v639
    %v641 = vsub.f32 1.5, %v640
    %v642 = vmul.f32 %v637, %v641
    %vm643 = vweird.f32 %v576
    %vm644 = vweird.f32 %v637
    %vm645 = vmor %vm643, %vm644
    %v646 = vsel %vm645, %v637, %v642
    %v647 = vrsqrt.pop %v577
    %v648 = vmul.f32 %v647, %v577
    %v649 = vmul.f32 %v648, %v647
    %v650 = vmul.f32 0.5, %v649
    %v651 = vsub.f32 1.5, %v650
    %v652 = vmul.f32 %v647, %v651
    %vm653 = vweird.f32 %v577
    %vm654 = vweird.f32 %v647
    %vm655 = vmor %vm653, %vm654
    %v656 = vsel %vm655, %v647, %v652
    %v657 = vrsqrt.pop %v578
    %v658 = vmul.f32 %v657, %v578
    %v659 = vmul.f32 %v658, %v657
    %v660 = vmul.f32 0.5, %v659
    %v661 = vsub.f32 1.5, %v660
    %v662 = vmul.f32 %v657, %v661
    %vm663 = vweird.f32 %v578
    %vm664 = vweird.f32 %v657
    %vm665 = vmor %vm663, %vm664
    %v666 = vsel %vm665, %v657, %v662
    %v667 = vrsqrt.pop %v579
    %v668 = vmul.f32 %v667, %v579
    %v669 = vmul.f32 %v668, %v667
    %v670 = vmul.f32 0.5, %v669
    %v671 = vsub.f32 1.5, %v670
    %v672 = vmul.f32 %v667, %v671
    %vm673 = vweird.f32 %v579
    %vm674 = vweird.f32 %v667
    %vm675 = vmor %vm673, %vm674
    %v676 = vsel %vm675, %v667, %v672
    %v677 = vrsqrt.pop %v580
    %v678 = vmul.f32 %v677, %v580
    %v679 = vmul.f32 %v678, %v677
    %v680 = vmul.f32 0.5, %v679
    %v681 = vsub.f32 1.5, %v680
    %v682 = vmul.f32 %v677, %v681
    %vm683 = vweird.f32 %v580
    %vm684 = vweird.f32 %v677
    %vm685 = vmor %vm683, %vm684
    %v686 = vsel %vm685, %v677, %v682
    %v687 = vrsqrt.pop %v581
    %v688 = vmul.f32 %v687, %v581
    %v689 = vmul.f32 %v688, %v687
    %v690 = vmul.f32 0.5, %v689
    %v691 = vsub.f32 1.5, %v690
    %v692 = vmul.f32 %v687, %v691
    %vm693 = vweird.f32 %v581
    %vm694 = vweird.f32 %v687
    %vm695 = vmor %vm693, %vm694
    %v696 = vsel %vm695, %v687, %v692
    %v697 = vrsqrt.pop %v582
    %v698 = vmul.f32 %v697, %v582
    %v699 = vmul.f32 %v698, %v697
    %v700 = vmul.f32 0.5, %v699
    %v701 = vsub.f32 1.5, %v700
    %v702 = vmul.f32 %v697, %v701
    %vm703 = vweird.f32 %v582
    %vm704 = vweird.f32 %v697
    %vm705 = vmor %vm703, %vm704
    %v706 = vsel %vm705, %v697, %v702
    %v707 = vrsqrt.pop %v583
    %v708 = vmul.f32 %v707, %v583
    %v709 = vmul.f32 %v708, %v707
    %v710 = vmul.f32 0.5, %v709
    %v711 = vsub.f32 1.5, %v710
    %v712 = vmul.f32 %v707, %v711
    %vm713 = vweird.f32 %v583
    %vm714 = vweird.f32 %v707
    %vm715 = vmor %vm713, %vm714
    %v716 = vsel %vm715, %v707, %v712
    %v717 = vrsqrt.pop %v584
    %v718 = vmul.f32 %v717, %v584
    %v719 = vmul.f32 %v718, %v717
    %v720 = vmul.f32 0.5, %v719
    %v721 = vsub.f32 1.5, %v720
    %v722 = vmul.f32 %v717, %v721
    %vm723 = vweird.f32 %v584
    %vm724 = vweird.f32 %v717
    %vm725 = vmor %vm723, %vm724
    %v726 = vsel %vm725, %v717, %v722
    %v727 = vrsqrt.pop %v585
    %v728 = vmul.f32 %v727, %v585
    %v729 = vmul.f32 %v728, %v727
    %v730 = vmul.f32 0.5, %v729
    %v731 = vsub.f32 1.5, %v730
    %v732 = vmul.f32 %v727, %v731
    %vm733 = vweird.f32 %v585
    %vm734 = vweird.f32 %v727
    %vm735 = vmor %vm733, %vm734
    %v736 = vsel %vm735, %v727, %v732
    %v737 = vrsqrt.pop %v586
    %v738 = vmul.f32 %v737, %v586
    %v739 = vmul.f32 %v738, %v737
    %v740 = vmul.f32 0.5, %v739
    %v741 = vsub.f32 1.5, %v740
    %v742 = vmul.f32 %v737, %v741
    %vm743 = vweird.f32 %v586
    %vm744 = vweird.f32 %v737
    %vm745 = vmor %vm743, %vm744
    %v746 = vsel %vm745, %v737, %v742
    %v747 = vsub.f32 %v340, %v427
    %v748 = vsub.f32 %v342, %v428
    %v749 = vsub.f32 %v345, %v429
    %v750 = vsub.f32 %v347, %v430
    %v751 = vsub.f32 %v350, %v431
    %v752 = vsub.f32 %v352, %v432
    %v753 = vsub.f32 %v355, %v433
    %v754 = vsub.f32 %v357, %v434
    %v755 = vsub.f32 %v360, %v435
    %v756 = vsub.f32 %v362, %v436
    %v757 = vsub.f32 %v365, %v437
    %v758 = vsub.f32 %v367, %v438
    %v759 = vsub.f32 %v370, %v439
    %v760 = vsub.f32 %v372, %v440
    %v761 = vsub.f32 %v375, %v441
    %v762 = vsub.f32 %v377, %v442
    %v763 = vmul.f32 %v747, %v596
    %v764 = vmul.f32 %v748, %v606
    %v765 = vmul.f32 %v749, %v616
    %v766 = vmul.f32 %v750, %v626
    %v767 = vmul.f32 %v751, %v636
    %v768 = vmul.f32 %v752, %v646
    %v769 = vmul.f32 %v753, %v656
    %v770 = vmul.f32 %v754, %v666
    %v771 = vmul.f32 %v755, %v676
    %v772 = vmul.f32 %v756, %v686
    %v773 = vmul.f32 %v757, %v696
    %v774 = vmul.f32 %v758, %v706
    %v775 = vmul.f32 %v759, %v716
    %v776 = vmul.f32 %v760, %v726
    %v777 = vmul.f32 %v761, %v736
    %v778 = vmul.f32 %v762, %v746
    %v779 = vld [vmem:[%s13] sm:$0x1]
    %v781 = vperm.slane %v779, 0
    %v783 = vmul.f32 %v763, %v781
    %v784 = vmul.f32 %v764, %v781
    %v785 = vmul.f32 %v765, %v781
    %v786 = vmul.f32 %v766, %v781
    %v787 = vmul.f32 %v767, %v781
    %v788 = vmul.f32 %v768, %v781
    %v789 = vmul.f32 %v769, %v781
    %v790 = vmul.f32 %v770, %v781
    %v791 = vmul.f32 %v771, %v781
    %v792 = vmul.f32 %v772, %v781
    %v793 = vmul.f32 %v773, %v781
    %v794 = vmul.f32 %v774, %v781
    %v795 = vmul.f32 %v775, %v781
    %v796 = vmul.f32 %v776, %v781
    %v797 = vmul.f32 %v777, %v781
    %v798 = vmul.f32 %v778, %v781
    %v799 = vld [vmem:[%s15] sm:$0x1]
    %v801 = vperm.slane %v799, 0
    %v803 = vadd.f32 %v783, %v801
    %v804 = vadd.f32 %v784, %v801
    %v805 = vadd.f32 %v785, %v801
    %v806 = vadd.f32 %v786, %v801
    %v807 = vadd.f32 %v787, %v801
    %v808 = vadd.f32 %v788, %v801
    %v809 = vadd.f32 %v789, %v801
    %v810 = vadd.f32 %v790, %v801
    %v811 = vadd.f32 %v791, %v801
    %v812 = vadd.f32 %v792, %v801
    %v813 = vadd.f32 %v793, %v801
    %v814 = vadd.f32 %v794, %v801
    %v815 = vadd.f32 %v795, %v801
    %v816 = vadd.f32 %v796, %v801
    %v817 = vadd.f32 %v797, %v801
    %v818 = vadd.f32 %v798, %v801
    %vm819 = vcmp.ge.f32.partialorder %v803, 0.0
    %vm820 = vcmp.ge.f32.partialorder %v804, 0.0
    %vm821 = vcmp.ge.f32.partialorder %v805, 0.0
    %vm822 = vcmp.ge.f32.partialorder %v806, 0.0
    %vm823 = vcmp.ge.f32.partialorder %v807, 0.0
    %vm824 = vcmp.ge.f32.partialorder %v808, 0.0
    %vm825 = vcmp.ge.f32.partialorder %v809, 0.0
    %vm826 = vcmp.ge.f32.partialorder %v810, 0.0
    %vm827 = vcmp.ge.f32.partialorder %v811, 0.0
    %vm828 = vcmp.ge.f32.partialorder %v812, 0.0
    %vm829 = vcmp.ge.f32.partialorder %v813, 0.0
    %vm830 = vcmp.ge.f32.partialorder %v814, 0.0
    %vm831 = vcmp.ge.f32.partialorder %v815, 0.0
    %vm832 = vcmp.ge.f32.partialorder %v816, 0.0
    %vm833 = vcmp.ge.f32.partialorder %v817, 0.0
    %vm834 = vcmp.ge.f32.partialorder %v818, 0.0
    %v835 = vstv %s189
    %v836 = vmul.f32 %v835, %v803
    %v837 = vmul.f32 %v835, %v804
    %v838 = vmul.f32 %v835, %v805
    %v839 = vmul.f32 %v835, %v806
    %v840 = vmul.f32 %v835, %v807
    %v841 = vmul.f32 %v835, %v808
    %v842 = vmul.f32 %v835, %v809
    %v843 = vmul.f32 %v835, %v810
    %v844 = vmul.f32 %v835, %v811
    %v845 = vmul.f32 %v835, %v812
    %v846 = vmul.f32 %v835, %v813
    %v847 = vmul.f32 %v835, %v814
    %v848 = vmul.f32 %v835, %v815
    %v849 = vmul.f32 %v835, %v816
    %v850 = vmul.f32 %v835, %v817
    %v851 = vmul.f32 %v835, %v818
    %v852 = vsel %vm819, %v803, %v836
    %v853 = vsel %vm820, %v804, %v837
    %v854 = vsel %vm821, %v805, %v838
    %v855 = vsel %vm822, %v806, %v839
    %v856 = vsel %vm823, %v807, %v840
    %v857 = vsel %vm824, %v808, %v841
    %v858 = vsel %vm825, %v809, %v842
    %v859 = vsel %vm826, %v810, %v843
    %v860 = vsel %vm827, %v811, %v844
    %v861 = vsel %vm828, %v812, %v845
    %v862 = vsel %vm829, %v813, %v846
    %v863 = vsel %vm830, %v814, %v847
    %v864 = vsel %vm831, %v815, %v848
    %v865 = vsel %vm832, %v816, %v849
    %v866 = vsel %vm833, %v817, %v850
    %v867 = vsel %vm834, %v818, %v851
    %v868 = vpack.c.bf16 %v853, %v852
    %v869 = vpack.c.bf16 %v855, %v854
    %v870 = vpack.c.bf16 %v857, %v856
    %v871 = vpack.c.bf16 %v859, %v858
    %v872 = vpack.c.bf16 %v861, %v860
    %v873 = vpack.c.bf16 %v863, %v862
    %v874 = vpack.c.bf16 %v865, %v864
    %v875 = vpack.c.bf16 %v867, %v866
    %v876 = vld [vmem:[%s17] sm:$0xf]
    %v877 = vld [vmem:[%s17 + $0x4] sm:$0xf]
    %v878 = vld [vmem:[%s17 + $0x8] sm:$0xf]
    %v879 = vld [vmem:[%s17 + $0xc] sm:$0xf]
    %v880 = vld [vmem:[%s17 + $0x10] sm:$0xf]
    %v881 = vld [vmem:[%s17 + $0x14] sm:$0xf]
    %v882 = vld [vmem:[%s17 + $0x18] sm:$0xf]
    %v883 = vld [vmem:[%s17 + $0x1c] sm:$0xf]
    %v884 = vld [vmem:[%s17 + $0x20] sm:$0xf]
    %v885 = vld [vmem:[%s17 + $0x24] sm:$0xf]
    %v886 = vld [vmem:[%s17 + $0x28] sm:$0xf]
    %v887 = vld [vmem:[%s17 + $0x2c] sm:$0xf]
    %v888 = vld [vmem:[%s19] sm:$0x1]
    %v890 = vperm.slane %v888, 0
    %v904 = vunpack.c.l.b16 %v876
    %v905 = vunpack.c.l.b16 %v877
    %v906 = vunpack.c.l.b16 %v878
    %v907 = vunpack.c.l.b16 %v879
    %v908 = vunpack.c.l.b16 %v880
    %v909 = vunpack.c.l.b16 %v881
    %v910 = vunpack.c.l.b16 %v882
    %v911 = vunpack.c.l.b16 %v883
    %v912 = vunpack.c.l.b16 %v884
    %v913 = vunpack.c.l.b16 %v885
    %v914 = vunpack.c.l.b16 %v886
    %v915 = vunpack.c.l.b16 %v887
    %v916 = vpack.c.b16 %v905, %v904
    %v917 = vpack.c.b16 %v907, %v906
    %v918 = vpack.c.b16 %v909, %v908
    %v919 = vpack.c.b16 %v911, %v910
    %v920 = vpack.c.b16 %v913, %v912
    %v921 = vpack.c.b16 %v915, %v914
    %v929 = vsel %vm305, %v868, 0
    %v932 = vsel %vm305, %v869, 0
    %v935 = vsel %vm305, %v870, 0
    %v938 = vsel %vm305, %v871, 0
    %v941 = vsel %vm305, %v872, 0
    %v944 = vsel %vm305, %v873, 0
    %v947 = vsel %vm305, %v874, 0
    %v950 = vsel %vm305, %v875, 0
    %952 = vmatpush.bf16.msra.mxu0 0
    %953 = vmatpush.bf16.msra.mxu0 0
    %954 = vmatpush.bf16.msra.mxu0 %v921
    %955 = vmatpush.bf16.msra.mxu0 %v920
    %956 = vmatpush.bf16.msra.mxu0 %v919
    %957 = vmatpush.bf16.msra.mxu0 %v918
    %958 = vmatpush.bf16.msra.mxu0 %v917
    %959 = vmatpush.bf16.msra.mxu0 %v916
    %960 = vmatmul.bf16.gmra.mxu0 %v929
    %v961 = vpop.f32.mrf.mxu0
    %v962 = vadd.f32 %v890, %v961
    %v963 = vpop.f32.mrf.mxu0
    %v964 = vadd.f32 %v890, %v963
    %965 = vmatmul.bf16.gmra.mxu0 %v932
    %v966 = vpop.f32.mrf.mxu0
    %v967 = vadd.f32 %v890, %v966
    %v968 = vpop.f32.mrf.mxu0
    %v969 = vadd.f32 %v890, %v968
    %970 = vmatmul.bf16.gmra.mxu0 %v935
    %v971 = vpop.f32.mrf.mxu0
    %v972 = vadd.f32 %v890, %v971
    %v973 = vpop.f32.mrf.mxu0
    %v974 = vadd.f32 %v890, %v973
    %975 = vmatmul.bf16.gmra.mxu0 %v938
    %v976 = vpop.f32.mrf.mxu0
    %v977 = vadd.f32 %v890, %v976
    %v978 = vpop.f32.mrf.mxu0
    %v979 = vadd.f32 %v890, %v978
    %980 = vmatmul.bf16.gmra.mxu0 %v941
    %v981 = vpop.f32.mrf.mxu0
    %v982 = vadd.f32 %v890, %v981
    %v983 = vpop.f32.mrf.mxu0
    %v984 = vadd.f32 %v890, %v983
    %985 = vmatmul.bf16.gmra.mxu0 %v944
    %v986 = vpop.f32.mrf.mxu0
    %v987 = vadd.f32 %v890, %v986
    %v988 = vpop.f32.mrf.mxu0
    %v989 = vadd.f32 %v890, %v988
    %990 = vmatmul.bf16.gmra.mxu0 %v947
    %v991 = vpop.f32.mrf.mxu0
    %v992 = vadd.f32 %v890, %v991
    %v993 = vpop.f32.mrf.mxu0
    %v994 = vadd.f32 %v890, %v993
    %995 = vmatmul.bf16.gmra.mxu0 %v950
    %v996 = vpop.f32.mrf.mxu0
    %v997 = vadd.f32 %v890, %v996
    %v998 = vpop.f32.mrf.mxu0
    %v999 = vadd.f32 %v890, %v998
    %1000 = vdwg.mxu0
    %v1001 = vsel %vm305, %v962, 0.0
    %1002 = vadd.xlane.f32.xlu0 %v1001
    %v1003 = vpop.xlane.xlu0 %1002
    %v1004 = vsel %vm305, %v964, 0.0
    %1005 = vadd.xlane.f32.xlu0 %v1004
    %v1006 = vpop.xlane.xlu0 %1005
    %v1007 = vsel %vm305, %v967, 0.0
    %1008 = vadd.xlane.f32.xlu0 %v1007
    %v1009 = vpop.xlane.xlu0 %1008
    %v1010 = vsel %vm305, %v969, 0.0
    %1011 = vadd.xlane.f32.xlu0 %v1010
    %v1012 = vpop.xlane.xlu0 %1011
    %v1013 = vsel %vm305, %v972, 0.0
    %1014 = vadd.xlane.f32.xlu0 %v1013
    %v1015 = vpop.xlane.xlu0 %1014
    %v1016 = vsel %vm305, %v974, 0.0
    %1017 = vadd.xlane.f32.xlu0 %v1016
    %v1018 = vpop.xlane.xlu0 %1017
    %v1019 = vsel %vm305, %v977, 0.0
    %1020 = vadd.xlane.f32.xlu0 %v1019
    %v1021 = vpop.xlane.xlu0 %1020
    %v1022 = vsel %vm305, %v979, 0.0
    %1023 = vadd.xlane.f32.xlu0 %v1022
    %v1024 = vpop.xlane.xlu0 %1023
    %v1025 = vsel %vm305, %v982, 0.0
    %1026 = vadd.xlane.f32.xlu0 %v1025
    %v1027 = vpop.xlane.xlu0 %1026
    %v1028 = vsel %vm305, %v984, 0.0
    %1029 = vadd.xlane.f32.xlu0 %v1028
    %v1030 = vpop.xlane.xlu0 %1029
    %v1031 = vsel %vm305, %v987, 0.0
    %1032 = vadd.xlane.f32.xlu0 %v1031
    %v1033 = vpop.xlane.xlu0 %1032
    %v1034 = vsel %vm305, %v989, 0.0
    %1035 = vadd.xlane.f32.xlu0 %v1034
    %v1036 = vpop.xlane.xlu0 %1035
    %v1037 = vsel %vm305, %v992, 0.0
    %1038 = vadd.xlane.f32.xlu0 %v1037
    %v1039 = vpop.xlane.xlu0 %1038
    %v1040 = vsel %vm305, %v994, 0.0
    %1041 = vadd.xlane.f32.xlu0 %v1040
    %v1042 = vpop.xlane.xlu0 %1041
    %v1043 = vsel %vm305, %v997, 0.0
    %1044 = vadd.xlane.f32.xlu0 %v1043
    %v1045 = vpop.xlane.xlu0 %1044
    %v1046 = vsel %vm305, %v999, 0.0
    %1047 = vadd.xlane.f32.xlu0 %v1046
    %v1048 = vpop.xlane.xlu0 %1047
    %v1049 = vmul.f32 %v1003, 0.010416667
    %v1050 = vmul.f32 %v1006, 0.010416667
    %v1051 = vmul.f32 %v1009, 0.010416667
    %v1052 = vmul.f32 %v1012, 0.010416667
    %v1053 = vmul.f32 %v1015, 0.010416667
    %v1054 = vmul.f32 %v1018, 0.010416667
    %v1055 = vmul.f32 %v1021, 0.010416667
    %v1056 = vmul.f32 %v1024, 0.010416667
    %v1057 = vmul.f32 %v1027, 0.010416667
    %v1058 = vmul.f32 %v1030, 0.010416667
    %v1059 = vmul.f32 %v1033, 0.010416667
    %v1060 = vmul.f32 %v1036, 0.010416667
    %v1061 = vmul.f32 %v1039, 0.010416667
    %v1062 = vmul.f32 %v1042, 0.010416667
    %v1063 = vmul.f32 %v1045, 0.010416667
    %v1064 = vmul.f32 %v1048, 0.010416667
    %v1065 = vmul.f32 %v962, %v962
    %v1066 = vmul.f32 %v964, %v964
    %v1067 = vmul.f32 %v967, %v967
    %v1068 = vmul.f32 %v969, %v969
    %v1069 = vmul.f32 %v972, %v972
    %v1070 = vmul.f32 %v974, %v974
    %v1071 = vmul.f32 %v977, %v977
    %v1072 = vmul.f32 %v979, %v979
    %v1073 = vmul.f32 %v982, %v982
    %v1074 = vmul.f32 %v984, %v984
    %v1075 = vmul.f32 %v987, %v987
    %v1076 = vmul.f32 %v989, %v989
    %v1077 = vmul.f32 %v992, %v992
    %v1078 = vmul.f32 %v994, %v994
    %v1079 = vmul.f32 %v997, %v997
    %v1080 = vmul.f32 %v999, %v999
    %v1081 = vsel %vm305, %v1065, 0.0
    %1082 = vadd.xlane.f32.xlu0 %v1081
    %v1083 = vpop.xlane.xlu0 %1082
    %v1084 = vsel %vm305, %v1066, 0.0
    %1085 = vadd.xlane.f32.xlu0 %v1084
    %v1086 = vpop.xlane.xlu0 %1085
    %v1087 = vsel %vm305, %v1067, 0.0
    %1088 = vadd.xlane.f32.xlu0 %v1087
    %v1089 = vpop.xlane.xlu0 %1088
    %v1090 = vsel %vm305, %v1068, 0.0
    %1091 = vadd.xlane.f32.xlu0 %v1090
    %v1092 = vpop.xlane.xlu0 %1091
    %v1093 = vsel %vm305, %v1069, 0.0
    %1094 = vadd.xlane.f32.xlu0 %v1093
    %v1095 = vpop.xlane.xlu0 %1094
    %v1096 = vsel %vm305, %v1070, 0.0
    %1097 = vadd.xlane.f32.xlu0 %v1096
    %v1098 = vpop.xlane.xlu0 %1097
    %v1099 = vsel %vm305, %v1071, 0.0
    %1100 = vadd.xlane.f32.xlu0 %v1099
    %v1101 = vpop.xlane.xlu0 %1100
    %v1102 = vsel %vm305, %v1072, 0.0
    %1103 = vadd.xlane.f32.xlu0 %v1102
    %v1104 = vpop.xlane.xlu0 %1103
    %v1105 = vsel %vm305, %v1073, 0.0
    %1106 = vadd.xlane.f32.xlu0 %v1105
    %v1107 = vpop.xlane.xlu0 %1106
    %v1108 = vsel %vm305, %v1074, 0.0
    %1109 = vadd.xlane.f32.xlu0 %v1108
    %v1110 = vpop.xlane.xlu0 %1109
    %v1111 = vsel %vm305, %v1075, 0.0
    %1112 = vadd.xlane.f32.xlu0 %v1111
    %v1113 = vpop.xlane.xlu0 %1112
    %v1114 = vsel %vm305, %v1076, 0.0
    %1115 = vadd.xlane.f32.xlu0 %v1114
    %v1116 = vpop.xlane.xlu0 %1115
    %v1117 = vsel %vm305, %v1077, 0.0
    %1118 = vadd.xlane.f32.xlu0 %v1117
    %v1119 = vpop.xlane.xlu0 %1118
    %v1120 = vsel %vm305, %v1078, 0.0
    %1121 = vadd.xlane.f32.xlu0 %v1120
    %v1122 = vpop.xlane.xlu0 %1121
    %v1123 = vsel %vm305, %v1079, 0.0
    %1124 = vadd.xlane.f32.xlu0 %v1123
    %v1125 = vpop.xlane.xlu0 %1124
    %v1126 = vsel %vm305, %v1080, 0.0
    %1127 = vadd.xlane.f32.xlu0 %v1126
    %v1128 = vpop.xlane.xlu0 %1127
    %v1129 = vmul.f32 %v1083, 0.010416667
    %v1130 = vmul.f32 %v1086, 0.010416667
    %v1131 = vmul.f32 %v1089, 0.010416667
    %v1132 = vmul.f32 %v1092, 0.010416667
    %v1133 = vmul.f32 %v1095, 0.010416667
    %v1134 = vmul.f32 %v1098, 0.010416667
    %v1135 = vmul.f32 %v1101, 0.010416667
    %v1136 = vmul.f32 %v1104, 0.010416667
    %v1137 = vmul.f32 %v1107, 0.010416667
    %v1138 = vmul.f32 %v1110, 0.010416667
    %v1139 = vmul.f32 %v1113, 0.010416667
    %v1140 = vmul.f32 %v1116, 0.010416667
    %v1141 = vmul.f32 %v1119, 0.010416667
    %v1142 = vmul.f32 %v1122, 0.010416667
    %v1143 = vmul.f32 %v1125, 0.010416667
    %v1144 = vmul.f32 %v1128, 0.010416667
    %v1145 = vmul.f32 %v1049, %v1049
    %v1146 = vmul.f32 %v1050, %v1050
    %v1147 = vmul.f32 %v1051, %v1051
    %v1148 = vmul.f32 %v1052, %v1052
    %v1149 = vmul.f32 %v1053, %v1053
    %v1150 = vmul.f32 %v1054, %v1054
    %v1151 = vmul.f32 %v1055, %v1055
    %v1152 = vmul.f32 %v1056, %v1056
    %v1153 = vmul.f32 %v1057, %v1057
    %v1154 = vmul.f32 %v1058, %v1058
    %v1155 = vmul.f32 %v1059, %v1059
    %v1156 = vmul.f32 %v1060, %v1060
    %v1157 = vmul.f32 %v1061, %v1061
    %v1158 = vmul.f32 %v1062, %v1062
    %v1159 = vmul.f32 %v1063, %v1063
    %v1160 = vmul.f32 %v1064, %v1064
    %v1161 = vsub.f32 %v1129, %v1145
    %v1162 = vsub.f32 %v1130, %v1146
    %v1163 = vsub.f32 %v1131, %v1147
    %v1164 = vsub.f32 %v1132, %v1148
    %v1165 = vsub.f32 %v1133, %v1149
    %v1166 = vsub.f32 %v1134, %v1150
    %v1167 = vsub.f32 %v1135, %v1151
    %v1168 = vsub.f32 %v1136, %v1152
    %v1169 = vsub.f32 %v1137, %v1153
    %v1170 = vsub.f32 %v1138, %v1154
    %v1171 = vsub.f32 %v1139, %v1155
    %v1172 = vsub.f32 %v1140, %v1156
    %v1173 = vsub.f32 %v1141, %v1157
    %v1174 = vsub.f32 %v1142, %v1158
    %v1175 = vsub.f32 %v1143, %v1159
    %v1176 = vsub.f32 %v1144, %v1160
    %v1177 = vmax.f32 %v1161, 0.0
    %v1178 = vmax.f32 %v1162, 0.0
    %v1179 = vmax.f32 %v1163, 0.0
    %v1180 = vmax.f32 %v1164, 0.0
    %v1181 = vmax.f32 %v1165, 0.0
    %v1182 = vmax.f32 %v1166, 0.0
    %v1183 = vmax.f32 %v1167, 0.0
    %v1184 = vmax.f32 %v1168, 0.0
    %v1185 = vmax.f32 %v1169, 0.0
    %v1186 = vmax.f32 %v1170, 0.0
    %v1187 = vmax.f32 %v1171, 0.0
    %v1188 = vmax.f32 %v1172, 0.0
    %v1189 = vmax.f32 %v1173, 0.0
    %v1190 = vmax.f32 %v1174, 0.0
    %v1191 = vmax.f32 %v1175, 0.0
    %v1192 = vmax.f32 %v1176, 0.0
    %v1193 = vadd.f32 %v1177, 1e-05
    %v1194 = vadd.f32 %v1178, 1e-05
    %v1195 = vadd.f32 %v1179, 1e-05
    %v1196 = vadd.f32 %v1180, 1e-05
    %v1197 = vadd.f32 %v1181, 1e-05
    %v1198 = vadd.f32 %v1182, 1e-05
    %v1199 = vadd.f32 %v1183, 1e-05
    %v1200 = vadd.f32 %v1184, 1e-05
    %v1201 = vadd.f32 %v1185, 1e-05
    %v1202 = vadd.f32 %v1186, 1e-05
    %v1203 = vadd.f32 %v1187, 1e-05
    %v1204 = vadd.f32 %v1188, 1e-05
    %v1205 = vadd.f32 %v1189, 1e-05
    %v1206 = vadd.f32 %v1190, 1e-05
    %v1207 = vadd.f32 %v1191, 1e-05
    %v1208 = vadd.f32 %v1192, 1e-05
    %v1209 = vrsqrt.pop %v1193
    %v1210 = vmul.f32 %v1209, %v1193
    %v1211 = vmul.f32 %v1210, %v1209
    %v1212 = vmul.f32 0.5, %v1211
    %v1213 = vsub.f32 1.5, %v1212
    %v1214 = vmul.f32 %v1209, %v1213
    %vm1215 = vweird.f32 %v1193
    %vm1216 = vweird.f32 %v1209
    %vm1217 = vmor %vm1215, %vm1216
    %v1218 = vsel %vm1217, %v1209, %v1214
    %v1219 = vrsqrt.pop %v1194
    %v1220 = vmul.f32 %v1219, %v1194
    %v1221 = vmul.f32 %v1220, %v1219
    %v1222 = vmul.f32 0.5, %v1221
    %v1223 = vsub.f32 1.5, %v1222
    %v1224 = vmul.f32 %v1219, %v1223
    %vm1225 = vweird.f32 %v1194
    %vm1226 = vweird.f32 %v1219
    %vm1227 = vmor %vm1225, %vm1226
    %v1228 = vsel %vm1227, %v1219, %v1224
    %v1229 = vrsqrt.pop %v1195
    %v1230 = vmul.f32 %v1229, %v1195
    %v1231 = vmul.f32 %v1230, %v1229
    %v1232 = vmul.f32 0.5, %v1231
    %v1233 = vsub.f32 1.5, %v1232
    %v1234 = vmul.f32 %v1229, %v1233
    %vm1235 = vweird.f32 %v1195
    %vm1236 = vweird.f32 %v1229
    %vm1237 = vmor %vm1235, %vm1236
    %v1238 = vsel %vm1237, %v1229, %v1234
    %v1239 = vrsqrt.pop %v1196
    %v1240 = vmul.f32 %v1239, %v1196
    %v1241 = vmul.f32 %v1240, %v1239
    %v1242 = vmul.f32 0.5, %v1241
    %v1243 = vsub.f32 1.5, %v1242
    %v1244 = vmul.f32 %v1239, %v1243
    %vm1245 = vweird.f32 %v1196
    %vm1246 = vweird.f32 %v1239
    %vm1247 = vmor %vm1245, %vm1246
    %v1248 = vsel %vm1247, %v1239, %v1244
    %v1249 = vrsqrt.pop %v1197
    %v1250 = vmul.f32 %v1249, %v1197
    %v1251 = vmul.f32 %v1250, %v1249
    %v1252 = vmul.f32 0.5, %v1251
    %v1253 = vsub.f32 1.5, %v1252
    %v1254 = vmul.f32 %v1249, %v1253
    %vm1255 = vweird.f32 %v1197
    %vm1256 = vweird.f32 %v1249
    %vm1257 = vmor %vm1255, %vm1256
    %v1258 = vsel %vm1257, %v1249, %v1254
    %v1259 = vrsqrt.pop %v1198
    %v1260 = vmul.f32 %v1259, %v1198
    %v1261 = vmul.f32 %v1260, %v1259
    %v1262 = vmul.f32 0.5, %v1261
    %v1263 = vsub.f32 1.5, %v1262
    %v1264 = vmul.f32 %v1259, %v1263
    %vm1265 = vweird.f32 %v1198
    %vm1266 = vweird.f32 %v1259
    %vm1267 = vmor %vm1265, %vm1266
    %v1268 = vsel %vm1267, %v1259, %v1264
    %v1269 = vrsqrt.pop %v1199
    %v1270 = vmul.f32 %v1269, %v1199
    %v1271 = vmul.f32 %v1270, %v1269
    %v1272 = vmul.f32 0.5, %v1271
    %v1273 = vsub.f32 1.5, %v1272
    %v1274 = vmul.f32 %v1269, %v1273
    %vm1275 = vweird.f32 %v1199
    %vm1276 = vweird.f32 %v1269
    %vm1277 = vmor %vm1275, %vm1276
    %v1278 = vsel %vm1277, %v1269, %v1274
    %v1279 = vrsqrt.pop %v1200
    %v1280 = vmul.f32 %v1279, %v1200
    %v1281 = vmul.f32 %v1280, %v1279
    %v1282 = vmul.f32 0.5, %v1281
    %v1283 = vsub.f32 1.5, %v1282
    %v1284 = vmul.f32 %v1279, %v1283
    %vm1285 = vweird.f32 %v1200
    %vm1286 = vweird.f32 %v1279
    %vm1287 = vmor %vm1285, %vm1286
    %v1288 = vsel %vm1287, %v1279, %v1284
    %v1289 = vrsqrt.pop %v1201
    %v1290 = vmul.f32 %v1289, %v1201
    %v1291 = vmul.f32 %v1290, %v1289
    %v1292 = vmul.f32 0.5, %v1291
    %v1293 = vsub.f32 1.5, %v1292
    %v1294 = vmul.f32 %v1289, %v1293
    %vm1295 = vweird.f32 %v1201
    %vm1296 = vweird.f32 %v1289
    %vm1297 = vmor %vm1295, %vm1296
    %v1298 = vsel %vm1297, %v1289, %v1294
    %v1299 = vrsqrt.pop %v1202
    %v1300 = vmul.f32 %v1299, %v1202
    %v1301 = vmul.f32 %v1300, %v1299
    %v1302 = vmul.f32 0.5, %v1301
    %v1303 = vsub.f32 1.5, %v1302
    %v1304 = vmul.f32 %v1299, %v1303
    %vm1305 = vweird.f32 %v1202
    %vm1306 = vweird.f32 %v1299
    %vm1307 = vmor %vm1305, %vm1306
    %v1308 = vsel %vm1307, %v1299, %v1304
    %v1309 = vrsqrt.pop %v1203
    %v1310 = vmul.f32 %v1309, %v1203
    %v1311 = vmul.f32 %v1310, %v1309
    %v1312 = vmul.f32 0.5, %v1311
    %v1313 = vsub.f32 1.5, %v1312
    %v1314 = vmul.f32 %v1309, %v1313
    %vm1315 = vweird.f32 %v1203
    %vm1316 = vweird.f32 %v1309
    %vm1317 = vmor %vm1315, %vm1316
    %v1318 = vsel %vm1317, %v1309, %v1314
    %v1319 = vrsqrt.pop %v1204
    %v1320 = vmul.f32 %v1319, %v1204
    %v1321 = vmul.f32 %v1320, %v1319
    %v1322 = vmul.f32 0.5, %v1321
    %v1323 = vsub.f32 1.5, %v1322
    %v1324 = vmul.f32 %v1319, %v1323
    %vm1325 = vweird.f32 %v1204
    %vm1326 = vweird.f32 %v1319
    %vm1327 = vmor %vm1325, %vm1326
    %v1328 = vsel %vm1327, %v1319, %v1324
    %v1329 = vrsqrt.pop %v1205
    %v1330 = vmul.f32 %v1329, %v1205
    %v1331 = vmul.f32 %v1330, %v1329
    %v1332 = vmul.f32 0.5, %v1331
    %v1333 = vsub.f32 1.5, %v1332
    %v1334 = vmul.f32 %v1329, %v1333
    %vm1335 = vweird.f32 %v1205
    %vm1336 = vweird.f32 %v1329
    %vm1337 = vmor %vm1335, %vm1336
    %v1338 = vsel %vm1337, %v1329, %v1334
    %v1339 = vrsqrt.pop %v1206
    %v1340 = vmul.f32 %v1339, %v1206
    %v1341 = vmul.f32 %v1340, %v1339
    %v1342 = vmul.f32 0.5, %v1341
    %v1343 = vsub.f32 1.5, %v1342
    %v1344 = vmul.f32 %v1339, %v1343
    %vm1345 = vweird.f32 %v1206
    %vm1346 = vweird.f32 %v1339
    %vm1347 = vmor %vm1345, %vm1346
    %v1348 = vsel %vm1347, %v1339, %v1344
    %v1349 = vrsqrt.pop %v1207
    %v1350 = vmul.f32 %v1349, %v1207
    %v1351 = vmul.f32 %v1350, %v1349
    %v1352 = vmul.f32 0.5, %v1351
    %v1353 = vsub.f32 1.5, %v1352
    %v1354 = vmul.f32 %v1349, %v1353
    %vm1355 = vweird.f32 %v1207
    %vm1356 = vweird.f32 %v1349
    %vm1357 = vmor %vm1355, %vm1356
    %v1358 = vsel %vm1357, %v1349, %v1354
    %v1359 = vrsqrt.pop %v1208
    %v1360 = vmul.f32 %v1359, %v1208
    %v1361 = vmul.f32 %v1360, %v1359
    %v1362 = vmul.f32 0.5, %v1361
    %v1363 = vsub.f32 1.5, %v1362
    %v1364 = vmul.f32 %v1359, %v1363
    %vm1365 = vweird.f32 %v1208
    %vm1366 = vweird.f32 %v1359
    %vm1367 = vmor %vm1365, %vm1366
    %v1368 = vsel %vm1367, %v1359, %v1364
    %v1369 = vsub.f32 %v962, %v1049
    %v1370 = vsub.f32 %v964, %v1050
    %v1371 = vsub.f32 %v967, %v1051
    %v1372 = vsub.f32 %v969, %v1052
    %v1373 = vsub.f32 %v972, %v1053
    %v1374 = vsub.f32 %v974, %v1054
    %v1375 = vsub.f32 %v977, %v1055
    %v1376 = vsub.f32 %v979, %v1056
    %v1377 = vsub.f32 %v982, %v1057
    %v1378 = vsub.f32 %v984, %v1058
    %v1379 = vsub.f32 %v987, %v1059
    %v1380 = vsub.f32 %v989, %v1060
    %v1381 = vsub.f32 %v992, %v1061
    %v1382 = vsub.f32 %v994, %v1062
    %v1383 = vsub.f32 %v997, %v1063
    %v1384 = vsub.f32 %v999, %v1064
    %v1385 = vmul.f32 %v1369, %v1218
    %v1386 = vmul.f32 %v1370, %v1228
    %v1387 = vmul.f32 %v1371, %v1238
    %v1388 = vmul.f32 %v1372, %v1248
    %v1389 = vmul.f32 %v1373, %v1258
    %v1390 = vmul.f32 %v1374, %v1268
    %v1391 = vmul.f32 %v1375, %v1278
    %v1392 = vmul.f32 %v1376, %v1288
    %v1393 = vmul.f32 %v1377, %v1298
    %v1394 = vmul.f32 %v1378, %v1308
    %v1395 = vmul.f32 %v1379, %v1318
    %v1396 = vmul.f32 %v1380, %v1328
    %v1397 = vmul.f32 %v1381, %v1338
    %v1398 = vmul.f32 %v1382, %v1348
    %v1399 = vmul.f32 %v1383, %v1358
    %v1400 = vmul.f32 %v1384, %v1368
    %v1401 = vld [vmem:[%s21] sm:$0x1]
    %v1403 = vperm.slane %v1401, 0
    %v1405 = vmul.f32 %v1385, %v1403
    %v1406 = vmul.f32 %v1386, %v1403
    %v1407 = vmul.f32 %v1387, %v1403
    %v1408 = vmul.f32 %v1388, %v1403
    %v1409 = vmul.f32 %v1389, %v1403
    %v1410 = vmul.f32 %v1390, %v1403
    %v1411 = vmul.f32 %v1391, %v1403
    %v1412 = vmul.f32 %v1392, %v1403
    %v1413 = vmul.f32 %v1393, %v1403
    %v1414 = vmul.f32 %v1394, %v1403
    %v1415 = vmul.f32 %v1395, %v1403
    %v1416 = vmul.f32 %v1396, %v1403
    %v1417 = vmul.f32 %v1397, %v1403
    %v1418 = vmul.f32 %v1398, %v1403
    %v1419 = vmul.f32 %v1399, %v1403
    %v1420 = vmul.f32 %v1400, %v1403
    %v1421 = vld [vmem:[%s23] sm:$0x1]
    %v1423 = vperm.slane %v1421, 0
    %v1425 = vadd.f32 %v1405, %v1423
    %v1426 = vadd.f32 %v1406, %v1423
    %v1427 = vadd.f32 %v1407, %v1423
    %v1428 = vadd.f32 %v1408, %v1423
    %v1429 = vadd.f32 %v1409, %v1423
    %v1430 = vadd.f32 %v1410, %v1423
    %v1431 = vadd.f32 %v1411, %v1423
    %v1432 = vadd.f32 %v1412, %v1423
    %v1433 = vadd.f32 %v1413, %v1423
    %v1434 = vadd.f32 %v1414, %v1423
    %v1435 = vadd.f32 %v1415, %v1423
    %v1436 = vadd.f32 %v1416, %v1423
    %v1437 = vadd.f32 %v1417, %v1423
    %v1438 = vadd.f32 %v1418, %v1423
    %v1439 = vadd.f32 %v1419, %v1423
    %v1440 = vadd.f32 %v1420, %v1423
    %vm1441 = vcmp.ge.f32.partialorder %v1425, 0.0
    %vm1442 = vcmp.ge.f32.partialorder %v1426, 0.0
    %vm1443 = vcmp.ge.f32.partialorder %v1427, 0.0
    %vm1444 = vcmp.ge.f32.partialorder %v1428, 0.0
    %vm1445 = vcmp.ge.f32.partialorder %v1429, 0.0
    %vm1446 = vcmp.ge.f32.partialorder %v1430, 0.0
    %vm1447 = vcmp.ge.f32.partialorder %v1431, 0.0
    %vm1448 = vcmp.ge.f32.partialorder %v1432, 0.0
    %vm1449 = vcmp.ge.f32.partialorder %v1433, 0.0
    %vm1450 = vcmp.ge.f32.partialorder %v1434, 0.0
    %vm1451 = vcmp.ge.f32.partialorder %v1435, 0.0
    %vm1452 = vcmp.ge.f32.partialorder %v1436, 0.0
    %vm1453 = vcmp.ge.f32.partialorder %v1437, 0.0
    %vm1454 = vcmp.ge.f32.partialorder %v1438, 0.0
    %vm1455 = vcmp.ge.f32.partialorder %v1439, 0.0
    %vm1456 = vcmp.ge.f32.partialorder %v1440, 0.0
    %v1457 = vstv %s190
    %v1458 = vmul.f32 %v1457, %v1425
    %v1459 = vmul.f32 %v1457, %v1426
    %v1460 = vmul.f32 %v1457, %v1427
    %v1461 = vmul.f32 %v1457, %v1428
    %v1462 = vmul.f32 %v1457, %v1429
    %v1463 = vmul.f32 %v1457, %v1430
    %v1464 = vmul.f32 %v1457, %v1431
    %v1465 = vmul.f32 %v1457, %v1432
    %v1466 = vmul.f32 %v1457, %v1433
    %v1467 = vmul.f32 %v1457, %v1434
    %v1468 = vmul.f32 %v1457, %v1435
    %v1469 = vmul.f32 %v1457, %v1436
    %v1470 = vmul.f32 %v1457, %v1437
    %v1471 = vmul.f32 %v1457, %v1438
    %v1472 = vmul.f32 %v1457, %v1439
    %v1473 = vmul.f32 %v1457, %v1440
    %v1474 = vsel %vm1441, %v1425, %v1458
    %v1475 = vsel %vm1442, %v1426, %v1459
    %v1476 = vsel %vm1443, %v1427, %v1460
    %v1477 = vsel %vm1444, %v1428, %v1461
    %v1478 = vsel %vm1445, %v1429, %v1462
    %v1479 = vsel %vm1446, %v1430, %v1463
    %v1480 = vsel %vm1447, %v1431, %v1464
    %v1481 = vsel %vm1448, %v1432, %v1465
    %v1482 = vsel %vm1449, %v1433, %v1466
    %v1483 = vsel %vm1450, %v1434, %v1467
    %v1484 = vsel %vm1451, %v1435, %v1468
    %v1485 = vsel %vm1452, %v1436, %v1469
    %v1486 = vsel %vm1453, %v1437, %v1470
    %v1487 = vsel %vm1454, %v1438, %v1471
    %v1488 = vsel %vm1455, %v1439, %v1472
    %v1489 = vsel %vm1456, %v1440, %v1473
    %v1490 = vld [vmem:[%s3] sm:$0xf]
    %v1491 = vld [vmem:[%s3 + $0x4] sm:$0xf]
    %v1492 = vld [vmem:[%s3 + $0x8] sm:$0xf]
    %v1493 = vld [vmem:[%s3 + $0xc] sm:$0xf]
    %v1494 = vld [vmem:[%s3 + $0x10] sm:$0xf]
    %v1495 = vld [vmem:[%s3 + $0x14] sm:$0xf]
    %v1496 = vld [vmem:[%s3 + $0x18] sm:$0xf]
    %v1497 = vld [vmem:[%s3 + $0x1c] sm:$0xf]
    %v1498 = vld [vmem:[%s3 + $0x20] sm:$0xf]
    %v1499 = vld [vmem:[%s3 + $0x24] sm:$0xf]
    %v1500 = vld [vmem:[%s3 + $0x28] sm:$0xf]
    %v1501 = vld [vmem:[%s3 + $0x2c] sm:$0xf]
    %v1502 = vld [vmem:[%s3 + $0x30] sm:$0xf]
    %v1503 = vld [vmem:[%s3 + $0x34] sm:$0xf]
    %v1504 = vld [vmem:[%s3 + $0x38] sm:$0xf]
    %v1505 = vld [vmem:[%s3 + $0x3c] sm:$0xf]
    %v1506 = vld [vmem:[%s25] sm:$0xf]
    %v1507 = vld [vmem:[%s25 + $0x4] sm:$0xf]
    %v1508 = vld [vmem:[%s27] sm:$0x1]
    %v1510 = vperm.slane %v1508, 0
    %v1528 = vunpack.c.l.b16 %v1490
    %v1529 = vunpack.c.l.b16 %v1491
    %v1530 = vunpack.c.l.b16 %v1492
    %v1531 = vunpack.c.l.b16 %v1493
    %v1532 = vunpack.c.l.b16 %v1494
    %v1533 = vunpack.c.l.b16 %v1495
    %v1534 = vunpack.c.l.b16 %v1496
    %v1535 = vunpack.c.l.b16 %v1497
    %v1536 = vunpack.c.l.b16 %v1498
    %v1537 = vunpack.c.l.b16 %v1499
    %v1538 = vunpack.c.l.b16 %v1500
    %v1539 = vunpack.c.l.b16 %v1501
    %v1540 = vunpack.c.l.b16 %v1502
    %v1541 = vunpack.c.l.b16 %v1503
    %v1542 = vunpack.c.l.b16 %v1504
    %v1543 = vunpack.c.l.b16 %v1505
    %v1544 = vpack.c.b16 %v1529, %v1528
    %v1545 = vpack.c.b16 %v1531, %v1530
    %v1546 = vpack.c.b16 %v1533, %v1532
    %v1547 = vpack.c.b16 %v1535, %v1534
    %v1548 = vpack.c.b16 %v1537, %v1536
    %v1549 = vpack.c.b16 %v1539, %v1538
    %v1550 = vpack.c.b16 %v1541, %v1540
    %v1551 = vpack.c.b16 %v1543, %v1542
    %v1554 = vunpack.c.l.b16 %v1506
    %v1555 = vunpack.c.l.b16 %v1507
    %v1556 = vpack.c.b16 %v1555, %v1554
    %vm1558 = vcmask 130048
    %v1560 = vsel %vm1558, %v1544, 0
    %v1563 = vsel %vm1558, %v1545, 0
    %v1566 = vsel %vm1558, %v1546, 0
    %v1569 = vsel %vm1558, %v1547, 0
    %v1572 = vsel %vm1558, %v1548, 0
    %v1575 = vsel %vm1558, %v1549, 0
    %v1578 = vsel %vm1558, %v1550, 0
    %v1581 = vsel %vm1558, %v1551, 0
    %1583 = vmatpush.bf16.msra.mxu0 0
    %1584 = vmatpush.bf16.msra.mxu0 0
    %1585 = vmatpush.bf16.msra.mxu0 0
    %1586 = vmatpush.bf16.msra.mxu0 0
    %1587 = vmatpush.bf16.msra.mxu0 0
    %1588 = vmatpush.bf16.msra.mxu0 0
    %1589 = vmatpush.bf16.msra.mxu0 0
    %1590 = vmatpush.bf16.msra.mxu0 %v1556
    %1591 = vmatmul.bf16.gmra.mxu0 %v1560
    %v1592 = vpop.f32.mrf.mxu0
    %v1593 = vadd.f32 %v1510, %v1592
    %v1594 = vpop.f32.mrf.mxu0
    %v1595 = vadd.f32 %v1510, %v1594
    %1596 = vmatmul.bf16.gmra.mxu0 %v1563
    %v1597 = vpop.f32.mrf.mxu0
    %v1598 = vadd.f32 %v1510, %v1597
    %v1599 = vpop.f32.mrf.mxu0
    %v1600 = vadd.f32 %v1510, %v1599
    %1601 = vmatmul.bf16.gmra.mxu0 %v1566
    %v1602 = vpop.f32.mrf.mxu0
    %v1603 = vadd.f32 %v1510, %v1602
    %v1604 = vpop.f32.mrf.mxu0
    %v1605 = vadd.f32 %v1510, %v1604
    %1606 = vmatmul.bf16.gmra.mxu0 %v1569
    %v1607 = vpop.f32.mrf.mxu0
    %v1608 = vadd.f32 %v1510, %v1607
    %v1609 = vpop.f32.mrf.mxu0
    %v1610 = vadd.f32 %v1510, %v1609
    %1611 = vmatmul.bf16.gmra.mxu0 %v1572
    %v1612 = vpop.f32.mrf.mxu0
    %v1613 = vadd.f32 %v1510, %v1612
    %v1614 = vpop.f32.mrf.mxu0
    %v1615 = vadd.f32 %v1510, %v1614
    %1616 = vmatmul.bf16.gmra.mxu0 %v1575
    %v1617 = vpop.f32.mrf.mxu0
    %v1618 = vadd.f32 %v1510, %v1617
    %v1619 = vpop.f32.mrf.mxu0
    %v1620 = vadd.f32 %v1510, %v1619
    %1621 = vmatmul.bf16.gmra.mxu0 %v1578
    %v1622 = vpop.f32.mrf.mxu0
    %v1623 = vadd.f32 %v1510, %v1622
    %v1624 = vpop.f32.mrf.mxu0
    %v1625 = vadd.f32 %v1510, %v1624
    %1626 = vmatmul.bf16.gmra.mxu0 %v1581
    %v1627 = vpop.f32.mrf.mxu0
    %v1628 = vadd.f32 %v1510, %v1627
    %v1629 = vpop.f32.mrf.mxu0
    %v1630 = vadd.f32 %v1510, %v1629
    %1631 = vdwg.mxu0
    %vm1632 = vcmask 523264
    %v1633 = vsel %vm1632, %v1593, 0.0
    %1634 = vadd.xlane.f32.xlu0 %v1633
    %v1635 = vpop.xlane.xlu0 %1634
    %v1636 = vsel %vm1632, %v1595, 0.0
    %1637 = vadd.xlane.f32.xlu0 %v1636
    %v1638 = vpop.xlane.xlu0 %1637
    %v1639 = vsel %vm1632, %v1598, 0.0
    %1640 = vadd.xlane.f32.xlu0 %v1639
    %v1641 = vpop.xlane.xlu0 %1640
    %v1642 = vsel %vm1632, %v1600, 0.0
    %1643 = vadd.xlane.f32.xlu0 %v1642
    %v1644 = vpop.xlane.xlu0 %1643
    %v1645 = vsel %vm1632, %v1603, 0.0
    %1646 = vadd.xlane.f32.xlu0 %v1645
    %v1647 = vpop.xlane.xlu0 %1646
    %v1648 = vsel %vm1632, %v1605, 0.0
    %1649 = vadd.xlane.f32.xlu0 %v1648
    %v1650 = vpop.xlane.xlu0 %1649
    %v1651 = vsel %vm1632, %v1608, 0.0
    %1652 = vadd.xlane.f32.xlu0 %v1651
    %v1653 = vpop.xlane.xlu0 %1652
    %v1654 = vsel %vm1632, %v1610, 0.0
    %1655 = vadd.xlane.f32.xlu0 %v1654
    %v1656 = vpop.xlane.xlu0 %1655
    %v1657 = vsel %vm1632, %v1613, 0.0
    %1658 = vadd.xlane.f32.xlu0 %v1657
    %v1659 = vpop.xlane.xlu0 %1658
    %v1660 = vsel %vm1632, %v1615, 0.0
    %1661 = vadd.xlane.f32.xlu0 %v1660
    %v1662 = vpop.xlane.xlu0 %1661
    %v1663 = vsel %vm1632, %v1618, 0.0
    %1664 = vadd.xlane.f32.xlu0 %v1663
    %v1665 = vpop.xlane.xlu0 %1664
    %v1666 = vsel %vm1632, %v1620, 0.0
    %1667 = vadd.xlane.f32.xlu0 %v1666
    %v1668 = vpop.xlane.xlu0 %1667
    %v1669 = vsel %vm1632, %v1623, 0.0
    %1670 = vadd.xlane.f32.xlu0 %v1669
    %v1671 = vpop.xlane.xlu0 %1670
    %v1672 = vsel %vm1632, %v1625, 0.0
    %1673 = vadd.xlane.f32.xlu0 %v1672
    %v1674 = vpop.xlane.xlu0 %1673
    %v1675 = vsel %vm1632, %v1628, 0.0
    %1676 = vadd.xlane.f32.xlu0 %v1675
    %v1677 = vpop.xlane.xlu0 %1676
    %v1678 = vsel %vm1632, %v1630, 0.0
    %1679 = vadd.xlane.f32.xlu0 %v1678
    %v1680 = vpop.xlane.xlu0 %1679
    %v1681 = vmul.f32 %v1635, 0.015625
    %v1682 = vmul.f32 %v1638, 0.015625
    %v1683 = vmul.f32 %v1641, 0.015625
    %v1684 = vmul.f32 %v1644, 0.015625
    %v1685 = vmul.f32 %v1647, 0.015625
    %v1686 = vmul.f32 %v1650, 0.015625
    %v1687 = vmul.f32 %v1653, 0.015625
    %v1688 = vmul.f32 %v1656, 0.015625
    %v1689 = vmul.f32 %v1659, 0.015625
    %v1690 = vmul.f32 %v1662, 0.015625
    %v1691 = vmul.f32 %v1665, 0.015625
    %v1692 = vmul.f32 %v1668, 0.015625
    %v1693 = vmul.f32 %v1671, 0.015625
    %v1694 = vmul.f32 %v1674, 0.015625
    %v1695 = vmul.f32 %v1677, 0.015625
    %v1696 = vmul.f32 %v1680, 0.015625
    %v1697 = vmul.f32 %v1593, %v1593
    %v1698 = vmul.f32 %v1595, %v1595
    %v1699 = vmul.f32 %v1598, %v1598
    %v1700 = vmul.f32 %v1600, %v1600
    %v1701 = vmul.f32 %v1603, %v1603
    %v1702 = vmul.f32 %v1605, %v1605
    %v1703 = vmul.f32 %v1608, %v1608
    %v1704 = vmul.f32 %v1610, %v1610
    %v1705 = vmul.f32 %v1613, %v1613
    %v1706 = vmul.f32 %v1615, %v1615
    %v1707 = vmul.f32 %v1618, %v1618
    %v1708 = vmul.f32 %v1620, %v1620
    %v1709 = vmul.f32 %v1623, %v1623
    %v1710 = vmul.f32 %v1625, %v1625
    %v1711 = vmul.f32 %v1628, %v1628
    %v1712 = vmul.f32 %v1630, %v1630
    %v1713 = vsel %vm1632, %v1697, 0.0
    %1714 = vadd.xlane.f32.xlu0 %v1713
    %v1715 = vpop.xlane.xlu0 %1714
    %v1716 = vsel %vm1632, %v1698, 0.0
    %1717 = vadd.xlane.f32.xlu0 %v1716
    %v1718 = vpop.xlane.xlu0 %1717
    %v1719 = vsel %vm1632, %v1699, 0.0
    %1720 = vadd.xlane.f32.xlu0 %v1719
    %v1721 = vpop.xlane.xlu0 %1720
    %v1722 = vsel %vm1632, %v1700, 0.0
    %1723 = vadd.xlane.f32.xlu0 %v1722
    %v1724 = vpop.xlane.xlu0 %1723
    %v1725 = vsel %vm1632, %v1701, 0.0
    %1726 = vadd.xlane.f32.xlu0 %v1725
    %v1727 = vpop.xlane.xlu0 %1726
    %v1728 = vsel %vm1632, %v1702, 0.0
    %1729 = vadd.xlane.f32.xlu0 %v1728
    %v1730 = vpop.xlane.xlu0 %1729
    %v1731 = vsel %vm1632, %v1703, 0.0
    %1732 = vadd.xlane.f32.xlu0 %v1731
    %v1733 = vpop.xlane.xlu0 %1732
    %v1734 = vsel %vm1632, %v1704, 0.0
    %1735 = vadd.xlane.f32.xlu0 %v1734
    %v1736 = vpop.xlane.xlu0 %1735
    %v1737 = vsel %vm1632, %v1705, 0.0
    %1738 = vadd.xlane.f32.xlu0 %v1737
    %v1739 = vpop.xlane.xlu0 %1738
    %v1740 = vsel %vm1632, %v1706, 0.0
    %1741 = vadd.xlane.f32.xlu0 %v1740
    %v1742 = vpop.xlane.xlu0 %1741
    %v1743 = vsel %vm1632, %v1707, 0.0
    %1744 = vadd.xlane.f32.xlu0 %v1743
    %v1745 = vpop.xlane.xlu0 %1744
    %v1746 = vsel %vm1632, %v1708, 0.0
    %1747 = vadd.xlane.f32.xlu0 %v1746
    %v1748 = vpop.xlane.xlu0 %1747
    %v1749 = vsel %vm1632, %v1709, 0.0
    %1750 = vadd.xlane.f32.xlu0 %v1749
    %v1751 = vpop.xlane.xlu0 %1750
    %v1752 = vsel %vm1632, %v1710, 0.0
    %1753 = vadd.xlane.f32.xlu0 %v1752
    %v1754 = vpop.xlane.xlu0 %1753
    %v1755 = vsel %vm1632, %v1711, 0.0
    %1756 = vadd.xlane.f32.xlu0 %v1755
    %v1757 = vpop.xlane.xlu0 %1756
    %v1758 = vsel %vm1632, %v1712, 0.0
    %1759 = vadd.xlane.f32.xlu0 %v1758
    %v1760 = vpop.xlane.xlu0 %1759
    %v1761 = vmul.f32 %v1715, 0.015625
    %v1762 = vmul.f32 %v1718, 0.015625
    %v1763 = vmul.f32 %v1721, 0.015625
    %v1764 = vmul.f32 %v1724, 0.015625
    %v1765 = vmul.f32 %v1727, 0.015625
    %v1766 = vmul.f32 %v1730, 0.015625
    %v1767 = vmul.f32 %v1733, 0.015625
    %v1768 = vmul.f32 %v1736, 0.015625
    %v1769 = vmul.f32 %v1739, 0.015625
    %v1770 = vmul.f32 %v1742, 0.015625
    %v1771 = vmul.f32 %v1745, 0.015625
    %v1772 = vmul.f32 %v1748, 0.015625
    %v1773 = vmul.f32 %v1751, 0.015625
    %v1774 = vmul.f32 %v1754, 0.015625
    %v1775 = vmul.f32 %v1757, 0.015625
    %v1776 = vmul.f32 %v1760, 0.015625
    %v1777 = vmul.f32 %v1681, %v1681
    %v1778 = vmul.f32 %v1682, %v1682
    %v1779 = vmul.f32 %v1683, %v1683
    %v1780 = vmul.f32 %v1684, %v1684
    %v1781 = vmul.f32 %v1685, %v1685
    %v1782 = vmul.f32 %v1686, %v1686
    %v1783 = vmul.f32 %v1687, %v1687
    %v1784 = vmul.f32 %v1688, %v1688
    %v1785 = vmul.f32 %v1689, %v1689
    %v1786 = vmul.f32 %v1690, %v1690
    %v1787 = vmul.f32 %v1691, %v1691
    %v1788 = vmul.f32 %v1692, %v1692
    %v1789 = vmul.f32 %v1693, %v1693
    %v1790 = vmul.f32 %v1694, %v1694
    %v1791 = vmul.f32 %v1695, %v1695
    %v1792 = vmul.f32 %v1696, %v1696
    %v1793 = vsub.f32 %v1761, %v1777
    %v1794 = vsub.f32 %v1762, %v1778
    %v1795 = vsub.f32 %v1763, %v1779
    %v1796 = vsub.f32 %v1764, %v1780
    %v1797 = vsub.f32 %v1765, %v1781
    %v1798 = vsub.f32 %v1766, %v1782
    %v1799 = vsub.f32 %v1767, %v1783
    %v1800 = vsub.f32 %v1768, %v1784
    %v1801 = vsub.f32 %v1769, %v1785
    %v1802 = vsub.f32 %v1770, %v1786
    %v1803 = vsub.f32 %v1771, %v1787
    %v1804 = vsub.f32 %v1772, %v1788
    %v1805 = vsub.f32 %v1773, %v1789
    %v1806 = vsub.f32 %v1774, %v1790
    %v1807 = vsub.f32 %v1775, %v1791
    %v1808 = vsub.f32 %v1776, %v1792
    %v1809 = vmax.f32 %v1793, 0.0
    %v1810 = vmax.f32 %v1794, 0.0
    %v1811 = vmax.f32 %v1795, 0.0
    %v1812 = vmax.f32 %v1796, 0.0
    %v1813 = vmax.f32 %v1797, 0.0
    %v1814 = vmax.f32 %v1798, 0.0
    %v1815 = vmax.f32 %v1799, 0.0
    %v1816 = vmax.f32 %v1800, 0.0
    %v1817 = vmax.f32 %v1801, 0.0
    %v1818 = vmax.f32 %v1802, 0.0
    %v1819 = vmax.f32 %v1803, 0.0
    %v1820 = vmax.f32 %v1804, 0.0
    %v1821 = vmax.f32 %v1805, 0.0
    %v1822 = vmax.f32 %v1806, 0.0
    %v1823 = vmax.f32 %v1807, 0.0
    %v1824 = vmax.f32 %v1808, 0.0
    %v1825 = vadd.f32 %v1809, 1e-05
    %v1826 = vadd.f32 %v1810, 1e-05
    %v1827 = vadd.f32 %v1811, 1e-05
    %v1828 = vadd.f32 %v1812, 1e-05
    %v1829 = vadd.f32 %v1813, 1e-05
    %v1830 = vadd.f32 %v1814, 1e-05
    %v1831 = vadd.f32 %v1815, 1e-05
    %v1832 = vadd.f32 %v1816, 1e-05
    %v1833 = vadd.f32 %v1817, 1e-05
    %v1834 = vadd.f32 %v1818, 1e-05
    %v1835 = vadd.f32 %v1819, 1e-05
    %v1836 = vadd.f32 %v1820, 1e-05
    %v1837 = vadd.f32 %v1821, 1e-05
    %v1838 = vadd.f32 %v1822, 1e-05
    %v1839 = vadd.f32 %v1823, 1e-05
    %v1840 = vadd.f32 %v1824, 1e-05
    %v1841 = vrsqrt.pop %v1825
    %v1842 = vmul.f32 %v1841, %v1825
    %v1843 = vmul.f32 %v1842, %v1841
    %v1844 = vmul.f32 0.5, %v1843
    %v1845 = vsub.f32 1.5, %v1844
    %v1846 = vmul.f32 %v1841, %v1845
    %vm1847 = vweird.f32 %v1825
    %vm1848 = vweird.f32 %v1841
    %vm1849 = vmor %vm1847, %vm1848
    %v1850 = vsel %vm1849, %v1841, %v1846
    %v1851 = vrsqrt.pop %v1826
    %v1852 = vmul.f32 %v1851, %v1826
    %v1853 = vmul.f32 %v1852, %v1851
    %v1854 = vmul.f32 0.5, %v1853
    %v1855 = vsub.f32 1.5, %v1854
    %v1856 = vmul.f32 %v1851, %v1855
    %vm1857 = vweird.f32 %v1826
    %vm1858 = vweird.f32 %v1851
    %vm1859 = vmor %vm1857, %vm1858
    %v1860 = vsel %vm1859, %v1851, %v1856
    %v1861 = vrsqrt.pop %v1827
    %v1862 = vmul.f32 %v1861, %v1827
    %v1863 = vmul.f32 %v1862, %v1861
    %v1864 = vmul.f32 0.5, %v1863
    %v1865 = vsub.f32 1.5, %v1864
    %v1866 = vmul.f32 %v1861, %v1865
    %vm1867 = vweird.f32 %v1827
    %vm1868 = vweird.f32 %v1861
    %vm1869 = vmor %vm1867, %vm1868
    %v1870 = vsel %vm1869, %v1861, %v1866
    %v1871 = vrsqrt.pop %v1828
    %v1872 = vmul.f32 %v1871, %v1828
    %v1873 = vmul.f32 %v1872, %v1871
    %v1874 = vmul.f32 0.5, %v1873
    %v1875 = vsub.f32 1.5, %v1874
    %v1876 = vmul.f32 %v1871, %v1875
    %vm1877 = vweird.f32 %v1828
    %vm1878 = vweird.f32 %v1871
    %vm1879 = vmor %vm1877, %vm1878
    %v1880 = vsel %vm1879, %v1871, %v1876
    %v1881 = vrsqrt.pop %v1829
    %v1882 = vmul.f32 %v1881, %v1829
    %v1883 = vmul.f32 %v1882, %v1881
    %v1884 = vmul.f32 0.5, %v1883
    %v1885 = vsub.f32 1.5, %v1884
    %v1886 = vmul.f32 %v1881, %v1885
    %vm1887 = vweird.f32 %v1829
    %vm1888 = vweird.f32 %v1881
    %vm1889 = vmor %vm1887, %vm1888
    %v1890 = vsel %vm1889, %v1881, %v1886
    %v1891 = vrsqrt.pop %v1830
    %v1892 = vmul.f32 %v1891, %v1830
    %v1893 = vmul.f32 %v1892, %v1891
    %v1894 = vmul.f32 0.5, %v1893
    %v1895 = vsub.f32 1.5, %v1894
    %v1896 = vmul.f32 %v1891, %v1895
    %vm1897 = vweird.f32 %v1830
    %vm1898 = vweird.f32 %v1891
    %vm1899 = vmor %vm1897, %vm1898
    %v1900 = vsel %vm1899, %v1891, %v1896
    %v1901 = vrsqrt.pop %v1831
    %v1902 = vmul.f32 %v1901, %v1831
    %v1903 = vmul.f32 %v1902, %v1901
    %v1904 = vmul.f32 0.5, %v1903
    %v1905 = vsub.f32 1.5, %v1904
    %v1906 = vmul.f32 %v1901, %v1905
    %vm1907 = vweird.f32 %v1831
    %vm1908 = vweird.f32 %v1901
    %vm1909 = vmor %vm1907, %vm1908
    %v1910 = vsel %vm1909, %v1901, %v1906
    %v1911 = vrsqrt.pop %v1832
    %v1912 = vmul.f32 %v1911, %v1832
    %v1913 = vmul.f32 %v1912, %v1911
    %v1914 = vmul.f32 0.5, %v1913
    %v1915 = vsub.f32 1.5, %v1914
    %v1916 = vmul.f32 %v1911, %v1915
    %vm1917 = vweird.f32 %v1832
    %vm1918 = vweird.f32 %v1911
    %vm1919 = vmor %vm1917, %vm1918
    %v1920 = vsel %vm1919, %v1911, %v1916
    %v1921 = vrsqrt.pop %v1833
    %v1922 = vmul.f32 %v1921, %v1833
    %v1923 = vmul.f32 %v1922, %v1921
    %v1924 = vmul.f32 0.5, %v1923
    %v1925 = vsub.f32 1.5, %v1924
    %v1926 = vmul.f32 %v1921, %v1925
    %vm1927 = vweird.f32 %v1833
    %vm1928 = vweird.f32 %v1921
    %vm1929 = vmor %vm1927, %vm1928
    %v1930 = vsel %vm1929, %v1921, %v1926
    %v1931 = vrsqrt.pop %v1834
    %v1932 = vmul.f32 %v1931, %v1834
    %v1933 = vmul.f32 %v1932, %v1931
    %v1934 = vmul.f32 0.5, %v1933
    %v1935 = vsub.f32 1.5, %v1934
    %v1936 = vmul.f32 %v1931, %v1935
    %vm1937 = vweird.f32 %v1834
    %vm1938 = vweird.f32 %v1931
    %vm1939 = vmor %vm1937, %vm1938
    %v1940 = vsel %vm1939, %v1931, %v1936
    %v1941 = vrsqrt.pop %v1835
    %v1942 = vmul.f32 %v1941, %v1835
    %v1943 = vmul.f32 %v1942, %v1941
    %v1944 = vmul.f32 0.5, %v1943
    %v1945 = vsub.f32 1.5, %v1944
    %v1946 = vmul.f32 %v1941, %v1945
    %vm1947 = vweird.f32 %v1835
    %vm1948 = vweird.f32 %v1941
    %vm1949 = vmor %vm1947, %vm1948
    %v1950 = vsel %vm1949, %v1941, %v1946
    %v1951 = vrsqrt.pop %v1836
    %v1952 = vmul.f32 %v1951, %v1836
    %v1953 = vmul.f32 %v1952, %v1951
    %v1954 = vmul.f32 0.5, %v1953
    %v1955 = vsub.f32 1.5, %v1954
    %v1956 = vmul.f32 %v1951, %v1955
    %vm1957 = vweird.f32 %v1836
    %vm1958 = vweird.f32 %v1951
    %vm1959 = vmor %vm1957, %vm1958
    %v1960 = vsel %vm1959, %v1951, %v1956
    %v1961 = vrsqrt.pop %v1837
    %v1962 = vmul.f32 %v1961, %v1837
    %v1963 = vmul.f32 %v1962, %v1961
    %v1964 = vmul.f32 0.5, %v1963
    %v1965 = vsub.f32 1.5, %v1964
    %v1966 = vmul.f32 %v1961, %v1965
    %vm1967 = vweird.f32 %v1837
    %vm1968 = vweird.f32 %v1961
    %vm1969 = vmor %vm1967, %vm1968
    %v1970 = vsel %vm1969, %v1961, %v1966
    %v1971 = vrsqrt.pop %v1838
    %v1972 = vmul.f32 %v1971, %v1838
    %v1973 = vmul.f32 %v1972, %v1971
    %v1974 = vmul.f32 0.5, %v1973
    %v1975 = vsub.f32 1.5, %v1974
    %v1976 = vmul.f32 %v1971, %v1975
    %vm1977 = vweird.f32 %v1838
    %vm1978 = vweird.f32 %v1971
    %vm1979 = vmor %vm1977, %vm1978
    %v1980 = vsel %vm1979, %v1971, %v1976
    %v1981 = vrsqrt.pop %v1839
    %v1982 = vmul.f32 %v1981, %v1839
    %v1983 = vmul.f32 %v1982, %v1981
    %v1984 = vmul.f32 0.5, %v1983
    %v1985 = vsub.f32 1.5, %v1984
    %v1986 = vmul.f32 %v1981, %v1985
    %vm1987 = vweird.f32 %v1839
    %vm1988 = vweird.f32 %v1981
    %vm1989 = vmor %vm1987, %vm1988
    %v1990 = vsel %vm1989, %v1981, %v1986
    %v1991 = vrsqrt.pop %v1840
    %v1992 = vmul.f32 %v1991, %v1840
    %v1993 = vmul.f32 %v1992, %v1991
    %v1994 = vmul.f32 0.5, %v1993
    %v1995 = vsub.f32 1.5, %v1994
    %v1996 = vmul.f32 %v1991, %v1995
    %vm1997 = vweird.f32 %v1840
    %vm1998 = vweird.f32 %v1991
    %vm1999 = vmor %vm1997, %vm1998
    %v2000 = vsel %vm1999, %v1991, %v1996
    %v2001 = vsub.f32 %v1593, %v1681
    %v2002 = vsub.f32 %v1595, %v1682
    %v2003 = vsub.f32 %v1598, %v1683
    %v2004 = vsub.f32 %v1600, %v1684
    %v2005 = vsub.f32 %v1603, %v1685
    %v2006 = vsub.f32 %v1605, %v1686
    %v2007 = vsub.f32 %v1608, %v1687
    %v2008 = vsub.f32 %v1610, %v1688
    %v2009 = vsub.f32 %v1613, %v1689
    %v2010 = vsub.f32 %v1615, %v1690
    %v2011 = vsub.f32 %v1618, %v1691
    %v2012 = vsub.f32 %v1620, %v1692
    %v2013 = vsub.f32 %v1623, %v1693
    %v2014 = vsub.f32 %v1625, %v1694
    %v2015 = vsub.f32 %v1628, %v1695
    %v2016 = vsub.f32 %v1630, %v1696
    %v2017 = vmul.f32 %v2001, %v1850
    %v2018 = vmul.f32 %v2002, %v1860
    %v2019 = vmul.f32 %v2003, %v1870
    %v2020 = vmul.f32 %v2004, %v1880
    %v2021 = vmul.f32 %v2005, %v1890
    %v2022 = vmul.f32 %v2006, %v1900
    %v2023 = vmul.f32 %v2007, %v1910
    %v2024 = vmul.f32 %v2008, %v1920
    %v2025 = vmul.f32 %v2009, %v1930
    %v2026 = vmul.f32 %v2010, %v1940
    %v2027 = vmul.f32 %v2011, %v1950
    %v2028 = vmul.f32 %v2012, %v1960
    %v2029 = vmul.f32 %v2013, %v1970
    %v2030 = vmul.f32 %v2014, %v1980
    %v2031 = vmul.f32 %v2015, %v1990
    %v2032 = vmul.f32 %v2016, %v2000
    %v2033 = vld [vmem:[%s29] sm:$0x1]
    %v2035 = vperm.slane %v2033, 0
    %v2037 = vmul.f32 %v2017, %v2035
    %v2038 = vmul.f32 %v2018, %v2035
    %v2039 = vmul.f32 %v2019, %v2035
    %v2040 = vmul.f32 %v2020, %v2035
    %v2041 = vmul.f32 %v2021, %v2035
    %v2042 = vmul.f32 %v2022, %v2035
    %v2043 = vmul.f32 %v2023, %v2035
    %v2044 = vmul.f32 %v2024, %v2035
    %v2045 = vmul.f32 %v2025, %v2035
    %v2046 = vmul.f32 %v2026, %v2035
    %v2047 = vmul.f32 %v2027, %v2035
    %v2048 = vmul.f32 %v2028, %v2035
    %v2049 = vmul.f32 %v2029, %v2035
    %v2050 = vmul.f32 %v2030, %v2035
    %v2051 = vmul.f32 %v2031, %v2035
    %v2052 = vmul.f32 %v2032, %v2035
    %v2053 = vld [vmem:[%s31] sm:$0x1]
    %v2055 = vperm.slane %v2053, 0
    %v2057 = vadd.f32 %v2037, %v2055
    %v2058 = vadd.f32 %v2038, %v2055
    %v2059 = vadd.f32 %v2039, %v2055
    %v2060 = vadd.f32 %v2040, %v2055
    %v2061 = vadd.f32 %v2041, %v2055
    %v2062 = vadd.f32 %v2042, %v2055
    %v2063 = vadd.f32 %v2043, %v2055
    %v2064 = vadd.f32 %v2044, %v2055
    %v2065 = vadd.f32 %v2045, %v2055
    %v2066 = vadd.f32 %v2046, %v2055
    %v2067 = vadd.f32 %v2047, %v2055
    %v2068 = vadd.f32 %v2048, %v2055
    %v2069 = vadd.f32 %v2049, %v2055
    %v2070 = vadd.f32 %v2050, %v2055
    %v2071 = vadd.f32 %v2051, %v2055
    %v2072 = vadd.f32 %v2052, %v2055
    %vm2073 = vcmp.ge.f32.partialorder %v2057, 0.0
    %vm2074 = vcmp.ge.f32.partialorder %v2058, 0.0
    %vm2075 = vcmp.ge.f32.partialorder %v2059, 0.0
    %vm2076 = vcmp.ge.f32.partialorder %v2060, 0.0
    %vm2077 = vcmp.ge.f32.partialorder %v2061, 0.0
    %vm2078 = vcmp.ge.f32.partialorder %v2062, 0.0
    %vm2079 = vcmp.ge.f32.partialorder %v2063, 0.0
    %vm2080 = vcmp.ge.f32.partialorder %v2064, 0.0
    %vm2081 = vcmp.ge.f32.partialorder %v2065, 0.0
    %vm2082 = vcmp.ge.f32.partialorder %v2066, 0.0
    %vm2083 = vcmp.ge.f32.partialorder %v2067, 0.0
    %vm2084 = vcmp.ge.f32.partialorder %v2068, 0.0
    %vm2085 = vcmp.ge.f32.partialorder %v2069, 0.0
    %vm2086 = vcmp.ge.f32.partialorder %v2070, 0.0
    %vm2087 = vcmp.ge.f32.partialorder %v2071, 0.0
    %vm2088 = vcmp.ge.f32.partialorder %v2072, 0.0
    %v2089 = vstv %s191
    %v2090 = vmul.f32 %v2089, %v2057
    %v2091 = vmul.f32 %v2089, %v2058
    %v2092 = vmul.f32 %v2089, %v2059
    %v2093 = vmul.f32 %v2089, %v2060
    %v2094 = vmul.f32 %v2089, %v2061
    %v2095 = vmul.f32 %v2089, %v2062
    %v2096 = vmul.f32 %v2089, %v2063
    %v2097 = vmul.f32 %v2089, %v2064
    %v2098 = vmul.f32 %v2089, %v2065
    %v2099 = vmul.f32 %v2089, %v2066
    %v2100 = vmul.f32 %v2089, %v2067
    %v2101 = vmul.f32 %v2089, %v2068
    %v2102 = vmul.f32 %v2089, %v2069
    %v2103 = vmul.f32 %v2089, %v2070
    %v2104 = vmul.f32 %v2089, %v2071
    %v2105 = vmul.f32 %v2089, %v2072
    %v2106 = vsel %vm2073, %v2057, %v2090
    %v2107 = vsel %vm2074, %v2058, %v2091
    %v2108 = vsel %vm2075, %v2059, %v2092
    %v2109 = vsel %vm2076, %v2060, %v2093
    %v2110 = vsel %vm2077, %v2061, %v2094
    %v2111 = vsel %vm2078, %v2062, %v2095
    %v2112 = vsel %vm2079, %v2063, %v2096
    %v2113 = vsel %vm2080, %v2064, %v2097
    %v2114 = vsel %vm2081, %v2065, %v2098
    %v2115 = vsel %vm2082, %v2066, %v2099
    %v2116 = vsel %vm2083, %v2067, %v2100
    %v2117 = vsel %vm2084, %v2068, %v2101
    %v2118 = vsel %vm2085, %v2069, %v2102
    %v2119 = vsel %vm2086, %v2070, %v2103
    %v2120 = vsel %vm2087, %v2071, %v2104
    %v2121 = vsel %vm2088, %v2072, %v2105
    %v2122 = vpack.c.bf16 %v2107, %v2106
    %v2123 = vpack.c.bf16 %v2109, %v2108
    %v2124 = vpack.c.bf16 %v2111, %v2110
    %v2125 = vpack.c.bf16 %v2113, %v2112
    %v2126 = vpack.c.bf16 %v2115, %v2114
    %v2127 = vpack.c.bf16 %v2117, %v2116
    %v2128 = vpack.c.bf16 %v2119, %v2118
    %v2129 = vpack.c.bf16 %v2121, %v2120
    %v2130 = vld [vmem:[%s33] sm:$0xf]
    %v2131 = vld [vmem:[%s33 + $0x4] sm:$0xf]
    %v2132 = vld [vmem:[%s33 + $0x8] sm:$0xf]
    %v2133 = vld [vmem:[%s33 + $0xc] sm:$0xf]
    %v2134 = vld [vmem:[%s33 + $0x10] sm:$0xf]
    %v2135 = vld [vmem:[%s33 + $0x14] sm:$0xf]
    %v2136 = vld [vmem:[%s33 + $0x18] sm:$0xf]
    %v2137 = vld [vmem:[%s33 + $0x1c] sm:$0xf]
    %v2138 = vld [vmem:[%s35] sm:$0x1]
    %v2140 = vperm.slane %v2138, 0
    %v2150 = vunpack.c.l.b16 %v2130
    %v2151 = vunpack.c.l.b16 %v2131
    %v2152 = vunpack.c.l.b16 %v2132
    %v2153 = vunpack.c.l.b16 %v2133
    %v2154 = vunpack.c.l.b16 %v2134
    %v2155 = vunpack.c.l.b16 %v2135
    %v2156 = vunpack.c.l.b16 %v2136
    %v2157 = vunpack.c.l.b16 %v2137
    %v2158 = vpack.c.b16 %v2151, %v2150
    %v2159 = vpack.c.b16 %v2153, %v2152
    %v2160 = vpack.c.b16 %v2155, %v2154
    %v2161 = vpack.c.b16 %v2157, %v2156
    %v2167 = vsel %vm1632, %v2122, 0
    %v2170 = vsel %vm1632, %v2123, 0
    %v2173 = vsel %vm1632, %v2124, 0
    %v2176 = vsel %vm1632, %v2125, 0
    %v2179 = vsel %vm1632, %v2126, 0
    %v2182 = vsel %vm1632, %v2127, 0
    %v2185 = vsel %vm1632, %v2128, 0
    %v2188 = vsel %vm1632, %v2129, 0
    %2190 = vmatpush.bf16.msra.mxu0 0
    %2191 = vmatpush.bf16.msra.mxu0 0
    %2192 = vmatpush.bf16.msra.mxu0 0
    %2193 = vmatpush.bf16.msra.mxu0 0
    %2194 = vmatpush.bf16.msra.mxu0 %v2161
    %2195 = vmatpush.bf16.msra.mxu0 %v2160
    %2196 = vmatpush.bf16.msra.mxu0 %v2159
    %2197 = vmatpush.bf16.msra.mxu0 %v2158
    %2198 = vmatmul.bf16.gmra.mxu0 %v2167
    %v2199 = vpop.f32.mrf.mxu0
    %v2200 = vadd.f32 %v2140, %v2199
    %v2201 = vpop.f32.mrf.mxu0
    %v2202 = vadd.f32 %v2140, %v2201
    %2203 = vmatmul.bf16.gmra.mxu0 %v2170
    %v2204 = vpop.f32.mrf.mxu0
    %v2205 = vadd.f32 %v2140, %v2204
    %v2206 = vpop.f32.mrf.mxu0
    %v2207 = vadd.f32 %v2140, %v2206
    %2208 = vmatmul.bf16.gmra.mxu0 %v2173
    %v2209 = vpop.f32.mrf.mxu0
    %v2210 = vadd.f32 %v2140, %v2209
    %v2211 = vpop.f32.mrf.mxu0
    %v2212 = vadd.f32 %v2140, %v2211
    %2213 = vmatmul.bf16.gmra.mxu0 %v2176
    %v2214 = vpop.f32.mrf.mxu0
    %v2215 = vadd.f32 %v2140, %v2214
    %v2216 = vpop.f32.mrf.mxu0
    %v2217 = vadd.f32 %v2140, %v2216
    %2218 = vmatmul.bf16.gmra.mxu0 %v2179
    %v2219 = vpop.f32.mrf.mxu0
    %v2220 = vadd.f32 %v2140, %v2219
    %v2221 = vpop.f32.mrf.mxu0
    %v2222 = vadd.f32 %v2140, %v2221
    %2223 = vmatmul.bf16.gmra.mxu0 %v2182
    %v2224 = vpop.f32.mrf.mxu0
    %v2225 = vadd.f32 %v2140, %v2224
    %v2226 = vpop.f32.mrf.mxu0
    %v2227 = vadd.f32 %v2140, %v2226
    %2228 = vmatmul.bf16.gmra.mxu0 %v2185
    %v2229 = vpop.f32.mrf.mxu0
    %v2230 = vadd.f32 %v2140, %v2229
    %v2231 = vpop.f32.mrf.mxu0
    %v2232 = vadd.f32 %v2140, %v2231
    %2233 = vmatmul.bf16.gmra.mxu0 %v2188
    %v2234 = vpop.f32.mrf.mxu0
    %v2235 = vadd.f32 %v2140, %v2234
    %v2236 = vpop.f32.mrf.mxu0
    %v2237 = vadd.f32 %v2140, %v2236
    %2238 = vdwg.mxu0
    %v2239 = vsel %vm1632, %v2200, 0.0
    %2240 = vadd.xlane.f32.xlu0 %v2239
    %v2241 = vpop.xlane.xlu0 %2240
    %v2242 = vsel %vm1632, %v2202, 0.0
    %2243 = vadd.xlane.f32.xlu0 %v2242
    %v2244 = vpop.xlane.xlu0 %2243
    %v2245 = vsel %vm1632, %v2205, 0.0
    %2246 = vadd.xlane.f32.xlu0 %v2245
    %v2247 = vpop.xlane.xlu0 %2246
    %v2248 = vsel %vm1632, %v2207, 0.0
    %2249 = vadd.xlane.f32.xlu0 %v2248
    %v2250 = vpop.xlane.xlu0 %2249
    %v2251 = vsel %vm1632, %v2210, 0.0
    %2252 = vadd.xlane.f32.xlu0 %v2251
    %v2253 = vpop.xlane.xlu0 %2252
    %v2254 = vsel %vm1632, %v2212, 0.0
    %2255 = vadd.xlane.f32.xlu0 %v2254
    %v2256 = vpop.xlane.xlu0 %2255
    %v2257 = vsel %vm1632, %v2215, 0.0
    %2258 = vadd.xlane.f32.xlu0 %v2257
    %v2259 = vpop.xlane.xlu0 %2258
    %v2260 = vsel %vm1632, %v2217, 0.0
    %2261 = vadd.xlane.f32.xlu0 %v2260
    %v2262 = vpop.xlane.xlu0 %2261
    %v2263 = vsel %vm1632, %v2220, 0.0
    %2264 = vadd.xlane.f32.xlu0 %v2263
    %v2265 = vpop.xlane.xlu0 %2264
    %v2266 = vsel %vm1632, %v2222, 0.0
    %2267 = vadd.xlane.f32.xlu0 %v2266
    %v2268 = vpop.xlane.xlu0 %2267
    %v2269 = vsel %vm1632, %v2225, 0.0
    %2270 = vadd.xlane.f32.xlu0 %v2269
    %v2271 = vpop.xlane.xlu0 %2270
    %v2272 = vsel %vm1632, %v2227, 0.0
    %2273 = vadd.xlane.f32.xlu0 %v2272
    %v2274 = vpop.xlane.xlu0 %2273
    %v2275 = vsel %vm1632, %v2230, 0.0
    %2276 = vadd.xlane.f32.xlu0 %v2275
    %v2277 = vpop.xlane.xlu0 %2276
    %v2278 = vsel %vm1632, %v2232, 0.0
    %2279 = vadd.xlane.f32.xlu0 %v2278
    %v2280 = vpop.xlane.xlu0 %2279
    %v2281 = vsel %vm1632, %v2235, 0.0
    %2282 = vadd.xlane.f32.xlu0 %v2281
    %v2283 = vpop.xlane.xlu0 %2282
    %v2284 = vsel %vm1632, %v2237, 0.0
    %2285 = vadd.xlane.f32.xlu0 %v2284
    %v2286 = vpop.xlane.xlu0 %2285
    %v2287 = vmul.f32 %v2241, 0.015625
    %v2288 = vmul.f32 %v2244, 0.015625
    %v2289 = vmul.f32 %v2247, 0.015625
    %v2290 = vmul.f32 %v2250, 0.015625
    %v2291 = vmul.f32 %v2253, 0.015625
    %v2292 = vmul.f32 %v2256, 0.015625
    %v2293 = vmul.f32 %v2259, 0.015625
    %v2294 = vmul.f32 %v2262, 0.015625
    %v2295 = vmul.f32 %v2265, 0.015625
    %v2296 = vmul.f32 %v2268, 0.015625
    %v2297 = vmul.f32 %v2271, 0.015625
    %v2298 = vmul.f32 %v2274, 0.015625
    %v2299 = vmul.f32 %v2277, 0.015625
    %v2300 = vmul.f32 %v2280, 0.015625
    %v2301 = vmul.f32 %v2283, 0.015625
    %v2302 = vmul.f32 %v2286, 0.015625
    %v2303 = vmul.f32 %v2200, %v2200
    %v2304 = vmul.f32 %v2202, %v2202
    %v2305 = vmul.f32 %v2205, %v2205
    %v2306 = vmul.f32 %v2207, %v2207
    %v2307 = vmul.f32 %v2210, %v2210
    %v2308 = vmul.f32 %v2212, %v2212
    %v2309 = vmul.f32 %v2215, %v2215
    %v2310 = vmul.f32 %v2217, %v2217
    %v2311 = vmul.f32 %v2220, %v2220
    %v2312 = vmul.f32 %v2222, %v2222
    %v2313 = vmul.f32 %v2225, %v2225
    %v2314 = vmul.f32 %v2227, %v2227
    %v2315 = vmul.f32 %v2230, %v2230
    %v2316 = vmul.f32 %v2232, %v2232
    %v2317 = vmul.f32 %v2235, %v2235
    %v2318 = vmul.f32 %v2237, %v2237
    %v2319 = vsel %vm1632, %v2303, 0.0
    %2320 = vadd.xlane.f32.xlu0 %v2319
    %v2321 = vpop.xlane.xlu0 %2320
    %v2322 = vsel %vm1632, %v2304, 0.0
    %2323 = vadd.xlane.f32.xlu0 %v2322
    %v2324 = vpop.xlane.xlu0 %2323
    %v2325 = vsel %vm1632, %v2305, 0.0
    %2326 = vadd.xlane.f32.xlu0 %v2325
    %v2327 = vpop.xlane.xlu0 %2326
    %v2328 = vsel %vm1632, %v2306, 0.0
    %2329 = vadd.xlane.f32.xlu0 %v2328
    %v2330 = vpop.xlane.xlu0 %2329
    %v2331 = vsel %vm1632, %v2307, 0.0
    %2332 = vadd.xlane.f32.xlu0 %v2331
    %v2333 = vpop.xlane.xlu0 %2332
    %v2334 = vsel %vm1632, %v2308, 0.0
    %2335 = vadd.xlane.f32.xlu0 %v2334
    %v2336 = vpop.xlane.xlu0 %2335
    %v2337 = vsel %vm1632, %v2309, 0.0
    %2338 = vadd.xlane.f32.xlu0 %v2337
    %v2339 = vpop.xlane.xlu0 %2338
    %v2340 = vsel %vm1632, %v2310, 0.0
    %2341 = vadd.xlane.f32.xlu0 %v2340
    %v2342 = vpop.xlane.xlu0 %2341
    %v2343 = vsel %vm1632, %v2311, 0.0
    %2344 = vadd.xlane.f32.xlu0 %v2343
    %v2345 = vpop.xlane.xlu0 %2344
    %v2346 = vsel %vm1632, %v2312, 0.0
    %2347 = vadd.xlane.f32.xlu0 %v2346
    %v2348 = vpop.xlane.xlu0 %2347
    %v2349 = vsel %vm1632, %v2313, 0.0
    %2350 = vadd.xlane.f32.xlu0 %v2349
    %v2351 = vpop.xlane.xlu0 %2350
    %v2352 = vsel %vm1632, %v2314, 0.0
    %2353 = vadd.xlane.f32.xlu0 %v2352
    %v2354 = vpop.xlane.xlu0 %2353
    %v2355 = vsel %vm1632, %v2315, 0.0
    %2356 = vadd.xlane.f32.xlu0 %v2355
    %v2357 = vpop.xlane.xlu0 %2356
    %v2358 = vsel %vm1632, %v2316, 0.0
    %2359 = vadd.xlane.f32.xlu0 %v2358
    %v2360 = vpop.xlane.xlu0 %2359
    %v2361 = vsel %vm1632, %v2317, 0.0
    %2362 = vadd.xlane.f32.xlu0 %v2361
    %v2363 = vpop.xlane.xlu0 %2362
    %v2364 = vsel %vm1632, %v2318, 0.0
    %2365 = vadd.xlane.f32.xlu0 %v2364
    %v2366 = vpop.xlane.xlu0 %2365
    %v2367 = vmul.f32 %v2321, 0.015625
    %v2368 = vmul.f32 %v2324, 0.015625
    %v2369 = vmul.f32 %v2327, 0.015625
    %v2370 = vmul.f32 %v2330, 0.015625
    %v2371 = vmul.f32 %v2333, 0.015625
    %v2372 = vmul.f32 %v2336, 0.015625
    %v2373 = vmul.f32 %v2339, 0.015625
    %v2374 = vmul.f32 %v2342, 0.015625
    %v2375 = vmul.f32 %v2345, 0.015625
    %v2376 = vmul.f32 %v2348, 0.015625
    %v2377 = vmul.f32 %v2351, 0.015625
    %v2378 = vmul.f32 %v2354, 0.015625
    %v2379 = vmul.f32 %v2357, 0.015625
    %v2380 = vmul.f32 %v2360, 0.015625
    %v2381 = vmul.f32 %v2363, 0.015625
    %v2382 = vmul.f32 %v2366, 0.015625
    %v2383 = vmul.f32 %v2287, %v2287
    %v2384 = vmul.f32 %v2288, %v2288
    %v2385 = vmul.f32 %v2289, %v2289
    %v2386 = vmul.f32 %v2290, %v2290
    %v2387 = vmul.f32 %v2291, %v2291
    %v2388 = vmul.f32 %v2292, %v2292
    %v2389 = vmul.f32 %v2293, %v2293
    %v2390 = vmul.f32 %v2294, %v2294
    %v2391 = vmul.f32 %v2295, %v2295
    %v2392 = vmul.f32 %v2296, %v2296
    %v2393 = vmul.f32 %v2297, %v2297
    %v2394 = vmul.f32 %v2298, %v2298
    %v2395 = vmul.f32 %v2299, %v2299
    %v2396 = vmul.f32 %v2300, %v2300
    %v2397 = vmul.f32 %v2301, %v2301
    %v2398 = vmul.f32 %v2302, %v2302
    %v2399 = vsub.f32 %v2367, %v2383
    %v2400 = vsub.f32 %v2368, %v2384
    %v2401 = vsub.f32 %v2369, %v2385
    %v2402 = vsub.f32 %v2370, %v2386
    %v2403 = vsub.f32 %v2371, %v2387
    %v2404 = vsub.f32 %v2372, %v2388
    %v2405 = vsub.f32 %v2373, %v2389
    %v2406 = vsub.f32 %v2374, %v2390
    %v2407 = vsub.f32 %v2375, %v2391
    %v2408 = vsub.f32 %v2376, %v2392
    %v2409 = vsub.f32 %v2377, %v2393
    %v2410 = vsub.f32 %v2378, %v2394
    %v2411 = vsub.f32 %v2379, %v2395
    %v2412 = vsub.f32 %v2380, %v2396
    %v2413 = vsub.f32 %v2381, %v2397
    %v2414 = vsub.f32 %v2382, %v2398
    %v2415 = vmax.f32 %v2399, 0.0
    %v2416 = vmax.f32 %v2400, 0.0
    %v2417 = vmax.f32 %v2401, 0.0
    %v2418 = vmax.f32 %v2402, 0.0
    %v2419 = vmax.f32 %v2403, 0.0
    %v2420 = vmax.f32 %v2404, 0.0
    %v2421 = vmax.f32 %v2405, 0.0
    %v2422 = vmax.f32 %v2406, 0.0
    %v2423 = vmax.f32 %v2407, 0.0
    %v2424 = vmax.f32 %v2408, 0.0
    %v2425 = vmax.f32 %v2409, 0.0
    %v2426 = vmax.f32 %v2410, 0.0
    %v2427 = vmax.f32 %v2411, 0.0
    %v2428 = vmax.f32 %v2412, 0.0
    %v2429 = vmax.f32 %v2413, 0.0
    %v2430 = vmax.f32 %v2414, 0.0
    %v2431 = vadd.f32 %v2415, 1e-05
    %v2432 = vadd.f32 %v2416, 1e-05
    %v2433 = vadd.f32 %v2417, 1e-05
    %v2434 = vadd.f32 %v2418, 1e-05
    %v2435 = vadd.f32 %v2419, 1e-05
    %v2436 = vadd.f32 %v2420, 1e-05
    %v2437 = vadd.f32 %v2421, 1e-05
    %v2438 = vadd.f32 %v2422, 1e-05
    %v2439 = vadd.f32 %v2423, 1e-05
    %v2440 = vadd.f32 %v2424, 1e-05
    %v2441 = vadd.f32 %v2425, 1e-05
    %v2442 = vadd.f32 %v2426, 1e-05
    %v2443 = vadd.f32 %v2427, 1e-05
    %v2444 = vadd.f32 %v2428, 1e-05
    %v2445 = vadd.f32 %v2429, 1e-05
    %v2446 = vadd.f32 %v2430, 1e-05
    %v2447 = vrsqrt.pop %v2431
    %v2448 = vmul.f32 %v2447, %v2431
    %v2449 = vmul.f32 %v2448, %v2447
    %v2450 = vmul.f32 0.5, %v2449
    %v2451 = vsub.f32 1.5, %v2450
    %v2452 = vmul.f32 %v2447, %v2451
    %vm2453 = vweird.f32 %v2431
    %vm2454 = vweird.f32 %v2447
    %vm2455 = vmor %vm2453, %vm2454
    %v2456 = vsel %vm2455, %v2447, %v2452
    %v2457 = vrsqrt.pop %v2432
    %v2458 = vmul.f32 %v2457, %v2432
    %v2459 = vmul.f32 %v2458, %v2457
    %v2460 = vmul.f32 0.5, %v2459
    %v2461 = vsub.f32 1.5, %v2460
    %v2462 = vmul.f32 %v2457, %v2461
    %vm2463 = vweird.f32 %v2432
    %vm2464 = vweird.f32 %v2457
    %vm2465 = vmor %vm2463, %vm2464
    %v2466 = vsel %vm2465, %v2457, %v2462
    %v2467 = vrsqrt.pop %v2433
    %v2468 = vmul.f32 %v2467, %v2433
    %v2469 = vmul.f32 %v2468, %v2467
    %v2470 = vmul.f32 0.5, %v2469
    %v2471 = vsub.f32 1.5, %v2470
    %v2472 = vmul.f32 %v2467, %v2471
    %vm2473 = vweird.f32 %v2433
    %vm2474 = vweird.f32 %v2467
    %vm2475 = vmor %vm2473, %vm2474
    %v2476 = vsel %vm2475, %v2467, %v2472
    %v2477 = vrsqrt.pop %v2434
    %v2478 = vmul.f32 %v2477, %v2434
    %v2479 = vmul.f32 %v2478, %v2477
    %v2480 = vmul.f32 0.5, %v2479
    %v2481 = vsub.f32 1.5, %v2480
    %v2482 = vmul.f32 %v2477, %v2481
    %vm2483 = vweird.f32 %v2434
    %vm2484 = vweird.f32 %v2477
    %vm2485 = vmor %vm2483, %vm2484
    %v2486 = vsel %vm2485, %v2477, %v2482
    %v2487 = vrsqrt.pop %v2435
    %v2488 = vmul.f32 %v2487, %v2435
    %v2489 = vmul.f32 %v2488, %v2487
    %v2490 = vmul.f32 0.5, %v2489
    %v2491 = vsub.f32 1.5, %v2490
    %v2492 = vmul.f32 %v2487, %v2491
    %vm2493 = vweird.f32 %v2435
    %vm2494 = vweird.f32 %v2487
    %vm2495 = vmor %vm2493, %vm2494
    %v2496 = vsel %vm2495, %v2487, %v2492
    %v2497 = vrsqrt.pop %v2436
    %v2498 = vmul.f32 %v2497, %v2436
    %v2499 = vmul.f32 %v2498, %v2497
    %v2500 = vmul.f32 0.5, %v2499
    %v2501 = vsub.f32 1.5, %v2500
    %v2502 = vmul.f32 %v2497, %v2501
    %vm2503 = vweird.f32 %v2436
    %vm2504 = vweird.f32 %v2497
    %vm2505 = vmor %vm2503, %vm2504
    %v2506 = vsel %vm2505, %v2497, %v2502
    %v2507 = vrsqrt.pop %v2437
    %v2508 = vmul.f32 %v2507, %v2437
    %v2509 = vmul.f32 %v2508, %v2507
    %v2510 = vmul.f32 0.5, %v2509
    %v2511 = vsub.f32 1.5, %v2510
    %v2512 = vmul.f32 %v2507, %v2511
    %vm2513 = vweird.f32 %v2437
    %vm2514 = vweird.f32 %v2507
    %vm2515 = vmor %vm2513, %vm2514
    %v2516 = vsel %vm2515, %v2507, %v2512
    %v2517 = vrsqrt.pop %v2438
    %v2518 = vmul.f32 %v2517, %v2438
    %v2519 = vmul.f32 %v2518, %v2517
    %v2520 = vmul.f32 0.5, %v2519
    %v2521 = vsub.f32 1.5, %v2520
    %v2522 = vmul.f32 %v2517, %v2521
    %vm2523 = vweird.f32 %v2438
    %vm2524 = vweird.f32 %v2517
    %vm2525 = vmor %vm2523, %vm2524
    %v2526 = vsel %vm2525, %v2517, %v2522
    %v2527 = vrsqrt.pop %v2439
    %v2528 = vmul.f32 %v2527, %v2439
    %v2529 = vmul.f32 %v2528, %v2527
    %v2530 = vmul.f32 0.5, %v2529
    %v2531 = vsub.f32 1.5, %v2530
    %v2532 = vmul.f32 %v2527, %v2531
    %vm2533 = vweird.f32 %v2439
    %vm2534 = vweird.f32 %v2527
    %vm2535 = vmor %vm2533, %vm2534
    %v2536 = vsel %vm2535, %v2527, %v2532
    %v2537 = vrsqrt.pop %v2440
    %v2538 = vmul.f32 %v2537, %v2440
    %v2539 = vmul.f32 %v2538, %v2537
    %v2540 = vmul.f32 0.5, %v2539
    %v2541 = vsub.f32 1.5, %v2540
    %v2542 = vmul.f32 %v2537, %v2541
    %vm2543 = vweird.f32 %v2440
    %vm2544 = vweird.f32 %v2537
    %vm2545 = vmor %vm2543, %vm2544
    %v2546 = vsel %vm2545, %v2537, %v2542
    %v2547 = vrsqrt.pop %v2441
    %v2548 = vmul.f32 %v2547, %v2441
    %v2549 = vmul.f32 %v2548, %v2547
    %v2550 = vmul.f32 0.5, %v2549
    %v2551 = vsub.f32 1.5, %v2550
    %v2552 = vmul.f32 %v2547, %v2551
    %vm2553 = vweird.f32 %v2441
    %vm2554 = vweird.f32 %v2547
    %vm2555 = vmor %vm2553, %vm2554
    %v2556 = vsel %vm2555, %v2547, %v2552
    %v2557 = vrsqrt.pop %v2442
    %v2558 = vmul.f32 %v2557, %v2442
    %v2559 = vmul.f32 %v2558, %v2557
    %v2560 = vmul.f32 0.5, %v2559
    %v2561 = vsub.f32 1.5, %v2560
    %v2562 = vmul.f32 %v2557, %v2561
    %vm2563 = vweird.f32 %v2442
    %vm2564 = vweird.f32 %v2557
    %vm2565 = vmor %vm2563, %vm2564
    %v2566 = vsel %vm2565, %v2557, %v2562
    %v2567 = vrsqrt.pop %v2443
    %v2568 = vmul.f32 %v2567, %v2443
    %v2569 = vmul.f32 %v2568, %v2567
    %v2570 = vmul.f32 0.5, %v2569
    %v2571 = vsub.f32 1.5, %v2570
    %v2572 = vmul.f32 %v2567, %v2571
    %vm2573 = vweird.f32 %v2443
    %vm2574 = vweird.f32 %v2567
    %vm2575 = vmor %vm2573, %vm2574
    %v2576 = vsel %vm2575, %v2567, %v2572
    %v2577 = vrsqrt.pop %v2444
    %v2578 = vmul.f32 %v2577, %v2444
    %v2579 = vmul.f32 %v2578, %v2577
    %v2580 = vmul.f32 0.5, %v2579
    %v2581 = vsub.f32 1.5, %v2580
    %v2582 = vmul.f32 %v2577, %v2581
    %vm2583 = vweird.f32 %v2444
    %vm2584 = vweird.f32 %v2577
    %vm2585 = vmor %vm2583, %vm2584
    %v2586 = vsel %vm2585, %v2577, %v2582
    %v2587 = vrsqrt.pop %v2445
    %v2588 = vmul.f32 %v2587, %v2445
    %v2589 = vmul.f32 %v2588, %v2587
    %v2590 = vmul.f32 0.5, %v2589
    %v2591 = vsub.f32 1.5, %v2590
    %v2592 = vmul.f32 %v2587, %v2591
    %vm2593 = vweird.f32 %v2445
    %vm2594 = vweird.f32 %v2587
    %vm2595 = vmor %vm2593, %vm2594
    %v2596 = vsel %vm2595, %v2587, %v2592
    %v2597 = vrsqrt.pop %v2446
    %v2598 = vmul.f32 %v2597, %v2446
    %v2599 = vmul.f32 %v2598, %v2597
    %v2600 = vmul.f32 0.5, %v2599
    %v2601 = vsub.f32 1.5, %v2600
    %v2602 = vmul.f32 %v2597, %v2601
    %vm2603 = vweird.f32 %v2446
    %vm2604 = vweird.f32 %v2597
    %vm2605 = vmor %vm2603, %vm2604
    %v2606 = vsel %vm2605, %v2597, %v2602
    %v2607 = vsub.f32 %v2200, %v2287
    %v2608 = vsub.f32 %v2202, %v2288
    %v2609 = vsub.f32 %v2205, %v2289
    %v2610 = vsub.f32 %v2207, %v2290
    %v2611 = vsub.f32 %v2210, %v2291
    %v2612 = vsub.f32 %v2212, %v2292
    %v2613 = vsub.f32 %v2215, %v2293
    %v2614 = vsub.f32 %v2217, %v2294
    %v2615 = vsub.f32 %v2220, %v2295
    %v2616 = vsub.f32 %v2222, %v2296
    %v2617 = vsub.f32 %v2225, %v2297
    %v2618 = vsub.f32 %v2227, %v2298
    %v2619 = vsub.f32 %v2230, %v2299
    %v2620 = vsub.f32 %v2232, %v2300
    %v2621 = vsub.f32 %v2235, %v2301
    %v2622 = vsub.f32 %v2237, %v2302
    %v2623 = vmul.f32 %v2607, %v2456
    %v2624 = vmul.f32 %v2608, %v2466
    %v2625 = vmul.f32 %v2609, %v2476
    %v2626 = vmul.f32 %v2610, %v2486
    %v2627 = vmul.f32 %v2611, %v2496
    %v2628 = vmul.f32 %v2612, %v2506
    %v2629 = vmul.f32 %v2613, %v2516
    %v2630 = vmul.f32 %v2614, %v2526
    %v2631 = vmul.f32 %v2615, %v2536
    %v2632 = vmul.f32 %v2616, %v2546
    %v2633 = vmul.f32 %v2617, %v2556
    %v2634 = vmul.f32 %v2618, %v2566
    %v2635 = vmul.f32 %v2619, %v2576
    %v2636 = vmul.f32 %v2620, %v2586
    %v2637 = vmul.f32 %v2621, %v2596
    %v2638 = vmul.f32 %v2622, %v2606
    %v2639 = vld [vmem:[%s37] sm:$0x1]
    %v2641 = vperm.slane %v2639, 0
    %v2643 = vmul.f32 %v2623, %v2641
    %v2644 = vmul.f32 %v2624, %v2641
    %v2645 = vmul.f32 %v2625, %v2641
    %v2646 = vmul.f32 %v2626, %v2641
    %v2647 = vmul.f32 %v2627, %v2641
    %v2648 = vmul.f32 %v2628, %v2641
    %v2649 = vmul.f32 %v2629, %v2641
    %v2650 = vmul.f32 %v2630, %v2641
    %v2651 = vmul.f32 %v2631, %v2641
    %v2652 = vmul.f32 %v2632, %v2641
    %v2653 = vmul.f32 %v2633, %v2641
    %v2654 = vmul.f32 %v2634, %v2641
    %v2655 = vmul.f32 %v2635, %v2641
    %v2656 = vmul.f32 %v2636, %v2641
    %v2657 = vmul.f32 %v2637, %v2641
    %v2658 = vmul.f32 %v2638, %v2641
    %v2659 = vld [vmem:[%s39] sm:$0x1]
    %v2661 = vperm.slane %v2659, 0
    %v2663 = vadd.f32 %v2643, %v2661
    %v2664 = vadd.f32 %v2644, %v2661
    %v2665 = vadd.f32 %v2645, %v2661
    %v2666 = vadd.f32 %v2646, %v2661
    %v2667 = vadd.f32 %v2647, %v2661
    %v2668 = vadd.f32 %v2648, %v2661
    %v2669 = vadd.f32 %v2649, %v2661
    %v2670 = vadd.f32 %v2650, %v2661
    %v2671 = vadd.f32 %v2651, %v2661
    %v2672 = vadd.f32 %v2652, %v2661
    %v2673 = vadd.f32 %v2653, %v2661
    %v2674 = vadd.f32 %v2654, %v2661
    %v2675 = vadd.f32 %v2655, %v2661
    %v2676 = vadd.f32 %v2656, %v2661
    %v2677 = vadd.f32 %v2657, %v2661
    %v2678 = vadd.f32 %v2658, %v2661
    %vm2679 = vcmp.ge.f32.partialorder %v2663, 0.0
    %vm2680 = vcmp.ge.f32.partialorder %v2664, 0.0
    %vm2681 = vcmp.ge.f32.partialorder %v2665, 0.0
    %vm2682 = vcmp.ge.f32.partialorder %v2666, 0.0
    %vm2683 = vcmp.ge.f32.partialorder %v2667, 0.0
    %vm2684 = vcmp.ge.f32.partialorder %v2668, 0.0
    %vm2685 = vcmp.ge.f32.partialorder %v2669, 0.0
    %vm2686 = vcmp.ge.f32.partialorder %v2670, 0.0
    %vm2687 = vcmp.ge.f32.partialorder %v2671, 0.0
    %vm2688 = vcmp.ge.f32.partialorder %v2672, 0.0
    %vm2689 = vcmp.ge.f32.partialorder %v2673, 0.0
    %vm2690 = vcmp.ge.f32.partialorder %v2674, 0.0
    %vm2691 = vcmp.ge.f32.partialorder %v2675, 0.0
    %vm2692 = vcmp.ge.f32.partialorder %v2676, 0.0
    %vm2693 = vcmp.ge.f32.partialorder %v2677, 0.0
    %vm2694 = vcmp.ge.f32.partialorder %v2678, 0.0
    %v2695 = vstv %s192
    %v2696 = vmul.f32 %v2695, %v2663
    %v2697 = vmul.f32 %v2695, %v2664
    %v2698 = vmul.f32 %v2695, %v2665
    %v2699 = vmul.f32 %v2695, %v2666
    %v2700 = vmul.f32 %v2695, %v2667
    %v2701 = vmul.f32 %v2695, %v2668
    %v2702 = vmul.f32 %v2695, %v2669
    %v2703 = vmul.f32 %v2695, %v2670
    %v2704 = vmul.f32 %v2695, %v2671
    %v2705 = vmul.f32 %v2695, %v2672
    %v2706 = vmul.f32 %v2695, %v2673
    %v2707 = vmul.f32 %v2695, %v2674
    %v2708 = vmul.f32 %v2695, %v2675
    %v2709 = vmul.f32 %v2695, %v2676
    %v2710 = vmul.f32 %v2695, %v2677
    %v2711 = vmul.f32 %v2695, %v2678
    %v2712 = vsel %vm2679, %v2663, %v2696
    %v2713 = vsel %vm2680, %v2664, %v2697
    %v2714 = vsel %vm2681, %v2665, %v2698
    %v2715 = vsel %vm2682, %v2666, %v2699
    %v2716 = vsel %vm2683, %v2667, %v2700
    %v2717 = vsel %vm2684, %v2668, %v2701
    %v2718 = vsel %vm2685, %v2669, %v2702
    %v2719 = vsel %vm2686, %v2670, %v2703
    %v2720 = vsel %vm2687, %v2671, %v2704
    %v2721 = vsel %vm2688, %v2672, %v2705
    %v2722 = vsel %vm2689, %v2673, %v2706
    %v2723 = vsel %vm2690, %v2674, %v2707
    %v2724 = vsel %vm2691, %v2675, %v2708
    %v2725 = vsel %vm2692, %v2676, %v2709
    %v2726 = vsel %vm2693, %v2677, %v2710
    %v2727 = vsel %vm2694, %v2678, %v2711
    %2744 = vrot.lane.b32.xlu0 %v2712, 96
    %v2745 = vpop.permute.xlu0 %2744
    %2746 = vrot.lane.b32.xlu0 %v2713, 96
    %v2747 = vpop.permute.xlu0 %2746
    %2748 = vrot.lane.b32.xlu0 %v2714, 96
    %v2749 = vpop.permute.xlu0 %2748
    %2750 = vrot.lane.b32.xlu0 %v2715, 96
    %v2751 = vpop.permute.xlu0 %2750
    %2752 = vrot.lane.b32.xlu0 %v2716, 96
    %v2753 = vpop.permute.xlu0 %2752
    %2754 = vrot.lane.b32.xlu0 %v2717, 96
    %v2755 = vpop.permute.xlu0 %2754
    %2756 = vrot.lane.b32.xlu0 %v2718, 96
    %v2757 = vpop.permute.xlu0 %2756
    %2758 = vrot.lane.b32.xlu0 %v2719, 96
    %v2759 = vpop.permute.xlu0 %2758
    %2760 = vrot.lane.b32.xlu0 %v2720, 96
    %v2761 = vpop.permute.xlu0 %2760
    %2762 = vrot.lane.b32.xlu0 %v2721, 96
    %v2763 = vpop.permute.xlu0 %2762
    %2764 = vrot.lane.b32.xlu0 %v2722, 96
    %v2765 = vpop.permute.xlu0 %2764
    %2766 = vrot.lane.b32.xlu0 %v2723, 96
    %v2767 = vpop.permute.xlu0 %2766
    %2768 = vrot.lane.b32.xlu0 %v2724, 96
    %v2769 = vpop.permute.xlu0 %2768
    %2770 = vrot.lane.b32.xlu0 %v2725, 96
    %v2771 = vpop.permute.xlu0 %2770
    %2772 = vrot.lane.b32.xlu0 %v2726, 96
    %v2773 = vpop.permute.xlu0 %2772
    %2774 = vrot.lane.b32.xlu0 %v2727, 96
    %v2775 = vpop.permute.xlu0 %2774
    %v2792 = vsel %vm305, %v1474, %v2745
    %v2793 = vsel %vm305, %v1475, %v2747
    %v2794 = vsel %vm305, %v1476, %v2749
    %v2795 = vsel %vm305, %v1477, %v2751
    %v2796 = vsel %vm305, %v1478, %v2753
    %v2797 = vsel %vm305, %v1479, %v2755
    %v2798 = vsel %vm305, %v1480, %v2757
    %v2799 = vsel %vm305, %v1481, %v2759
    %v2800 = vsel %vm305, %v1482, %v2761
    %v2801 = vsel %vm305, %v1483, %v2763
    %v2802 = vsel %vm305, %v1484, %v2765
    %v2803 = vsel %vm305, %v1485, %v2767
    %v2804 = vsel %vm305, %v1486, %v2769
    %v2805 = vsel %vm305, %v1487, %v2771
    %v2806 = vsel %vm305, %v1488, %v2773
    %v2807 = vsel %vm305, %v1489, %v2775
    %v2808 = vpack.c.bf16 %v2793, %v2792
    %v2809 = vpack.c.bf16 %v2747, %v2745
    %v2810 = vpack.c.bf16 %v2795, %v2794
    %v2811 = vpack.c.bf16 %v2751, %v2749
    %v2812 = vpack.c.bf16 %v2797, %v2796
    %v2813 = vpack.c.bf16 %v2755, %v2753
    %v2814 = vpack.c.bf16 %v2799, %v2798
    %v2815 = vpack.c.bf16 %v2759, %v2757
    %v2816 = vpack.c.bf16 %v2801, %v2800
    %v2817 = vpack.c.bf16 %v2763, %v2761
    %v2818 = vpack.c.bf16 %v2803, %v2802
    %v2819 = vpack.c.bf16 %v2767, %v2765
    %v2820 = vpack.c.bf16 %v2805, %v2804
    %v2821 = vpack.c.bf16 %v2771, %v2769
    %v2822 = vpack.c.bf16 %v2807, %v2806
    %v2823 = vpack.c.bf16 %v2775, %v2773
    %v2824 = vld [vmem:[%s41] sm:$0xf]
    %v2825 = vld [vmem:[%s41 + $0x4] sm:$0xf]
    %v2826 = vld [vmem:[%s41 + $0x8] sm:$0xf]
    %v2827 = vld [vmem:[%s41 + $0xc] sm:$0xf]
    %v2828 = vld [vmem:[%s41 + $0x10] sm:$0xf]
    %v2829 = vld [vmem:[%s41 + $0x14] sm:$0xf]
    %v2830 = vld [vmem:[%s41 + $0x18] sm:$0xf]
    %v2831 = vld [vmem:[%s41 + $0x1c] sm:$0xf]
    %v2832 = vld [vmem:[%s41 + $0x20] sm:$0xf]
    %v2833 = vld [vmem:[%s41 + $0x24] sm:$0xf]
    %v2834 = vld [vmem:[%s41 + $0x28] sm:$0xf]
    %v2835 = vld [vmem:[%s41 + $0x2c] sm:$0xf]
    %v2836 = vld [vmem:[%s41 + $0x30] sm:$0xf]
    %v2837 = vld [vmem:[%s41 + $0x34] sm:$0xf]
    %v2838 = vld [vmem:[%s41 + $0x38] sm:$0xf]
    %v2839 = vld [vmem:[%s41 + $0x3c] sm:$0xf]
    %v2840 = vld [vmem:[%s41 + $0x40] sm:$0xf]
    %v2841 = vld [vmem:[%s41 + $0x44] sm:$0xf]
    %v2842 = vld [vmem:[%s41 + $0x48] sm:$0xf]
    %v2843 = vld [vmem:[%s41 + $0x4c] sm:$0xf]
    %v2844 = vld [vmem:[%s43] sm:$0x1]
    %v2846 = vperm.slane %v2844, 0
    %v2868 = vunpack.c.l.b16 %v2824
    %v2869 = vunpack.c.l.b16 %v2825
    %v2870 = vunpack.c.l.b16 %v2826
    %v2871 = vunpack.c.l.b16 %v2827
    %v2872 = vunpack.c.l.b16 %v2828
    %v2873 = vunpack.c.l.b16 %v2829
    %v2874 = vunpack.c.l.b16 %v2830
    %v2875 = vunpack.c.l.b16 %v2831
    %v2876 = vunpack.c.l.b16 %v2832
    %v2877 = vunpack.c.l.b16 %v2833
    %v2878 = vunpack.c.l.b16 %v2834
    %v2879 = vunpack.c.l.b16 %v2835
    %v2880 = vunpack.c.l.b16 %v2836
    %v2881 = vunpack.c.l.b16 %v2837
    %v2882 = vunpack.c.l.b16 %v2838
    %v2883 = vunpack.c.l.b16 %v2839
    %v2884 = vunpack.c.l.b16 %v2840
    %v2885 = vunpack.c.l.b16 %v2841
    %v2886 = vunpack.c.l.b16 %v2842
    %v2887 = vunpack.c.l.b16 %v2843
    %v2888 = vpack.c.b16 %v2869, %v2868
    %v2889 = vpack.c.b16 %v2871, %v2870
    %v2890 = vpack.c.b16 %v2873, %v2872
    %v2891 = vpack.c.b16 %v2875, %v2874
    %v2892 = vpack.c.b16 %v2877, %v2876
    %v2893 = vpack.c.b16 %v2879, %v2878
    %v2894 = vpack.c.b16 %v2881, %v2880
    %v2895 = vpack.c.b16 %v2883, %v2882
    %v2896 = vpack.c.b16 %v2885, %v2884
    %v2897 = vpack.c.b16 %v2887, %v2886
    %vm2908 = vcmask 261120
    %v2910 = vsel %vm2908, %v2809, 0
    %v2913 = vsel %vm2908, %v2811, 0
    %v2916 = vsel %vm2908, %v2813, 0
    %v2919 = vsel %vm2908, %v2815, 0
    %v2922 = vsel %vm2908, %v2817, 0
    %v2925 = vsel %vm2908, %v2819, 0
    %v2928 = vsel %vm2908, %v2821, 0
    %v2931 = vsel %vm2908, %v2823, 0
    %2933 = vmatpush.bf16.msra.mxu0 %v2895
    %2934 = vmatpush.bf16.msra.mxu0 %v2894
    %2935 = vmatpush.bf16.msra.mxu0 %v2893
    %2936 = vmatpush.bf16.msra.mxu0 %v2892
    %2937 = vmatpush.bf16.msra.mxu0 %v2891
    %2938 = vmatpush.bf16.msra.mxu0 %v2890
    %2939 = vmatpush.bf16.msra.mxu0 %v2889
    %2940 = vmatpush.bf16.msra.mxu0 %v2888
    %2941 = vmatmul.bf16.gmra.mxu0 %v2808
    %v2942 = vpop.f32.mrf.mxu0
    %v2943 = vadd.f32 %v2846, %v2942
    %v2944 = vpop.f32.mrf.mxu0
    %v2945 = vadd.f32 %v2846, %v2944
    %2946 = vmatmul.bf16.gmra.mxu0 %v2810
    %v2947 = vpop.f32.mrf.mxu0
    %v2948 = vadd.f32 %v2846, %v2947
    %v2949 = vpop.f32.mrf.mxu0
    %v2950 = vadd.f32 %v2846, %v2949
    %2951 = vmatmul.bf16.gmra.mxu0 %v2812
    %v2952 = vpop.f32.mrf.mxu0
    %v2953 = vadd.f32 %v2846, %v2952
    %v2954 = vpop.f32.mrf.mxu0
    %v2955 = vadd.f32 %v2846, %v2954
    %2956 = vmatmul.bf16.gmra.mxu0 %v2814
    %v2957 = vpop.f32.mrf.mxu0
    %v2958 = vadd.f32 %v2846, %v2957
    %v2959 = vpop.f32.mrf.mxu0
    %v2960 = vadd.f32 %v2846, %v2959
    %2961 = vmatmul.bf16.gmra.mxu0 %v2816
    %v2962 = vpop.f32.mrf.mxu0
    %v2963 = vadd.f32 %v2846, %v2962
    %v2964 = vpop.f32.mrf.mxu0
    %v2965 = vadd.f32 %v2846, %v2964
    %2966 = vmatmul.bf16.gmra.mxu0 %v2818
    %v2967 = vpop.f32.mrf.mxu0
    %v2968 = vadd.f32 %v2846, %v2967
    %v2969 = vpop.f32.mrf.mxu0
    %v2970 = vadd.f32 %v2846, %v2969
    %2971 = vmatmul.bf16.gmra.mxu0 %v2820
    %v2972 = vpop.f32.mrf.mxu0
    %v2973 = vadd.f32 %v2846, %v2972
    %v2974 = vpop.f32.mrf.mxu0
    %v2975 = vadd.f32 %v2846, %v2974
    %2976 = vmatmul.bf16.gmra.mxu0 %v2822
    %v2977 = vpop.f32.mrf.mxu0
    %v2978 = vadd.f32 %v2846, %v2977
    %v2979 = vpop.f32.mrf.mxu0
    %v2980 = vadd.f32 %v2846, %v2979
    %2981 = vdwg.mxu0
    %2982 = vmatpush.bf16.msra.mxu0 0
    %2983 = vmatpush.bf16.msra.mxu0 0
    %2984 = vmatpush.bf16.msra.mxu0 0
    %2985 = vmatpush.bf16.msra.mxu0 0
    %2986 = vmatpush.bf16.msra.mxu0 0
    %2987 = vmatpush.bf16.msra.mxu0 0
    %2988 = vmatpush.bf16.msra.mxu0 %v2897
    %2989 = vmatpush.bf16.msra.mxu0 %v2896
    %2990 = vmatmul.bf16.gmra.mxu0 %v2910
    %v2991 = vpop.f32.mrf.mxu0
    %v2992 = vadd.f32 %v2943, %v2991
    %v2993 = vpop.f32.mrf.mxu0
    %v2994 = vadd.f32 %v2945, %v2993
    %2995 = vmatmul.bf16.gmra.mxu0 %v2913
    %v2996 = vpop.f32.mrf.mxu0
    %v2997 = vadd.f32 %v2948, %v2996
    %v2998 = vpop.f32.mrf.mxu0
    %v2999 = vadd.f32 %v2950, %v2998
    %3000 = vmatmul.bf16.gmra.mxu0 %v2916
    %v3001 = vpop.f32.mrf.mxu0
    %v3002 = vadd.f32 %v2953, %v3001
    %v3003 = vpop.f32.mrf.mxu0
    %v3004 = vadd.f32 %v2955, %v3003
    %3005 = vmatmul.bf16.gmra.mxu0 %v2919
    %v3006 = vpop.f32.mrf.mxu0
    %v3007 = vadd.f32 %v2958, %v3006
    %v3008 = vpop.f32.mrf.mxu0
    %v3009 = vadd.f32 %v2960, %v3008
    %3010 = vmatmul.bf16.gmra.mxu0 %v2922
    %v3011 = vpop.f32.mrf.mxu0
    %v3012 = vadd.f32 %v2963, %v3011
    %v3013 = vpop.f32.mrf.mxu0
    %v3014 = vadd.f32 %v2965, %v3013
    %3015 = vmatmul.bf16.gmra.mxu0 %v2925
    %v3016 = vpop.f32.mrf.mxu0
    %v3017 = vadd.f32 %v2968, %v3016
    %v3018 = vpop.f32.mrf.mxu0
    %v3019 = vadd.f32 %v2970, %v3018
    %3020 = vmatmul.bf16.gmra.mxu0 %v2928
    %v3021 = vpop.f32.mrf.mxu0
    %v3022 = vadd.f32 %v2973, %v3021
    %v3023 = vpop.f32.mrf.mxu0
    %v3024 = vadd.f32 %v2975, %v3023
    %3025 = vmatmul.bf16.gmra.mxu0 %v2931
    %v3026 = vpop.f32.mrf.mxu0
    %v3027 = vadd.f32 %v2978, %v3026
    %v3028 = vpop.f32.mrf.mxu0
    %v3029 = vadd.f32 %v2980, %v3028
    %3030 = vdwg.mxu0
    %v3031 = vld [vmem:[%s45] sm:$0xf]
    %v3032 = vld [vmem:[%s45 + $0x4] sm:$0xf]
    %v3033 = vld [vmem:[%s45 + $0x8] sm:$0xf]
    %v3034 = vld [vmem:[%s45 + $0xc] sm:$0xf]
    %v3035 = vld [vmem:[%s45 + $0x10] sm:$0xf]
    %v3036 = vld [vmem:[%s45 + $0x14] sm:$0xf]
    %v3037 = vld [vmem:[%s45 + $0x18] sm:$0xf]
    %v3038 = vld [vmem:[%s45 + $0x1c] sm:$0xf]
    %v3039 = vld [vmem:[%s45 + $0x20] sm:$0xf]
    %v3040 = vld [vmem:[%s45 + $0x24] sm:$0xf]
    %v3041 = vld [vmem:[%s45 + $0x28] sm:$0xf]
    %v3042 = vld [vmem:[%s45 + $0x2c] sm:$0xf]
    %v3043 = vld [vmem:[%s45 + $0x30] sm:$0xf]
    %v3044 = vld [vmem:[%s45 + $0x34] sm:$0xf]
    %v3045 = vld [vmem:[%s45 + $0x38] sm:$0xf]
    %v3046 = vld [vmem:[%s45 + $0x3c] sm:$0xf]
    %v3047 = vld [vmem:[%s45 + $0x40] sm:$0xf]
    %v3048 = vld [vmem:[%s45 + $0x44] sm:$0xf]
    %v3049 = vld [vmem:[%s45 + $0x48] sm:$0xf]
    %v3050 = vld [vmem:[%s45 + $0x4c] sm:$0xf]
    %v3051 = vld [vmem:[%s47] sm:$0x1]
    %v3053 = vperm.slane %v3051, 0
    %v3075 = vunpack.c.l.b16 %v3031
    %v3076 = vunpack.c.l.b16 %v3032
    %v3077 = vunpack.c.l.b16 %v3033
    %v3078 = vunpack.c.l.b16 %v3034
    %v3079 = vunpack.c.l.b16 %v3035
    %v3080 = vunpack.c.l.b16 %v3036
    %v3081 = vunpack.c.l.b16 %v3037
    %v3082 = vunpack.c.l.b16 %v3038
    %v3083 = vunpack.c.l.b16 %v3039
    %v3084 = vunpack.c.l.b16 %v3040
    %v3085 = vunpack.c.l.b16 %v3041
    %v3086 = vunpack.c.l.b16 %v3042
    %v3087 = vunpack.c.l.b16 %v3043
    %v3088 = vunpack.c.l.b16 %v3044
    %v3089 = vunpack.c.l.b16 %v3045
    %v3090 = vunpack.c.l.b16 %v3046
    %v3091 = vunpack.c.l.b16 %v3047
    %v3092 = vunpack.c.l.b16 %v3048
    %v3093 = vunpack.c.l.b16 %v3049
    %v3094 = vunpack.c.l.b16 %v3050
    %v3095 = vpack.c.b16 %v3076, %v3075
    %v3096 = vpack.c.b16 %v3078, %v3077
    %v3097 = vpack.c.b16 %v3080, %v3079
    %v3098 = vpack.c.b16 %v3082, %v3081
    %v3099 = vpack.c.b16 %v3084, %v3083
    %v3100 = vpack.c.b16 %v3086, %v3085
    %v3101 = vpack.c.b16 %v3088, %v3087
    %v3102 = vpack.c.b16 %v3090, %v3089
    %v3103 = vpack.c.b16 %v3092, %v3091
    %v3104 = vpack.c.b16 %v3094, %v3093
    %3115 = vmatpush.bf16.msra.mxu0 %v3102
    %3116 = vmatpush.bf16.msra.mxu0 %v3101
    %3117 = vmatpush.bf16.msra.mxu0 %v3100
    %3118 = vmatpush.bf16.msra.mxu0 %v3099
    %3119 = vmatpush.bf16.msra.mxu0 %v3098
    %3120 = vmatpush.bf16.msra.mxu0 %v3097
    %3121 = vmatpush.bf16.msra.mxu0 %v3096
    %3122 = vmatpush.bf16.msra.mxu0 %v3095
    %3123 = vmatmul.bf16.gmra.mxu0 %v2808
    %v3124 = vpop.f32.mrf.mxu0
    %v3125 = vadd.f32 %v3053, %v3124
    %v3126 = vpop.f32.mrf.mxu0
    %v3127 = vadd.f32 %v3053, %v3126
    %3128 = vmatmul.bf16.gmra.mxu0 %v2810
    %v3129 = vpop.f32.mrf.mxu0
    %v3130 = vadd.f32 %v3053, %v3129
    %v3131 = vpop.f32.mrf.mxu0
    %v3132 = vadd.f32 %v3053, %v3131
    %3133 = vmatmul.bf16.gmra.mxu0 %v2812
    %v3134 = vpop.f32.mrf.mxu0
    %v3135 = vadd.f32 %v3053, %v3134
    %v3136 = vpop.f32.mrf.mxu0
    %v3137 = vadd.f32 %v3053, %v3136
    %3138 = vmatmul.bf16.gmra.mxu0 %v2814
    %v3139 = vpop.f32.mrf.mxu0
    %v3140 = vadd.f32 %v3053, %v3139
    %v3141 = vpop.f32.mrf.mxu0
    %v3142 = vadd.f32 %v3053, %v3141
    %3143 = vmatmul.bf16.gmra.mxu0 %v2816
    %v3144 = vpop.f32.mrf.mxu0
    %v3145 = vadd.f32 %v3053, %v3144
    %v3146 = vpop.f32.mrf.mxu0
    %v3147 = vadd.f32 %v3053, %v3146
    %3148 = vmatmul.bf16.gmra.mxu0 %v2818
    %v3149 = vpop.f32.mrf.mxu0
    %v3150 = vadd.f32 %v3053, %v3149
    %v3151 = vpop.f32.mrf.mxu0
    %v3152 = vadd.f32 %v3053, %v3151
    %3153 = vmatmul.bf16.gmra.mxu0 %v2820
    %v3154 = vpop.f32.mrf.mxu0
    %v3155 = vadd.f32 %v3053, %v3154
    %v3156 = vpop.f32.mrf.mxu0
    %v3157 = vadd.f32 %v3053, %v3156
    %3158 = vmatmul.bf16.gmra.mxu0 %v2822
    %v3159 = vpop.f32.mrf.mxu0
    %v3160 = vadd.f32 %v3053, %v3159
    %v3161 = vpop.f32.mrf.mxu0
    %v3162 = vadd.f32 %v3053, %v3161
    %3163 = vdwg.mxu0
    %3164 = vmatpush.bf16.msra.mxu0 0
    %3165 = vmatpush.bf16.msra.mxu0 0
    %3166 = vmatpush.bf16.msra.mxu0 0
    %3167 = vmatpush.bf16.msra.mxu0 0
    %3168 = vmatpush.bf16.msra.mxu0 0
    %3169 = vmatpush.bf16.msra.mxu0 0
    %3170 = vmatpush.bf16.msra.mxu0 %v3104
    %3171 = vmatpush.bf16.msra.mxu0 %v3103
    %3172 = vmatmul.bf16.gmra.mxu0 %v2910
    %v3173 = vpop.f32.mrf.mxu0
    %v3174 = vadd.f32 %v3125, %v3173
    %v3175 = vpop.f32.mrf.mxu0
    %v3176 = vadd.f32 %v3127, %v3175
    %3177 = vmatmul.bf16.gmra.mxu0 %v2913
    %v3178 = vpop.f32.mrf.mxu0
    %v3179 = vadd.f32 %v3130, %v3178
    %v3180 = vpop.f32.mrf.mxu0
    %v3181 = vadd.f32 %v3132, %v3180
    %3182 = vmatmul.bf16.gmra.mxu0 %v2916
    %v3183 = vpop.f32.mrf.mxu0
    %v3184 = vadd.f32 %v3135, %v3183
    %v3185 = vpop.f32.mrf.mxu0
    %v3186 = vadd.f32 %v3137, %v3185
    %3187 = vmatmul.bf16.gmra.mxu0 %v2919
    %v3188 = vpop.f32.mrf.mxu0
    %v3189 = vadd.f32 %v3140, %v3188
    %v3190 = vpop.f32.mrf.mxu0
    %v3191 = vadd.f32 %v3142, %v3190
    %3192 = vmatmul.bf16.gmra.mxu0 %v2922
    %v3193 = vpop.f32.mrf.mxu0
    %v3194 = vadd.f32 %v3145, %v3193
    %v3195 = vpop.f32.mrf.mxu0
    %v3196 = vadd.f32 %v3147, %v3195
    %3197 = vmatmul.bf16.gmra.mxu0 %v2925
    %v3198 = vpop.f32.mrf.mxu0
    %v3199 = vadd.f32 %v3150, %v3198
    %v3200 = vpop.f32.mrf.mxu0
    %v3201 = vadd.f32 %v3152, %v3200
    %3202 = vmatmul.bf16.gmra.mxu0 %v2928
    %v3203 = vpop.f32.mrf.mxu0
    %v3204 = vadd.f32 %v3155, %v3203
    %v3205 = vpop.f32.mrf.mxu0
    %v3206 = vadd.f32 %v3157, %v3205
    %3207 = vmatmul.bf16.gmra.mxu0 %v2931
    %v3208 = vpop.f32.mrf.mxu0
    %v3209 = vadd.f32 %v3160, %v3208
    %v3210 = vpop.f32.mrf.mxu0
    %v3211 = vadd.f32 %v3162, %v3210
    %3212 = vdwg.mxu0
    %v3213 = vld [vmem:[%s49] sm:$0xff]
    %v3214 = vld [vmem:[%s49 + $0x8] sm:$0xff]
    %v3215 = vld [vmem:[%s49 + $0x10] sm:$0xff]
    %v3216 = vld [vmem:[%s49 + $0x18] sm:$0xff]
    %v3217 = vld [vmem:[%s49 + $0x20] sm:$0xff]
    %v3218 = vld [vmem:[%s49 + $0x28] sm:$0xff]
    %v3219 = vld [vmem:[%s49 + $0x30] sm:$0xff]
    %v3220 = vld [vmem:[%s49 + $0x38] sm:$0xff]
    %v3221 = vld [vmem:[%s49 + $0x40] sm:$0xff]
    %v3222 = vld [vmem:[%s49 + $0x48] sm:$0xff]
    %v3223 = vld [vmem:[%s49 + $0x50] sm:$0xff]
    %v3224 = vld [vmem:[%s49 + $0x58] sm:$0xff]
    %v3225 = vld [vmem:[%s49 + $0x60] sm:$0xff]
    %v3226 = vld [vmem:[%s49 + $0x68] sm:$0xff]
    %v3227 = vld [vmem:[%s49 + $0x70] sm:$0xff]
    %v3228 = vld [vmem:[%s49 + $0x78] sm:$0xff]
    %v3229 = vld [vmem:[%s49 + $0x80] sm:$0xff]
    %v3230 = vld [vmem:[%s49 + $0x88] sm:$0xff]
    %v3231 = vld [vmem:[%s49 + $0x90] sm:$0xff]
    %v3232 = vld [vmem:[%s49 + $0x98] sm:$0xff]
    %v3233 = vld [vmem:[%s51] sm:$0x3]
    %v3235 = vperm.slane %v3233, 0
    %v3236 = vperm.slane %v3233, 1
    %v3259 = vunpack.c.l.b16 %v3213
    %v3260 = vunpack.c.h.b16 %v3213
    %v3261 = vunpack.c.l.b16 %v3214
    %v3262 = vunpack.c.h.b16 %v3214
    %v3263 = vunpack.c.l.b16 %v3215
    %v3264 = vunpack.c.h.b16 %v3215
    %v3265 = vunpack.c.l.b16 %v3216
    %v3266 = vunpack.c.h.b16 %v3216
    %v3267 = vunpack.c.l.b16 %v3217
    %v3268 = vunpack.c.h.b16 %v3217
    %v3269 = vunpack.c.l.b16 %v3218
    %v3270 = vunpack.c.h.b16 %v3218
    %v3271 = vunpack.c.l.b16 %v3219
    %v3272 = vunpack.c.h.b16 %v3219
    %v3273 = vunpack.c.l.b16 %v3220
    %v3274 = vunpack.c.h.b16 %v3220
    %v3275 = vunpack.c.l.b16 %v3221
    %v3276 = vunpack.c.h.b16 %v3221
    %v3277 = vunpack.c.l.b16 %v3222
    %v3278 = vunpack.c.h.b16 %v3222
    %v3279 = vunpack.c.l.b16 %v3223
    %v3280 = vunpack.c.h.b16 %v3223
    %v3281 = vunpack.c.l.b16 %v3224
    %v3282 = vunpack.c.h.b16 %v3224
    %v3283 = vunpack.c.l.b16 %v3225
    %v3284 = vunpack.c.h.b16 %v3225
    %v3285 = vunpack.c.l.b16 %v3226
    %v3286 = vunpack.c.h.b16 %v3226
    %v3287 = vunpack.c.l.b16 %v3227
    %v3288 = vunpack.c.h.b16 %v3227
    %v3289 = vunpack.c.l.b16 %v3228
    %v3290 = vunpack.c.h.b16 %v3228
    %v3291 = vunpack.c.l.b16 %v3229
    %v3292 = vunpack.c.h.b16 %v3229
    %v3293 = vunpack.c.l.b16 %v3230
    %v3294 = vunpack.c.h.b16 %v3230
    %v3295 = vunpack.c.l.b16 %v3231
    %v3296 = vunpack.c.h.b16 %v3231
    %v3297 = vunpack.c.l.b16 %v3232
    %v3298 = vunpack.c.h.b16 %v3232
    %v3299 = vpack.c.b16 %v3261, %v3259
    %v3300 = vpack.c.b16 %v3262, %v3260
    %v3301 = vpack.c.b16 %v3265, %v3263
    %v3302 = vpack.c.b16 %v3266, %v3264
    %v3303 = vpack.c.b16 %v3269, %v3267
    %v3304 = vpack.c.b16 %v3270, %v3268
    %v3305 = vpack.c.b16 %v3273, %v3271
    %v3306 = vpack.c.b16 %v3274, %v3272
    %v3307 = vpack.c.b16 %v3277, %v3275
    %v3308 = vpack.c.b16 %v3278, %v3276
    %v3309 = vpack.c.b16 %v3281, %v3279
    %v3310 = vpack.c.b16 %v3282, %v3280
    %v3311 = vpack.c.b16 %v3285, %v3283
    %v3312 = vpack.c.b16 %v3286, %v3284
    %v3313 = vpack.c.b16 %v3289, %v3287
    %v3314 = vpack.c.b16 %v3290, %v3288
    %v3315 = vpack.c.b16 %v3293, %v3291
    %v3316 = vpack.c.b16 %v3294, %v3292
    %v3317 = vpack.c.b16 %v3297, %v3295
    %v3318 = vpack.c.b16 %v3298, %v3296
    %3339 = vmatpush.bf16.msra.mxu0 %v3313
    %3340 = vmatpush.bf16.msra.mxu0 %v3311
    %3341 = vmatpush.bf16.msra.mxu0 %v3309
    %3342 = vmatpush.bf16.msra.mxu0 %v3307
    %3343 = vmatpush.bf16.msra.mxu0 %v3305
    %3344 = vmatpush.bf16.msra.mxu0 %v3303
    %3345 = vmatpush.bf16.msra.mxu0 %v3301
    %3346 = vmatpush.bf16.msra.mxu0 %v3299
    %3347 = vmatmul.bf16.gmra.mxu0 %v2808
    %v3348 = vpop.f32.mrf.mxu0
    %v3349 = vadd.f32 %v3235, %v3348
    %v3350 = vpop.f32.mrf.mxu0
    %v3351 = vadd.f32 %v3235, %v3350
    %3352 = vmatmul.bf16.gmra.mxu0 %v2810
    %v3353 = vpop.f32.mrf.mxu0
    %v3354 = vadd.f32 %v3235, %v3353
    %v3355 = vpop.f32.mrf.mxu0
    %v3356 = vadd.f32 %v3235, %v3355
    %3357 = vmatmul.bf16.gmra.mxu0 %v2812
    %v3358 = vpop.f32.mrf.mxu0
    %v3359 = vadd.f32 %v3235, %v3358
    %v3360 = vpop.f32.mrf.mxu0
    %v3361 = vadd.f32 %v3235, %v3360
    %3362 = vmatmul.bf16.gmra.mxu0 %v2814
    %v3363 = vpop.f32.mrf.mxu0
    %v3364 = vadd.f32 %v3235, %v3363
    %v3365 = vpop.f32.mrf.mxu0
    %v3366 = vadd.f32 %v3235, %v3365
    %3367 = vmatmul.bf16.gmra.mxu0 %v2816
    %v3368 = vpop.f32.mrf.mxu0
    %v3369 = vadd.f32 %v3235, %v3368
    %v3370 = vpop.f32.mrf.mxu0
    %v3371 = vadd.f32 %v3235, %v3370
    %3372 = vmatmul.bf16.gmra.mxu0 %v2818
    %v3373 = vpop.f32.mrf.mxu0
    %v3374 = vadd.f32 %v3235, %v3373
    %v3375 = vpop.f32.mrf.mxu0
    %v3376 = vadd.f32 %v3235, %v3375
    %3377 = vmatmul.bf16.gmra.mxu0 %v2820
    %v3378 = vpop.f32.mrf.mxu0
    %v3379 = vadd.f32 %v3235, %v3378
    %v3380 = vpop.f32.mrf.mxu0
    %v3381 = vadd.f32 %v3235, %v3380
    %3382 = vmatmul.bf16.gmra.mxu0 %v2822
    %v3383 = vpop.f32.mrf.mxu0
    %v3384 = vadd.f32 %v3235, %v3383
    %v3385 = vpop.f32.mrf.mxu0
    %v3386 = vadd.f32 %v3235, %v3385
    %3387 = vdwg.mxu0
    %3388 = vmatpush.bf16.msra.mxu0 0
    %3389 = vmatpush.bf16.msra.mxu0 0
    %3390 = vmatpush.bf16.msra.mxu0 0
    %3391 = vmatpush.bf16.msra.mxu0 0
    %3392 = vmatpush.bf16.msra.mxu0 0
    %3393 = vmatpush.bf16.msra.mxu0 0
    %3394 = vmatpush.bf16.msra.mxu0 %v3317
    %3395 = vmatpush.bf16.msra.mxu0 %v3315
    %3396 = vmatmul.bf16.gmra.mxu0 %v2910
    %v3397 = vpop.f32.mrf.mxu0
    %v3398 = vadd.f32 %v3349, %v3397
    %v3399 = vpop.f32.mrf.mxu0
    %v3400 = vadd.f32 %v3351, %v3399
    %3401 = vmatmul.bf16.gmra.mxu0 %v2913
    %v3402 = vpop.f32.mrf.mxu0
    %v3403 = vadd.f32 %v3354, %v3402
    %v3404 = vpop.f32.mrf.mxu0
    %v3405 = vadd.f32 %v3356, %v3404
    %3406 = vmatmul.bf16.gmra.mxu0 %v2916
    %v3407 = vpop.f32.mrf.mxu0
    %v3408 = vadd.f32 %v3359, %v3407
    %v3409 = vpop.f32.mrf.mxu0
    %v3410 = vadd.f32 %v3361, %v3409
    %3411 = vmatmul.bf16.gmra.mxu0 %v2919
    %v3412 = vpop.f32.mrf.mxu0
    %v3413 = vadd.f32 %v3364, %v3412
    %v3414 = vpop.f32.mrf.mxu0
    %v3415 = vadd.f32 %v3366, %v3414
    %3416 = vmatmul.bf16.gmra.mxu0 %v2922
    %v3417 = vpop.f32.mrf.mxu0
    %v3418 = vadd.f32 %v3369, %v3417
    %v3419 = vpop.f32.mrf.mxu0
    %v3420 = vadd.f32 %v3371, %v3419
    %3421 = vmatmul.bf16.gmra.mxu0 %v2925
    %v3422 = vpop.f32.mrf.mxu0
    %v3423 = vadd.f32 %v3374, %v3422
    %v3424 = vpop.f32.mrf.mxu0
    %v3425 = vadd.f32 %v3376, %v3424
    %3426 = vmatmul.bf16.gmra.mxu0 %v2928
    %v3427 = vpop.f32.mrf.mxu0
    %v3428 = vadd.f32 %v3379, %v3427
    %v3429 = vpop.f32.mrf.mxu0
    %v3430 = vadd.f32 %v3381, %v3429
    %3431 = vmatmul.bf16.gmra.mxu0 %v2931
    %v3432 = vpop.f32.mrf.mxu0
    %v3433 = vadd.f32 %v3384, %v3432
    %v3434 = vpop.f32.mrf.mxu0
    %v3435 = vadd.f32 %v3386, %v3434
    %3436 = vdwg.mxu0
    %3437 = vmatpush.bf16.msra.mxu0 %v3314
    %3438 = vmatpush.bf16.msra.mxu0 %v3312
    %3439 = vmatpush.bf16.msra.mxu0 %v3310
    %3440 = vmatpush.bf16.msra.mxu0 %v3308
    %3441 = vmatpush.bf16.msra.mxu0 %v3306
    %3442 = vmatpush.bf16.msra.mxu0 %v3304
    %3443 = vmatpush.bf16.msra.mxu0 %v3302
    %3444 = vmatpush.bf16.msra.mxu0 %v3300
    %3445 = vmatmul.bf16.gmra.mxu0 %v2808
    %v3446 = vpop.f32.mrf.mxu0
    %v3447 = vadd.f32 %v3236, %v3446
    %v3448 = vpop.f32.mrf.mxu0
    %v3449 = vadd.f32 %v3236, %v3448
    %3450 = vmatmul.bf16.gmra.mxu0 %v2810
    %v3451 = vpop.f32.mrf.mxu0
    %v3452 = vadd.f32 %v3236, %v3451
    %v3453 = vpop.f32.mrf.mxu0
    %v3454 = vadd.f32 %v3236, %v3453
    %3455 = vmatmul.bf16.gmra.mxu0 %v2812
    %v3456 = vpop.f32.mrf.mxu0
    %v3457 = vadd.f32 %v3236, %v3456
    %v3458 = vpop.f32.mrf.mxu0
    %v3459 = vadd.f32 %v3236, %v3458
    %3460 = vmatmul.bf16.gmra.mxu0 %v2814
    %v3461 = vpop.f32.mrf.mxu0
    %v3462 = vadd.f32 %v3236, %v3461
    %v3463 = vpop.f32.mrf.mxu0
    %v3464 = vadd.f32 %v3236, %v3463
    %3465 = vmatmul.bf16.gmra.mxu0 %v2816
    %v3466 = vpop.f32.mrf.mxu0
    %v3467 = vadd.f32 %v3236, %v3466
    %v3468 = vpop.f32.mrf.mxu0
    %v3469 = vadd.f32 %v3236, %v3468
    %3470 = vmatmul.bf16.gmra.mxu0 %v2818
    %v3471 = vpop.f32.mrf.mxu0
    %v3472 = vadd.f32 %v3236, %v3471
    %v3473 = vpop.f32.mrf.mxu0
    %v3474 = vadd.f32 %v3236, %v3473
    %3475 = vmatmul.bf16.gmra.mxu0 %v2820
    %v3476 = vpop.f32.mrf.mxu0
    %v3477 = vadd.f32 %v3236, %v3476
    %v3478 = vpop.f32.mrf.mxu0
    %v3479 = vadd.f32 %v3236, %v3478
    %3480 = vmatmul.bf16.gmra.mxu0 %v2822
    %v3481 = vpop.f32.mrf.mxu0
    %v3482 = vadd.f32 %v3236, %v3481
    %v3483 = vpop.f32.mrf.mxu0
    %v3484 = vadd.f32 %v3236, %v3483
    %3485 = vdwg.mxu0
    %3486 = vmatpush.bf16.msra.mxu0 0
    %3487 = vmatpush.bf16.msra.mxu0 0
    %3488 = vmatpush.bf16.msra.mxu0 0
    %3489 = vmatpush.bf16.msra.mxu0 0
    %3490 = vmatpush.bf16.msra.mxu0 0
    %3491 = vmatpush.bf16.msra.mxu0 0
    %3492 = vmatpush.bf16.msra.mxu0 %v3318
    %3493 = vmatpush.bf16.msra.mxu0 %v3316
    %3494 = vmatmul.bf16.gmra.mxu0 %v2910
    %v3495 = vpop.f32.mrf.mxu0
    %v3496 = vadd.f32 %v3447, %v3495
    %v3497 = vpop.f32.mrf.mxu0
    %v3498 = vadd.f32 %v3449, %v3497
    %3499 = vmatmul.bf16.gmra.mxu0 %v2913
    %v3500 = vpop.f32.mrf.mxu0
    %v3501 = vadd.f32 %v3452, %v3500
    %v3502 = vpop.f32.mrf.mxu0
    %v3503 = vadd.f32 %v3454, %v3502
    %3504 = vmatmul.bf16.gmra.mxu0 %v2916
    %v3505 = vpop.f32.mrf.mxu0
    %v3506 = vadd.f32 %v3457, %v3505
    %v3507 = vpop.f32.mrf.mxu0
    %v3508 = vadd.f32 %v3459, %v3507
    %3509 = vmatmul.bf16.gmra.mxu0 %v2919
    %v3510 = vpop.f32.mrf.mxu0
    %v3511 = vadd.f32 %v3462, %v3510
    %v3512 = vpop.f32.mrf.mxu0
    %v3513 = vadd.f32 %v3464, %v3512
    %3514 = vmatmul.bf16.gmra.mxu0 %v2922
    %v3515 = vpop.f32.mrf.mxu0
    %v3516 = vadd.f32 %v3467, %v3515
    %v3517 = vpop.f32.mrf.mxu0
    %v3518 = vadd.f32 %v3469, %v3517
    %3519 = vmatmul.bf16.gmra.mxu0 %v2925
    %v3520 = vpop.f32.mrf.mxu0
    %v3521 = vadd.f32 %v3472, %v3520
    %v3522 = vpop.f32.mrf.mxu0
    %v3523 = vadd.f32 %v3474, %v3522
    %3524 = vmatmul.bf16.gmra.mxu0 %v2928
    %v3525 = vpop.f32.mrf.mxu0
    %v3526 = vadd.f32 %v3477, %v3525
    %v3527 = vpop.f32.mrf.mxu0
    %v3528 = vadd.f32 %v3479, %v3527
    %3529 = vmatmul.bf16.gmra.mxu0 %v2931
    %v3530 = vpop.f32.mrf.mxu0
    %v3531 = vadd.f32 %v3482, %v3530
    %v3532 = vpop.f32.mrf.mxu0
    %v3533 = vadd.f32 %v3484, %v3532
    %3534 = vdwg.mxu0
    %v3535 = vld [vmem:[%s53] sm:$0xf]
    %v3536 = vld [vmem:[%s53 + $0x4] sm:$0xf]
    %v3537 = vld [vmem:[%s53 + $0x8] sm:$0xf]
    %v3538 = vld [vmem:[%s53 + $0xc] sm:$0xf]
    %v3539 = vld [vmem:[%s53 + $0x10] sm:$0xf]
    %3556 = vrot.lane.b32.xlu0 %v2992, 8
    %v3557 = vpop.permute.xlu0 %3556
    %3558 = vrot.lane.b32.xlu0 %v2994, 8
    %v3559 = vpop.permute.xlu0 %3558
    %3560 = vrot.lane.b32.xlu0 %v2997, 8
    %v3561 = vpop.permute.xlu0 %3560
    %3562 = vrot.lane.b32.xlu0 %v2999, 8
    %v3563 = vpop.permute.xlu0 %3562
    %3564 = vrot.lane.b32.xlu0 %v3002, 8
    %v3565 = vpop.permute.xlu0 %3564
    %3566 = vrot.lane.b32.xlu0 %v3004, 8
    %v3567 = vpop.permute.xlu0 %3566
    %3568 = vrot.lane.b32.xlu0 %v3007, 8
    %v3569 = vpop.permute.xlu0 %3568
    %3570 = vrot.lane.b32.xlu0 %v3009, 8
    %v3571 = vpop.permute.xlu0 %3570
    %3572 = vrot.lane.b32.xlu0 %v3012, 8
    %v3573 = vpop.permute.xlu0 %3572
    %3574 = vrot.lane.b32.xlu0 %v3014, 8
    %v3575 = vpop.permute.xlu0 %3574
    %3576 = vrot.lane.b32.xlu0 %v3017, 8
    %v3577 = vpop.permute.xlu0 %3576
    %3578 = vrot.lane.b32.xlu0 %v3019, 8
    %v3579 = vpop.permute.xlu0 %3578
    %3580 = vrot.lane.b32.xlu0 %v3022, 8
    %v3581 = vpop.permute.xlu0 %3580
    %3582 = vrot.lane.b32.xlu0 %v3024, 8
    %v3583 = vpop.permute.xlu0 %3582
    %3584 = vrot.lane.b32.xlu0 %v3027, 8
    %v3585 = vpop.permute.xlu0 %3584
    %3586 = vrot.lane.b32.xlu0 %v3029, 8
    %v3587 = vpop.permute.xlu0 %3586
    %3604 = vrot.lane.b32.xlu0 %v2992, 16
    %v3605 = vpop.permute.xlu0 %3604
    %3606 = vrot.lane.b32.xlu0 %v2994, 16
    %v3607 = vpop.permute.xlu0 %3606
    %3608 = vrot.lane.b32.xlu0 %v2997, 16
    %v3609 = vpop.permute.xlu0 %3608
    %3610 = vrot.lane.b32.xlu0 %v2999, 16
    %v3611 = vpop.permute.xlu0 %3610
    %3612 = vrot.lane.b32.xlu0 %v3002, 16
    %v3613 = vpop.permute.xlu0 %3612
    %3614 = vrot.lane.b32.xlu0 %v3004, 16
    %v3615 = vpop.permute.xlu0 %3614
    %3616 = vrot.lane.b32.xlu0 %v3007, 16
    %v3617 = vpop.permute.xlu0 %3616
    %3618 = vrot.lane.b32.xlu0 %v3009, 16
    %v3619 = vpop.permute.xlu0 %3618
    %3620 = vrot.lane.b32.xlu0 %v3012, 16
    %v3621 = vpop.permute.xlu0 %3620
    %3622 = vrot.lane.b32.xlu0 %v3014, 16
    %v3623 = vpop.permute.xlu0 %3622
    %3624 = vrot.lane.b32.xlu0 %v3017, 16
    %v3625 = vpop.permute.xlu0 %3624
    %3626 = vrot.lane.b32.xlu0 %v3019, 16
    %v3627 = vpop.permute.xlu0 %3626
    %3628 = vrot.lane.b32.xlu0 %v3022, 16
    %v3629 = vpop.permute.xlu0 %3628
    %3630 = vrot.lane.b32.xlu0 %v3024, 16
    %v3631 = vpop.permute.xlu0 %3630
    %3632 = vrot.lane.b32.xlu0 %v3027, 16
    %v3633 = vpop.permute.xlu0 %3632
    %3634 = vrot.lane.b32.xlu0 %v3029, 16
    %v3635 = vpop.permute.xlu0 %3634
    %3652 = vrot.lane.b32.xlu0 %v2992, 24
    %v3653 = vpop.permute.xlu0 %3652
    %3654 = vrot.lane.b32.xlu0 %v2994, 24
    %v3655 = vpop.permute.xlu0 %3654
    %3656 = vrot.lane.b32.xlu0 %v2997, 24
    %v3657 = vpop.permute.xlu0 %3656
    %3658 = vrot.lane.b32.xlu0 %v2999, 24
    %v3659 = vpop.permute.xlu0 %3658
    %3660 = vrot.lane.b32.xlu0 %v3002, 24
    %v3661 = vpop.permute.xlu0 %3660
    %3662 = vrot.lane.b32.xlu0 %v3004, 24
    %v3663 = vpop.permute.xlu0 %3662
    %3664 = vrot.lane.b32.xlu0 %v3007, 24
    %v3665 = vpop.permute.xlu0 %3664
    %3666 = vrot.lane.b32.xlu0 %v3009, 24
    %v3667 = vpop.permute.xlu0 %3666
    %3668 = vrot.lane.b32.xlu0 %v3012, 24
    %v3669 = vpop.permute.xlu0 %3668
    %3670 = vrot.lane.b32.xlu0 %v3014, 24
    %v3671 = vpop.permute.xlu0 %3670
    %3672 = vrot.lane.b32.xlu0 %v3017, 24
    %v3673 = vpop.permute.xlu0 %3672
    %3674 = vrot.lane.b32.xlu0 %v3019, 24
    %v3675 = vpop.permute.xlu0 %3674
    %3676 = vrot.lane.b32.xlu0 %v3022, 24
    %v3677 = vpop.permute.xlu0 %3676
    %3678 = vrot.lane.b32.xlu0 %v3024, 24
    %v3679 = vpop.permute.xlu0 %3678
    %3680 = vrot.lane.b32.xlu0 %v3027, 24
    %v3681 = vpop.permute.xlu0 %3680
    %3682 = vrot.lane.b32.xlu0 %v3029, 24
    %v3683 = vpop.permute.xlu0 %3682
    %3700 = vrot.lane.b32.xlu0 %v2992, 32
    %v3701 = vpop.permute.xlu0 %3700
    %3702 = vrot.lane.b32.xlu0 %v2994, 32
    %v3703 = vpop.permute.xlu0 %3702
    %3704 = vrot.lane.b32.xlu0 %v2997, 32
    %v3705 = vpop.permute.xlu0 %3704
    %3706 = vrot.lane.b32.xlu0 %v2999, 32
    %v3707 = vpop.permute.xlu0 %3706
    %3708 = vrot.lane.b32.xlu0 %v3002, 32
    %v3709 = vpop.permute.xlu0 %3708
    %3710 = vrot.lane.b32.xlu0 %v3004, 32
    %v3711 = vpop.permute.xlu0 %3710
    %3712 = vrot.lane.b32.xlu0 %v3007, 32
    %v3713 = vpop.permute.xlu0 %3712
    %3714 = vrot.lane.b32.xlu0 %v3009, 32
    %v3715 = vpop.permute.xlu0 %3714
    %3716 = vrot.lane.b32.xlu0 %v3012, 32
    %v3717 = vpop.permute.xlu0 %3716
    %3718 = vrot.lane.b32.xlu0 %v3014, 32
    %v3719 = vpop.permute.xlu0 %3718
    %3720 = vrot.lane.b32.xlu0 %v3017, 32
    %v3721 = vpop.permute.xlu0 %3720
    %3722 = vrot.lane.b32.xlu0 %v3019, 32
    %v3723 = vpop.permute.xlu0 %3722
    %3724 = vrot.lane.b32.xlu0 %v3022, 32
    %v3725 = vpop.permute.xlu0 %3724
    %3726 = vrot.lane.b32.xlu0 %v3024, 32
    %v3727 = vpop.permute.xlu0 %3726
    %3728 = vrot.lane.b32.xlu0 %v3027, 32
    %v3729 = vpop.permute.xlu0 %3728
    %3730 = vrot.lane.b32.xlu0 %v3029, 32
    %v3731 = vpop.permute.xlu0 %3730
    %vm3748 = vcmask 64512
    %v3749 = vsel %vm3748, %v2992, %v3557
    %v3750 = vsel %vm3748, %v2994, %v3559
    %v3751 = vsel %vm3748, %v2997, %v3561
    %v3752 = vsel %vm3748, %v2999, %v3563
    %v3753 = vsel %vm3748, %v3002, %v3565
    %v3754 = vsel %vm3748, %v3004, %v3567
    %v3755 = vsel %vm3748, %v3007, %v3569
    %v3756 = vsel %vm3748, %v3009, %v3571
    %v3757 = vsel %vm3748, %v3012, %v3573
    %v3758 = vsel %vm3748, %v3014, %v3575
    %v3759 = vsel %vm3748, %v3017, %v3577
    %v3760 = vsel %vm3748, %v3019, %v3579
    %v3761 = vsel %vm3748, %v3022, %v3581
    %v3762 = vsel %vm3748, %v3024, %v3583
    %v3763 = vsel %vm3748, %v3027, %v3585
    %v3764 = vsel %vm3748, %v3029, %v3587
    %v3765 = vsel %vm1558, %v3749, %v3605
    %v3766 = vsel %vm1558, %v3750, %v3607
    %v3767 = vsel %vm1558, %v3751, %v3609
    %v3768 = vsel %vm1558, %v3752, %v3611
    %v3769 = vsel %vm1558, %v3753, %v3613
    %v3770 = vsel %vm1558, %v3754, %v3615
    %v3771 = vsel %vm1558, %v3755, %v3617
    %v3772 = vsel %vm1558, %v3756, %v3619
    %v3773 = vsel %vm1558, %v3757, %v3621
    %v3774 = vsel %vm1558, %v3758, %v3623
    %v3775 = vsel %vm1558, %v3759, %v3625
    %v3776 = vsel %vm1558, %v3760, %v3627
    %v3777 = vsel %vm1558, %v3761, %v3629
    %v3778 = vsel %vm1558, %v3762, %v3631
    %v3779 = vsel %vm1558, %v3763, %v3633
    %v3780 = vsel %vm1558, %v3764, %v3635
    %vm3781 = vcmask 195584
    %v3782 = vsel %vm3781, %v3765, %v3653
    %v3783 = vsel %vm3781, %v3766, %v3655
    %v3784 = vsel %vm3781, %v3767, %v3657
    %v3785 = vsel %vm3781, %v3768, %v3659
    %v3786 = vsel %vm3781, %v3769, %v3661
    %v3787 = vsel %vm3781, %v3770, %v3663
    %v3788 = vsel %vm3781, %v3771, %v3665
    %v3789 = vsel %vm3781, %v3772, %v3667
    %v3790 = vsel %vm3781, %v3773, %v3669
    %v3791 = vsel %vm3781, %v3774, %v3671
    %v3792 = vsel %vm3781, %v3775, %v3673
    %v3793 = vsel %vm3781, %v3776, %v3675
    %v3794 = vsel %vm3781, %v3777, %v3677
    %v3795 = vsel %vm3781, %v3778, %v3679
    %v3796 = vsel %vm3781, %v3779, %v3681
    %v3797 = vsel %vm3781, %v3780, %v3683
    %v3798 = vsel %vm2908, %v3782, %v3701
    %v3799 = vsel %vm2908, %v3783, %v3703
    %v3800 = vsel %vm2908, %v3784, %v3705
    %v3801 = vsel %vm2908, %v3785, %v3707
    %v3802 = vsel %vm2908, %v3786, %v3709
    %v3803 = vsel %vm2908, %v3787, %v3711
    %v3804 = vsel %vm2908, %v3788, %v3713
    %v3805 = vsel %vm2908, %v3789, %v3715
    %v3806 = vsel %vm2908, %v3790, %v3717
    %v3807 = vsel %vm2908, %v3791, %v3719
    %v3808 = vsel %vm2908, %v3792, %v3721
    %v3809 = vsel %vm2908, %v3793, %v3723
    %v3810 = vsel %vm2908, %v3794, %v3725
    %v3811 = vsel %vm2908, %v3795, %v3727
    %v3812 = vsel %vm2908, %v3796, %v3729
    %v3813 = vsel %vm2908, %v3797, %v3731
    %v3814 = vmul.f32 %v3174, %v3798
    %v3815 = vmul.f32 %v3176, %v3799
    %v3816 = vmul.f32 %v3179, %v3800
    %v3817 = vmul.f32 %v3181, %v3801
    %v3818 = vmul.f32 %v3184, %v3802
    %v3819 = vmul.f32 %v3186, %v3803
    %v3820 = vmul.f32 %v3189, %v3804
    %v3821 = vmul.f32 %v3191, %v3805
    %v3822 = vmul.f32 %v3194, %v3806
    %v3823 = vmul.f32 %v3196, %v3807
    %v3824 = vmul.f32 %v3199, %v3808
    %v3825 = vmul.f32 %v3201, %v3809
    %v3826 = vmul.f32 %v3204, %v3810
    %v3827 = vmul.f32 %v3206, %v3811
    %v3828 = vmul.f32 %v3209, %v3812
    %v3829 = vmul.f32 %v3211, %v3813
    %v3830 = vpack.c.bf16 %v3815, %v3814
    %v3831 = vpack.c.bf16 %v3817, %v3816
    %v3832 = vpack.c.bf16 %v3819, %v3818
    %v3833 = vpack.c.bf16 %v3821, %v3820
    %v3834 = vpack.c.bf16 %v3823, %v3822
    %v3835 = vpack.c.bf16 %v3825, %v3824
    %v3836 = vpack.c.bf16 %v3827, %v3826
    %v3837 = vpack.c.bf16 %v3829, %v3828
    %v3843 = vunpack.c.l.b16 %v3535
    %v3844 = vunpack.c.l.b16 %v3536
    %v3845 = vunpack.c.l.b16 %v3537
    %v3846 = vunpack.c.l.b16 %v3538
    %v3847 = vunpack.c.l.b16 %v3539
    %v3848 = vpack.c.b16 %v3844, %v3843
    %v3849 = vpack.c.b16 %v3846, %v3845
    %v3850 = vpack.c.b16 %v3847, %v3847
    %vm3853 = vcmask 326656
    %v3855 = vsel %vm3853, %v3830, 0
    %v3858 = vsel %vm3853, %v3831, 0
    %v3861 = vsel %vm3853, %v3832, 0
    %v3864 = vsel %vm3853, %v3833, 0
    %v3867 = vsel %vm3853, %v3834, 0
    %v3870 = vsel %vm3853, %v3835, 0
    %v3873 = vsel %vm3853, %v3836, 0
    %v3876 = vsel %vm3853, %v3837, 0
    %vm3878 = vcmask 1043456
    %v3880 = vsel %vm3878, %v3850, 0
    %3882 = vmatpush.bf16.msra.mxu0 0
    %3883 = vmatpush.bf16.msra.mxu0 0
    %3884 = vmatpush.bf16.msra.mxu0 0
    %3885 = vmatpush.bf16.msra.mxu0 0
    %3886 = vmatpush.bf16.msra.mxu0 0
    %3887 = vmatpush.bf16.msra.mxu0 %v3880
    %3888 = vmatpush.bf16.msra.mxu0 %v3849
    %3889 = vmatpush.bf16.msra.mxu0 %v3848
    %3890 = vmatmul.bf16.gmra.mxu0 %v3855
    %v3891 = vpop.f32.mrf.mxu0
    %v3892 = vadd.f32 0.0, %v3891
    %v3893 = vpop.f32.mrf.mxu0
    %v3894 = vadd.f32 0.0, %v3893
    %3895 = vmatmul.bf16.gmra.mxu0 %v3858
    %v3896 = vpop.f32.mrf.mxu0
    %v3897 = vadd.f32 0.0, %v3896
    %v3898 = vpop.f32.mrf.mxu0
    %v3899 = vadd.f32 0.0, %v3898
    %3900 = vmatmul.bf16.gmra.mxu0 %v3861
    %v3901 = vpop.f32.mrf.mxu0
    %v3902 = vadd.f32 0.0, %v3901
    %v3903 = vpop.f32.mrf.mxu0
    %v3904 = vadd.f32 0.0, %v3903
    %3905 = vmatmul.bf16.gmra.mxu0 %v3864
    %v3906 = vpop.f32.mrf.mxu0
    %v3907 = vadd.f32 0.0, %v3906
    %v3908 = vpop.f32.mrf.mxu0
    %v3909 = vadd.f32 0.0, %v3908
    %3910 = vmatmul.bf16.gmra.mxu0 %v3867
    %v3911 = vpop.f32.mrf.mxu0
    %v3912 = vadd.f32 0.0, %v3911
    %v3913 = vpop.f32.mrf.mxu0
    %v3914 = vadd.f32 0.0, %v3913
    %3915 = vmatmul.bf16.gmra.mxu0 %v3870
    %v3916 = vpop.f32.mrf.mxu0
    %v3917 = vadd.f32 0.0, %v3916
    %v3918 = vpop.f32.mrf.mxu0
    %v3919 = vadd.f32 0.0, %v3918
    %3920 = vmatmul.bf16.gmra.mxu0 %v3873
    %v3921 = vpop.f32.mrf.mxu0
    %v3922 = vadd.f32 0.0, %v3921
    %v3923 = vpop.f32.mrf.mxu0
    %v3924 = vadd.f32 0.0, %v3923
    %3925 = vmatmul.bf16.gmra.mxu0 %v3876
    %v3926 = vpop.f32.mrf.mxu0
    %v3927 = vadd.f32 0.0, %v3926
    %v3928 = vpop.f32.mrf.mxu0
    %v3929 = vadd.f32 0.0, %v3928
    %3930 = vdwg.mxu0
    %v3931 = vmul.f32 %v3892, 0.35355338
    %v3932 = vmul.f32 %v3894, 0.35355338
    %v3933 = vmul.f32 %v3897, 0.35355338
    %v3934 = vmul.f32 %v3899, 0.35355338
    %v3935 = vmul.f32 %v3902, 0.35355338
    %v3936 = vmul.f32 %v3904, 0.35355338
    %v3937 = vmul.f32 %v3907, 0.35355338
    %v3938 = vmul.f32 %v3909, 0.35355338
    %v3939 = vmul.f32 %v3912, 0.35355338
    %v3940 = vmul.f32 %v3914, 0.35355338
    %v3941 = vmul.f32 %v3917, 0.35355338
    %v3942 = vmul.f32 %v3919, 0.35355338
    %v3943 = vmul.f32 %v3922, 0.35355338
    %v3944 = vmul.f32 %v3924, 0.35355338
    %v3945 = vmul.f32 %v3927, 0.35355338
    %v3946 = vmul.f32 %v3929, 0.35355338
    %vm3947 = vcmask 39936
    %v3948 = vsel %vm3947, %v3931, -inf
    %3949 = vmax.xlane.f32.xlu0 %v3948
    %v3950 = vpop.xlane.xlu0 %3949
    %v3951 = vsel %vm3947, %v3932, -inf
    %3952 = vmax.xlane.f32.xlu0 %v3951
    %v3953 = vpop.xlane.xlu0 %3952
    %v3954 = vsel %vm3947, %v3933, -inf
    %3955 = vmax.xlane.f32.xlu0 %v3954
    %v3956 = vpop.xlane.xlu0 %3955
    %v3957 = vsel %vm3947, %v3934, -inf
    %3958 = vmax.xlane.f32.xlu0 %v3957
    %v3959 = vpop.xlane.xlu0 %3958
    %v3960 = vsel %vm3947, %v3935, -inf
    %3961 = vmax.xlane.f32.xlu0 %v3960
    %v3962 = vpop.xlane.xlu0 %3961
    %v3963 = vsel %vm3947, %v3936, -inf
    %3964 = vmax.xlane.f32.xlu0 %v3963
    %v3965 = vpop.xlane.xlu0 %3964
    %v3966 = vsel %vm3947, %v3937, -inf
    %3967 = vmax.xlane.f32.xlu0 %v3966
    %v3968 = vpop.xlane.xlu0 %3967
    %v3969 = vsel %vm3947, %v3938, -inf
    %3970 = vmax.xlane.f32.xlu0 %v3969
    %v3971 = vpop.xlane.xlu0 %3970
    %v3972 = vsel %vm3947, %v3939, -inf
    %3973 = vmax.xlane.f32.xlu0 %v3972
    %v3974 = vpop.xlane.xlu0 %3973
    %v3975 = vsel %vm3947, %v3940, -inf
    %3976 = vmax.xlane.f32.xlu0 %v3975
    %v3977 = vpop.xlane.xlu0 %3976
    %v3978 = vsel %vm3947, %v3941, -inf
    %3979 = vmax.xlane.f32.xlu0 %v3978
    %v3980 = vpop.xlane.xlu0 %3979
    %v3981 = vsel %vm3947, %v3942, -inf
    %3982 = vmax.xlane.f32.xlu0 %v3981
    %v3983 = vpop.xlane.xlu0 %3982
    %v3984 = vsel %vm3947, %v3943, -inf
    %3985 = vmax.xlane.f32.xlu0 %v3984
    %v3986 = vpop.xlane.xlu0 %3985
    %v3987 = vsel %vm3947, %v3944, -inf
    %3988 = vmax.xlane.f32.xlu0 %v3987
    %v3989 = vpop.xlane.xlu0 %3988
    %v3990 = vsel %vm3947, %v3945, -inf
    %3991 = vmax.xlane.f32.xlu0 %v3990
    %v3992 = vpop.xlane.xlu0 %3991
    %v3993 = vsel %vm3947, %v3946, -inf
    %3994 = vmax.xlane.f32.xlu0 %v3993
    %v3995 = vpop.xlane.xlu0 %3994
    %v3996 = vsub.f32 %v3931, %v3950
    %v3997 = vsub.f32 %v3932, %v3953
    %v3998 = vsub.f32 %v3933, %v3956
    %v3999 = vsub.f32 %v3934, %v3959
    %v4000 = vsub.f32 %v3935, %v3962
    %v4001 = vsub.f32 %v3936, %v3965
    %v4002 = vsub.f32 %v3937, %v3968
    %v4003 = vsub.f32 %v3938, %v3971
    %v4004 = vsub.f32 %v3939, %v3974
    %v4005 = vsub.f32 %v3940, %v3977
    %v4006 = vsub.f32 %v3941, %v3980
    %v4007 = vsub.f32 %v3942, %v3983
    %v4008 = vsub.f32 %v3943, %v3986
    %v4009 = vsub.f32 %v3944, %v3989
    %v4010 = vsub.f32 %v3945, %v3992
    %v4011 = vsub.f32 %v3946, %v3995
    %v4012 = vmul.f32 %v3996, 1.442695
    %v4013 = vpow.pop %v4012
    %v4014 = vmul.f32 %v3997, 1.442695
    %v4015 = vpow.pop %v4014
    %v4016 = vmul.f32 %v3998, 1.442695
    %v4017 = vpow.pop %v4016
    %v4018 = vmul.f32 %v3999, 1.442695
    %v4019 = vpow.pop %v4018
    %v4020 = vmul.f32 %v4000, 1.442695
    %v4021 = vpow.pop %v4020
    %v4022 = vmul.f32 %v4001, 1.442695
    %v4023 = vpow.pop %v4022
    %v4024 = vmul.f32 %v4002, 1.442695
    %v4025 = vpow.pop %v4024
    %v4026 = vmul.f32 %v4003, 1.442695
    %v4027 = vpow.pop %v4026
    %v4028 = vmul.f32 %v4004, 1.442695
    %v4029 = vpow.pop %v4028
    %v4030 = vmul.f32 %v4005, 1.442695
    %v4031 = vpow.pop %v4030
    %v4032 = vmul.f32 %v4006, 1.442695
    %v4033 = vpow.pop %v4032
    %v4034 = vmul.f32 %v4007, 1.442695
    %v4035 = vpow.pop %v4034
    %v4036 = vmul.f32 %v4008, 1.442695
    %v4037 = vpow.pop %v4036
    %v4038 = vmul.f32 %v4009, 1.442695
    %v4039 = vpow.pop %v4038
    %v4040 = vmul.f32 %v4010, 1.442695
    %v4041 = vpow.pop %v4040
    %v4042 = vmul.f32 %v4011, 1.442695
    %v4043 = vpow.pop %v4042
    %v4044 = vsel %vm3947, %v4013, 0.0
    %4045 = vadd.xlane.f32.xlu0 %v4044
    %v4046 = vpop.xlane.xlu0 %4045
    %v4047 = vsel %vm3947, %v4015, 0.0
    %4048 = vadd.xlane.f32.xlu0 %v4047
    %v4049 = vpop.xlane.xlu0 %4048
    %v4050 = vsel %vm3947, %v4017, 0.0
    %4051 = vadd.xlane.f32.xlu0 %v4050
    %v4052 = vpop.xlane.xlu0 %4051
    %v4053 = vsel %vm3947, %v4019, 0.0
    %4054 = vadd.xlane.f32.xlu0 %v4053
    %v4055 = vpop.xlane.xlu0 %4054
    %v4056 = vsel %vm3947, %v4021, 0.0
    %4057 = vadd.xlane.f32.xlu0 %v4056
    %v4058 = vpop.xlane.xlu0 %4057
    %v4059 = vsel %vm3947, %v4023, 0.0
    %4060 = vadd.xlane.f32.xlu0 %v4059
    %v4061 = vpop.xlane.xlu0 %4060
    %v4062 = vsel %vm3947, %v4025, 0.0
    %4063 = vadd.xlane.f32.xlu0 %v4062
    %v4064 = vpop.xlane.xlu0 %4063
    %v4065 = vsel %vm3947, %v4027, 0.0
    %4066 = vadd.xlane.f32.xlu0 %v4065
    %v4067 = vpop.xlane.xlu0 %4066
    %v4068 = vsel %vm3947, %v4029, 0.0
    %4069 = vadd.xlane.f32.xlu0 %v4068
    %v4070 = vpop.xlane.xlu0 %4069
    %v4071 = vsel %vm3947, %v4031, 0.0
    %4072 = vadd.xlane.f32.xlu0 %v4071
    %v4073 = vpop.xlane.xlu0 %4072
    %v4074 = vsel %vm3947, %v4033, 0.0
    %4075 = vadd.xlane.f32.xlu0 %v4074
    %v4076 = vpop.xlane.xlu0 %4075
    %v4077 = vsel %vm3947, %v4035, 0.0
    %4078 = vadd.xlane.f32.xlu0 %v4077
    %v4079 = vpop.xlane.xlu0 %4078
    %v4080 = vsel %vm3947, %v4037, 0.0
    %4081 = vadd.xlane.f32.xlu0 %v4080
    %v4082 = vpop.xlane.xlu0 %4081
    %v4083 = vsel %vm3947, %v4039, 0.0
    %4084 = vadd.xlane.f32.xlu0 %v4083
    %v4085 = vpop.xlane.xlu0 %4084
    %v4086 = vsel %vm3947, %v4041, 0.0
    %4087 = vadd.xlane.f32.xlu0 %v4086
    %v4088 = vpop.xlane.xlu0 %4087
    %v4089 = vsel %vm3947, %v4043, 0.0
    %4090 = vadd.xlane.f32.xlu0 %v4089
    %v4091 = vpop.xlane.xlu0 %4090
    %v4092 = vrcp.pop %v4046
    %v4093 = vrcp.pop %v4049
    %v4094 = vrcp.pop %v4052
    %v4095 = vrcp.pop %v4055
    %v4096 = vrcp.pop %v4058
    %v4097 = vrcp.pop %v4061
    %v4098 = vrcp.pop %v4064
    %v4099 = vrcp.pop %v4067
    %v4100 = vrcp.pop %v4070
    %v4101 = vrcp.pop %v4073
    %v4102 = vrcp.pop %v4076
    %v4103 = vrcp.pop %v4079
    %v4104 = vrcp.pop %v4082
    %v4105 = vrcp.pop %v4085
    %v4106 = vrcp.pop %v4088
    %v4107 = vrcp.pop %v4091
    %v4108 = vmul.f32 %v4013, %v4092
    %v4109 = vmul.f32 %v4015, %v4093
    %v4110 = vmul.f32 %v4017, %v4094
    %v4111 = vmul.f32 %v4019, %v4095
    %v4112 = vmul.f32 %v4021, %v4096
    %v4113 = vmul.f32 %v4023, %v4097
    %v4114 = vmul.f32 %v4025, %v4098
    %v4115 = vmul.f32 %v4027, %v4099
    %v4116 = vmul.f32 %v4029, %v4100
    %v4117 = vmul.f32 %v4031, %v4101
    %v4118 = vmul.f32 %v4033, %v4102
    %v4119 = vmul.f32 %v4035, %v4103
    %v4120 = vmul.f32 %v4037, %v4104
    %v4121 = vmul.f32 %v4039, %v4105
    %v4122 = vmul.f32 %v4041, %v4106
    %v4123 = vmul.f32 %v4043, %v4107
    %4125 = vset.pattern.permute.xlu0 0
    %4126 = vperm.xlu0 %4125, %v4108
    %v4127 = vpop.permute.xlu0 %4126
    %4130 = vset.pattern.permute.xlu0 0
    %4131 = vperm.xlu0 %4130, %v4109
    %v4132 = vpop.permute.xlu0 %4131
    %4135 = vset.pattern.permute.xlu0 0
    %4136 = vperm.xlu0 %4135, %v4110
    %v4137 = vpop.permute.xlu0 %4136
    %4140 = vset.pattern.permute.xlu0 0
    %4141 = vperm.xlu0 %4140, %v4111
    %v4142 = vpop.permute.xlu0 %4141
    %4145 = vset.pattern.permute.xlu0 0
    %4146 = vperm.xlu0 %4145, %v4112
    %v4147 = vpop.permute.xlu0 %4146
    %4150 = vset.pattern.permute.xlu0 0
    %4151 = vperm.xlu0 %4150, %v4113
    %v4152 = vpop.permute.xlu0 %4151
    %4155 = vset.pattern.permute.xlu0 0
    %4156 = vperm.xlu0 %4155, %v4114
    %v4157 = vpop.permute.xlu0 %4156
    %4160 = vset.pattern.permute.xlu0 0
    %4161 = vperm.xlu0 %4160, %v4115
    %v4162 = vpop.permute.xlu0 %4161
    %4165 = vset.pattern.permute.xlu0 0
    %4166 = vperm.xlu0 %4165, %v4116
    %v4167 = vpop.permute.xlu0 %4166
    %4170 = vset.pattern.permute.xlu0 0
    %4171 = vperm.xlu0 %4170, %v4117
    %v4172 = vpop.permute.xlu0 %4171
    %4175 = vset.pattern.permute.xlu0 0
    %4176 = vperm.xlu0 %4175, %v4118
    %v4177 = vpop.permute.xlu0 %4176
    %4180 = vset.pattern.permute.xlu0 0
    %4181 = vperm.xlu0 %4180, %v4119
    %v4182 = vpop.permute.xlu0 %4181
    %4185 = vset.pattern.permute.xlu0 0
    %4186 = vperm.xlu0 %4185, %v4120
    %v4187 = vpop.permute.xlu0 %4186
    %4190 = vset.pattern.permute.xlu0 0
    %4191 = vperm.xlu0 %4190, %v4121
    %v4192 = vpop.permute.xlu0 %4191
    %4195 = vset.pattern.permute.xlu0 0
    %4196 = vperm.xlu0 %4195, %v4122
    %v4197 = vpop.permute.xlu0 %4196
    %4200 = vset.pattern.permute.xlu0 0
    %4201 = vperm.xlu0 %4200, %v4123
    %v4202 = vpop.permute.xlu0 %4201
    %v4204 = vmul.f32 %v4127, %v3398
    %v4205 = vmul.f32 %v4132, %v3400
    %v4206 = vmul.f32 %v4137, %v3403
    %v4207 = vmul.f32 %v4142, %v3405
    %v4208 = vmul.f32 %v4147, %v3408
    %v4209 = vmul.f32 %v4152, %v3410
    %v4210 = vmul.f32 %v4157, %v3413
    %v4211 = vmul.f32 %v4162, %v3415
    %v4212 = vmul.f32 %v4167, %v3418
    %v4213 = vmul.f32 %v4172, %v3420
    %v4214 = vmul.f32 %v4177, %v3423
    %v4215 = vmul.f32 %v4182, %v3425
    %v4216 = vmul.f32 %v4187, %v3428
    %v4217 = vmul.f32 %v4192, %v3430
    %v4218 = vmul.f32 %v4197, %v3433
    %v4219 = vmul.f32 %v4202, %v3435
    %4220 = vset.pattern.permute.xlu0 1
    %4221 = vperm.xlu0 %4220, %v4108
    %v4222 = vpop.permute.xlu0 %4221
    %4224 = vset.pattern.permute.xlu0 1
    %4225 = vperm.xlu0 %4224, %v4109
    %v4226 = vpop.permute.xlu0 %4225
    %4228 = vset.pattern.permute.xlu0 1
    %4229 = vperm.xlu0 %4228, %v4110
    %v4230 = vpop.permute.xlu0 %4229
    %4232 = vset.pattern.permute.xlu0 1
    %4233 = vperm.xlu0 %4232, %v4111
    %v4234 = vpop.permute.xlu0 %4233
    %4236 = vset.pattern.permute.xlu0 1
    %4237 = vperm.xlu0 %4236, %v4112
    %v4238 = vpop.permute.xlu0 %4237
    %4240 = vset.pattern.permute.xlu0 1
    %4241 = vperm.xlu0 %4240, %v4113
    %v4242 = vpop.permute.xlu0 %4241
    %4244 = vset.pattern.permute.xlu0 1
    %4245 = vperm.xlu0 %4244, %v4114
    %v4246 = vpop.permute.xlu0 %4245
    %4248 = vset.pattern.permute.xlu0 1
    %4249 = vperm.xlu0 %4248, %v4115
    %v4250 = vpop.permute.xlu0 %4249
    %4252 = vset.pattern.permute.xlu0 1
    %4253 = vperm.xlu0 %4252, %v4116
    %v4254 = vpop.permute.xlu0 %4253
    %4256 = vset.pattern.permute.xlu0 1
    %4257 = vperm.xlu0 %4256, %v4117
    %v4258 = vpop.permute.xlu0 %4257
    %4260 = vset.pattern.permute.xlu0 1
    %4261 = vperm.xlu0 %4260, %v4118
    %v4262 = vpop.permute.xlu0 %4261
    %4264 = vset.pattern.permute.xlu0 1
    %4265 = vperm.xlu0 %4264, %v4119
    %v4266 = vpop.permute.xlu0 %4265
    %4268 = vset.pattern.permute.xlu0 1
    %4269 = vperm.xlu0 %4268, %v4120
    %v4270 = vpop.permute.xlu0 %4269
    %4272 = vset.pattern.permute.xlu0 1
    %4273 = vperm.xlu0 %4272, %v4121
    %v4274 = vpop.permute.xlu0 %4273
    %4276 = vset.pattern.permute.xlu0 1
    %4277 = vperm.xlu0 %4276, %v4122
    %v4278 = vpop.permute.xlu0 %4277
    %4280 = vset.pattern.permute.xlu0 1
    %4281 = vperm.xlu0 %4280, %v4123
    %v4282 = vpop.permute.xlu0 %4281
    %v4284 = vmul.f32 %v4222, %v3398
    %v4285 = vmul.f32 %v4226, %v3400
    %v4286 = vmul.f32 %v4230, %v3403
    %v4287 = vmul.f32 %v4234, %v3405
    %v4288 = vmul.f32 %v4238, %v3408
    %v4289 = vmul.f32 %v4242, %v3410
    %v4290 = vmul.f32 %v4246, %v3413
    %v4291 = vmul.f32 %v4250, %v3415
    %v4292 = vmul.f32 %v4254, %v3418
    %v4293 = vmul.f32 %v4258, %v3420
    %v4294 = vmul.f32 %v4262, %v3423
    %v4295 = vmul.f32 %v4266, %v3425
    %v4296 = vmul.f32 %v4270, %v3428
    %v4297 = vmul.f32 %v4274, %v3430
    %v4298 = vmul.f32 %v4278, %v3433
    %v4299 = vmul.f32 %v4282, %v3435
    %4316 = vrot.lane.b32.xlu0 %v4284, 96
    %v4317 = vpop.permute.xlu0 %4316
    %4318 = vrot.lane.b32.xlu0 %v4285, 96
    %v4319 = vpop.permute.xlu0 %4318
    %4320 = vrot.lane.b32.xlu0 %v4286, 96
    %v4321 = vpop.permute.xlu0 %4320
    %4322 = vrot.lane.b32.xlu0 %v4287, 96
    %v4323 = vpop.permute.xlu0 %4322
    %4324 = vrot.lane.b32.xlu0 %v4288, 96
    %v4325 = vpop.permute.xlu0 %4324
    %4326 = vrot.lane.b32.xlu0 %v4289, 96
    %v4327 = vpop.permute.xlu0 %4326
    %4328 = vrot.lane.b32.xlu0 %v4290, 96
    %v4329 = vpop.permute.xlu0 %4328
    %4330 = vrot.lane.b32.xlu0 %v4291, 96
    %v4331 = vpop.permute.xlu0 %4330
    %4332 = vrot.lane.b32.xlu0 %v4292, 96
    %v4333 = vpop.permute.xlu0 %4332
    %4334 = vrot.lane.b32.xlu0 %v4293, 96
    %v4335 = vpop.permute.xlu0 %4334
    %4336 = vrot.lane.b32.xlu0 %v4294, 96
    %v4337 = vpop.permute.xlu0 %4336
    %4338 = vrot.lane.b32.xlu0 %v4295, 96
    %v4339 = vpop.permute.xlu0 %4338
    %4340 = vrot.lane.b32.xlu0 %v4296, 96
    %v4341 = vpop.permute.xlu0 %4340
    %4342 = vrot.lane.b32.xlu0 %v4297, 96
    %v4343 = vpop.permute.xlu0 %4342
    %4344 = vrot.lane.b32.xlu0 %v4298, 96
    %v4345 = vpop.permute.xlu0 %4344
    %4346 = vrot.lane.b32.xlu0 %v4299, 96
    %v4347 = vpop.permute.xlu0 %4346
    %v4364 = vadd.f32 %v4204, %v4317
    %v4365 = vadd.f32 %v4205, %v4319
    %v4366 = vadd.f32 %v4206, %v4321
    %v4367 = vadd.f32 %v4207, %v4323
    %v4368 = vadd.f32 %v4208, %v4325
    %v4369 = vadd.f32 %v4209, %v4327
    %v4370 = vadd.f32 %v4210, %v4329
    %v4371 = vadd.f32 %v4211, %v4331
    %v4372 = vadd.f32 %v4212, %v4333
    %v4373 = vadd.f32 %v4213, %v4335
    %v4374 = vadd.f32 %v4214, %v4337
    %v4375 = vadd.f32 %v4215, %v4339
    %v4376 = vadd.f32 %v4216, %v4341
    %v4377 = vadd.f32 %v4217, %v4343
    %v4378 = vadd.f32 %v4218, %v4345
    %v4379 = vadd.f32 %v4219, %v4347
    %4380 = vset.pattern.permute.xlu0 2
    %4381 = vperm.xlu0 %4380, %v4108
    %v4382 = vpop.permute.xlu0 %4381
    %4384 = vset.pattern.permute.xlu0 2
    %4385 = vperm.xlu0 %4384, %v4109
    %v4386 = vpop.permute.xlu0 %4385
    %4388 = vset.pattern.permute.xlu0 2
    %4389 = vperm.xlu0 %4388, %v4110
    %v4390 = vpop.permute.xlu0 %4389
    %4392 = vset.pattern.permute.xlu0 2
    %4393 = vperm.xlu0 %4392, %v4111
    %v4394 = vpop.permute.xlu0 %4393
    %4396 = vset.pattern.permute.xlu0 2
    %4397 = vperm.xlu0 %4396, %v4112
    %v4398 = vpop.permute.xlu0 %4397
    %4400 = vset.pattern.permute.xlu0 2
    %4401 = vperm.xlu0 %4400, %v4113
    %v4402 = vpop.permute.xlu0 %4401
    %4404 = vset.pattern.permute.xlu0 2
    %4405 = vperm.xlu0 %4404, %v4114
    %v4406 = vpop.permute.xlu0 %4405
    %4408 = vset.pattern.permute.xlu0 2
    %4409 = vperm.xlu0 %4408, %v4115
    %v4410 = vpop.permute.xlu0 %4409
    %4412 = vset.pattern.permute.xlu0 2
    %4413 = vperm.xlu0 %4412, %v4116
    %v4414 = vpop.permute.xlu0 %4413
    %4416 = vset.pattern.permute.xlu0 2
    %4417 = vperm.xlu0 %4416, %v4117
    %v4418 = vpop.permute.xlu0 %4417
    %4420 = vset.pattern.permute.xlu0 2
    %4421 = vperm.xlu0 %4420, %v4118
    %v4422 = vpop.permute.xlu0 %4421
    %4424 = vset.pattern.permute.xlu0 2
    %4425 = vperm.xlu0 %4424, %v4119
    %v4426 = vpop.permute.xlu0 %4425
    %4428 = vset.pattern.permute.xlu0 2
    %4429 = vperm.xlu0 %4428, %v4120
    %v4430 = vpop.permute.xlu0 %4429
    %4432 = vset.pattern.permute.xlu0 2
    %4433 = vperm.xlu0 %4432, %v4121
    %v4434 = vpop.permute.xlu0 %4433
    %4436 = vset.pattern.permute.xlu0 2
    %4437 = vperm.xlu0 %4436, %v4122
    %v4438 = vpop.permute.xlu0 %4437
    %4440 = vset.pattern.permute.xlu0 2
    %4441 = vperm.xlu0 %4440, %v4123
    %v4442 = vpop.permute.xlu0 %4441
    %v4444 = vmul.f32 %v4382, %v3398
    %v4445 = vmul.f32 %v4386, %v3400
    %v4446 = vmul.f32 %v4390, %v3403
    %v4447 = vmul.f32 %v4394, %v3405
    %v4448 = vmul.f32 %v4398, %v3408
    %v4449 = vmul.f32 %v4402, %v3410
    %v4450 = vmul.f32 %v4406, %v3413
    %v4451 = vmul.f32 %v4410, %v3415
    %v4452 = vmul.f32 %v4414, %v3418
    %v4453 = vmul.f32 %v4418, %v3420
    %v4454 = vmul.f32 %v4422, %v3423
    %v4455 = vmul.f32 %v4426, %v3425
    %v4456 = vmul.f32 %v4430, %v3428
    %v4457 = vmul.f32 %v4434, %v3430
    %v4458 = vmul.f32 %v4438, %v3433
    %v4459 = vmul.f32 %v4442, %v3435
    %4476 = vrot.lane.b32.xlu0 %v4444, 64
    %v4477 = vpop.permute.xlu0 %4476
    %4478 = vrot.lane.b32.xlu0 %v4445, 64
    %v4479 = vpop.permute.xlu0 %4478
    %4480 = vrot.lane.b32.xlu0 %v4446, 64
    %v4481 = vpop.permute.xlu0 %4480
    %4482 = vrot.lane.b32.xlu0 %v4447, 64
    %v4483 = vpop.permute.xlu0 %4482
    %4484 = vrot.lane.b32.xlu0 %v4448, 64
    %v4485 = vpop.permute.xlu0 %4484
    %4486 = vrot.lane.b32.xlu0 %v4449, 64
    %v4487 = vpop.permute.xlu0 %4486
    %4488 = vrot.lane.b32.xlu0 %v4450, 64
    %v4489 = vpop.permute.xlu0 %4488
    %4490 = vrot.lane.b32.xlu0 %v4451, 64
    %v4491 = vpop.permute.xlu0 %4490
    %4492 = vrot.lane.b32.xlu0 %v4452, 64
    %v4493 = vpop.permute.xlu0 %4492
    %4494 = vrot.lane.b32.xlu0 %v4453, 64
    %v4495 = vpop.permute.xlu0 %4494
    %4496 = vrot.lane.b32.xlu0 %v4454, 64
    %v4497 = vpop.permute.xlu0 %4496
    %4498 = vrot.lane.b32.xlu0 %v4455, 64
    %v4499 = vpop.permute.xlu0 %4498
    %4500 = vrot.lane.b32.xlu0 %v4456, 64
    %v4501 = vpop.permute.xlu0 %4500
    %4502 = vrot.lane.b32.xlu0 %v4457, 64
    %v4503 = vpop.permute.xlu0 %4502
    %4504 = vrot.lane.b32.xlu0 %v4458, 64
    %v4505 = vpop.permute.xlu0 %4504
    %4506 = vrot.lane.b32.xlu0 %v4459, 64
    %v4507 = vpop.permute.xlu0 %4506
    %v4524 = vadd.f32 %v4364, %v4477
    %v4525 = vadd.f32 %v4365, %v4479
    %v4526 = vadd.f32 %v4366, %v4481
    %v4527 = vadd.f32 %v4367, %v4483
    %v4528 = vadd.f32 %v4368, %v4485
    %v4529 = vadd.f32 %v4369, %v4487
    %v4530 = vadd.f32 %v4370, %v4489
    %v4531 = vadd.f32 %v4371, %v4491
    %v4532 = vadd.f32 %v4372, %v4493
    %v4533 = vadd.f32 %v4373, %v4495
    %v4534 = vadd.f32 %v4374, %v4497
    %v4535 = vadd.f32 %v4375, %v4499
    %v4536 = vadd.f32 %v4376, %v4501
    %v4537 = vadd.f32 %v4377, %v4503
    %v4538 = vadd.f32 %v4378, %v4505
    %v4539 = vadd.f32 %v4379, %v4507
    %4540 = vset.pattern.permute.xlu0 3
    %4541 = vperm.xlu0 %4540, %v4108
    %v4542 = vpop.permute.xlu0 %4541
    %4544 = vset.pattern.permute.xlu0 3
    %4545 = vperm.xlu0 %4544, %v4109
    %v4546 = vpop.permute.xlu0 %4545
    %4548 = vset.pattern.permute.xlu0 3
    %4549 = vperm.xlu0 %4548, %v4110
    %v4550 = vpop.permute.xlu0 %4549
    %4552 = vset.pattern.permute.xlu0 3
    %4553 = vperm.xlu0 %4552, %v4111
    %v4554 = vpop.permute.xlu0 %4553
    %4556 = vset.pattern.permute.xlu0 3
    %4557 = vperm.xlu0 %4556, %v4112
    %v4558 = vpop.permute.xlu0 %4557
    %4560 = vset.pattern.permute.xlu0 3
    %4561 = vperm.xlu0 %4560, %v4113
    %v4562 = vpop.permute.xlu0 %4561
    %4564 = vset.pattern.permute.xlu0 3
    %4565 = vperm.xlu0 %4564, %v4114
    %v4566 = vpop.permute.xlu0 %4565
    %4568 = vset.pattern.permute.xlu0 3
    %4569 = vperm.xlu0 %4568, %v4115
    %v4570 = vpop.permute.xlu0 %4569
    %4572 = vset.pattern.permute.xlu0 3
    %4573 = vperm.xlu0 %4572, %v4116
    %v4574 = vpop.permute.xlu0 %4573
    %4576 = vset.pattern.permute.xlu0 3
    %4577 = vperm.xlu0 %4576, %v4117
    %v4578 = vpop.permute.xlu0 %4577
    %4580 = vset.pattern.permute.xlu0 3
    %4581 = vperm.xlu0 %4580, %v4118
    %v4582 = vpop.permute.xlu0 %4581
    %4584 = vset.pattern.permute.xlu0 3
    %4585 = vperm.xlu0 %4584, %v4119
    %v4586 = vpop.permute.xlu0 %4585
    %4588 = vset.pattern.permute.xlu0 3
    %4589 = vperm.xlu0 %4588, %v4120
    %v4590 = vpop.permute.xlu0 %4589
    %4592 = vset.pattern.permute.xlu0 3
    %4593 = vperm.xlu0 %4592, %v4121
    %v4594 = vpop.permute.xlu0 %4593
    %4596 = vset.pattern.permute.xlu0 3
    %4597 = vperm.xlu0 %4596, %v4122
    %v4598 = vpop.permute.xlu0 %4597
    %4600 = vset.pattern.permute.xlu0 3
    %4601 = vperm.xlu0 %4600, %v4123
    %v4602 = vpop.permute.xlu0 %4601
    %v4604 = vmul.f32 %v4542, %v3398
    %v4605 = vmul.f32 %v4546, %v3400
    %v4606 = vmul.f32 %v4550, %v3403
    %v4607 = vmul.f32 %v4554, %v3405
    %v4608 = vmul.f32 %v4558, %v3408
    %v4609 = vmul.f32 %v4562, %v3410
    %v4610 = vmul.f32 %v4566, %v3413
    %v4611 = vmul.f32 %v4570, %v3415
    %v4612 = vmul.f32 %v4574, %v3418
    %v4613 = vmul.f32 %v4578, %v3420
    %v4614 = vmul.f32 %v4582, %v3423
    %v4615 = vmul.f32 %v4586, %v3425
    %v4616 = vmul.f32 %v4590, %v3428
    %v4617 = vmul.f32 %v4594, %v3430
    %v4618 = vmul.f32 %v4598, %v3433
    %v4619 = vmul.f32 %v4602, %v3435
    %4636 = vrot.lane.b32.xlu0 %v4604, 32
    %v4637 = vpop.permute.xlu0 %4636
    %4638 = vrot.lane.b32.xlu0 %v4605, 32
    %v4639 = vpop.permute.xlu0 %4638
    %4640 = vrot.lane.b32.xlu0 %v4606, 32
    %v4641 = vpop.permute.xlu0 %4640
    %4642 = vrot.lane.b32.xlu0 %v4607, 32
    %v4643 = vpop.permute.xlu0 %4642
    %4644 = vrot.lane.b32.xlu0 %v4608, 32
    %v4645 = vpop.permute.xlu0 %4644
    %4646 = vrot.lane.b32.xlu0 %v4609, 32
    %v4647 = vpop.permute.xlu0 %4646
    %4648 = vrot.lane.b32.xlu0 %v4610, 32
    %v4649 = vpop.permute.xlu0 %4648
    %4650 = vrot.lane.b32.xlu0 %v4611, 32
    %v4651 = vpop.permute.xlu0 %4650
    %4652 = vrot.lane.b32.xlu0 %v4612, 32
    %v4653 = vpop.permute.xlu0 %4652
    %4654 = vrot.lane.b32.xlu0 %v4613, 32
    %v4655 = vpop.permute.xlu0 %4654
    %4656 = vrot.lane.b32.xlu0 %v4614, 32
    %v4657 = vpop.permute.xlu0 %4656
    %4658 = vrot.lane.b32.xlu0 %v4615, 32
    %v4659 = vpop.permute.xlu0 %4658
    %4660 = vrot.lane.b32.xlu0 %v4616, 32
    %v4661 = vpop.permute.xlu0 %4660
    %4662 = vrot.lane.b32.xlu0 %v4617, 32
    %v4663 = vpop.permute.xlu0 %4662
    %4664 = vrot.lane.b32.xlu0 %v4618, 32
    %v4665 = vpop.permute.xlu0 %4664
    %4666 = vrot.lane.b32.xlu0 %v4619, 32
    %v4667 = vpop.permute.xlu0 %4666
    %v4684 = vadd.f32 %v4524, %v4637
    %v4685 = vadd.f32 %v4525, %v4639
    %v4686 = vadd.f32 %v4526, %v4641
    %v4687 = vadd.f32 %v4527, %v4643
    %v4688 = vadd.f32 %v4528, %v4645
    %v4689 = vadd.f32 %v4529, %v4647
    %v4690 = vadd.f32 %v4530, %v4649
    %v4691 = vadd.f32 %v4531, %v4651
    %v4692 = vadd.f32 %v4532, %v4653
    %v4693 = vadd.f32 %v4533, %v4655
    %v4694 = vadd.f32 %v4534, %v4657
    %v4695 = vadd.f32 %v4535, %v4659
    %v4696 = vadd.f32 %v4536, %v4661
    %v4697 = vadd.f32 %v4537, %v4663
    %v4698 = vadd.f32 %v4538, %v4665
    %v4699 = vadd.f32 %v4539, %v4667
    %4700 = vset.pattern.permute.xlu0 4
    %4701 = vperm.xlu0 %4700, %v4108
    %v4702 = vpop.permute.xlu0 %4701
    %4704 = vset.pattern.permute.xlu0 4
    %4705 = vperm.xlu0 %4704, %v4109
    %v4706 = vpop.permute.xlu0 %4705
    %4708 = vset.pattern.permute.xlu0 4
    %4709 = vperm.xlu0 %4708, %v4110
    %v4710 = vpop.permute.xlu0 %4709
    %4712 = vset.pattern.permute.xlu0 4
    %4713 = vperm.xlu0 %4712, %v4111
    %v4714 = vpop.permute.xlu0 %4713
    %4716 = vset.pattern.permute.xlu0 4
    %4717 = vperm.xlu0 %4716, %v4112
    %v4718 = vpop.permute.xlu0 %4717
    %4720 = vset.pattern.permute.xlu0 4
    %4721 = vperm.xlu0 %4720, %v4113
    %v4722 = vpop.permute.xlu0 %4721
    %4724 = vset.pattern.permute.xlu0 4
    %4725 = vperm.xlu0 %4724, %v4114
    %v4726 = vpop.permute.xlu0 %4725
    %4728 = vset.pattern.permute.xlu0 4
    %4729 = vperm.xlu0 %4728, %v4115
    %v4730 = vpop.permute.xlu0 %4729
    %4732 = vset.pattern.permute.xlu0 4
    %4733 = vperm.xlu0 %4732, %v4116
    %v4734 = vpop.permute.xlu0 %4733
    %4736 = vset.pattern.permute.xlu0 4
    %4737 = vperm.xlu0 %4736, %v4117
    %v4738 = vpop.permute.xlu0 %4737
    %4740 = vset.pattern.permute.xlu0 4
    %4741 = vperm.xlu0 %4740, %v4118
    %v4742 = vpop.permute.xlu0 %4741
    %4744 = vset.pattern.permute.xlu0 4
    %4745 = vperm.xlu0 %4744, %v4119
    %v4746 = vpop.permute.xlu0 %4745
    %4748 = vset.pattern.permute.xlu0 4
    %4749 = vperm.xlu0 %4748, %v4120
    %v4750 = vpop.permute.xlu0 %4749
    %4752 = vset.pattern.permute.xlu0 4
    %4753 = vperm.xlu0 %4752, %v4121
    %v4754 = vpop.permute.xlu0 %4753
    %4756 = vset.pattern.permute.xlu0 4
    %4757 = vperm.xlu0 %4756, %v4122
    %v4758 = vpop.permute.xlu0 %4757
    %4760 = vset.pattern.permute.xlu0 4
    %4761 = vperm.xlu0 %4760, %v4123
    %v4762 = vpop.permute.xlu0 %4761
    %v4764 = vmul.f32 %v4702, %v3496
    %v4765 = vmul.f32 %v4706, %v3498
    %v4766 = vmul.f32 %v4710, %v3501
    %v4767 = vmul.f32 %v4714, %v3503
    %v4768 = vmul.f32 %v4718, %v3506
    %v4769 = vmul.f32 %v4722, %v3508
    %v4770 = vmul.f32 %v4726, %v3511
    %v4771 = vmul.f32 %v4730, %v3513
    %v4772 = vmul.f32 %v4734, %v3516
    %v4773 = vmul.f32 %v4738, %v3518
    %v4774 = vmul.f32 %v4742, %v3521
    %v4775 = vmul.f32 %v4746, %v3523
    %v4776 = vmul.f32 %v4750, %v3526
    %v4777 = vmul.f32 %v4754, %v3528
    %v4778 = vmul.f32 %v4758, %v3531
    %v4779 = vmul.f32 %v4762, %v3533
    %v4780 = vadd.f32 %v4684, %v4764
    %v4781 = vadd.f32 %v4685, %v4765
    %v4782 = vadd.f32 %v4686, %v4766
    %v4783 = vadd.f32 %v4687, %v4767
    %v4784 = vadd.f32 %v4688, %v4768
    %v4785 = vadd.f32 %v4689, %v4769
    %v4786 = vadd.f32 %v4690, %v4770
    %v4787 = vadd.f32 %v4691, %v4771
    %v4788 = vadd.f32 %v4692, %v4772
    %v4789 = vadd.f32 %v4693, %v4773
    %v4790 = vadd.f32 %v4694, %v4774
    %v4791 = vadd.f32 %v4695, %v4775
    %v4792 = vadd.f32 %v4696, %v4776
    %v4793 = vadd.f32 %v4697, %v4777
    %v4794 = vadd.f32 %v4698, %v4778
    %v4795 = vadd.f32 %v4699, %v4779
    %v4796 = vstv %s193
    %v4797 = vmul.f32 %v4796, %v4780
    %v4798 = vmul.f32 %v4796, %v4781
    %v4799 = vmul.f32 %v4796, %v4782
    %v4800 = vmul.f32 %v4796, %v4783
    %v4801 = vmul.f32 %v4796, %v4784
    %v4802 = vmul.f32 %v4796, %v4785
    %v4803 = vmul.f32 %v4796, %v4786
    %v4804 = vmul.f32 %v4796, %v4787
    %v4805 = vmul.f32 %v4796, %v4788
    %v4806 = vmul.f32 %v4796, %v4789
    %v4807 = vmul.f32 %v4796, %v4790
    %v4808 = vmul.f32 %v4796, %v4791
    %v4809 = vmul.f32 %v4796, %v4792
    %v4810 = vmul.f32 %v4796, %v4793
    %v4811 = vmul.f32 %v4796, %v4794
    %v4812 = vmul.f32 %v4796, %v4795
    %v4813 = vadd.f32 %v4797, %v2792
    %v4814 = vadd.f32 %v4798, %v2793
    %v4815 = vadd.f32 %v4799, %v2794
    %v4816 = vadd.f32 %v4800, %v2795
    %v4817 = vadd.f32 %v4801, %v2796
    %v4818 = vadd.f32 %v4802, %v2797
    %v4819 = vadd.f32 %v4803, %v2798
    %v4820 = vadd.f32 %v4804, %v2799
    %v4821 = vadd.f32 %v4805, %v2800
    %v4822 = vadd.f32 %v4806, %v2801
    %v4823 = vadd.f32 %v4807, %v2802
    %v4824 = vadd.f32 %v4808, %v2803
    %v4825 = vadd.f32 %v4809, %v2804
    %v4826 = vadd.f32 %v4810, %v2805
    %v4827 = vadd.f32 %v4811, %v2806
    %v4828 = vadd.f32 %v4812, %v2807
    %4829 = vrot.lane.b32.xlu0 %v2992, 120
    %v4830 = vpop.permute.xlu0 %4829
    %4831 = vrot.lane.b32.xlu0 %v2994, 120
    %v4832 = vpop.permute.xlu0 %4831
    %4833 = vrot.lane.b32.xlu0 %v2997, 120
    %v4834 = vpop.permute.xlu0 %4833
    %4835 = vrot.lane.b32.xlu0 %v2999, 120
    %v4836 = vpop.permute.xlu0 %4835
    %4837 = vrot.lane.b32.xlu0 %v3002, 120
    %v4838 = vpop.permute.xlu0 %4837
    %4839 = vrot.lane.b32.xlu0 %v3004, 120
    %v4840 = vpop.permute.xlu0 %4839
    %4841 = vrot.lane.b32.xlu0 %v3007, 120
    %v4842 = vpop.permute.xlu0 %4841
    %4843 = vrot.lane.b32.xlu0 %v3009, 120
    %v4844 = vpop.permute.xlu0 %4843
    %4845 = vrot.lane.b32.xlu0 %v3012, 120
    %v4846 = vpop.permute.xlu0 %4845
    %4847 = vrot.lane.b32.xlu0 %v3014, 120
    %v4848 = vpop.permute.xlu0 %4847
    %4849 = vrot.lane.b32.xlu0 %v3017, 120
    %v4850 = vpop.permute.xlu0 %4849
    %4851 = vrot.lane.b32.xlu0 %v3019, 120
    %v4852 = vpop.permute.xlu0 %4851
    %4853 = vrot.lane.b32.xlu0 %v3022, 120
    %v4854 = vpop.permute.xlu0 %4853
    %4855 = vrot.lane.b32.xlu0 %v3024, 120
    %v4856 = vpop.permute.xlu0 %4855
    %4857 = vrot.lane.b32.xlu0 %v3027, 120
    %v4858 = vpop.permute.xlu0 %4857
    %4859 = vrot.lane.b32.xlu0 %v3029, 120
    %v4860 = vpop.permute.xlu0 %4859
    %v4877 = vsel %vm3748, %v4830, %v2992
    %v4878 = vsel %vm3748, %v4832, %v2994
    %v4879 = vsel %vm3748, %v4834, %v2997
    %v4880 = vsel %vm3748, %v4836, %v2999
    %v4881 = vsel %vm3748, %v4838, %v3002
    %v4882 = vsel %vm3748, %v4840, %v3004
    %v4883 = vsel %vm3748, %v4842, %v3007
    %v4884 = vsel %vm3748, %v4844, %v3009
    %v4885 = vsel %vm3748, %v4846, %v3012
    %v4886 = vsel %vm3748, %v4848, %v3014
    %v4887 = vsel %vm3748, %v4850, %v3017
    %v4888 = vsel %vm3748, %v4852, %v3019
    %v4889 = vsel %vm3748, %v4854, %v3022
    %v4890 = vsel %vm3748, %v4856, %v3024
    %v4891 = vsel %vm3748, %v4858, %v3027
    %v4892 = vsel %vm3748, %v4860, %v3029
    %v4893 = vsel %vm1558, %v4877, %v3557
    %v4894 = vsel %vm1558, %v4878, %v3559
    %v4895 = vsel %vm1558, %v4879, %v3561
    %v4896 = vsel %vm1558, %v4880, %v3563
    %v4897 = vsel %vm1558, %v4881, %v3565
    %v4898 = vsel %vm1558, %v4882, %v3567
    %v4899 = vsel %vm1558, %v4883, %v3569
    %v4900 = vsel %vm1558, %v4884, %v3571
    %v4901 = vsel %vm1558, %v4885, %v3573
    %v4902 = vsel %vm1558, %v4886, %v3575
    %v4903 = vsel %vm1558, %v4887, %v3577
    %v4904 = vsel %vm1558, %v4888, %v3579
    %v4905 = vsel %vm1558, %v4889, %v3581
    %v4906 = vsel %vm1558, %v4890, %v3583
    %v4907 = vsel %vm1558, %v4891, %v3585
    %v4908 = vsel %vm1558, %v4892, %v3587
    %v4909 = vsel %vm3781, %v4893, %v3605
    %v4910 = vsel %vm3781, %v4894, %v3607
    %v4911 = vsel %vm3781, %v4895, %v3609
    %v4912 = vsel %vm3781, %v4896, %v3611
    %v4913 = vsel %vm3781, %v4897, %v3613
    %v4914 = vsel %vm3781, %v4898, %v3615
    %v4915 = vsel %vm3781, %v4899, %v3617
    %v4916 = vsel %vm3781, %v4900, %v3619
    %v4917 = vsel %vm3781, %v4901, %v3621
    %v4918 = vsel %vm3781, %v4902, %v3623
    %v4919 = vsel %vm3781, %v4903, %v3625
    %v4920 = vsel %vm3781, %v4904, %v3627
    %v4921 = vsel %vm3781, %v4905, %v3629
    %v4922 = vsel %vm3781, %v4906, %v3631
    %v4923 = vsel %vm3781, %v4907, %v3633
    %v4924 = vsel %vm3781, %v4908, %v3635
    %v4925 = vsel %vm2908, %v4909, %v3653
    %v4926 = vsel %vm2908, %v4910, %v3655
    %v4927 = vsel %vm2908, %v4911, %v3657
    %v4928 = vsel %vm2908, %v4912, %v3659
    %v4929 = vsel %vm2908, %v4913, %v3661
    %v4930 = vsel %vm2908, %v4914, %v3663
    %v4931 = vsel %vm2908, %v4915, %v3665
    %v4932 = vsel %vm2908, %v4916, %v3667
    %v4933 = vsel %vm2908, %v4917, %v3669
    %v4934 = vsel %vm2908, %v4918, %v3671
    %v4935 = vsel %vm2908, %v4919, %v3673
    %v4936 = vsel %vm2908, %v4920, %v3675
    %v4937 = vsel %vm2908, %v4921, %v3677
    %v4938 = vsel %vm2908, %v4922, %v3679
    %v4939 = vsel %vm2908, %v4923, %v3681
    %v4940 = vsel %vm2908, %v4924, %v3683
    %v4941 = vmul.f32 %v3174, %v4925
    %v4942 = vmul.f32 %v3176, %v4926
    %v4943 = vmul.f32 %v3179, %v4927
    %v4944 = vmul.f32 %v3181, %v4928
    %v4945 = vmul.f32 %v3184, %v4929
    %v4946 = vmul.f32 %v3186, %v4930
    %v4947 = vmul.f32 %v3189, %v4931
    %v4948 = vmul.f32 %v3191, %v4932
    %v4949 = vmul.f32 %v3194, %v4933
    %v4950 = vmul.f32 %v3196, %v4934
    %v4951 = vmul.f32 %v3199, %v4935
    %v4952 = vmul.f32 %v3201, %v4936
    %v4953 = vmul.f32 %v3204, %v4937
    %v4954 = vmul.f32 %v3206, %v4938
    %v4955 = vmul.f32 %v3209, %v4939
    %v4956 = vmul.f32 %v3211, %v4940
    %v4957 = vpack.c.bf16 %v4942, %v4941
    %v4958 = vpack.c.bf16 %v4944, %v4943
    %v4959 = vpack.c.bf16 %v4946, %v4945
    %v4960 = vpack.c.bf16 %v4948, %v4947
    %v4961 = vpack.c.bf16 %v4950, %v4949
    %v4962 = vpack.c.bf16 %v4952, %v4951
    %v4963 = vpack.c.bf16 %v4954, %v4953
    %v4964 = vpack.c.bf16 %v4956, %v4955
    %v4966 = vsel %vm3853, %v4957, 0
    %v4969 = vsel %vm3853, %v4958, 0
    %v4972 = vsel %vm3853, %v4959, 0
    %v4975 = vsel %vm3853, %v4960, 0
    %v4978 = vsel %vm3853, %v4961, 0
    %v4981 = vsel %vm3853, %v4962, 0
    %v4984 = vsel %vm3853, %v4963, 0
    %v4987 = vsel %vm3853, %v4964, 0
    %4989 = vmatpush.bf16.msra.mxu0 0
    %4990 = vmatpush.bf16.msra.mxu0 0
    %4991 = vmatpush.bf16.msra.mxu0 0
    %4992 = vmatpush.bf16.msra.mxu0 0
    %4993 = vmatpush.bf16.msra.mxu0 0
    %4994 = vmatpush.bf16.msra.mxu0 %v3880
    %4995 = vmatpush.bf16.msra.mxu0 %v3849
    %4996 = vmatpush.bf16.msra.mxu0 %v3848
    %4997 = vmatmul.bf16.gmra.mxu0 %v4966
    %v4998 = vpop.f32.mrf.mxu0
    %v4999 = vadd.f32 0.0, %v4998
    %v5000 = vpop.f32.mrf.mxu0
    %v5001 = vadd.f32 0.0, %v5000
    %5002 = vmatmul.bf16.gmra.mxu0 %v4969
    %v5003 = vpop.f32.mrf.mxu0
    %v5004 = vadd.f32 0.0, %v5003
    %v5005 = vpop.f32.mrf.mxu0
    %v5006 = vadd.f32 0.0, %v5005
    %5007 = vmatmul.bf16.gmra.mxu0 %v4972
    %v5008 = vpop.f32.mrf.mxu0
    %v5009 = vadd.f32 0.0, %v5008
    %v5010 = vpop.f32.mrf.mxu0
    %v5011 = vadd.f32 0.0, %v5010
    %5012 = vmatmul.bf16.gmra.mxu0 %v4975
    %v5013 = vpop.f32.mrf.mxu0
    %v5014 = vadd.f32 0.0, %v5013
    %v5015 = vpop.f32.mrf.mxu0
    %v5016 = vadd.f32 0.0, %v5015
    %5017 = vmatmul.bf16.gmra.mxu0 %v4978
    %v5018 = vpop.f32.mrf.mxu0
    %v5019 = vadd.f32 0.0, %v5018
    %v5020 = vpop.f32.mrf.mxu0
    %v5021 = vadd.f32 0.0, %v5020
    %5022 = vmatmul.bf16.gmra.mxu0 %v4981
    %v5023 = vpop.f32.mrf.mxu0
    %v5024 = vadd.f32 0.0, %v5023
    %v5025 = vpop.f32.mrf.mxu0
    %v5026 = vadd.f32 0.0, %v5025
    %5027 = vmatmul.bf16.gmra.mxu0 %v4984
    %v5028 = vpop.f32.mrf.mxu0
    %v5029 = vadd.f32 0.0, %v5028
    %v5030 = vpop.f32.mrf.mxu0
    %v5031 = vadd.f32 0.0, %v5030
    %5032 = vmatmul.bf16.gmra.mxu0 %v4987
    %v5033 = vpop.f32.mrf.mxu0
    %v5034 = vadd.f32 0.0, %v5033
    %v5035 = vpop.f32.mrf.mxu0
    %v5036 = vadd.f32 0.0, %v5035
    %5037 = vdwg.mxu0
    %v5038 = vmul.f32 %v4999, 0.35355338
    %v5039 = vmul.f32 %v5001, 0.35355338
    %v5040 = vmul.f32 %v5004, 0.35355338
    %v5041 = vmul.f32 %v5006, 0.35355338
    %v5042 = vmul.f32 %v5009, 0.35355338
    %v5043 = vmul.f32 %v5011, 0.35355338
    %v5044 = vmul.f32 %v5014, 0.35355338
    %v5045 = vmul.f32 %v5016, 0.35355338
    %v5046 = vmul.f32 %v5019, 0.35355338
    %v5047 = vmul.f32 %v5021, 0.35355338
    %v5048 = vmul.f32 %v5024, 0.35355338
    %v5049 = vmul.f32 %v5026, 0.35355338
    %v5050 = vmul.f32 %v5029, 0.35355338
    %v5051 = vmul.f32 %v5031, 0.35355338
    %v5052 = vmul.f32 %v5034, 0.35355338
    %v5053 = vmul.f32 %v5036, 0.35355338
    %v5054 = vsel %vm3947, %v5038, -inf
    %5055 = vmax.xlane.f32.xlu0 %v5054
    %v5056 = vpop.xlane.xlu0 %5055
    %v5057 = vsel %vm3947, %v5039, -inf
    %5058 = vmax.xlane.f32.xlu0 %v5057
    %v5059 = vpop.xlane.xlu0 %5058
    %v5060 = vsel %vm3947, %v5040, -inf
    %5061 = vmax.xlane.f32.xlu0 %v5060
    %v5062 = vpop.xlane.xlu0 %5061
    %v5063 = vsel %vm3947, %v5041, -inf
    %5064 = vmax.xlane.f32.xlu0 %v5063
    %v5065 = vpop.xlane.xlu0 %5064
    %v5066 = vsel %vm3947, %v5042, -inf
    %5067 = vmax.xlane.f32.xlu0 %v5066
    %v5068 = vpop.xlane.xlu0 %5067
    %v5069 = vsel %vm3947, %v5043, -inf
    %5070 = vmax.xlane.f32.xlu0 %v5069
    %v5071 = vpop.xlane.xlu0 %5070
    %v5072 = vsel %vm3947, %v5044, -inf
    %5073 = vmax.xlane.f32.xlu0 %v5072
    %v5074 = vpop.xlane.xlu0 %5073
    %v5075 = vsel %vm3947, %v5045, -inf
    %5076 = vmax.xlane.f32.xlu0 %v5075
    %v5077 = vpop.xlane.xlu0 %5076
    %v5078 = vsel %vm3947, %v5046, -inf
    %5079 = vmax.xlane.f32.xlu0 %v5078
    %v5080 = vpop.xlane.xlu0 %5079
    %v5081 = vsel %vm3947, %v5047, -inf
    %5082 = vmax.xlane.f32.xlu0 %v5081
    %v5083 = vpop.xlane.xlu0 %5082
    %v5084 = vsel %vm3947, %v5048, -inf
    %5085 = vmax.xlane.f32.xlu0 %v5084
    %v5086 = vpop.xlane.xlu0 %5085
    %v5087 = vsel %vm3947, %v5049, -inf
    %5088 = vmax.xlane.f32.xlu0 %v5087
    %v5089 = vpop.xlane.xlu0 %5088
    %v5090 = vsel %vm3947, %v5050, -inf
    %5091 = vmax.xlane.f32.xlu0 %v5090
    %v5092 = vpop.xlane.xlu0 %5091
    %v5093 = vsel %vm3947, %v5051, -inf
    %5094 = vmax.xlane.f32.xlu0 %v5093
    %v5095 = vpop.xlane.xlu0 %5094
    %v5096 = vsel %vm3947, %v5052, -inf
    %5097 = vmax.xlane.f32.xlu0 %v5096
    %v5098 = vpop.xlane.xlu0 %5097
    %v5099 = vsel %vm3947, %v5053, -inf
    %5100 = vmax.xlane.f32.xlu0 %v5099
    %v5101 = vpop.xlane.xlu0 %5100
    %v5102 = vsub.f32 %v5038, %v5056
    %v5103 = vsub.f32 %v5039, %v5059
    %v5104 = vsub.f32 %v5040, %v5062
    %v5105 = vsub.f32 %v5041, %v5065
    %v5106 = vsub.f32 %v5042, %v5068
    %v5107 = vsub.f32 %v5043, %v5071
    %v5108 = vsub.f32 %v5044, %v5074
    %v5109 = vsub.f32 %v5045, %v5077
    %v5110 = vsub.f32 %v5046, %v5080
    %v5111 = vsub.f32 %v5047, %v5083
    %v5112 = vsub.f32 %v5048, %v5086
    %v5113 = vsub.f32 %v5049, %v5089
    %v5114 = vsub.f32 %v5050, %v5092
    %v5115 = vsub.f32 %v5051, %v5095
    %v5116 = vsub.f32 %v5052, %v5098
    %v5117 = vsub.f32 %v5053, %v5101
    %v5118 = vmul.f32 %v5102, 1.442695
    %v5119 = vpow.pop %v5118
    %v5120 = vmul.f32 %v5103, 1.442695
    %v5121 = vpow.pop %v5120
    %v5122 = vmul.f32 %v5104, 1.442695
    %v5123 = vpow.pop %v5122
    %v5124 = vmul.f32 %v5105, 1.442695
    %v5125 = vpow.pop %v5124
    %v5126 = vmul.f32 %v5106, 1.442695
    %v5127 = vpow.pop %v5126
    %v5128 = vmul.f32 %v5107, 1.442695
    %v5129 = vpow.pop %v5128
    %v5130 = vmul.f32 %v5108, 1.442695
    %v5131 = vpow.pop %v5130
    %v5132 = vmul.f32 %v5109, 1.442695
    %v5133 = vpow.pop %v5132
    %v5134 = vmul.f32 %v5110, 1.442695
    %v5135 = vpow.pop %v5134
    %v5136 = vmul.f32 %v5111, 1.442695
    %v5137 = vpow.pop %v5136
    %v5138 = vmul.f32 %v5112, 1.442695
    %v5139 = vpow.pop %v5138
    %v5140 = vmul.f32 %v5113, 1.442695
    %v5141 = vpow.pop %v5140
    %v5142 = vmul.f32 %v5114, 1.442695
    %v5143 = vpow.pop %v5142
    %v5144 = vmul.f32 %v5115, 1.442695
    %v5145 = vpow.pop %v5144
    %v5146 = vmul.f32 %v5116, 1.442695
    %v5147 = vpow.pop %v5146
    %v5148 = vmul.f32 %v5117, 1.442695
    %v5149 = vpow.pop %v5148
    %v5150 = vsel %vm3947, %v5119, 0.0
    %5151 = vadd.xlane.f32.xlu0 %v5150
    %v5152 = vpop.xlane.xlu0 %5151
    %v5153 = vsel %vm3947, %v5121, 0.0
    %5154 = vadd.xlane.f32.xlu0 %v5153
    %v5155 = vpop.xlane.xlu0 %5154
    %v5156 = vsel %vm3947, %v5123, 0.0
    %5157 = vadd.xlane.f32.xlu0 %v5156
    %v5158 = vpop.xlane.xlu0 %5157
    %v5159 = vsel %vm3947, %v5125, 0.0
    %5160 = vadd.xlane.f32.xlu0 %v5159
    %v5161 = vpop.xlane.xlu0 %5160
    %v5162 = vsel %vm3947, %v5127, 0.0
    %5163 = vadd.xlane.f32.xlu0 %v5162
    %v5164 = vpop.xlane.xlu0 %5163
    %v5165 = vsel %vm3947, %v5129, 0.0
    %5166 = vadd.xlane.f32.xlu0 %v5165
    %v5167 = vpop.xlane.xlu0 %5166
    %v5168 = vsel %vm3947, %v5131, 0.0
    %5169 = vadd.xlane.f32.xlu0 %v5168
    %v5170 = vpop.xlane.xlu0 %5169
    %v5171 = vsel %vm3947, %v5133, 0.0
    %5172 = vadd.xlane.f32.xlu0 %v5171
    %v5173 = vpop.xlane.xlu0 %5172
    %v5174 = vsel %vm3947, %v5135, 0.0
    %5175 = vadd.xlane.f32.xlu0 %v5174
    %v5176 = vpop.xlane.xlu0 %5175
    %v5177 = vsel %vm3947, %v5137, 0.0
    %5178 = vadd.xlane.f32.xlu0 %v5177
    %v5179 = vpop.xlane.xlu0 %5178
    %v5180 = vsel %vm3947, %v5139, 0.0
    %5181 = vadd.xlane.f32.xlu0 %v5180
    %v5182 = vpop.xlane.xlu0 %5181
    %v5183 = vsel %vm3947, %v5141, 0.0
    %5184 = vadd.xlane.f32.xlu0 %v5183
    %v5185 = vpop.xlane.xlu0 %5184
    %v5186 = vsel %vm3947, %v5143, 0.0
    %5187 = vadd.xlane.f32.xlu0 %v5186
    %v5188 = vpop.xlane.xlu0 %5187
    %v5189 = vsel %vm3947, %v5145, 0.0
    %5190 = vadd.xlane.f32.xlu0 %v5189
    %v5191 = vpop.xlane.xlu0 %5190
    %v5192 = vsel %vm3947, %v5147, 0.0
    %5193 = vadd.xlane.f32.xlu0 %v5192
    %v5194 = vpop.xlane.xlu0 %5193
    %v5195 = vsel %vm3947, %v5149, 0.0
    %5196 = vadd.xlane.f32.xlu0 %v5195
    %v5197 = vpop.xlane.xlu0 %5196
    %v5198 = vrcp.pop %v5152
    %v5199 = vrcp.pop %v5155
    %v5200 = vrcp.pop %v5158
    %v5201 = vrcp.pop %v5161
    %v5202 = vrcp.pop %v5164
    %v5203 = vrcp.pop %v5167
    %v5204 = vrcp.pop %v5170
    %v5205 = vrcp.pop %v5173
    %v5206 = vrcp.pop %v5176
    %v5207 = vrcp.pop %v5179
    %v5208 = vrcp.pop %v5182
    %v5209 = vrcp.pop %v5185
    %v5210 = vrcp.pop %v5188
    %v5211 = vrcp.pop %v5191
    %v5212 = vrcp.pop %v5194
    %v5213 = vrcp.pop %v5197
    %v5214 = vmul.f32 %v5119, %v5198
    %v5215 = vmul.f32 %v5121, %v5199
    %v5216 = vmul.f32 %v5123, %v5200
    %v5217 = vmul.f32 %v5125, %v5201
    %v5218 = vmul.f32 %v5127, %v5202
    %v5219 = vmul.f32 %v5129, %v5203
    %v5220 = vmul.f32 %v5131, %v5204
    %v5221 = vmul.f32 %v5133, %v5205
    %v5222 = vmul.f32 %v5135, %v5206
    %v5223 = vmul.f32 %v5137, %v5207
    %v5224 = vmul.f32 %v5139, %v5208
    %v5225 = vmul.f32 %v5141, %v5209
    %v5226 = vmul.f32 %v5143, %v5210
    %v5227 = vmul.f32 %v5145, %v5211
    %v5228 = vmul.f32 %v5147, %v5212
    %v5229 = vmul.f32 %v5149, %v5213
    %5231 = vset.pattern.permute.xlu0 0
    %5232 = vperm.xlu0 %5231, %v5214
    %v5233 = vpop.permute.xlu0 %5232
    %5236 = vset.pattern.permute.xlu0 0
    %5237 = vperm.xlu0 %5236, %v5215
    %v5238 = vpop.permute.xlu0 %5237
    %5241 = vset.pattern.permute.xlu0 0
    %5242 = vperm.xlu0 %5241, %v5216
    %v5243 = vpop.permute.xlu0 %5242
    %5246 = vset.pattern.permute.xlu0 0
    %5247 = vperm.xlu0 %5246, %v5217
    %v5248 = vpop.permute.xlu0 %5247
    %5251 = vset.pattern.permute.xlu0 0
    %5252 = vperm.xlu0 %5251, %v5218
    %v5253 = vpop.permute.xlu0 %5252
    %5256 = vset.pattern.permute.xlu0 0
    %5257 = vperm.xlu0 %5256, %v5219
    %v5258 = vpop.permute.xlu0 %5257
    %5261 = vset.pattern.permute.xlu0 0
    %5262 = vperm.xlu0 %5261, %v5220
    %v5263 = vpop.permute.xlu0 %5262
    %5266 = vset.pattern.permute.xlu0 0
    %5267 = vperm.xlu0 %5266, %v5221
    %v5268 = vpop.permute.xlu0 %5267
    %5271 = vset.pattern.permute.xlu0 0
    %5272 = vperm.xlu0 %5271, %v5222
    %v5273 = vpop.permute.xlu0 %5272
    %5276 = vset.pattern.permute.xlu0 0
    %5277 = vperm.xlu0 %5276, %v5223
    %v5278 = vpop.permute.xlu0 %5277
    %5281 = vset.pattern.permute.xlu0 0
    %5282 = vperm.xlu0 %5281, %v5224
    %v5283 = vpop.permute.xlu0 %5282
    %5286 = vset.pattern.permute.xlu0 0
    %5287 = vperm.xlu0 %5286, %v5225
    %v5288 = vpop.permute.xlu0 %5287
    %5291 = vset.pattern.permute.xlu0 0
    %5292 = vperm.xlu0 %5291, %v5226
    %v5293 = vpop.permute.xlu0 %5292
    %5296 = vset.pattern.permute.xlu0 0
    %5297 = vperm.xlu0 %5296, %v5227
    %v5298 = vpop.permute.xlu0 %5297
    %5301 = vset.pattern.permute.xlu0 0
    %5302 = vperm.xlu0 %5301, %v5228
    %v5303 = vpop.permute.xlu0 %5302
    %5306 = vset.pattern.permute.xlu0 0
    %5307 = vperm.xlu0 %5306, %v5229
    %v5308 = vpop.permute.xlu0 %5307
    %v5310 = vmul.f32 %v5233, %v3398
    %v5311 = vmul.f32 %v5238, %v3400
    %v5312 = vmul.f32 %v5243, %v3403
    %v5313 = vmul.f32 %v5248, %v3405
    %v5314 = vmul.f32 %v5253, %v3408
    %v5315 = vmul.f32 %v5258, %v3410
    %v5316 = vmul.f32 %v5263, %v3413
    %v5317 = vmul.f32 %v5268, %v3415
    %v5318 = vmul.f32 %v5273, %v3418
    %v5319 = vmul.f32 %v5278, %v3420
    %v5320 = vmul.f32 %v5283, %v3423
    %v5321 = vmul.f32 %v5288, %v3425
    %v5322 = vmul.f32 %v5293, %v3428
    %v5323 = vmul.f32 %v5298, %v3430
    %v5324 = vmul.f32 %v5303, %v3433
    %v5325 = vmul.f32 %v5308, %v3435
    %5326 = vset.pattern.permute.xlu0 1
    %5327 = vperm.xlu0 %5326, %v5214
    %v5328 = vpop.permute.xlu0 %5327
    %5330 = vset.pattern.permute.xlu0 1
    %5331 = vperm.xlu0 %5330, %v5215
    %v5332 = vpop.permute.xlu0 %5331
    %5334 = vset.pattern.permute.xlu0 1
    %5335 = vperm.xlu0 %5334, %v5216
    %v5336 = vpop.permute.xlu0 %5335
    %5338 = vset.pattern.permute.xlu0 1
    %5339 = vperm.xlu0 %5338, %v5217
    %v5340 = vpop.permute.xlu0 %5339
    %5342 = vset.pattern.permute.xlu0 1
    %5343 = vperm.xlu0 %5342, %v5218
    %v5344 = vpop.permute.xlu0 %5343
    %5346 = vset.pattern.permute.xlu0 1
    %5347 = vperm.xlu0 %5346, %v5219
    %v5348 = vpop.permute.xlu0 %5347
    %5350 = vset.pattern.permute.xlu0 1
    %5351 = vperm.xlu0 %5350, %v5220
    %v5352 = vpop.permute.xlu0 %5351
    %5354 = vset.pattern.permute.xlu0 1
    %5355 = vperm.xlu0 %5354, %v5221
    %v5356 = vpop.permute.xlu0 %5355
    %5358 = vset.pattern.permute.xlu0 1
    %5359 = vperm.xlu0 %5358, %v5222
    %v5360 = vpop.permute.xlu0 %5359
    %5362 = vset.pattern.permute.xlu0 1
    %5363 = vperm.xlu0 %5362, %v5223
    %v5364 = vpop.permute.xlu0 %5363
    %5366 = vset.pattern.permute.xlu0 1
    %5367 = vperm.xlu0 %5366, %v5224
    %v5368 = vpop.permute.xlu0 %5367
    %5370 = vset.pattern.permute.xlu0 1
    %5371 = vperm.xlu0 %5370, %v5225
    %v5372 = vpop.permute.xlu0 %5371
    %5374 = vset.pattern.permute.xlu0 1
    %5375 = vperm.xlu0 %5374, %v5226
    %v5376 = vpop.permute.xlu0 %5375
    %5378 = vset.pattern.permute.xlu0 1
    %5379 = vperm.xlu0 %5378, %v5227
    %v5380 = vpop.permute.xlu0 %5379
    %5382 = vset.pattern.permute.xlu0 1
    %5383 = vperm.xlu0 %5382, %v5228
    %v5384 = vpop.permute.xlu0 %5383
    %5386 = vset.pattern.permute.xlu0 1
    %5387 = vperm.xlu0 %5386, %v5229
    %v5388 = vpop.permute.xlu0 %5387
    %v5390 = vmul.f32 %v5328, %v3398
    %v5391 = vmul.f32 %v5332, %v3400
    %v5392 = vmul.f32 %v5336, %v3403
    %v5393 = vmul.f32 %v5340, %v3405
    %v5394 = vmul.f32 %v5344, %v3408
    %v5395 = vmul.f32 %v5348, %v3410
    %v5396 = vmul.f32 %v5352, %v3413
    %v5397 = vmul.f32 %v5356, %v3415
    %v5398 = vmul.f32 %v5360, %v3418
    %v5399 = vmul.f32 %v5364, %v3420
    %v5400 = vmul.f32 %v5368, %v3423
    %v5401 = vmul.f32 %v5372, %v3425
    %v5402 = vmul.f32 %v5376, %v3428
    %v5403 = vmul.f32 %v5380, %v3430
    %v5404 = vmul.f32 %v5384, %v3433
    %v5405 = vmul.f32 %v5388, %v3435
    %5422 = vrot.lane.b32.xlu0 %v5390, 96
    %v5423 = vpop.permute.xlu0 %5422
    %5424 = vrot.lane.b32.xlu0 %v5391, 96
    %v5425 = vpop.permute.xlu0 %5424
    %5426 = vrot.lane.b32.xlu0 %v5392, 96
    %v5427 = vpop.permute.xlu0 %5426
    %5428 = vrot.lane.b32.xlu0 %v5393, 96
    %v5429 = vpop.permute.xlu0 %5428
    %5430 = vrot.lane.b32.xlu0 %v5394, 96
    %v5431 = vpop.permute.xlu0 %5430
    %5432 = vrot.lane.b32.xlu0 %v5395, 96
    %v5433 = vpop.permute.xlu0 %5432
    %5434 = vrot.lane.b32.xlu0 %v5396, 96
    %v5435 = vpop.permute.xlu0 %5434
    %5436 = vrot.lane.b32.xlu0 %v5397, 96
    %v5437 = vpop.permute.xlu0 %5436
    %5438 = vrot.lane.b32.xlu0 %v5398, 96
    %v5439 = vpop.permute.xlu0 %5438
    %5440 = vrot.lane.b32.xlu0 %v5399, 96
    %v5441 = vpop.permute.xlu0 %5440
    %5442 = vrot.lane.b32.xlu0 %v5400, 96
    %v5443 = vpop.permute.xlu0 %5442
    %5444 = vrot.lane.b32.xlu0 %v5401, 96
    %v5445 = vpop.permute.xlu0 %5444
    %5446 = vrot.lane.b32.xlu0 %v5402, 96
    %v5447 = vpop.permute.xlu0 %5446
    %5448 = vrot.lane.b32.xlu0 %v5403, 96
    %v5449 = vpop.permute.xlu0 %5448
    %5450 = vrot.lane.b32.xlu0 %v5404, 96
    %v5451 = vpop.permute.xlu0 %5450
    %5452 = vrot.lane.b32.xlu0 %v5405, 96
    %v5453 = vpop.permute.xlu0 %5452
    %v5470 = vadd.f32 %v5310, %v5423
    %v5471 = vadd.f32 %v5311, %v5425
    %v5472 = vadd.f32 %v5312, %v5427
    %v5473 = vadd.f32 %v5313, %v5429
    %v5474 = vadd.f32 %v5314, %v5431
    %v5475 = vadd.f32 %v5315, %v5433
    %v5476 = vadd.f32 %v5316, %v5435
    %v5477 = vadd.f32 %v5317, %v5437
    %v5478 = vadd.f32 %v5318, %v5439
    %v5479 = vadd.f32 %v5319, %v5441
    %v5480 = vadd.f32 %v5320, %v5443
    %v5481 = vadd.f32 %v5321, %v5445
    %v5482 = vadd.f32 %v5322, %v5447
    %v5483 = vadd.f32 %v5323, %v5449
    %v5484 = vadd.f32 %v5324, %v5451
    %v5485 = vadd.f32 %v5325, %v5453
    %5486 = vset.pattern.permute.xlu0 2
    %5487 = vperm.xlu0 %5486, %v5214
    %v5488 = vpop.permute.xlu0 %5487
    %5490 = vset.pattern.permute.xlu0 2
    %5491 = vperm.xlu0 %5490, %v5215
    %v5492 = vpop.permute.xlu0 %5491
    %5494 = vset.pattern.permute.xlu0 2
    %5495 = vperm.xlu0 %5494, %v5216
    %v5496 = vpop.permute.xlu0 %5495
    %5498 = vset.pattern.permute.xlu0 2
    %5499 = vperm.xlu0 %5498, %v5217
    %v5500 = vpop.permute.xlu0 %5499
    %5502 = vset.pattern.permute.xlu0 2
    %5503 = vperm.xlu0 %5502, %v5218
    %v5504 = vpop.permute.xlu0 %5503
    %5506 = vset.pattern.permute.xlu0 2
    %5507 = vperm.xlu0 %5506, %v5219
    %v5508 = vpop.permute.xlu0 %5507
    %5510 = vset.pattern.permute.xlu0 2
    %5511 = vperm.xlu0 %5510, %v5220
    %v5512 = vpop.permute.xlu0 %5511
    %5514 = vset.pattern.permute.xlu0 2
    %5515 = vperm.xlu0 %5514, %v5221
    %v5516 = vpop.permute.xlu0 %5515
    %5518 = vset.pattern.permute.xlu0 2
    %5519 = vperm.xlu0 %5518, %v5222
    %v5520 = vpop.permute.xlu0 %5519
    %5522 = vset.pattern.permute.xlu0 2
    %5523 = vperm.xlu0 %5522, %v5223
    %v5524 = vpop.permute.xlu0 %5523
    %5526 = vset.pattern.permute.xlu0 2
    %5527 = vperm.xlu0 %5526, %v5224
    %v5528 = vpop.permute.xlu0 %5527
    %5530 = vset.pattern.permute.xlu0 2
    %5531 = vperm.xlu0 %5530, %v5225
    %v5532 = vpop.permute.xlu0 %5531
    %5534 = vset.pattern.permute.xlu0 2
    %5535 = vperm.xlu0 %5534, %v5226
    %v5536 = vpop.permute.xlu0 %5535
    %5538 = vset.pattern.permute.xlu0 2
    %5539 = vperm.xlu0 %5538, %v5227
    %v5540 = vpop.permute.xlu0 %5539
    %5542 = vset.pattern.permute.xlu0 2
    %5543 = vperm.xlu0 %5542, %v5228
    %v5544 = vpop.permute.xlu0 %5543
    %5546 = vset.pattern.permute.xlu0 2
    %5547 = vperm.xlu0 %5546, %v5229
    %v5548 = vpop.permute.xlu0 %5547
    %v5550 = vmul.f32 %v5488, %v3398
    %v5551 = vmul.f32 %v5492, %v3400
    %v5552 = vmul.f32 %v5496, %v3403
    %v5553 = vmul.f32 %v5500, %v3405
    %v5554 = vmul.f32 %v5504, %v3408
    %v5555 = vmul.f32 %v5508, %v3410
    %v5556 = vmul.f32 %v5512, %v3413
    %v5557 = vmul.f32 %v5516, %v3415
    %v5558 = vmul.f32 %v5520, %v3418
    %v5559 = vmul.f32 %v5524, %v3420
    %v5560 = vmul.f32 %v5528, %v3423
    %v5561 = vmul.f32 %v5532, %v3425
    %v5562 = vmul.f32 %v5536, %v3428
    %v5563 = vmul.f32 %v5540, %v3430
    %v5564 = vmul.f32 %v5544, %v3433
    %v5565 = vmul.f32 %v5548, %v3435
    %5582 = vrot.lane.b32.xlu0 %v5550, 64
    %v5583 = vpop.permute.xlu0 %5582
    %5584 = vrot.lane.b32.xlu0 %v5551, 64
    %v5585 = vpop.permute.xlu0 %5584
    %5586 = vrot.lane.b32.xlu0 %v5552, 64
    %v5587 = vpop.permute.xlu0 %5586
    %5588 = vrot.lane.b32.xlu0 %v5553, 64
    %v5589 = vpop.permute.xlu0 %5588
    %5590 = vrot.lane.b32.xlu0 %v5554, 64
    %v5591 = vpop.permute.xlu0 %5590
    %5592 = vrot.lane.b32.xlu0 %v5555, 64
    %v5593 = vpop.permute.xlu0 %5592
    %5594 = vrot.lane.b32.xlu0 %v5556, 64
    %v5595 = vpop.permute.xlu0 %5594
    %5596 = vrot.lane.b32.xlu0 %v5557, 64
    %v5597 = vpop.permute.xlu0 %5596
    %5598 = vrot.lane.b32.xlu0 %v5558, 64
    %v5599 = vpop.permute.xlu0 %5598
    %5600 = vrot.lane.b32.xlu0 %v5559, 64
    %v5601 = vpop.permute.xlu0 %5600
    %5602 = vrot.lane.b32.xlu0 %v5560, 64
    %v5603 = vpop.permute.xlu0 %5602
    %5604 = vrot.lane.b32.xlu0 %v5561, 64
    %v5605 = vpop.permute.xlu0 %5604
    %5606 = vrot.lane.b32.xlu0 %v5562, 64
    %v5607 = vpop.permute.xlu0 %5606
    %5608 = vrot.lane.b32.xlu0 %v5563, 64
    %v5609 = vpop.permute.xlu0 %5608
    %5610 = vrot.lane.b32.xlu0 %v5564, 64
    %v5611 = vpop.permute.xlu0 %5610
    %5612 = vrot.lane.b32.xlu0 %v5565, 64
    %v5613 = vpop.permute.xlu0 %5612
    %v5630 = vadd.f32 %v5470, %v5583
    %v5631 = vadd.f32 %v5471, %v5585
    %v5632 = vadd.f32 %v5472, %v5587
    %v5633 = vadd.f32 %v5473, %v5589
    %v5634 = vadd.f32 %v5474, %v5591
    %v5635 = vadd.f32 %v5475, %v5593
    %v5636 = vadd.f32 %v5476, %v5595
    %v5637 = vadd.f32 %v5477, %v5597
    %v5638 = vadd.f32 %v5478, %v5599
    %v5639 = vadd.f32 %v5479, %v5601
    %v5640 = vadd.f32 %v5480, %v5603
    %v5641 = vadd.f32 %v5481, %v5605
    %v5642 = vadd.f32 %v5482, %v5607
    %v5643 = vadd.f32 %v5483, %v5609
    %v5644 = vadd.f32 %v5484, %v5611
    %v5645 = vadd.f32 %v5485, %v5613
    %5646 = vset.pattern.permute.xlu0 3
    %5647 = vperm.xlu0 %5646, %v5214
    %v5648 = vpop.permute.xlu0 %5647
    %5650 = vset.pattern.permute.xlu0 3
    %5651 = vperm.xlu0 %5650, %v5215
    %v5652 = vpop.permute.xlu0 %5651
    %5654 = vset.pattern.permute.xlu0 3
    %5655 = vperm.xlu0 %5654, %v5216
    %v5656 = vpop.permute.xlu0 %5655
    %5658 = vset.pattern.permute.xlu0 3
    %5659 = vperm.xlu0 %5658, %v5217
    %v5660 = vpop.permute.xlu0 %5659
    %5662 = vset.pattern.permute.xlu0 3
    %5663 = vperm.xlu0 %5662, %v5218
    %v5664 = vpop.permute.xlu0 %5663
    %5666 = vset.pattern.permute.xlu0 3
    %5667 = vperm.xlu0 %5666, %v5219
    %v5668 = vpop.permute.xlu0 %5667
    %5670 = vset.pattern.permute.xlu0 3
    %5671 = vperm.xlu0 %5670, %v5220
    %v5672 = vpop.permute.xlu0 %5671
    %5674 = vset.pattern.permute.xlu0 3
    %5675 = vperm.xlu0 %5674, %v5221
    %v5676 = vpop.permute.xlu0 %5675
    %5678 = vset.pattern.permute.xlu0 3
    %5679 = vperm.xlu0 %5678, %v5222
    %v5680 = vpop.permute.xlu0 %5679
    %5682 = vset.pattern.permute.xlu0 3
    %5683 = vperm.xlu0 %5682, %v5223
    %v5684 = vpop.permute.xlu0 %5683
    %5686 = vset.pattern.permute.xlu0 3
    %5687 = vperm.xlu0 %5686, %v5224
    %v5688 = vpop.permute.xlu0 %5687
    %5690 = vset.pattern.permute.xlu0 3
    %5691 = vperm.xlu0 %5690, %v5225
    %v5692 = vpop.permute.xlu0 %5691
    %5694 = vset.pattern.permute.xlu0 3
    %5695 = vperm.xlu0 %5694, %v5226
    %v5696 = vpop.permute.xlu0 %5695
    %5698 = vset.pattern.permute.xlu0 3
    %5699 = vperm.xlu0 %5698, %v5227
    %v5700 = vpop.permute.xlu0 %5699
    %5702 = vset.pattern.permute.xlu0 3
    %5703 = vperm.xlu0 %5702, %v5228
    %v5704 = vpop.permute.xlu0 %5703
    %5706 = vset.pattern.permute.xlu0 3
    %5707 = vperm.xlu0 %5706, %v5229
    %v5708 = vpop.permute.xlu0 %5707
    %v5710 = vmul.f32 %v5648, %v3398
    %v5711 = vmul.f32 %v5652, %v3400
    %v5712 = vmul.f32 %v5656, %v3403
    %v5713 = vmul.f32 %v5660, %v3405
    %v5714 = vmul.f32 %v5664, %v3408
    %v5715 = vmul.f32 %v5668, %v3410
    %v5716 = vmul.f32 %v5672, %v3413
    %v5717 = vmul.f32 %v5676, %v3415
    %v5718 = vmul.f32 %v5680, %v3418
    %v5719 = vmul.f32 %v5684, %v3420
    %v5720 = vmul.f32 %v5688, %v3423
    %v5721 = vmul.f32 %v5692, %v3425
    %v5722 = vmul.f32 %v5696, %v3428
    %v5723 = vmul.f32 %v5700, %v3430
    %v5724 = vmul.f32 %v5704, %v3433
    %v5725 = vmul.f32 %v5708, %v3435
    %5742 = vrot.lane.b32.xlu0 %v5710, 32
    %v5743 = vpop.permute.xlu0 %5742
    %5744 = vrot.lane.b32.xlu0 %v5711, 32
    %v5745 = vpop.permute.xlu0 %5744
    %5746 = vrot.lane.b32.xlu0 %v5712, 32
    %v5747 = vpop.permute.xlu0 %5746
    %5748 = vrot.lane.b32.xlu0 %v5713, 32
    %v5749 = vpop.permute.xlu0 %5748
    %5750 = vrot.lane.b32.xlu0 %v5714, 32
    %v5751 = vpop.permute.xlu0 %5750
    %5752 = vrot.lane.b32.xlu0 %v5715, 32
    %v5753 = vpop.permute.xlu0 %5752
    %5754 = vrot.lane.b32.xlu0 %v5716, 32
    %v5755 = vpop.permute.xlu0 %5754
    %5756 = vrot.lane.b32.xlu0 %v5717, 32
    %v5757 = vpop.permute.xlu0 %5756
    %5758 = vrot.lane.b32.xlu0 %v5718, 32
    %v5759 = vpop.permute.xlu0 %5758
    %5760 = vrot.lane.b32.xlu0 %v5719, 32
    %v5761 = vpop.permute.xlu0 %5760
    %5762 = vrot.lane.b32.xlu0 %v5720, 32
    %v5763 = vpop.permute.xlu0 %5762
    %5764 = vrot.lane.b32.xlu0 %v5721, 32
    %v5765 = vpop.permute.xlu0 %5764
    %5766 = vrot.lane.b32.xlu0 %v5722, 32
    %v5767 = vpop.permute.xlu0 %5766
    %5768 = vrot.lane.b32.xlu0 %v5723, 32
    %v5769 = vpop.permute.xlu0 %5768
    %5770 = vrot.lane.b32.xlu0 %v5724, 32
    %v5771 = vpop.permute.xlu0 %5770
    %5772 = vrot.lane.b32.xlu0 %v5725, 32
    %v5773 = vpop.permute.xlu0 %5772
    %v5790 = vadd.f32 %v5630, %v5743
    %v5791 = vadd.f32 %v5631, %v5745
    %v5792 = vadd.f32 %v5632, %v5747
    %v5793 = vadd.f32 %v5633, %v5749
    %v5794 = vadd.f32 %v5634, %v5751
    %v5795 = vadd.f32 %v5635, %v5753
    %v5796 = vadd.f32 %v5636, %v5755
    %v5797 = vadd.f32 %v5637, %v5757
    %v5798 = vadd.f32 %v5638, %v5759
    %v5799 = vadd.f32 %v5639, %v5761
    %v5800 = vadd.f32 %v5640, %v5763
    %v5801 = vadd.f32 %v5641, %v5765
    %v5802 = vadd.f32 %v5642, %v5767
    %v5803 = vadd.f32 %v5643, %v5769
    %v5804 = vadd.f32 %v5644, %v5771
    %v5805 = vadd.f32 %v5645, %v5773
    %5806 = vset.pattern.permute.xlu0 4
    %5807 = vperm.xlu0 %5806, %v5214
    %v5808 = vpop.permute.xlu0 %5807
    %5810 = vset.pattern.permute.xlu0 4
    %5811 = vperm.xlu0 %5810, %v5215
    %v5812 = vpop.permute.xlu0 %5811
    %5814 = vset.pattern.permute.xlu0 4
    %5815 = vperm.xlu0 %5814, %v5216
    %v5816 = vpop.permute.xlu0 %5815
    %5818 = vset.pattern.permute.xlu0 4
    %5819 = vperm.xlu0 %5818, %v5217
    %v5820 = vpop.permute.xlu0 %5819
    %5822 = vset.pattern.permute.xlu0 4
    %5823 = vperm.xlu0 %5822, %v5218
    %v5824 = vpop.permute.xlu0 %5823
    %5826 = vset.pattern.permute.xlu0 4
    %5827 = vperm.xlu0 %5826, %v5219
    %v5828 = vpop.permute.xlu0 %5827
    %5830 = vset.pattern.permute.xlu0 4
    %5831 = vperm.xlu0 %5830, %v5220
    %v5832 = vpop.permute.xlu0 %5831
    %5834 = vset.pattern.permute.xlu0 4
    %5835 = vperm.xlu0 %5834, %v5221
    %v5836 = vpop.permute.xlu0 %5835
    %5838 = vset.pattern.permute.xlu0 4
    %5839 = vperm.xlu0 %5838, %v5222
    %v5840 = vpop.permute.xlu0 %5839
    %5842 = vset.pattern.permute.xlu0 4
    %5843 = vperm.xlu0 %5842, %v5223
    %v5844 = vpop.permute.xlu0 %5843
    %5846 = vset.pattern.permute.xlu0 4
    %5847 = vperm.xlu0 %5846, %v5224
    %v5848 = vpop.permute.xlu0 %5847
    %5850 = vset.pattern.permute.xlu0 4
    %5851 = vperm.xlu0 %5850, %v5225
    %v5852 = vpop.permute.xlu0 %5851
    %5854 = vset.pattern.permute.xlu0 4
    %5855 = vperm.xlu0 %5854, %v5226
    %v5856 = vpop.permute.xlu0 %5855
    %5858 = vset.pattern.permute.xlu0 4
    %5859 = vperm.xlu0 %5858, %v5227
    %v5860 = vpop.permute.xlu0 %5859
    %5862 = vset.pattern.permute.xlu0 4
    %5863 = vperm.xlu0 %5862, %v5228
    %v5864 = vpop.permute.xlu0 %5863
    %5866 = vset.pattern.permute.xlu0 4
    %5867 = vperm.xlu0 %5866, %v5229
    %v5868 = vpop.permute.xlu0 %5867
    %v5870 = vmul.f32 %v5808, %v3496
    %v5871 = vmul.f32 %v5812, %v3498
    %v5872 = vmul.f32 %v5816, %v3501
    %v5873 = vmul.f32 %v5820, %v3503
    %v5874 = vmul.f32 %v5824, %v3506
    %v5875 = vmul.f32 %v5828, %v3508
    %v5876 = vmul.f32 %v5832, %v3511
    %v5877 = vmul.f32 %v5836, %v3513
    %v5878 = vmul.f32 %v5840, %v3516
    %v5879 = vmul.f32 %v5844, %v3518
    %v5880 = vmul.f32 %v5848, %v3521
    %v5881 = vmul.f32 %v5852, %v3523
    %v5882 = vmul.f32 %v5856, %v3526
    %v5883 = vmul.f32 %v5860, %v3528
    %v5884 = vmul.f32 %v5864, %v3531
    %v5885 = vmul.f32 %v5868, %v3533
    %v5886 = vadd.f32 %v5790, %v5870
    %v5887 = vadd.f32 %v5791, %v5871
    %v5888 = vadd.f32 %v5792, %v5872
    %v5889 = vadd.f32 %v5793, %v5873
    %v5890 = vadd.f32 %v5794, %v5874
    %v5891 = vadd.f32 %v5795, %v5875
    %v5892 = vadd.f32 %v5796, %v5876
    %v5893 = vadd.f32 %v5797, %v5877
    %v5894 = vadd.f32 %v5798, %v5878
    %v5895 = vadd.f32 %v5799, %v5879
    %v5896 = vadd.f32 %v5800, %v5880
    %v5897 = vadd.f32 %v5801, %v5881
    %v5898 = vadd.f32 %v5802, %v5882
    %v5899 = vadd.f32 %v5803, %v5883
    %v5900 = vadd.f32 %v5804, %v5884
    %v5901 = vadd.f32 %v5805, %v5885
    %v5902 = vmul.f32 %v4796, %v5886
    %v5903 = vmul.f32 %v4796, %v5887
    %v5904 = vmul.f32 %v4796, %v5888
    %v5905 = vmul.f32 %v4796, %v5889
    %v5906 = vmul.f32 %v4796, %v5890
    %v5907 = vmul.f32 %v4796, %v5891
    %v5908 = vmul.f32 %v4796, %v5892
    %v5909 = vmul.f32 %v4796, %v5893
    %v5910 = vmul.f32 %v4796, %v5894
    %v5911 = vmul.f32 %v4796, %v5895
    %v5912 = vmul.f32 %v4796, %v5896
    %v5913 = vmul.f32 %v4796, %v5897
    %v5914 = vmul.f32 %v4796, %v5898
    %v5915 = vmul.f32 %v4796, %v5899
    %v5916 = vmul.f32 %v4796, %v5900
    %v5917 = vmul.f32 %v4796, %v5901
    %5934 = vrot.lane.b32.xlu0 %v2792, 96
    %v5935 = vpop.permute.xlu0 %5934
    %5936 = vrot.lane.b32.xlu0 %v2793, 96
    %v5937 = vpop.permute.xlu0 %5936
    %5938 = vrot.lane.b32.xlu0 %v2794, 96
    %v5939 = vpop.permute.xlu0 %5938
    %5940 = vrot.lane.b32.xlu0 %v2795, 96
    %v5941 = vpop.permute.xlu0 %5940
    %5942 = vrot.lane.b32.xlu0 %v2796, 96
    %v5943 = vpop.permute.xlu0 %5942
    %5944 = vrot.lane.b32.xlu0 %v2797, 96
    %v5945 = vpop.permute.xlu0 %5944
    %5946 = vrot.lane.b32.xlu0 %v2798, 96
    %v5947 = vpop.permute.xlu0 %5946
    %5948 = vrot.lane.b32.xlu0 %v2799, 96
    %v5949 = vpop.permute.xlu0 %5948
    %5950 = vrot.lane.b32.xlu0 %v2800, 96
    %v5951 = vpop.permute.xlu0 %5950
    %5952 = vrot.lane.b32.xlu0 %v2801, 96
    %v5953 = vpop.permute.xlu0 %5952
    %5954 = vrot.lane.b32.xlu0 %v2802, 96
    %v5955 = vpop.permute.xlu0 %5954
    %5956 = vrot.lane.b32.xlu0 %v2803, 96
    %v5957 = vpop.permute.xlu0 %5956
    %5958 = vrot.lane.b32.xlu0 %v2804, 96
    %v5959 = vpop.permute.xlu0 %5958
    %5960 = vrot.lane.b32.xlu0 %v2805, 96
    %v5961 = vpop.permute.xlu0 %5960
    %5962 = vrot.lane.b32.xlu0 %v2806, 96
    %v5963 = vpop.permute.xlu0 %5962
    %5964 = vrot.lane.b32.xlu0 %v2807, 96
    %v5965 = vpop.permute.xlu0 %5964
    %v5982 = vadd.f32 %v5902, %v5935
    %v5983 = vadd.f32 %v5903, %v5937
    %v5984 = vadd.f32 %v5904, %v5939
    %v5985 = vadd.f32 %v5905, %v5941
    %v5986 = vadd.f32 %v5906, %v5943
    %v5987 = vadd.f32 %v5907, %v5945
    %v5988 = vadd.f32 %v5908, %v5947
    %v5989 = vadd.f32 %v5909, %v5949
    %v5990 = vadd.f32 %v5910, %v5951
    %v5991 = vadd.f32 %v5911, %v5953
    %v5992 = vadd.f32 %v5912, %v5955
    %v5993 = vadd.f32 %v5913, %v5957
    %v5994 = vadd.f32 %v5914, %v5959
    %v5995 = vadd.f32 %v5915, %v5961
    %v5996 = vadd.f32 %v5916, %v5963
    %v5997 = vadd.f32 %v5917, %v5965
    %5998 = vrot.lane.b32.xlu0 %v2992, 112
    %v5999 = vpop.permute.xlu0 %5998
    %6000 = vrot.lane.b32.xlu0 %v2994, 112
    %v6001 = vpop.permute.xlu0 %6000
    %6002 = vrot.lane.b32.xlu0 %v2997, 112
    %v6003 = vpop.permute.xlu0 %6002
    %6004 = vrot.lane.b32.xlu0 %v2999, 112
    %v6005 = vpop.permute.xlu0 %6004
    %6006 = vrot.lane.b32.xlu0 %v3002, 112
    %v6007 = vpop.permute.xlu0 %6006
    %6008 = vrot.lane.b32.xlu0 %v3004, 112
    %v6009 = vpop.permute.xlu0 %6008
    %6010 = vrot.lane.b32.xlu0 %v3007, 112
    %v6011 = vpop.permute.xlu0 %6010
    %6012 = vrot.lane.b32.xlu0 %v3009, 112
    %v6013 = vpop.permute.xlu0 %6012
    %6014 = vrot.lane.b32.xlu0 %v3012, 112
    %v6015 = vpop.permute.xlu0 %6014
    %6016 = vrot.lane.b32.xlu0 %v3014, 112
    %v6017 = vpop.permute.xlu0 %6016
    %6018 = vrot.lane.b32.xlu0 %v3017, 112
    %v6019 = vpop.permute.xlu0 %6018
    %6020 = vrot.lane.b32.xlu0 %v3019, 112
    %v6021 = vpop.permute.xlu0 %6020
    %6022 = vrot.lane.b32.xlu0 %v3022, 112
    %v6023 = vpop.permute.xlu0 %6022
    %6024 = vrot.lane.b32.xlu0 %v3024, 112
    %v6025 = vpop.permute.xlu0 %6024
    %6026 = vrot.lane.b32.xlu0 %v3027, 112
    %v6027 = vpop.permute.xlu0 %6026
    %6028 = vrot.lane.b32.xlu0 %v3029, 112
    %v6029 = vpop.permute.xlu0 %6028
    %v6046 = vsel %vm3748, %v5999, %v4830
    %v6047 = vsel %vm3748, %v6001, %v4832
    %v6048 = vsel %vm3748, %v6003, %v4834
    %v6049 = vsel %vm3748, %v6005, %v4836
    %v6050 = vsel %vm3748, %v6007, %v4838
    %v6051 = vsel %vm3748, %v6009, %v4840
    %v6052 = vsel %vm3748, %v6011, %v4842
    %v6053 = vsel %vm3748, %v6013, %v4844
    %v6054 = vsel %vm3748, %v6015, %v4846
    %v6055 = vsel %vm3748, %v6017, %v4848
    %v6056 = vsel %vm3748, %v6019, %v4850
    %v6057 = vsel %vm3748, %v6021, %v4852
    %v6058 = vsel %vm3748, %v6023, %v4854
    %v6059 = vsel %vm3748, %v6025, %v4856
    %v6060 = vsel %vm3748, %v6027, %v4858
    %v6061 = vsel %vm3748, %v6029, %v4860
    %v6062 = vsel %vm1558, %v6046, %v2992
    %v6063 = vsel %vm1558, %v6047, %v2994
    %v6064 = vsel %vm1558, %v6048, %v2997
    %v6065 = vsel %vm1558, %v6049, %v2999
    %v6066 = vsel %vm1558, %v6050, %v3002
    %v6067 = vsel %vm1558, %v6051, %v3004
    %v6068 = vsel %vm1558, %v6052, %v3007
    %v6069 = vsel %vm1558, %v6053, %v3009
    %v6070 = vsel %vm1558, %v6054, %v3012
    %v6071 = vsel %vm1558, %v6055, %v3014
    %v6072 = vsel %vm1558, %v6056, %v3017
    %v6073 = vsel %vm1558, %v6057, %v3019
    %v6074 = vsel %vm1558, %v6058, %v3022
    %v6075 = vsel %vm1558, %v6059, %v3024
    %v6076 = vsel %vm1558, %v6060, %v3027
    %v6077 = vsel %vm1558, %v6061, %v3029
    %v6078 = vsel %vm3781, %v6062, %v3557
    %v6079 = vsel %vm3781, %v6063, %v3559
    %v6080 = vsel %vm3781, %v6064, %v3561
    %v6081 = vsel %vm3781, %v6065, %v3563
    %v6082 = vsel %vm3781, %v6066, %v3565
    %v6083 = vsel %vm3781, %v6067, %v3567
    %v6084 = vsel %vm3781, %v6068, %v3569
    %v6085 = vsel %vm3781, %v6069, %v3571
    %v6086 = vsel %vm3781, %v6070, %v3573
    %v6087 = vsel %vm3781, %v6071, %v3575
    %v6088 = vsel %vm3781, %v6072, %v3577
    %v6089 = vsel %vm3781, %v6073, %v3579
    %v6090 = vsel %vm3781, %v6074, %v3581
    %v6091 = vsel %vm3781, %v6075, %v3583
    %v6092 = vsel %vm3781, %v6076, %v3585
    %v6093 = vsel %vm3781, %v6077, %v3587
    %v6094 = vsel %vm2908, %v6078, %v3605
    %v6095 = vsel %vm2908, %v6079, %v3607
    %v6096 = vsel %vm2908, %v6080, %v3609
    %v6097 = vsel %vm2908, %v6081, %v3611
    %v6098 = vsel %vm2908, %v6082, %v3613
    %v6099 = vsel %vm2908, %v6083, %v3615
    %v6100 = vsel %vm2908, %v6084, %v3617
    %v6101 = vsel %vm2908, %v6085, %v3619
    %v6102 = vsel %vm2908, %v6086, %v3621
    %v6103 = vsel %vm2908, %v6087, %v3623
    %v6104 = vsel %vm2908, %v6088, %v3625
    %v6105 = vsel %vm2908, %v6089, %v3627
    %v6106 = vsel %vm2908, %v6090, %v3629
    %v6107 = vsel %vm2908, %v6091, %v3631
    %v6108 = vsel %vm2908, %v6092, %v3633
    %v6109 = vsel %vm2908, %v6093, %v3635
    %v6110 = vmul.f32 %v3174, %v6094
    %v6111 = vmul.f32 %v3176, %v6095
    %v6112 = vmul.f32 %v3179, %v6096
    %v6113 = vmul.f32 %v3181, %v6097
    %v6114 = vmul.f32 %v3184, %v6098
    %v6115 = vmul.f32 %v3186, %v6099
    %v6116 = vmul.f32 %v3189, %v6100
    %v6117 = vmul.f32 %v3191, %v6101
    %v6118 = vmul.f32 %v3194, %v6102
    %v6119 = vmul.f32 %v3196, %v6103
    %v6120 = vmul.f32 %v3199, %v6104
    %v6121 = vmul.f32 %v3201, %v6105
    %v6122 = vmul.f32 %v3204, %v6106
    %v6123 = vmul.f32 %v3206, %v6107
    %v6124 = vmul.f32 %v3209, %v6108
    %v6125 = vmul.f32 %v3211, %v6109
    %v6126 = vpack.c.bf16 %v6111, %v6110
    %v6127 = vpack.c.bf16 %v6113, %v6112
    %v6128 = vpack.c.bf16 %v6115, %v6114
    %v6129 = vpack.c.bf16 %v6117, %v6116
    %v6130 = vpack.c.bf16 %v6119, %v6118
    %v6131 = vpack.c.bf16 %v6121, %v6120
    %v6132 = vpack.c.bf16 %v6123, %v6122
    %v6133 = vpack.c.bf16 %v6125, %v6124
    %v6135 = vsel %vm3853, %v6126, 0
    %v6138 = vsel %vm3853, %v6127, 0
    %v6141 = vsel %vm3853, %v6128, 0
    %v6144 = vsel %vm3853, %v6129, 0
    %v6147 = vsel %vm3853, %v6130, 0
    %v6150 = vsel %vm3853, %v6131, 0
    %v6153 = vsel %vm3853, %v6132, 0
    %v6156 = vsel %vm3853, %v6133, 0
    %6158 = vmatpush.bf16.msra.mxu0 0
    %6159 = vmatpush.bf16.msra.mxu0 0
    %6160 = vmatpush.bf16.msra.mxu0 0
    %6161 = vmatpush.bf16.msra.mxu0 0
    %6162 = vmatpush.bf16.msra.mxu0 0
    %6163 = vmatpush.bf16.msra.mxu0 %v3880
    %6164 = vmatpush.bf16.msra.mxu0 %v3849
    %6165 = vmatpush.bf16.msra.mxu0 %v3848
    %6166 = vmatmul.bf16.gmra.mxu0 %v6135
    %v6167 = vpop.f32.mrf.mxu0
    %v6168 = vadd.f32 0.0, %v6167
    %v6169 = vpop.f32.mrf.mxu0
    %v6170 = vadd.f32 0.0, %v6169
    %6171 = vmatmul.bf16.gmra.mxu0 %v6138
    %v6172 = vpop.f32.mrf.mxu0
    %v6173 = vadd.f32 0.0, %v6172
    %v6174 = vpop.f32.mrf.mxu0
    %v6175 = vadd.f32 0.0, %v6174
    %6176 = vmatmul.bf16.gmra.mxu0 %v6141
    %v6177 = vpop.f32.mrf.mxu0
    %v6178 = vadd.f32 0.0, %v6177
    %v6179 = vpop.f32.mrf.mxu0
    %v6180 = vadd.f32 0.0, %v6179
    %6181 = vmatmul.bf16.gmra.mxu0 %v6144
    %v6182 = vpop.f32.mrf.mxu0
    %v6183 = vadd.f32 0.0, %v6182
    %v6184 = vpop.f32.mrf.mxu0
    %v6185 = vadd.f32 0.0, %v6184
    %6186 = vmatmul.bf16.gmra.mxu0 %v6147
    %v6187 = vpop.f32.mrf.mxu0
    %v6188 = vadd.f32 0.0, %v6187
    %v6189 = vpop.f32.mrf.mxu0
    %v6190 = vadd.f32 0.0, %v6189
    %6191 = vmatmul.bf16.gmra.mxu0 %v6150
    %v6192 = vpop.f32.mrf.mxu0
    %v6193 = vadd.f32 0.0, %v6192
    %v6194 = vpop.f32.mrf.mxu0
    %v6195 = vadd.f32 0.0, %v6194
    %6196 = vmatmul.bf16.gmra.mxu0 %v6153
    %v6197 = vpop.f32.mrf.mxu0
    %v6198 = vadd.f32 0.0, %v6197
    %v6199 = vpop.f32.mrf.mxu0
    %v6200 = vadd.f32 0.0, %v6199
    %6201 = vmatmul.bf16.gmra.mxu0 %v6156
    %v6202 = vpop.f32.mrf.mxu0
    %v6203 = vadd.f32 0.0, %v6202
    %v6204 = vpop.f32.mrf.mxu0
    %v6205 = vadd.f32 0.0, %v6204
    %6206 = vdwg.mxu0
    %v6207 = vmul.f32 %v6168, 0.35355338
    %v6208 = vmul.f32 %v6170, 0.35355338
    %v6209 = vmul.f32 %v6173, 0.35355338
    %v6210 = vmul.f32 %v6175, 0.35355338
    %v6211 = vmul.f32 %v6178, 0.35355338
    %v6212 = vmul.f32 %v6180, 0.35355338
    %v6213 = vmul.f32 %v6183, 0.35355338
    %v6214 = vmul.f32 %v6185, 0.35355338
    %v6215 = vmul.f32 %v6188, 0.35355338
    %v6216 = vmul.f32 %v6190, 0.35355338
    %v6217 = vmul.f32 %v6193, 0.35355338
    %v6218 = vmul.f32 %v6195, 0.35355338
    %v6219 = vmul.f32 %v6198, 0.35355338
    %v6220 = vmul.f32 %v6200, 0.35355338
    %v6221 = vmul.f32 %v6203, 0.35355338
    %v6222 = vmul.f32 %v6205, 0.35355338
    %v6223 = vsel %vm3947, %v6207, -inf
    %6224 = vmax.xlane.f32.xlu0 %v6223
    %v6225 = vpop.xlane.xlu0 %6224
    %v6226 = vsel %vm3947, %v6208, -inf
    %6227 = vmax.xlane.f32.xlu0 %v6226
    %v6228 = vpop.xlane.xlu0 %6227
    %v6229 = vsel %vm3947, %v6209, -inf
    %6230 = vmax.xlane.f32.xlu0 %v6229
    %v6231 = vpop.xlane.xlu0 %6230
    %v6232 = vsel %vm3947, %v6210, -inf
    %6233 = vmax.xlane.f32.xlu0 %v6232
    %v6234 = vpop.xlane.xlu0 %6233
    %v6235 = vsel %vm3947, %v6211, -inf
    %6236 = vmax.xlane.f32.xlu0 %v6235
    %v6237 = vpop.xlane.xlu0 %6236
    %v6238 = vsel %vm3947, %v6212, -inf
    %6239 = vmax.xlane.f32.xlu0 %v6238
    %v6240 = vpop.xlane.xlu0 %6239
    %v6241 = vsel %vm3947, %v6213, -inf
    %6242 = vmax.xlane.f32.xlu0 %v6241
    %v6243 = vpop.xlane.xlu0 %6242
    %v6244 = vsel %vm3947, %v6214, -inf
    %6245 = vmax.xlane.f32.xlu0 %v6244
    %v6246 = vpop.xlane.xlu0 %6245
    %v6247 = vsel %vm3947, %v6215, -inf
    %6248 = vmax.xlane.f32.xlu0 %v6247
    %v6249 = vpop.xlane.xlu0 %6248
    %v6250 = vsel %vm3947, %v6216, -inf
    %6251 = vmax.xlane.f32.xlu0 %v6250
    %v6252 = vpop.xlane.xlu0 %6251
    %v6253 = vsel %vm3947, %v6217, -inf
    %6254 = vmax.xlane.f32.xlu0 %v6253
    %v6255 = vpop.xlane.xlu0 %6254
    %v6256 = vsel %vm3947, %v6218, -inf
    %6257 = vmax.xlane.f32.xlu0 %v6256
    %v6258 = vpop.xlane.xlu0 %6257
    %v6259 = vsel %vm3947, %v6219, -inf
    %6260 = vmax.xlane.f32.xlu0 %v6259
    %v6261 = vpop.xlane.xlu0 %6260
    %v6262 = vsel %vm3947, %v6220, -inf
    %6263 = vmax.xlane.f32.xlu0 %v6262
    %v6264 = vpop.xlane.xlu0 %6263
    %v6265 = vsel %vm3947, %v6221, -inf
    %6266 = vmax.xlane.f32.xlu0 %v6265
    %v6267 = vpop.xlane.xlu0 %6266
    %v6268 = vsel %vm3947, %v6222, -inf
    %6269 = vmax.xlane.f32.xlu0 %v6268
    %v6270 = vpop.xlane.xlu0 %6269
    %v6271 = vsub.f32 %v6207, %v6225
    %v6272 = vsub.f32 %v6208, %v6228
    %v6273 = vsub.f32 %v6209, %v6231
    %v6274 = vsub.f32 %v6210, %v6234
    %v6275 = vsub.f32 %v6211, %v6237
    %v6276 = vsub.f32 %v6212, %v6240
    %v6277 = vsub.f32 %v6213, %v6243
    %v6278 = vsub.f32 %v6214, %v6246
    %v6279 = vsub.f32 %v6215, %v6249
    %v6280 = vsub.f32 %v6216, %v6252
    %v6281 = vsub.f32 %v6217, %v6255
    %v6282 = vsub.f32 %v6218, %v6258
    %v6283 = vsub.f32 %v6219, %v6261
    %v6284 = vsub.f32 %v6220, %v6264
    %v6285 = vsub.f32 %v6221, %v6267
    %v6286 = vsub.f32 %v6222, %v6270
    %v6287 = vmul.f32 %v6271, 1.442695
    %v6288 = vpow.pop %v6287
    %v6289 = vmul.f32 %v6272, 1.442695
    %v6290 = vpow.pop %v6289
    %v6291 = vmul.f32 %v6273, 1.442695
    %v6292 = vpow.pop %v6291
    %v6293 = vmul.f32 %v6274, 1.442695
    %v6294 = vpow.pop %v6293
    %v6295 = vmul.f32 %v6275, 1.442695
    %v6296 = vpow.pop %v6295
    %v6297 = vmul.f32 %v6276, 1.442695
    %v6298 = vpow.pop %v6297
    %v6299 = vmul.f32 %v6277, 1.442695
    %v6300 = vpow.pop %v6299
    %v6301 = vmul.f32 %v6278, 1.442695
    %v6302 = vpow.pop %v6301
    %v6303 = vmul.f32 %v6279, 1.442695
    %v6304 = vpow.pop %v6303
    %v6305 = vmul.f32 %v6280, 1.442695
    %v6306 = vpow.pop %v6305
    %v6307 = vmul.f32 %v6281, 1.442695
    %v6308 = vpow.pop %v6307
    %v6309 = vmul.f32 %v6282, 1.442695
    %v6310 = vpow.pop %v6309
    %v6311 = vmul.f32 %v6283, 1.442695
    %v6312 = vpow.pop %v6311
    %v6313 = vmul.f32 %v6284, 1.442695
    %v6314 = vpow.pop %v6313
    %v6315 = vmul.f32 %v6285, 1.442695
    %v6316 = vpow.pop %v6315
    %v6317 = vmul.f32 %v6286, 1.442695
    %v6318 = vpow.pop %v6317
    %v6319 = vsel %vm3947, %v6288, 0.0
    %6320 = vadd.xlane.f32.xlu0 %v6319
    %v6321 = vpop.xlane.xlu0 %6320
    %v6322 = vsel %vm3947, %v6290, 0.0
    %6323 = vadd.xlane.f32.xlu0 %v6322
    %v6324 = vpop.xlane.xlu0 %6323
    %v6325 = vsel %vm3947, %v6292, 0.0
    %6326 = vadd.xlane.f32.xlu0 %v6325
    %v6327 = vpop.xlane.xlu0 %6326
    %v6328 = vsel %vm3947, %v6294, 0.0
    %6329 = vadd.xlane.f32.xlu0 %v6328
    %v6330 = vpop.xlane.xlu0 %6329
    %v6331 = vsel %vm3947, %v6296, 0.0
    %6332 = vadd.xlane.f32.xlu0 %v6331
    %v6333 = vpop.xlane.xlu0 %6332
    %v6334 = vsel %vm3947, %v6298, 0.0
    %6335 = vadd.xlane.f32.xlu0 %v6334
    %v6336 = vpop.xlane.xlu0 %6335
    %v6337 = vsel %vm3947, %v6300, 0.0
    %6338 = vadd.xlane.f32.xlu0 %v6337
    %v6339 = vpop.xlane.xlu0 %6338
    %v6340 = vsel %vm3947, %v6302, 0.0
    %6341 = vadd.xlane.f32.xlu0 %v6340
    %v6342 = vpop.xlane.xlu0 %6341
    %v6343 = vsel %vm3947, %v6304, 0.0
    %6344 = vadd.xlane.f32.xlu0 %v6343
    %v6345 = vpop.xlane.xlu0 %6344
    %v6346 = vsel %vm3947, %v6306, 0.0
    %6347 = vadd.xlane.f32.xlu0 %v6346
    %v6348 = vpop.xlane.xlu0 %6347
    %v6349 = vsel %vm3947, %v6308, 0.0
    %6350 = vadd.xlane.f32.xlu0 %v6349
    %v6351 = vpop.xlane.xlu0 %6350
    %v6352 = vsel %vm3947, %v6310, 0.0
    %6353 = vadd.xlane.f32.xlu0 %v6352
    %v6354 = vpop.xlane.xlu0 %6353
    %v6355 = vsel %vm3947, %v6312, 0.0
    %6356 = vadd.xlane.f32.xlu0 %v6355
    %v6357 = vpop.xlane.xlu0 %6356
    %v6358 = vsel %vm3947, %v6314, 0.0
    %6359 = vadd.xlane.f32.xlu0 %v6358
    %v6360 = vpop.xlane.xlu0 %6359
    %v6361 = vsel %vm3947, %v6316, 0.0
    %6362 = vadd.xlane.f32.xlu0 %v6361
    %v6363 = vpop.xlane.xlu0 %6362
    %v6364 = vsel %vm3947, %v6318, 0.0
    %6365 = vadd.xlane.f32.xlu0 %v6364
    %v6366 = vpop.xlane.xlu0 %6365
    %v6367 = vrcp.pop %v6321
    %v6368 = vrcp.pop %v6324
    %v6369 = vrcp.pop %v6327
    %v6370 = vrcp.pop %v6330
    %v6371 = vrcp.pop %v6333
    %v6372 = vrcp.pop %v6336
    %v6373 = vrcp.pop %v6339
    %v6374 = vrcp.pop %v6342
    %v6375 = vrcp.pop %v6345
    %v6376 = vrcp.pop %v6348
    %v6377 = vrcp.pop %v6351
    %v6378 = vrcp.pop %v6354
    %v6379 = vrcp.pop %v6357
    %v6380 = vrcp.pop %v6360
    %v6381 = vrcp.pop %v6363
    %v6382 = vrcp.pop %v6366
    %v6383 = vmul.f32 %v6288, %v6367
    %v6384 = vmul.f32 %v6290, %v6368
    %v6385 = vmul.f32 %v6292, %v6369
    %v6386 = vmul.f32 %v6294, %v6370
    %v6387 = vmul.f32 %v6296, %v6371
    %v6388 = vmul.f32 %v6298, %v6372
    %v6389 = vmul.f32 %v6300, %v6373
    %v6390 = vmul.f32 %v6302, %v6374
    %v6391 = vmul.f32 %v6304, %v6375
    %v6392 = vmul.f32 %v6306, %v6376
    %v6393 = vmul.f32 %v6308, %v6377
    %v6394 = vmul.f32 %v6310, %v6378
    %v6395 = vmul.f32 %v6312, %v6379
    %v6396 = vmul.f32 %v6314, %v6380
    %v6397 = vmul.f32 %v6316, %v6381
    %v6398 = vmul.f32 %v6318, %v6382
    %6400 = vset.pattern.permute.xlu0 0
    %6401 = vperm.xlu0 %6400, %v6383
    %v6402 = vpop.permute.xlu0 %6401
    %6405 = vset.pattern.permute.xlu0 0
    %6406 = vperm.xlu0 %6405, %v6384
    %v6407 = vpop.permute.xlu0 %6406
    %6410 = vset.pattern.permute.xlu0 0
    %6411 = vperm.xlu0 %6410, %v6385
    %v6412 = vpop.permute.xlu0 %6411
    %6415 = vset.pattern.permute.xlu0 0
    %6416 = vperm.xlu0 %6415, %v6386
    %v6417 = vpop.permute.xlu0 %6416
    %6420 = vset.pattern.permute.xlu0 0
    %6421 = vperm.xlu0 %6420, %v6387
    %v6422 = vpop.permute.xlu0 %6421
    %6425 = vset.pattern.permute.xlu0 0
    %6426 = vperm.xlu0 %6425, %v6388
    %v6427 = vpop.permute.xlu0 %6426
    %6430 = vset.pattern.permute.xlu0 0
    %6431 = vperm.xlu0 %6430, %v6389
    %v6432 = vpop.permute.xlu0 %6431
    %6435 = vset.pattern.permute.xlu0 0
    %6436 = vperm.xlu0 %6435, %v6390
    %v6437 = vpop.permute.xlu0 %6436
    %6440 = vset.pattern.permute.xlu0 0
    %6441 = vperm.xlu0 %6440, %v6391
    %v6442 = vpop.permute.xlu0 %6441
    %6445 = vset.pattern.permute.xlu0 0
    %6446 = vperm.xlu0 %6445, %v6392
    %v6447 = vpop.permute.xlu0 %6446
    %6450 = vset.pattern.permute.xlu0 0
    %6451 = vperm.xlu0 %6450, %v6393
    %v6452 = vpop.permute.xlu0 %6451
    %6455 = vset.pattern.permute.xlu0 0
    %6456 = vperm.xlu0 %6455, %v6394
    %v6457 = vpop.permute.xlu0 %6456
    %6460 = vset.pattern.permute.xlu0 0
    %6461 = vperm.xlu0 %6460, %v6395
    %v6462 = vpop.permute.xlu0 %6461
    %6465 = vset.pattern.permute.xlu0 0
    %6466 = vperm.xlu0 %6465, %v6396
    %v6467 = vpop.permute.xlu0 %6466
    %6470 = vset.pattern.permute.xlu0 0
    %6471 = vperm.xlu0 %6470, %v6397
    %v6472 = vpop.permute.xlu0 %6471
    %6475 = vset.pattern.permute.xlu0 0
    %6476 = vperm.xlu0 %6475, %v6398
    %v6477 = vpop.permute.xlu0 %6476
    %v6479 = vmul.f32 %v6402, %v3398
    %v6480 = vmul.f32 %v6407, %v3400
    %v6481 = vmul.f32 %v6412, %v3403
    %v6482 = vmul.f32 %v6417, %v3405
    %v6483 = vmul.f32 %v6422, %v3408
    %v6484 = vmul.f32 %v6427, %v3410
    %v6485 = vmul.f32 %v6432, %v3413
    %v6486 = vmul.f32 %v6437, %v3415
    %v6487 = vmul.f32 %v6442, %v3418
    %v6488 = vmul.f32 %v6447, %v3420
    %v6489 = vmul.f32 %v6452, %v3423
    %v6490 = vmul.f32 %v6457, %v3425
    %v6491 = vmul.f32 %v6462, %v3428
    %v6492 = vmul.f32 %v6467, %v3430
    %v6493 = vmul.f32 %v6472, %v3433
    %v6494 = vmul.f32 %v6477, %v3435
    %6495 = vset.pattern.permute.xlu0 1
    %6496 = vperm.xlu0 %6495, %v6383
    %v6497 = vpop.permute.xlu0 %6496
    %6499 = vset.pattern.permute.xlu0 1
    %6500 = vperm.xlu0 %6499, %v6384
    %v6501 = vpop.permute.xlu0 %6500
    %6503 = vset.pattern.permute.xlu0 1
    %6504 = vperm.xlu0 %6503, %v6385
    %v6505 = vpop.permute.xlu0 %6504
    %6507 = vset.pattern.permute.xlu0 1
    %6508 = vperm.xlu0 %6507, %v6386
    %v6509 = vpop.permute.xlu0 %6508
    %6511 = vset.pattern.permute.xlu0 1
    %6512 = vperm.xlu0 %6511, %v6387
    %v6513 = vpop.permute.xlu0 %6512
    %6515 = vset.pattern.permute.xlu0 1
    %6516 = vperm.xlu0 %6515, %v6388
    %v6517 = vpop.permute.xlu0 %6516
    %6519 = vset.pattern.permute.xlu0 1
    %6520 = vperm.xlu0 %6519, %v6389
    %v6521 = vpop.permute.xlu0 %6520
    %6523 = vset.pattern.permute.xlu0 1
    %6524 = vperm.xlu0 %6523, %v6390
    %v6525 = vpop.permute.xlu0 %6524
    %6527 = vset.pattern.permute.xlu0 1
    %6528 = vperm.xlu0 %6527, %v6391
    %v6529 = vpop.permute.xlu0 %6528
    %6531 = vset.pattern.permute.xlu0 1
    %6532 = vperm.xlu0 %6531, %v6392
    %v6533 = vpop.permute.xlu0 %6532
    %6535 = vset.pattern.permute.xlu0 1
    %6536 = vperm.xlu0 %6535, %v6393
    %v6537 = vpop.permute.xlu0 %6536
    %6539 = vset.pattern.permute.xlu0 1
    %6540 = vperm.xlu0 %6539, %v6394
    %v6541 = vpop.permute.xlu0 %6540
    %6543 = vset.pattern.permute.xlu0 1
    %6544 = vperm.xlu0 %6543, %v6395
    %v6545 = vpop.permute.xlu0 %6544
    %6547 = vset.pattern.permute.xlu0 1
    %6548 = vperm.xlu0 %6547, %v6396
    %v6549 = vpop.permute.xlu0 %6548
    %6551 = vset.pattern.permute.xlu0 1
    %6552 = vperm.xlu0 %6551, %v6397
    %v6553 = vpop.permute.xlu0 %6552
    %6555 = vset.pattern.permute.xlu0 1
    %6556 = vperm.xlu0 %6555, %v6398
    %v6557 = vpop.permute.xlu0 %6556
    %v6559 = vmul.f32 %v6497, %v3398
    %v6560 = vmul.f32 %v6501, %v3400
    %v6561 = vmul.f32 %v6505, %v3403
    %v6562 = vmul.f32 %v6509, %v3405
    %v6563 = vmul.f32 %v6513, %v3408
    %v6564 = vmul.f32 %v6517, %v3410
    %v6565 = vmul.f32 %v6521, %v3413
    %v6566 = vmul.f32 %v6525, %v3415
    %v6567 = vmul.f32 %v6529, %v3418
    %v6568 = vmul.f32 %v6533, %v3420
    %v6569 = vmul.f32 %v6537, %v3423
    %v6570 = vmul.f32 %v6541, %v3425
    %v6571 = vmul.f32 %v6545, %v3428
    %v6572 = vmul.f32 %v6549, %v3430
    %v6573 = vmul.f32 %v6553, %v3433
    %v6574 = vmul.f32 %v6557, %v3435
    %6591 = vrot.lane.b32.xlu0 %v6559, 96
    %v6592 = vpop.permute.xlu0 %6591
    %6593 = vrot.lane.b32.xlu0 %v6560, 96
    %v6594 = vpop.permute.xlu0 %6593
    %6595 = vrot.lane.b32.xlu0 %v6561, 96
    %v6596 = vpop.permute.xlu0 %6595
    %6597 = vrot.lane.b32.xlu0 %v6562, 96
    %v6598 = vpop.permute.xlu0 %6597
    %6599 = vrot.lane.b32.xlu0 %v6563, 96
    %v6600 = vpop.permute.xlu0 %6599
    %6601 = vrot.lane.b32.xlu0 %v6564, 96
    %v6602 = vpop.permute.xlu0 %6601
    %6603 = vrot.lane.b32.xlu0 %v6565, 96
    %v6604 = vpop.permute.xlu0 %6603
    %6605 = vrot.lane.b32.xlu0 %v6566, 96
    %v6606 = vpop.permute.xlu0 %6605
    %6607 = vrot.lane.b32.xlu0 %v6567, 96
    %v6608 = vpop.permute.xlu0 %6607
    %6609 = vrot.lane.b32.xlu0 %v6568, 96
    %v6610 = vpop.permute.xlu0 %6609
    %6611 = vrot.lane.b32.xlu0 %v6569, 96
    %v6612 = vpop.permute.xlu0 %6611
    %6613 = vrot.lane.b32.xlu0 %v6570, 96
    %v6614 = vpop.permute.xlu0 %6613
    %6615 = vrot.lane.b32.xlu0 %v6571, 96
    %v6616 = vpop.permute.xlu0 %6615
    %6617 = vrot.lane.b32.xlu0 %v6572, 96
    %v6618 = vpop.permute.xlu0 %6617
    %6619 = vrot.lane.b32.xlu0 %v6573, 96
    %v6620 = vpop.permute.xlu0 %6619
    %6621 = vrot.lane.b32.xlu0 %v6574, 96
    %v6622 = vpop.permute.xlu0 %6621
    %v6639 = vadd.f32 %v6479, %v6592
    %v6640 = vadd.f32 %v6480, %v6594
    %v6641 = vadd.f32 %v6481, %v6596
    %v6642 = vadd.f32 %v6482, %v6598
    %v6643 = vadd.f32 %v6483, %v6600
    %v6644 = vadd.f32 %v6484, %v6602
    %v6645 = vadd.f32 %v6485, %v6604
    %v6646 = vadd.f32 %v6486, %v6606
    %v6647 = vadd.f32 %v6487, %v6608
    %v6648 = vadd.f32 %v6488, %v6610
    %v6649 = vadd.f32 %v6489, %v6612
    %v6650 = vadd.f32 %v6490, %v6614
    %v6651 = vadd.f32 %v6491, %v6616
    %v6652 = vadd.f32 %v6492, %v6618
    %v6653 = vadd.f32 %v6493, %v6620
    %v6654 = vadd.f32 %v6494, %v6622
    %6655 = vset.pattern.permute.xlu0 2
    %6656 = vperm.xlu0 %6655, %v6383
    %v6657 = vpop.permute.xlu0 %6656
    %6659 = vset.pattern.permute.xlu0 2
    %6660 = vperm.xlu0 %6659, %v6384
    %v6661 = vpop.permute.xlu0 %6660
    %6663 = vset.pattern.permute.xlu0 2
    %6664 = vperm.xlu0 %6663, %v6385
    %v6665 = vpop.permute.xlu0 %6664
    %6667 = vset.pattern.permute.xlu0 2
    %6668 = vperm.xlu0 %6667, %v6386
    %v6669 = vpop.permute.xlu0 %6668
    %6671 = vset.pattern.permute.xlu0 2
    %6672 = vperm.xlu0 %6671, %v6387
    %v6673 = vpop.permute.xlu0 %6672
    %6675 = vset.pattern.permute.xlu0 2
    %6676 = vperm.xlu0 %6675, %v6388
    %v6677 = vpop.permute.xlu0 %6676
    %6679 = vset.pattern.permute.xlu0 2
    %6680 = vperm.xlu0 %6679, %v6389
    %v6681 = vpop.permute.xlu0 %6680
    %6683 = vset.pattern.permute.xlu0 2
    %6684 = vperm.xlu0 %6683, %v6390
    %v6685 = vpop.permute.xlu0 %6684
    %6687 = vset.pattern.permute.xlu0 2
    %6688 = vperm.xlu0 %6687, %v6391
    %v6689 = vpop.permute.xlu0 %6688
    %6691 = vset.pattern.permute.xlu0 2
    %6692 = vperm.xlu0 %6691, %v6392
    %v6693 = vpop.permute.xlu0 %6692
    %6695 = vset.pattern.permute.xlu0 2
    %6696 = vperm.xlu0 %6695, %v6393
    %v6697 = vpop.permute.xlu0 %6696
    %6699 = vset.pattern.permute.xlu0 2
    %6700 = vperm.xlu0 %6699, %v6394
    %v6701 = vpop.permute.xlu0 %6700
    %6703 = vset.pattern.permute.xlu0 2
    %6704 = vperm.xlu0 %6703, %v6395
    %v6705 = vpop.permute.xlu0 %6704
    %6707 = vset.pattern.permute.xlu0 2
    %6708 = vperm.xlu0 %6707, %v6396
    %v6709 = vpop.permute.xlu0 %6708
    %6711 = vset.pattern.permute.xlu0 2
    %6712 = vperm.xlu0 %6711, %v6397
    %v6713 = vpop.permute.xlu0 %6712
    %6715 = vset.pattern.permute.xlu0 2
    %6716 = vperm.xlu0 %6715, %v6398
    %v6717 = vpop.permute.xlu0 %6716
    %v6719 = vmul.f32 %v6657, %v3398
    %v6720 = vmul.f32 %v6661, %v3400
    %v6721 = vmul.f32 %v6665, %v3403
    %v6722 = vmul.f32 %v6669, %v3405
    %v6723 = vmul.f32 %v6673, %v3408
    %v6724 = vmul.f32 %v6677, %v3410
    %v6725 = vmul.f32 %v6681, %v3413
    %v6726 = vmul.f32 %v6685, %v3415
    %v6727 = vmul.f32 %v6689, %v3418
    %v6728 = vmul.f32 %v6693, %v3420
    %v6729 = vmul.f32 %v6697, %v3423
    %v6730 = vmul.f32 %v6701, %v3425
    %v6731 = vmul.f32 %v6705, %v3428
    %v6732 = vmul.f32 %v6709, %v3430
    %v6733 = vmul.f32 %v6713, %v3433
    %v6734 = vmul.f32 %v6717, %v3435
    %6751 = vrot.lane.b32.xlu0 %v6719, 64
    %v6752 = vpop.permute.xlu0 %6751
    %6753 = vrot.lane.b32.xlu0 %v6720, 64
    %v6754 = vpop.permute.xlu0 %6753
    %6755 = vrot.lane.b32.xlu0 %v6721, 64
    %v6756 = vpop.permute.xlu0 %6755
    %6757 = vrot.lane.b32.xlu0 %v6722, 64
    %v6758 = vpop.permute.xlu0 %6757
    %6759 = vrot.lane.b32.xlu0 %v6723, 64
    %v6760 = vpop.permute.xlu0 %6759
    %6761 = vrot.lane.b32.xlu0 %v6724, 64
    %v6762 = vpop.permute.xlu0 %6761
    %6763 = vrot.lane.b32.xlu0 %v6725, 64
    %v6764 = vpop.permute.xlu0 %6763
    %6765 = vrot.lane.b32.xlu0 %v6726, 64
    %v6766 = vpop.permute.xlu0 %6765
    %6767 = vrot.lane.b32.xlu0 %v6727, 64
    %v6768 = vpop.permute.xlu0 %6767
    %6769 = vrot.lane.b32.xlu0 %v6728, 64
    %v6770 = vpop.permute.xlu0 %6769
    %6771 = vrot.lane.b32.xlu0 %v6729, 64
    %v6772 = vpop.permute.xlu0 %6771
    %6773 = vrot.lane.b32.xlu0 %v6730, 64
    %v6774 = vpop.permute.xlu0 %6773
    %6775 = vrot.lane.b32.xlu0 %v6731, 64
    %v6776 = vpop.permute.xlu0 %6775
    %6777 = vrot.lane.b32.xlu0 %v6732, 64
    %v6778 = vpop.permute.xlu0 %6777
    %6779 = vrot.lane.b32.xlu0 %v6733, 64
    %v6780 = vpop.permute.xlu0 %6779
    %6781 = vrot.lane.b32.xlu0 %v6734, 64
    %v6782 = vpop.permute.xlu0 %6781
    %v6799 = vadd.f32 %v6639, %v6752
    %v6800 = vadd.f32 %v6640, %v6754
    %v6801 = vadd.f32 %v6641, %v6756
    %v6802 = vadd.f32 %v6642, %v6758
    %v6803 = vadd.f32 %v6643, %v6760
    %v6804 = vadd.f32 %v6644, %v6762
    %v6805 = vadd.f32 %v6645, %v6764
    %v6806 = vadd.f32 %v6646, %v6766
    %v6807 = vadd.f32 %v6647, %v6768
    %v6808 = vadd.f32 %v6648, %v6770
    %v6809 = vadd.f32 %v6649, %v6772
    %v6810 = vadd.f32 %v6650, %v6774
    %v6811 = vadd.f32 %v6651, %v6776
    %v6812 = vadd.f32 %v6652, %v6778
    %v6813 = vadd.f32 %v6653, %v6780
    %v6814 = vadd.f32 %v6654, %v6782
    %6815 = vset.pattern.permute.xlu0 3
    %6816 = vperm.xlu0 %6815, %v6383
    %v6817 = vpop.permute.xlu0 %6816
    %6819 = vset.pattern.permute.xlu0 3
    %6820 = vperm.xlu0 %6819, %v6384
    %v6821 = vpop.permute.xlu0 %6820
    %6823 = vset.pattern.permute.xlu0 3
    %6824 = vperm.xlu0 %6823, %v6385
    %v6825 = vpop.permute.xlu0 %6824
    %6827 = vset.pattern.permute.xlu0 3
    %6828 = vperm.xlu0 %6827, %v6386
    %v6829 = vpop.permute.xlu0 %6828
    %6831 = vset.pattern.permute.xlu0 3
    %6832 = vperm.xlu0 %6831, %v6387
    %v6833 = vpop.permute.xlu0 %6832
    %6835 = vset.pattern.permute.xlu0 3
    %6836 = vperm.xlu0 %6835, %v6388
    %v6837 = vpop.permute.xlu0 %6836
    %6839 = vset.pattern.permute.xlu0 3
    %6840 = vperm.xlu0 %6839, %v6389
    %v6841 = vpop.permute.xlu0 %6840
    %6843 = vset.pattern.permute.xlu0 3
    %6844 = vperm.xlu0 %6843, %v6390
    %v6845 = vpop.permute.xlu0 %6844
    %6847 = vset.pattern.permute.xlu0 3
    %6848 = vperm.xlu0 %6847, %v6391
    %v6849 = vpop.permute.xlu0 %6848
    %6851 = vset.pattern.permute.xlu0 3
    %6852 = vperm.xlu0 %6851, %v6392
    %v6853 = vpop.permute.xlu0 %6852
    %6855 = vset.pattern.permute.xlu0 3
    %6856 = vperm.xlu0 %6855, %v6393
    %v6857 = vpop.permute.xlu0 %6856
    %6859 = vset.pattern.permute.xlu0 3
    %6860 = vperm.xlu0 %6859, %v6394
    %v6861 = vpop.permute.xlu0 %6860
    %6863 = vset.pattern.permute.xlu0 3
    %6864 = vperm.xlu0 %6863, %v6395
    %v6865 = vpop.permute.xlu0 %6864
    %6867 = vset.pattern.permute.xlu0 3
    %6868 = vperm.xlu0 %6867, %v6396
    %v6869 = vpop.permute.xlu0 %6868
    %6871 = vset.pattern.permute.xlu0 3
    %6872 = vperm.xlu0 %6871, %v6397
    %v6873 = vpop.permute.xlu0 %6872
    %6875 = vset.pattern.permute.xlu0 3
    %6876 = vperm.xlu0 %6875, %v6398
    %v6877 = vpop.permute.xlu0 %6876
    %v6879 = vmul.f32 %v6817, %v3398
    %v6880 = vmul.f32 %v6821, %v3400
    %v6881 = vmul.f32 %v6825, %v3403
    %v6882 = vmul.f32 %v6829, %v3405
    %v6883 = vmul.f32 %v6833, %v3408
    %v6884 = vmul.f32 %v6837, %v3410
    %v6885 = vmul.f32 %v6841, %v3413
    %v6886 = vmul.f32 %v6845, %v3415
    %v6887 = vmul.f32 %v6849, %v3418
    %v6888 = vmul.f32 %v6853, %v3420
    %v6889 = vmul.f32 %v6857, %v3423
    %v6890 = vmul.f32 %v6861, %v3425
    %v6891 = vmul.f32 %v6865, %v3428
    %v6892 = vmul.f32 %v6869, %v3430
    %v6893 = vmul.f32 %v6873, %v3433
    %v6894 = vmul.f32 %v6877, %v3435
    %6911 = vrot.lane.b32.xlu0 %v6879, 32
    %v6912 = vpop.permute.xlu0 %6911
    %6913 = vrot.lane.b32.xlu0 %v6880, 32
    %v6914 = vpop.permute.xlu0 %6913
    %6915 = vrot.lane.b32.xlu0 %v6881, 32
    %v6916 = vpop.permute.xlu0 %6915
    %6917 = vrot.lane.b32.xlu0 %v6882, 32
    %v6918 = vpop.permute.xlu0 %6917
    %6919 = vrot.lane.b32.xlu0 %v6883, 32
    %v6920 = vpop.permute.xlu0 %6919
    %6921 = vrot.lane.b32.xlu0 %v6884, 32
    %v6922 = vpop.permute.xlu0 %6921
    %6923 = vrot.lane.b32.xlu0 %v6885, 32
    %v6924 = vpop.permute.xlu0 %6923
    %6925 = vrot.lane.b32.xlu0 %v6886, 32
    %v6926 = vpop.permute.xlu0 %6925
    %6927 = vrot.lane.b32.xlu0 %v6887, 32
    %v6928 = vpop.permute.xlu0 %6927
    %6929 = vrot.lane.b32.xlu0 %v6888, 32
    %v6930 = vpop.permute.xlu0 %6929
    %6931 = vrot.lane.b32.xlu0 %v6889, 32
    %v6932 = vpop.permute.xlu0 %6931
    %6933 = vrot.lane.b32.xlu0 %v6890, 32
    %v6934 = vpop.permute.xlu0 %6933
    %6935 = vrot.lane.b32.xlu0 %v6891, 32
    %v6936 = vpop.permute.xlu0 %6935
    %6937 = vrot.lane.b32.xlu0 %v6892, 32
    %v6938 = vpop.permute.xlu0 %6937
    %6939 = vrot.lane.b32.xlu0 %v6893, 32
    %v6940 = vpop.permute.xlu0 %6939
    %6941 = vrot.lane.b32.xlu0 %v6894, 32
    %v6942 = vpop.permute.xlu0 %6941
    %v6959 = vadd.f32 %v6799, %v6912
    %v6960 = vadd.f32 %v6800, %v6914
    %v6961 = vadd.f32 %v6801, %v6916
    %v6962 = vadd.f32 %v6802, %v6918
    %v6963 = vadd.f32 %v6803, %v6920
    %v6964 = vadd.f32 %v6804, %v6922
    %v6965 = vadd.f32 %v6805, %v6924
    %v6966 = vadd.f32 %v6806, %v6926
    %v6967 = vadd.f32 %v6807, %v6928
    %v6968 = vadd.f32 %v6808, %v6930
    %v6969 = vadd.f32 %v6809, %v6932
    %v6970 = vadd.f32 %v6810, %v6934
    %v6971 = vadd.f32 %v6811, %v6936
    %v6972 = vadd.f32 %v6812, %v6938
    %v6973 = vadd.f32 %v6813, %v6940
    %v6974 = vadd.f32 %v6814, %v6942
    %6975 = vset.pattern.permute.xlu0 4
    %6976 = vperm.xlu0 %6975, %v6383
    %v6977 = vpop.permute.xlu0 %6976
    %6979 = vset.pattern.permute.xlu0 4
    %6980 = vperm.xlu0 %6979, %v6384
    %v6981 = vpop.permute.xlu0 %6980
    %6983 = vset.pattern.permute.xlu0 4
    %6984 = vperm.xlu0 %6983, %v6385
    %v6985 = vpop.permute.xlu0 %6984
    %6987 = vset.pattern.permute.xlu0 4
    %6988 = vperm.xlu0 %6987, %v6386
    %v6989 = vpop.permute.xlu0 %6988
    %6991 = vset.pattern.permute.xlu0 4
    %6992 = vperm.xlu0 %6991, %v6387
    %v6993 = vpop.permute.xlu0 %6992
    %6995 = vset.pattern.permute.xlu0 4
    %6996 = vperm.xlu0 %6995, %v6388
    %v6997 = vpop.permute.xlu0 %6996
    %6999 = vset.pattern.permute.xlu0 4
    %7000 = vperm.xlu0 %6999, %v6389
    %v7001 = vpop.permute.xlu0 %7000
    %7003 = vset.pattern.permute.xlu0 4
    %7004 = vperm.xlu0 %7003, %v6390
    %v7005 = vpop.permute.xlu0 %7004
    %7007 = vset.pattern.permute.xlu0 4
    %7008 = vperm.xlu0 %7007, %v6391
    %v7009 = vpop.permute.xlu0 %7008
    %7011 = vset.pattern.permute.xlu0 4
    %7012 = vperm.xlu0 %7011, %v6392
    %v7013 = vpop.permute.xlu0 %7012
    %7015 = vset.pattern.permute.xlu0 4
    %7016 = vperm.xlu0 %7015, %v6393
    %v7017 = vpop.permute.xlu0 %7016
    %7019 = vset.pattern.permute.xlu0 4
    %7020 = vperm.xlu0 %7019, %v6394
    %v7021 = vpop.permute.xlu0 %7020
    %7023 = vset.pattern.permute.xlu0 4
    %7024 = vperm.xlu0 %7023, %v6395
    %v7025 = vpop.permute.xlu0 %7024
    %7027 = vset.pattern.permute.xlu0 4
    %7028 = vperm.xlu0 %7027, %v6396
    %v7029 = vpop.permute.xlu0 %7028
    %7031 = vset.pattern.permute.xlu0 4
    %7032 = vperm.xlu0 %7031, %v6397
    %v7033 = vpop.permute.xlu0 %7032
    %7035 = vset.pattern.permute.xlu0 4
    %7036 = vperm.xlu0 %7035, %v6398
    %v7037 = vpop.permute.xlu0 %7036
    %v7039 = vmul.f32 %v6977, %v3496
    %v7040 = vmul.f32 %v6981, %v3498
    %v7041 = vmul.f32 %v6985, %v3501
    %v7042 = vmul.f32 %v6989, %v3503
    %v7043 = vmul.f32 %v6993, %v3506
    %v7044 = vmul.f32 %v6997, %v3508
    %v7045 = vmul.f32 %v7001, %v3511
    %v7046 = vmul.f32 %v7005, %v3513
    %v7047 = vmul.f32 %v7009, %v3516
    %v7048 = vmul.f32 %v7013, %v3518
    %v7049 = vmul.f32 %v7017, %v3521
    %v7050 = vmul.f32 %v7021, %v3523
    %v7051 = vmul.f32 %v7025, %v3526
    %v7052 = vmul.f32 %v7029, %v3528
    %v7053 = vmul.f32 %v7033, %v3531
    %v7054 = vmul.f32 %v7037, %v3533
    %v7055 = vadd.f32 %v6959, %v7039
    %v7056 = vadd.f32 %v6960, %v7040
    %v7057 = vadd.f32 %v6961, %v7041
    %v7058 = vadd.f32 %v6962, %v7042
    %v7059 = vadd.f32 %v6963, %v7043
    %v7060 = vadd.f32 %v6964, %v7044
    %v7061 = vadd.f32 %v6965, %v7045
    %v7062 = vadd.f32 %v6966, %v7046
    %v7063 = vadd.f32 %v6967, %v7047
    %v7064 = vadd.f32 %v6968, %v7048
    %v7065 = vadd.f32 %v6969, %v7049
    %v7066 = vadd.f32 %v6970, %v7050
    %v7067 = vadd.f32 %v6971, %v7051
    %v7068 = vadd.f32 %v6972, %v7052
    %v7069 = vadd.f32 %v6973, %v7053
    %v7070 = vadd.f32 %v6974, %v7054
    %v7071 = vmul.f32 %v4796, %v7055
    %v7072 = vmul.f32 %v4796, %v7056
    %v7073 = vmul.f32 %v4796, %v7057
    %v7074 = vmul.f32 %v4796, %v7058
    %v7075 = vmul.f32 %v4796, %v7059
    %v7076 = vmul.f32 %v4796, %v7060
    %v7077 = vmul.f32 %v4796, %v7061
    %v7078 = vmul.f32 %v4796, %v7062
    %v7079 = vmul.f32 %v4796, %v7063
    %v7080 = vmul.f32 %v4796, %v7064
    %v7081 = vmul.f32 %v4796, %v7065
    %v7082 = vmul.f32 %v4796, %v7066
    %v7083 = vmul.f32 %v4796, %v7067
    %v7084 = vmul.f32 %v4796, %v7068
    %v7085 = vmul.f32 %v4796, %v7069
    %v7086 = vmul.f32 %v4796, %v7070
    %7087 = vrot.lane.b32.xlu0 %v2792, 64
    %v7088 = vpop.permute.xlu0 %7087
    %7089 = vrot.lane.b32.xlu0 %v2793, 64
    %v7090 = vpop.permute.xlu0 %7089
    %7091 = vrot.lane.b32.xlu0 %v2794, 64
    %v7092 = vpop.permute.xlu0 %7091
    %7093 = vrot.lane.b32.xlu0 %v2795, 64
    %v7094 = vpop.permute.xlu0 %7093
    %7095 = vrot.lane.b32.xlu0 %v2796, 64
    %v7096 = vpop.permute.xlu0 %7095
    %7097 = vrot.lane.b32.xlu0 %v2797, 64
    %v7098 = vpop.permute.xlu0 %7097
    %7099 = vrot.lane.b32.xlu0 %v2798, 64
    %v7100 = vpop.permute.xlu0 %7099
    %7101 = vrot.lane.b32.xlu0 %v2799, 64
    %v7102 = vpop.permute.xlu0 %7101
    %7103 = vrot.lane.b32.xlu0 %v2800, 64
    %v7104 = vpop.permute.xlu0 %7103
    %7105 = vrot.lane.b32.xlu0 %v2801, 64
    %v7106 = vpop.permute.xlu0 %7105
    %7107 = vrot.lane.b32.xlu0 %v2802, 64
    %v7108 = vpop.permute.xlu0 %7107
    %7109 = vrot.lane.b32.xlu0 %v2803, 64
    %v7110 = vpop.permute.xlu0 %7109
    %7111 = vrot.lane.b32.xlu0 %v2804, 64
    %v7112 = vpop.permute.xlu0 %7111
    %7113 = vrot.lane.b32.xlu0 %v2805, 64
    %v7114 = vpop.permute.xlu0 %7113
    %7115 = vrot.lane.b32.xlu0 %v2806, 64
    %v7116 = vpop.permute.xlu0 %7115
    %7117 = vrot.lane.b32.xlu0 %v2807, 64
    %v7118 = vpop.permute.xlu0 %7117
    %v7135 = vadd.f32 %v7071, %v7088
    %v7136 = vadd.f32 %v7072, %v7090
    %v7137 = vadd.f32 %v7073, %v7092
    %v7138 = vadd.f32 %v7074, %v7094
    %v7139 = vadd.f32 %v7075, %v7096
    %v7140 = vadd.f32 %v7076, %v7098
    %v7141 = vadd.f32 %v7077, %v7100
    %v7142 = vadd.f32 %v7078, %v7102
    %v7143 = vadd.f32 %v7079, %v7104
    %v7144 = vadd.f32 %v7080, %v7106
    %v7145 = vadd.f32 %v7081, %v7108
    %v7146 = vadd.f32 %v7082, %v7110
    %v7147 = vadd.f32 %v7083, %v7112
    %v7148 = vadd.f32 %v7084, %v7114
    %v7149 = vadd.f32 %v7085, %v7116
    %v7150 = vadd.f32 %v7086, %v7118
    %7151 = vrot.lane.b32.xlu0 %v2992, 104
    %v7152 = vpop.permute.xlu0 %7151
    %7153 = vrot.lane.b32.xlu0 %v2994, 104
    %v7154 = vpop.permute.xlu0 %7153
    %7155 = vrot.lane.b32.xlu0 %v2997, 104
    %v7156 = vpop.permute.xlu0 %7155
    %7157 = vrot.lane.b32.xlu0 %v2999, 104
    %v7158 = vpop.permute.xlu0 %7157
    %7159 = vrot.lane.b32.xlu0 %v3002, 104
    %v7160 = vpop.permute.xlu0 %7159
    %7161 = vrot.lane.b32.xlu0 %v3004, 104
    %v7162 = vpop.permute.xlu0 %7161
    %7163 = vrot.lane.b32.xlu0 %v3007, 104
    %v7164 = vpop.permute.xlu0 %7163
    %7165 = vrot.lane.b32.xlu0 %v3009, 104
    %v7166 = vpop.permute.xlu0 %7165
    %7167 = vrot.lane.b32.xlu0 %v3012, 104
    %v7168 = vpop.permute.xlu0 %7167
    %7169 = vrot.lane.b32.xlu0 %v3014, 104
    %v7170 = vpop.permute.xlu0 %7169
    %7171 = vrot.lane.b32.xlu0 %v3017, 104
    %v7172 = vpop.permute.xlu0 %7171
    %7173 = vrot.lane.b32.xlu0 %v3019, 104
    %v7174 = vpop.permute.xlu0 %7173
    %7175 = vrot.lane.b32.xlu0 %v3022, 104
    %v7176 = vpop.permute.xlu0 %7175
    %7177 = vrot.lane.b32.xlu0 %v3024, 104
    %v7178 = vpop.permute.xlu0 %7177
    %7179 = vrot.lane.b32.xlu0 %v3027, 104
    %v7180 = vpop.permute.xlu0 %7179
    %7181 = vrot.lane.b32.xlu0 %v3029, 104
    %v7182 = vpop.permute.xlu0 %7181
    %v7199 = vsel %vm3748, %v7152, %v5999
    %v7200 = vsel %vm3748, %v7154, %v6001
    %v7201 = vsel %vm3748, %v7156, %v6003
    %v7202 = vsel %vm3748, %v7158, %v6005
    %v7203 = vsel %vm3748, %v7160, %v6007
    %v7204 = vsel %vm3748, %v7162, %v6009
    %v7205 = vsel %vm3748, %v7164, %v6011
    %v7206 = vsel %vm3748, %v7166, %v6013
    %v7207 = vsel %vm3748, %v7168, %v6015
    %v7208 = vsel %vm3748, %v7170, %v6017
    %v7209 = vsel %vm3748, %v7172, %v6019
    %v7210 = vsel %vm3748, %v7174, %v6021
    %v7211 = vsel %vm3748, %v7176, %v6023
    %v7212 = vsel %vm3748, %v7178, %v6025
    %v7213 = vsel %vm3748, %v7180, %v6027
    %v7214 = vsel %vm3748, %v7182, %v6029
    %v7215 = vsel %vm1558, %v7199, %v4830
    %v7216 = vsel %vm1558, %v7200, %v4832
    %v7217 = vsel %vm1558, %v7201, %v4834
    %v7218 = vsel %vm1558, %v7202, %v4836
    %v7219 = vsel %vm1558, %v7203, %v4838
    %v7220 = vsel %vm1558, %v7204, %v4840
    %v7221 = vsel %vm1558, %v7205, %v4842
    %v7222 = vsel %vm1558, %v7206, %v4844
    %v7223 = vsel %vm1558, %v7207, %v4846
    %v7224 = vsel %vm1558, %v7208, %v4848
    %v7225 = vsel %vm1558, %v7209, %v4850
    %v7226 = vsel %vm1558, %v7210, %v4852
    %v7227 = vsel %vm1558, %v7211, %v4854
    %v7228 = vsel %vm1558, %v7212, %v4856
    %v7229 = vsel %vm1558, %v7213, %v4858
    %v7230 = vsel %vm1558, %v7214, %v4860
    %v7231 = vsel %vm3781, %v7215, %v2992
    %v7232 = vsel %vm3781, %v7216, %v2994
    %v7233 = vsel %vm3781, %v7217, %v2997
    %v7234 = vsel %vm3781, %v7218, %v2999
    %v7235 = vsel %vm3781, %v7219, %v3002
    %v7236 = vsel %vm3781, %v7220, %v3004
    %v7237 = vsel %vm3781, %v7221, %v3007
    %v7238 = vsel %vm3781, %v7222, %v3009
    %v7239 = vsel %vm3781, %v7223, %v3012
    %v7240 = vsel %vm3781, %v7224, %v3014
    %v7241 = vsel %vm3781, %v7225, %v3017
    %v7242 = vsel %vm3781, %v7226, %v3019
    %v7243 = vsel %vm3781, %v7227, %v3022
    %v7244 = vsel %vm3781, %v7228, %v3024
    %v7245 = vsel %vm3781, %v7229, %v3027
    %v7246 = vsel %vm3781, %v7230, %v3029
    %v7247 = vsel %vm2908, %v7231, %v3557
    %v7248 = vsel %vm2908, %v7232, %v3559
    %v7249 = vsel %vm2908, %v7233, %v3561
    %v7250 = vsel %vm2908, %v7234, %v3563
    %v7251 = vsel %vm2908, %v7235, %v3565
    %v7252 = vsel %vm2908, %v7236, %v3567
    %v7253 = vsel %vm2908, %v7237, %v3569
    %v7254 = vsel %vm2908, %v7238, %v3571
    %v7255 = vsel %vm2908, %v7239, %v3573
    %v7256 = vsel %vm2908, %v7240, %v3575
    %v7257 = vsel %vm2908, %v7241, %v3577
    %v7258 = vsel %vm2908, %v7242, %v3579
    %v7259 = vsel %vm2908, %v7243, %v3581
    %v7260 = vsel %vm2908, %v7244, %v3583
    %v7261 = vsel %vm2908, %v7245, %v3585
    %v7262 = vsel %vm2908, %v7246, %v3587
    %v7263 = vmul.f32 %v3174, %v7247
    %v7264 = vmul.f32 %v3176, %v7248
    %v7265 = vmul.f32 %v3179, %v7249
    %v7266 = vmul.f32 %v3181, %v7250
    %v7267 = vmul.f32 %v3184, %v7251
    %v7268 = vmul.f32 %v3186, %v7252
    %v7269 = vmul.f32 %v3189, %v7253
    %v7270 = vmul.f32 %v3191, %v7254
    %v7271 = vmul.f32 %v3194, %v7255
    %v7272 = vmul.f32 %v3196, %v7256
    %v7273 = vmul.f32 %v3199, %v7257
    %v7274 = vmul.f32 %v3201, %v7258
    %v7275 = vmul.f32 %v3204, %v7259
    %v7276 = vmul.f32 %v3206, %v7260
    %v7277 = vmul.f32 %v3209, %v7261
    %v7278 = vmul.f32 %v3211, %v7262
    %v7279 = vpack.c.bf16 %v7264, %v7263
    %v7280 = vpack.c.bf16 %v7266, %v7265
    %v7281 = vpack.c.bf16 %v7268, %v7267
    %v7282 = vpack.c.bf16 %v7270, %v7269
    %v7283 = vpack.c.bf16 %v7272, %v7271
    %v7284 = vpack.c.bf16 %v7274, %v7273
    %v7285 = vpack.c.bf16 %v7276, %v7275
    %v7286 = vpack.c.bf16 %v7278, %v7277
    %v7288 = vsel %vm3853, %v7279, 0
    %v7291 = vsel %vm3853, %v7280, 0
    %v7294 = vsel %vm3853, %v7281, 0
    %v7297 = vsel %vm3853, %v7282, 0
    %v7300 = vsel %vm3853, %v7283, 0
    %v7303 = vsel %vm3853, %v7284, 0
    %v7306 = vsel %vm3853, %v7285, 0
    %v7309 = vsel %vm3853, %v7286, 0
    %7311 = vmatpush.bf16.msra.mxu0 0
    %7312 = vmatpush.bf16.msra.mxu0 0
    %7313 = vmatpush.bf16.msra.mxu0 0
    %7314 = vmatpush.bf16.msra.mxu0 0
    %7315 = vmatpush.bf16.msra.mxu0 0
    %7316 = vmatpush.bf16.msra.mxu0 %v3880
    %7317 = vmatpush.bf16.msra.mxu0 %v3849
    %7318 = vmatpush.bf16.msra.mxu0 %v3848
    %7319 = vmatmul.bf16.gmra.mxu0 %v7288
    %v7320 = vpop.f32.mrf.mxu0
    %v7321 = vadd.f32 0.0, %v7320
    %v7322 = vpop.f32.mrf.mxu0
    %v7323 = vadd.f32 0.0, %v7322
    %7324 = vmatmul.bf16.gmra.mxu0 %v7291
    %v7325 = vpop.f32.mrf.mxu0
    %v7326 = vadd.f32 0.0, %v7325
    %v7327 = vpop.f32.mrf.mxu0
    %v7328 = vadd.f32 0.0, %v7327
    %7329 = vmatmul.bf16.gmra.mxu0 %v7294
    %v7330 = vpop.f32.mrf.mxu0
    %v7331 = vadd.f32 0.0, %v7330
    %v7332 = vpop.f32.mrf.mxu0
    %v7333 = vadd.f32 0.0, %v7332
    %7334 = vmatmul.bf16.gmra.mxu0 %v7297
    %v7335 = vpop.f32.mrf.mxu0
    %v7336 = vadd.f32 0.0, %v7335
    %v7337 = vpop.f32.mrf.mxu0
    %v7338 = vadd.f32 0.0, %v7337
    %7339 = vmatmul.bf16.gmra.mxu0 %v7300
    %v7340 = vpop.f32.mrf.mxu0
    %v7341 = vadd.f32 0.0, %v7340
    %v7342 = vpop.f32.mrf.mxu0
    %v7343 = vadd.f32 0.0, %v7342
    %7344 = vmatmul.bf16.gmra.mxu0 %v7303
    %v7345 = vpop.f32.mrf.mxu0
    %v7346 = vadd.f32 0.0, %v7345
    %v7347 = vpop.f32.mrf.mxu0
    %v7348 = vadd.f32 0.0, %v7347
    %7349 = vmatmul.bf16.gmra.mxu0 %v7306
    %v7350 = vpop.f32.mrf.mxu0
    %v7351 = vadd.f32 0.0, %v7350
    %v7352 = vpop.f32.mrf.mxu0
    %v7353 = vadd.f32 0.0, %v7352
    %7354 = vmatmul.bf16.gmra.mxu0 %v7309
    %v7355 = vpop.f32.mrf.mxu0
    %v7356 = vadd.f32 0.0, %v7355
    %v7357 = vpop.f32.mrf.mxu0
    %v7358 = vadd.f32 0.0, %v7357
    %7359 = vdwg.mxu0
    %v7360 = vmul.f32 %v7321, 0.35355338
    %v7361 = vmul.f32 %v7323, 0.35355338
    %v7362 = vmul.f32 %v7326, 0.35355338
    %v7363 = vmul.f32 %v7328, 0.35355338
    %v7364 = vmul.f32 %v7331, 0.35355338
    %v7365 = vmul.f32 %v7333, 0.35355338
    %v7366 = vmul.f32 %v7336, 0.35355338
    %v7367 = vmul.f32 %v7338, 0.35355338
    %v7368 = vmul.f32 %v7341, 0.35355338
    %v7369 = vmul.f32 %v7343, 0.35355338
    %v7370 = vmul.f32 %v7346, 0.35355338
    %v7371 = vmul.f32 %v7348, 0.35355338
    %v7372 = vmul.f32 %v7351, 0.35355338
    %v7373 = vmul.f32 %v7353, 0.35355338
    %v7374 = vmul.f32 %v7356, 0.35355338
    %v7375 = vmul.f32 %v7358, 0.35355338
    %v7376 = vsel %vm3947, %v7360, -inf
    %7377 = vmax.xlane.f32.xlu0 %v7376
    %v7378 = vpop.xlane.xlu0 %7377
    %v7379 = vsel %vm3947, %v7361, -inf
    %7380 = vmax.xlane.f32.xlu0 %v7379
    %v7381 = vpop.xlane.xlu0 %7380
    %v7382 = vsel %vm3947, %v7362, -inf
    %7383 = vmax.xlane.f32.xlu0 %v7382
    %v7384 = vpop.xlane.xlu0 %7383
    %v7385 = vsel %vm3947, %v7363, -inf
    %7386 = vmax.xlane.f32.xlu0 %v7385
    %v7387 = vpop.xlane.xlu0 %7386
    %v7388 = vsel %vm3947, %v7364, -inf
    %7389 = vmax.xlane.f32.xlu0 %v7388
    %v7390 = vpop.xlane.xlu0 %7389
    %v7391 = vsel %vm3947, %v7365, -inf
    %7392 = vmax.xlane.f32.xlu0 %v7391
    %v7393 = vpop.xlane.xlu0 %7392
    %v7394 = vsel %vm3947, %v7366, -inf
    %7395 = vmax.xlane.f32.xlu0 %v7394
    %v7396 = vpop.xlane.xlu0 %7395
    %v7397 = vsel %vm3947, %v7367, -inf
    %7398 = vmax.xlane.f32.xlu0 %v7397
    %v7399 = vpop.xlane.xlu0 %7398
    %v7400 = vsel %vm3947, %v7368, -inf
    %7401 = vmax.xlane.f32.xlu0 %v7400
    %v7402 = vpop.xlane.xlu0 %7401
    %v7403 = vsel %vm3947, %v7369, -inf
    %7404 = vmax.xlane.f32.xlu0 %v7403
    %v7405 = vpop.xlane.xlu0 %7404
    %v7406 = vsel %vm3947, %v7370, -inf
    %7407 = vmax.xlane.f32.xlu0 %v7406
    %v7408 = vpop.xlane.xlu0 %7407
    %v7409 = vsel %vm3947, %v7371, -inf
    %7410 = vmax.xlane.f32.xlu0 %v7409
    %v7411 = vpop.xlane.xlu0 %7410
    %v7412 = vsel %vm3947, %v7372, -inf
    %7413 = vmax.xlane.f32.xlu0 %v7412
    %v7414 = vpop.xlane.xlu0 %7413
    %v7415 = vsel %vm3947, %v7373, -inf
    %7416 = vmax.xlane.f32.xlu0 %v7415
    %v7417 = vpop.xlane.xlu0 %7416
    %v7418 = vsel %vm3947, %v7374, -inf
    %7419 = vmax.xlane.f32.xlu0 %v7418
    %v7420 = vpop.xlane.xlu0 %7419
    %v7421 = vsel %vm3947, %v7375, -inf
    %7422 = vmax.xlane.f32.xlu0 %v7421
    %v7423 = vpop.xlane.xlu0 %7422
    %v7424 = vsub.f32 %v7360, %v7378
    %v7425 = vsub.f32 %v7361, %v7381
    %v7426 = vsub.f32 %v7362, %v7384
    %v7427 = vsub.f32 %v7363, %v7387
    %v7428 = vsub.f32 %v7364, %v7390
    %v7429 = vsub.f32 %v7365, %v7393
    %v7430 = vsub.f32 %v7366, %v7396
    %v7431 = vsub.f32 %v7367, %v7399
    %v7432 = vsub.f32 %v7368, %v7402
    %v7433 = vsub.f32 %v7369, %v7405
    %v7434 = vsub.f32 %v7370, %v7408
    %v7435 = vsub.f32 %v7371, %v7411
    %v7436 = vsub.f32 %v7372, %v7414
    %v7437 = vsub.f32 %v7373, %v7417
    %v7438 = vsub.f32 %v7374, %v7420
    %v7439 = vsub.f32 %v7375, %v7423
    %v7440 = vmul.f32 %v7424, 1.442695
    %v7441 = vpow.pop %v7440
    %v7442 = vmul.f32 %v7425, 1.442695
    %v7443 = vpow.pop %v7442
    %v7444 = vmul.f32 %v7426, 1.442695
    %v7445 = vpow.pop %v7444
    %v7446 = vmul.f32 %v7427, 1.442695
    %v7447 = vpow.pop %v7446
    %v7448 = vmul.f32 %v7428, 1.442695
    %v7449 = vpow.pop %v7448
    %v7450 = vmul.f32 %v7429, 1.442695
    %v7451 = vpow.pop %v7450
    %v7452 = vmul.f32 %v7430, 1.442695
    %v7453 = vpow.pop %v7452
    %v7454 = vmul.f32 %v7431, 1.442695
    %v7455 = vpow.pop %v7454
    %v7456 = vmul.f32 %v7432, 1.442695
    %v7457 = vpow.pop %v7456
    %v7458 = vmul.f32 %v7433, 1.442695
    %v7459 = vpow.pop %v7458
    %v7460 = vmul.f32 %v7434, 1.442695
    %v7461 = vpow.pop %v7460
    %v7462 = vmul.f32 %v7435, 1.442695
    %v7463 = vpow.pop %v7462
    %v7464 = vmul.f32 %v7436, 1.442695
    %v7465 = vpow.pop %v7464
    %v7466 = vmul.f32 %v7437, 1.442695
    %v7467 = vpow.pop %v7466
    %v7468 = vmul.f32 %v7438, 1.442695
    %v7469 = vpow.pop %v7468
    %v7470 = vmul.f32 %v7439, 1.442695
    %v7471 = vpow.pop %v7470
    %v7472 = vsel %vm3947, %v7441, 0.0
    %7473 = vadd.xlane.f32.xlu0 %v7472
    %v7474 = vpop.xlane.xlu0 %7473
    %v7475 = vsel %vm3947, %v7443, 0.0
    %7476 = vadd.xlane.f32.xlu0 %v7475
    %v7477 = vpop.xlane.xlu0 %7476
    %v7478 = vsel %vm3947, %v7445, 0.0
    %7479 = vadd.xlane.f32.xlu0 %v7478
    %v7480 = vpop.xlane.xlu0 %7479
    %v7481 = vsel %vm3947, %v7447, 0.0
    %7482 = vadd.xlane.f32.xlu0 %v7481
    %v7483 = vpop.xlane.xlu0 %7482
    %v7484 = vsel %vm3947, %v7449, 0.0
    %7485 = vadd.xlane.f32.xlu0 %v7484
    %v7486 = vpop.xlane.xlu0 %7485
    %v7487 = vsel %vm3947, %v7451, 0.0
    %7488 = vadd.xlane.f32.xlu0 %v7487
    %v7489 = vpop.xlane.xlu0 %7488
    %v7490 = vsel %vm3947, %v7453, 0.0
    %7491 = vadd.xlane.f32.xlu0 %v7490
    %v7492 = vpop.xlane.xlu0 %7491
    %v7493 = vsel %vm3947, %v7455, 0.0
    %7494 = vadd.xlane.f32.xlu0 %v7493
    %v7495 = vpop.xlane.xlu0 %7494
    %v7496 = vsel %vm3947, %v7457, 0.0
    %7497 = vadd.xlane.f32.xlu0 %v7496
    %v7498 = vpop.xlane.xlu0 %7497
    %v7499 = vsel %vm3947, %v7459, 0.0
    %7500 = vadd.xlane.f32.xlu0 %v7499
    %v7501 = vpop.xlane.xlu0 %7500
    %v7502 = vsel %vm3947, %v7461, 0.0
    %7503 = vadd.xlane.f32.xlu0 %v7502
    %v7504 = vpop.xlane.xlu0 %7503
    %v7505 = vsel %vm3947, %v7463, 0.0
    %7506 = vadd.xlane.f32.xlu0 %v7505
    %v7507 = vpop.xlane.xlu0 %7506
    %v7508 = vsel %vm3947, %v7465, 0.0
    %7509 = vadd.xlane.f32.xlu0 %v7508
    %v7510 = vpop.xlane.xlu0 %7509
    %v7511 = vsel %vm3947, %v7467, 0.0
    %7512 = vadd.xlane.f32.xlu0 %v7511
    %v7513 = vpop.xlane.xlu0 %7512
    %v7514 = vsel %vm3947, %v7469, 0.0
    %7515 = vadd.xlane.f32.xlu0 %v7514
    %v7516 = vpop.xlane.xlu0 %7515
    %v7517 = vsel %vm3947, %v7471, 0.0
    %7518 = vadd.xlane.f32.xlu0 %v7517
    %v7519 = vpop.xlane.xlu0 %7518
    %v7520 = vrcp.pop %v7474
    %v7521 = vrcp.pop %v7477
    %v7522 = vrcp.pop %v7480
    %v7523 = vrcp.pop %v7483
    %v7524 = vrcp.pop %v7486
    %v7525 = vrcp.pop %v7489
    %v7526 = vrcp.pop %v7492
    %v7527 = vrcp.pop %v7495
    %v7528 = vrcp.pop %v7498
    %v7529 = vrcp.pop %v7501
    %v7530 = vrcp.pop %v7504
    %v7531 = vrcp.pop %v7507
    %v7532 = vrcp.pop %v7510
    %v7533 = vrcp.pop %v7513
    %v7534 = vrcp.pop %v7516
    %v7535 = vrcp.pop %v7519
    %v7536 = vmul.f32 %v7441, %v7520
    %v7537 = vmul.f32 %v7443, %v7521
    %v7538 = vmul.f32 %v7445, %v7522
    %v7539 = vmul.f32 %v7447, %v7523
    %v7540 = vmul.f32 %v7449, %v7524
    %v7541 = vmul.f32 %v7451, %v7525
    %v7542 = vmul.f32 %v7453, %v7526
    %v7543 = vmul.f32 %v7455, %v7527
    %v7544 = vmul.f32 %v7457, %v7528
    %v7545 = vmul.f32 %v7459, %v7529
    %v7546 = vmul.f32 %v7461, %v7530
    %v7547 = vmul.f32 %v7463, %v7531
    %v7548 = vmul.f32 %v7465, %v7532
    %v7549 = vmul.f32 %v7467, %v7533
    %v7550 = vmul.f32 %v7469, %v7534
    %v7551 = vmul.f32 %v7471, %v7535
    %7553 = vset.pattern.permute.xlu0 0
    %7554 = vperm.xlu0 %7553, %v7536
    %v7555 = vpop.permute.xlu0 %7554
    %7558 = vset.pattern.permute.xlu0 0
    %7559 = vperm.xlu0 %7558, %v7537
    %v7560 = vpop.permute.xlu0 %7559
    %7563 = vset.pattern.permute.xlu0 0
    %7564 = vperm.xlu0 %7563, %v7538
    %v7565 = vpop.permute.xlu0 %7564
    %7568 = vset.pattern.permute.xlu0 0
    %7569 = vperm.xlu0 %7568, %v7539
    %v7570 = vpop.permute.xlu0 %7569
    %7573 = vset.pattern.permute.xlu0 0
    %7574 = vperm.xlu0 %7573, %v7540
    %v7575 = vpop.permute.xlu0 %7574
    %7578 = vset.pattern.permute.xlu0 0
    %7579 = vperm.xlu0 %7578, %v7541
    %v7580 = vpop.permute.xlu0 %7579
    %7583 = vset.pattern.permute.xlu0 0
    %7584 = vperm.xlu0 %7583, %v7542
    %v7585 = vpop.permute.xlu0 %7584
    %7588 = vset.pattern.permute.xlu0 0
    %7589 = vperm.xlu0 %7588, %v7543
    %v7590 = vpop.permute.xlu0 %7589
    %7593 = vset.pattern.permute.xlu0 0
    %7594 = vperm.xlu0 %7593, %v7544
    %v7595 = vpop.permute.xlu0 %7594
    %7598 = vset.pattern.permute.xlu0 0
    %7599 = vperm.xlu0 %7598, %v7545
    %v7600 = vpop.permute.xlu0 %7599
    %7603 = vset.pattern.permute.xlu0 0
    %7604 = vperm.xlu0 %7603, %v7546
    %v7605 = vpop.permute.xlu0 %7604
    %7608 = vset.pattern.permute.xlu0 0
    %7609 = vperm.xlu0 %7608, %v7547
    %v7610 = vpop.permute.xlu0 %7609
    %7613 = vset.pattern.permute.xlu0 0
    %7614 = vperm.xlu0 %7613, %v7548
    %v7615 = vpop.permute.xlu0 %7614
    %7618 = vset.pattern.permute.xlu0 0
    %7619 = vperm.xlu0 %7618, %v7549
    %v7620 = vpop.permute.xlu0 %7619
    %7623 = vset.pattern.permute.xlu0 0
    %7624 = vperm.xlu0 %7623, %v7550
    %v7625 = vpop.permute.xlu0 %7624
    %7628 = vset.pattern.permute.xlu0 0
    %7629 = vperm.xlu0 %7628, %v7551
    %v7630 = vpop.permute.xlu0 %7629
    %v7632 = vmul.f32 %v7555, %v3398
    %v7633 = vmul.f32 %v7560, %v3400
    %v7634 = vmul.f32 %v7565, %v3403
    %v7635 = vmul.f32 %v7570, %v3405
    %v7636 = vmul.f32 %v7575, %v3408
    %v7637 = vmul.f32 %v7580, %v3410
    %v7638 = vmul.f32 %v7585, %v3413
    %v7639 = vmul.f32 %v7590, %v3415
    %v7640 = vmul.f32 %v7595, %v3418
    %v7641 = vmul.f32 %v7600, %v3420
    %v7642 = vmul.f32 %v7605, %v3423
    %v7643 = vmul.f32 %v7610, %v3425
    %v7644 = vmul.f32 %v7615, %v3428
    %v7645 = vmul.f32 %v7620, %v3430
    %v7646 = vmul.f32 %v7625, %v3433
    %v7647 = vmul.f32 %v7630, %v3435
    %7648 = vset.pattern.permute.xlu0 1
    %7649 = vperm.xlu0 %7648, %v7536
    %v7650 = vpop.permute.xlu0 %7649
    %7652 = vset.pattern.permute.xlu0 1
    %7653 = vperm.xlu0 %7652, %v7537
    %v7654 = vpop.permute.xlu0 %7653
    %7656 = vset.pattern.permute.xlu0 1
    %7657 = vperm.xlu0 %7656, %v7538
    %v7658 = vpop.permute.xlu0 %7657
    %7660 = vset.pattern.permute.xlu0 1
    %7661 = vperm.xlu0 %7660, %v7539
    %v7662 = vpop.permute.xlu0 %7661
    %7664 = vset.pattern.permute.xlu0 1
    %7665 = vperm.xlu0 %7664, %v7540
    %v7666 = vpop.permute.xlu0 %7665
    %7668 = vset.pattern.permute.xlu0 1
    %7669 = vperm.xlu0 %7668, %v7541
    %v7670 = vpop.permute.xlu0 %7669
    %7672 = vset.pattern.permute.xlu0 1
    %7673 = vperm.xlu0 %7672, %v7542
    %v7674 = vpop.permute.xlu0 %7673
    %7676 = vset.pattern.permute.xlu0 1
    %7677 = vperm.xlu0 %7676, %v7543
    %v7678 = vpop.permute.xlu0 %7677
    %7680 = vset.pattern.permute.xlu0 1
    %7681 = vperm.xlu0 %7680, %v7544
    %v7682 = vpop.permute.xlu0 %7681
    %7684 = vset.pattern.permute.xlu0 1
    %7685 = vperm.xlu0 %7684, %v7545
    %v7686 = vpop.permute.xlu0 %7685
    %7688 = vset.pattern.permute.xlu0 1
    %7689 = vperm.xlu0 %7688, %v7546
    %v7690 = vpop.permute.xlu0 %7689
    %7692 = vset.pattern.permute.xlu0 1
    %7693 = vperm.xlu0 %7692, %v7547
    %v7694 = vpop.permute.xlu0 %7693
    %7696 = vset.pattern.permute.xlu0 1
    %7697 = vperm.xlu0 %7696, %v7548
    %v7698 = vpop.permute.xlu0 %7697
    %7700 = vset.pattern.permute.xlu0 1
    %7701 = vperm.xlu0 %7700, %v7549
    %v7702 = vpop.permute.xlu0 %7701
    %7704 = vset.pattern.permute.xlu0 1
    %7705 = vperm.xlu0 %7704, %v7550
    %v7706 = vpop.permute.xlu0 %7705
    %7708 = vset.pattern.permute.xlu0 1
    %7709 = vperm.xlu0 %7708, %v7551
    %v7710 = vpop.permute.xlu0 %7709
    %v7712 = vmul.f32 %v7650, %v3398
    %v7713 = vmul.f32 %v7654, %v3400
    %v7714 = vmul.f32 %v7658, %v3403
    %v7715 = vmul.f32 %v7662, %v3405
    %v7716 = vmul.f32 %v7666, %v3408
    %v7717 = vmul.f32 %v7670, %v3410
    %v7718 = vmul.f32 %v7674, %v3413
    %v7719 = vmul.f32 %v7678, %v3415
    %v7720 = vmul.f32 %v7682, %v3418
    %v7721 = vmul.f32 %v7686, %v3420
    %v7722 = vmul.f32 %v7690, %v3423
    %v7723 = vmul.f32 %v7694, %v3425
    %v7724 = vmul.f32 %v7698, %v3428
    %v7725 = vmul.f32 %v7702, %v3430
    %v7726 = vmul.f32 %v7706, %v3433
    %v7727 = vmul.f32 %v7710, %v3435
    %7744 = vrot.lane.b32.xlu0 %v7712, 96
    %v7745 = vpop.permute.xlu0 %7744
    %7746 = vrot.lane.b32.xlu0 %v7713, 96
    %v7747 = vpop.permute.xlu0 %7746
    %7748 = vrot.lane.b32.xlu0 %v7714, 96
    %v7749 = vpop.permute.xlu0 %7748
    %7750 = vrot.lane.b32.xlu0 %v7715, 96
    %v7751 = vpop.permute.xlu0 %7750
    %7752 = vrot.lane.b32.xlu0 %v7716, 96
    %v7753 = vpop.permute.xlu0 %7752
    %7754 = vrot.lane.b32.xlu0 %v7717, 96
    %v7755 = vpop.permute.xlu0 %7754
    %7756 = vrot.lane.b32.xlu0 %v7718, 96
    %v7757 = vpop.permute.xlu0 %7756
    %7758 = vrot.lane.b32.xlu0 %v7719, 96
    %v7759 = vpop.permute.xlu0 %7758
    %7760 = vrot.lane.b32.xlu0 %v7720, 96
    %v7761 = vpop.permute.xlu0 %7760
    %7762 = vrot.lane.b32.xlu0 %v7721, 96
    %v7763 = vpop.permute.xlu0 %7762
    %7764 = vrot.lane.b32.xlu0 %v7722, 96
    %v7765 = vpop.permute.xlu0 %7764
    %7766 = vrot.lane.b32.xlu0 %v7723, 96
    %v7767 = vpop.permute.xlu0 %7766
    %7768 = vrot.lane.b32.xlu0 %v7724, 96
    %v7769 = vpop.permute.xlu0 %7768
    %7770 = vrot.lane.b32.xlu0 %v7725, 96
    %v7771 = vpop.permute.xlu0 %7770
    %7772 = vrot.lane.b32.xlu0 %v7726, 96
    %v7773 = vpop.permute.xlu0 %7772
    %7774 = vrot.lane.b32.xlu0 %v7727, 96
    %v7775 = vpop.permute.xlu0 %7774
    %v7792 = vadd.f32 %v7632, %v7745
    %v7793 = vadd.f32 %v7633, %v7747
    %v7794 = vadd.f32 %v7634, %v7749
    %v7795 = vadd.f32 %v7635, %v7751
    %v7796 = vadd.f32 %v7636, %v7753
    %v7797 = vadd.f32 %v7637, %v7755
    %v7798 = vadd.f32 %v7638, %v7757
    %v7799 = vadd.f32 %v7639, %v7759
    %v7800 = vadd.f32 %v7640, %v7761
    %v7801 = vadd.f32 %v7641, %v7763
    %v7802 = vadd.f32 %v7642, %v7765
    %v7803 = vadd.f32 %v7643, %v7767
    %v7804 = vadd.f32 %v7644, %v7769
    %v7805 = vadd.f32 %v7645, %v7771
    %v7806 = vadd.f32 %v7646, %v7773
    %v7807 = vadd.f32 %v7647, %v7775
    %7808 = vset.pattern.permute.xlu0 2
    %7809 = vperm.xlu0 %7808, %v7536
    %v7810 = vpop.permute.xlu0 %7809
    %7812 = vset.pattern.permute.xlu0 2
    %7813 = vperm.xlu0 %7812, %v7537
    %v7814 = vpop.permute.xlu0 %7813
    %7816 = vset.pattern.permute.xlu0 2
    %7817 = vperm.xlu0 %7816, %v7538
    %v7818 = vpop.permute.xlu0 %7817
    %7820 = vset.pattern.permute.xlu0 2
    %7821 = vperm.xlu0 %7820, %v7539
    %v7822 = vpop.permute.xlu0 %7821
    %7824 = vset.pattern.permute.xlu0 2
    %7825 = vperm.xlu0 %7824, %v7540
    %v7826 = vpop.permute.xlu0 %7825
    %7828 = vset.pattern.permute.xlu0 2
    %7829 = vperm.xlu0 %7828, %v7541
    %v7830 = vpop.permute.xlu0 %7829
    %7832 = vset.pattern.permute.xlu0 2
    %7833 = vperm.xlu0 %7832, %v7542
    %v7834 = vpop.permute.xlu0 %7833
    %7836 = vset.pattern.permute.xlu0 2
    %7837 = vperm.xlu0 %7836, %v7543
    %v7838 = vpop.permute.xlu0 %7837
    %7840 = vset.pattern.permute.xlu0 2
    %7841 = vperm.xlu0 %7840, %v7544
    %v7842 = vpop.permute.xlu0 %7841
    %7844 = vset.pattern.permute.xlu0 2
    %7845 = vperm.xlu0 %7844, %v7545
    %v7846 = vpop.permute.xlu0 %7845
    %7848 = vset.pattern.permute.xlu0 2
    %7849 = vperm.xlu0 %7848, %v7546
    %v7850 = vpop.permute.xlu0 %7849
    %7852 = vset.pattern.permute.xlu0 2
    %7853 = vperm.xlu0 %7852, %v7547
    %v7854 = vpop.permute.xlu0 %7853
    %7856 = vset.pattern.permute.xlu0 2
    %7857 = vperm.xlu0 %7856, %v7548
    %v7858 = vpop.permute.xlu0 %7857
    %7860 = vset.pattern.permute.xlu0 2
    %7861 = vperm.xlu0 %7860, %v7549
    %v7862 = vpop.permute.xlu0 %7861
    %7864 = vset.pattern.permute.xlu0 2
    %7865 = vperm.xlu0 %7864, %v7550
    %v7866 = vpop.permute.xlu0 %7865
    %7868 = vset.pattern.permute.xlu0 2
    %7869 = vperm.xlu0 %7868, %v7551
    %v7870 = vpop.permute.xlu0 %7869
    %v7872 = vmul.f32 %v7810, %v3398
    %v7873 = vmul.f32 %v7814, %v3400
    %v7874 = vmul.f32 %v7818, %v3403
    %v7875 = vmul.f32 %v7822, %v3405
    %v7876 = vmul.f32 %v7826, %v3408
    %v7877 = vmul.f32 %v7830, %v3410
    %v7878 = vmul.f32 %v7834, %v3413
    %v7879 = vmul.f32 %v7838, %v3415
    %v7880 = vmul.f32 %v7842, %v3418
    %v7881 = vmul.f32 %v7846, %v3420
    %v7882 = vmul.f32 %v7850, %v3423
    %v7883 = vmul.f32 %v7854, %v3425
    %v7884 = vmul.f32 %v7858, %v3428
    %v7885 = vmul.f32 %v7862, %v3430
    %v7886 = vmul.f32 %v7866, %v3433
    %v7887 = vmul.f32 %v7870, %v3435
    %7904 = vrot.lane.b32.xlu0 %v7872, 64
    %v7905 = vpop.permute.xlu0 %7904
    %7906 = vrot.lane.b32.xlu0 %v7873, 64
    %v7907 = vpop.permute.xlu0 %7906
    %7908 = vrot.lane.b32.xlu0 %v7874, 64
    %v7909 = vpop.permute.xlu0 %7908
    %7910 = vrot.lane.b32.xlu0 %v7875, 64
    %v7911 = vpop.permute.xlu0 %7910
    %7912 = vrot.lane.b32.xlu0 %v7876, 64
    %v7913 = vpop.permute.xlu0 %7912
    %7914 = vrot.lane.b32.xlu0 %v7877, 64
    %v7915 = vpop.permute.xlu0 %7914
    %7916 = vrot.lane.b32.xlu0 %v7878, 64
    %v7917 = vpop.permute.xlu0 %7916
    %7918 = vrot.lane.b32.xlu0 %v7879, 64
    %v7919 = vpop.permute.xlu0 %7918
    %7920 = vrot.lane.b32.xlu0 %v7880, 64
    %v7921 = vpop.permute.xlu0 %7920
    %7922 = vrot.lane.b32.xlu0 %v7881, 64
    %v7923 = vpop.permute.xlu0 %7922
    %7924 = vrot.lane.b32.xlu0 %v7882, 64
    %v7925 = vpop.permute.xlu0 %7924
    %7926 = vrot.lane.b32.xlu0 %v7883, 64
    %v7927 = vpop.permute.xlu0 %7926
    %7928 = vrot.lane.b32.xlu0 %v7884, 64
    %v7929 = vpop.permute.xlu0 %7928
    %7930 = vrot.lane.b32.xlu0 %v7885, 64
    %v7931 = vpop.permute.xlu0 %7930
    %7932 = vrot.lane.b32.xlu0 %v7886, 64
    %v7933 = vpop.permute.xlu0 %7932
    %7934 = vrot.lane.b32.xlu0 %v7887, 64
    %v7935 = vpop.permute.xlu0 %7934
    %v7952 = vadd.f32 %v7792, %v7905
    %v7953 = vadd.f32 %v7793, %v7907
    %v7954 = vadd.f32 %v7794, %v7909
    %v7955 = vadd.f32 %v7795, %v7911
    %v7956 = vadd.f32 %v7796, %v7913
    %v7957 = vadd.f32 %v7797, %v7915
    %v7958 = vadd.f32 %v7798, %v7917
    %v7959 = vadd.f32 %v7799, %v7919
    %v7960 = vadd.f32 %v7800, %v7921
    %v7961 = vadd.f32 %v7801, %v7923
    %v7962 = vadd.f32 %v7802, %v7925
    %v7963 = vadd.f32 %v7803, %v7927
    %v7964 = vadd.f32 %v7804, %v7929
    %v7965 = vadd.f32 %v7805, %v7931
    %v7966 = vadd.f32 %v7806, %v7933
    %v7967 = vadd.f32 %v7807, %v7935
    %7968 = vset.pattern.permute.xlu0 3
    %7969 = vperm.xlu0 %7968, %v7536
    %v7970 = vpop.permute.xlu0 %7969
    %7972 = vset.pattern.permute.xlu0 3
    %7973 = vperm.xlu0 %7972, %v7537
    %v7974 = vpop.permute.xlu0 %7973
    %7976 = vset.pattern.permute.xlu0 3
    %7977 = vperm.xlu0 %7976, %v7538
    %v7978 = vpop.permute.xlu0 %7977
    %7980 = vset.pattern.permute.xlu0 3
    %7981 = vperm.xlu0 %7980, %v7539
    %v7982 = vpop.permute.xlu0 %7981
    %7984 = vset.pattern.permute.xlu0 3
    %7985 = vperm.xlu0 %7984, %v7540
    %v7986 = vpop.permute.xlu0 %7985
    %7988 = vset.pattern.permute.xlu0 3
    %7989 = vperm.xlu0 %7988, %v7541
    %v7990 = vpop.permute.xlu0 %7989
    %7992 = vset.pattern.permute.xlu0 3
    %7993 = vperm.xlu0 %7992, %v7542
    %v7994 = vpop.permute.xlu0 %7993
    %7996 = vset.pattern.permute.xlu0 3
    %7997 = vperm.xlu0 %7996, %v7543
    %v7998 = vpop.permute.xlu0 %7997
    %8000 = vset.pattern.permute.xlu0 3
    %8001 = vperm.xlu0 %8000, %v7544
    %v8002 = vpop.permute.xlu0 %8001
    %8004 = vset.pattern.permute.xlu0 3
    %8005 = vperm.xlu0 %8004, %v7545
    %v8006 = vpop.permute.xlu0 %8005
    %8008 = vset.pattern.permute.xlu0 3
    %8009 = vperm.xlu0 %8008, %v7546
    %v8010 = vpop.permute.xlu0 %8009
    %8012 = vset.pattern.permute.xlu0 3
    %8013 = vperm.xlu0 %8012, %v7547
    %v8014 = vpop.permute.xlu0 %8013
    %8016 = vset.pattern.permute.xlu0 3
    %8017 = vperm.xlu0 %8016, %v7548
    %v8018 = vpop.permute.xlu0 %8017
    %8020 = vset.pattern.permute.xlu0 3
    %8021 = vperm.xlu0 %8020, %v7549
    %v8022 = vpop.permute.xlu0 %8021
    %8024 = vset.pattern.permute.xlu0 3
    %8025 = vperm.xlu0 %8024, %v7550
    %v8026 = vpop.permute.xlu0 %8025
    %8028 = vset.pattern.permute.xlu0 3
    %8029 = vperm.xlu0 %8028, %v7551
    %v8030 = vpop.permute.xlu0 %8029
    %v8032 = vmul.f32 %v7970, %v3398
    %v8033 = vmul.f32 %v7974, %v3400
    %v8034 = vmul.f32 %v7978, %v3403
    %v8035 = vmul.f32 %v7982, %v3405
    %v8036 = vmul.f32 %v7986, %v3408
    %v8037 = vmul.f32 %v7990, %v3410
    %v8038 = vmul.f32 %v7994, %v3413
    %v8039 = vmul.f32 %v7998, %v3415
    %v8040 = vmul.f32 %v8002, %v3418
    %v8041 = vmul.f32 %v8006, %v3420
    %v8042 = vmul.f32 %v8010, %v3423
    %v8043 = vmul.f32 %v8014, %v3425
    %v8044 = vmul.f32 %v8018, %v3428
    %v8045 = vmul.f32 %v8022, %v3430
    %v8046 = vmul.f32 %v8026, %v3433
    %v8047 = vmul.f32 %v8030, %v3435
    %8064 = vrot.lane.b32.xlu0 %v8032, 32
    %v8065 = vpop.permute.xlu0 %8064
    %8066 = vrot.lane.b32.xlu0 %v8033, 32
    %v8067 = vpop.permute.xlu0 %8066
    %8068 = vrot.lane.b32.xlu0 %v8034, 32
    %v8069 = vpop.permute.xlu0 %8068
    %8070 = vrot.lane.b32.xlu0 %v8035, 32
    %v8071 = vpop.permute.xlu0 %8070
    %8072 = vrot.lane.b32.xlu0 %v8036, 32
    %v8073 = vpop.permute.xlu0 %8072
    %8074 = vrot.lane.b32.xlu0 %v8037, 32
    %v8075 = vpop.permute.xlu0 %8074
    %8076 = vrot.lane.b32.xlu0 %v8038, 32
    %v8077 = vpop.permute.xlu0 %8076
    %8078 = vrot.lane.b32.xlu0 %v8039, 32
    %v8079 = vpop.permute.xlu0 %8078
    %8080 = vrot.lane.b32.xlu0 %v8040, 32
    %v8081 = vpop.permute.xlu0 %8080
    %8082 = vrot.lane.b32.xlu0 %v8041, 32
    %v8083 = vpop.permute.xlu0 %8082
    %8084 = vrot.lane.b32.xlu0 %v8042, 32
    %v8085 = vpop.permute.xlu0 %8084
    %8086 = vrot.lane.b32.xlu0 %v8043, 32
    %v8087 = vpop.permute.xlu0 %8086
    %8088 = vrot.lane.b32.xlu0 %v8044, 32
    %v8089 = vpop.permute.xlu0 %8088
    %8090 = vrot.lane.b32.xlu0 %v8045, 32
    %v8091 = vpop.permute.xlu0 %8090
    %8092 = vrot.lane.b32.xlu0 %v8046, 32
    %v8093 = vpop.permute.xlu0 %8092
    %8094 = vrot.lane.b32.xlu0 %v8047, 32
    %v8095 = vpop.permute.xlu0 %8094
    %v8112 = vadd.f32 %v7952, %v8065
    %v8113 = vadd.f32 %v7953, %v8067
    %v8114 = vadd.f32 %v7954, %v8069
    %v8115 = vadd.f32 %v7955, %v8071
    %v8116 = vadd.f32 %v7956, %v8073
    %v8117 = vadd.f32 %v7957, %v8075
    %v8118 = vadd.f32 %v7958, %v8077
    %v8119 = vadd.f32 %v7959, %v8079
    %v8120 = vadd.f32 %v7960, %v8081
    %v8121 = vadd.f32 %v7961, %v8083
    %v8122 = vadd.f32 %v7962, %v8085
    %v8123 = vadd.f32 %v7963, %v8087
    %v8124 = vadd.f32 %v7964, %v8089
    %v8125 = vadd.f32 %v7965, %v8091
    %v8126 = vadd.f32 %v7966, %v8093
    %v8127 = vadd.f32 %v7967, %v8095
    %8128 = vset.pattern.permute.xlu0 4
    %8129 = vperm.xlu0 %8128, %v7536
    %v8130 = vpop.permute.xlu0 %8129
    %8132 = vset.pattern.permute.xlu0 4
    %8133 = vperm.xlu0 %8132, %v7537
    %v8134 = vpop.permute.xlu0 %8133
    %8136 = vset.pattern.permute.xlu0 4
    %8137 = vperm.xlu0 %8136, %v7538
    %v8138 = vpop.permute.xlu0 %8137
    %8140 = vset.pattern.permute.xlu0 4
    %8141 = vperm.xlu0 %8140, %v7539
    %v8142 = vpop.permute.xlu0 %8141
    %8144 = vset.pattern.permute.xlu0 4
    %8145 = vperm.xlu0 %8144, %v7540
    %v8146 = vpop.permute.xlu0 %8145
    %8148 = vset.pattern.permute.xlu0 4
    %8149 = vperm.xlu0 %8148, %v7541
    %v8150 = vpop.permute.xlu0 %8149
    %8152 = vset.pattern.permute.xlu0 4
    %8153 = vperm.xlu0 %8152, %v7542
    %v8154 = vpop.permute.xlu0 %8153
    %8156 = vset.pattern.permute.xlu0 4
    %8157 = vperm.xlu0 %8156, %v7543
    %v8158 = vpop.permute.xlu0 %8157
    %8160 = vset.pattern.permute.xlu0 4
    %8161 = vperm.xlu0 %8160, %v7544
    %v8162 = vpop.permute.xlu0 %8161
    %8164 = vset.pattern.permute.xlu0 4
    %8165 = vperm.xlu0 %8164, %v7545
    %v8166 = vpop.permute.xlu0 %8165
    %8168 = vset.pattern.permute.xlu0 4
    %8169 = vperm.xlu0 %8168, %v7546
    %v8170 = vpop.permute.xlu0 %8169
    %8172 = vset.pattern.permute.xlu0 4
    %8173 = vperm.xlu0 %8172, %v7547
    %v8174 = vpop.permute.xlu0 %8173
    %8176 = vset.pattern.permute.xlu0 4
    %8177 = vperm.xlu0 %8176, %v7548
    %v8178 = vpop.permute.xlu0 %8177
    %8180 = vset.pattern.permute.xlu0 4
    %8181 = vperm.xlu0 %8180, %v7549
    %v8182 = vpop.permute.xlu0 %8181
    %8184 = vset.pattern.permute.xlu0 4
    %8185 = vperm.xlu0 %8184, %v7550
    %v8186 = vpop.permute.xlu0 %8185
    %8188 = vset.pattern.permute.xlu0 4
    %8189 = vperm.xlu0 %8188, %v7551
    %v8190 = vpop.permute.xlu0 %8189
    %v8192 = vmul.f32 %v8130, %v3496
    %v8193 = vmul.f32 %v8134, %v3498
    %v8194 = vmul.f32 %v8138, %v3501
    %v8195 = vmul.f32 %v8142, %v3503
    %v8196 = vmul.f32 %v8146, %v3506
    %v8197 = vmul.f32 %v8150, %v3508
    %v8198 = vmul.f32 %v8154, %v3511
    %v8199 = vmul.f32 %v8158, %v3513
    %v8200 = vmul.f32 %v8162, %v3516
    %v8201 = vmul.f32 %v8166, %v3518
    %v8202 = vmul.f32 %v8170, %v3521
    %v8203 = vmul.f32 %v8174, %v3523
    %v8204 = vmul.f32 %v8178, %v3526
    %v8205 = vmul.f32 %v8182, %v3528
    %v8206 = vmul.f32 %v8186, %v3531
    %v8207 = vmul.f32 %v8190, %v3533
    %v8208 = vadd.f32 %v8112, %v8192
    %v8209 = vadd.f32 %v8113, %v8193
    %v8210 = vadd.f32 %v8114, %v8194
    %v8211 = vadd.f32 %v8115, %v8195
    %v8212 = vadd.f32 %v8116, %v8196
    %v8213 = vadd.f32 %v8117, %v8197
    %v8214 = vadd.f32 %v8118, %v8198
    %v8215 = vadd.f32 %v8119, %v8199
    %v8216 = vadd.f32 %v8120, %v8200
    %v8217 = vadd.f32 %v8121, %v8201
    %v8218 = vadd.f32 %v8122, %v8202
    %v8219 = vadd.f32 %v8123, %v8203
    %v8220 = vadd.f32 %v8124, %v8204
    %v8221 = vadd.f32 %v8125, %v8205
    %v8222 = vadd.f32 %v8126, %v8206
    %v8223 = vadd.f32 %v8127, %v8207
    %v8224 = vmul.f32 %v4796, %v8208
    %v8225 = vmul.f32 %v4796, %v8209
    %v8226 = vmul.f32 %v4796, %v8210
    %v8227 = vmul.f32 %v4796, %v8211
    %v8228 = vmul.f32 %v4796, %v8212
    %v8229 = vmul.f32 %v4796, %v8213
    %v8230 = vmul.f32 %v4796, %v8214
    %v8231 = vmul.f32 %v4796, %v8215
    %v8232 = vmul.f32 %v4796, %v8216
    %v8233 = vmul.f32 %v4796, %v8217
    %v8234 = vmul.f32 %v4796, %v8218
    %v8235 = vmul.f32 %v4796, %v8219
    %v8236 = vmul.f32 %v4796, %v8220
    %v8237 = vmul.f32 %v4796, %v8221
    %v8238 = vmul.f32 %v4796, %v8222
    %v8239 = vmul.f32 %v4796, %v8223
    %8240 = vrot.lane.b32.xlu0 %v2792, 32
    %v8241 = vpop.permute.xlu0 %8240
    %8242 = vrot.lane.b32.xlu0 %v2793, 32
    %v8243 = vpop.permute.xlu0 %8242
    %8244 = vrot.lane.b32.xlu0 %v2794, 32
    %v8245 = vpop.permute.xlu0 %8244
    %8246 = vrot.lane.b32.xlu0 %v2795, 32
    %v8247 = vpop.permute.xlu0 %8246
    %8248 = vrot.lane.b32.xlu0 %v2796, 32
    %v8249 = vpop.permute.xlu0 %8248
    %8250 = vrot.lane.b32.xlu0 %v2797, 32
    %v8251 = vpop.permute.xlu0 %8250
    %8252 = vrot.lane.b32.xlu0 %v2798, 32
    %v8253 = vpop.permute.xlu0 %8252
    %8254 = vrot.lane.b32.xlu0 %v2799, 32
    %v8255 = vpop.permute.xlu0 %8254
    %8256 = vrot.lane.b32.xlu0 %v2800, 32
    %v8257 = vpop.permute.xlu0 %8256
    %8258 = vrot.lane.b32.xlu0 %v2801, 32
    %v8259 = vpop.permute.xlu0 %8258
    %8260 = vrot.lane.b32.xlu0 %v2802, 32
    %v8261 = vpop.permute.xlu0 %8260
    %8262 = vrot.lane.b32.xlu0 %v2803, 32
    %v8263 = vpop.permute.xlu0 %8262
    %8264 = vrot.lane.b32.xlu0 %v2804, 32
    %v8265 = vpop.permute.xlu0 %8264
    %8266 = vrot.lane.b32.xlu0 %v2805, 32
    %v8267 = vpop.permute.xlu0 %8266
    %8268 = vrot.lane.b32.xlu0 %v2806, 32
    %v8269 = vpop.permute.xlu0 %8268
    %8270 = vrot.lane.b32.xlu0 %v2807, 32
    %v8271 = vpop.permute.xlu0 %8270
    %v8288 = vadd.f32 %v8224, %v8241
    %v8289 = vadd.f32 %v8225, %v8243
    %v8290 = vadd.f32 %v8226, %v8245
    %v8291 = vadd.f32 %v8227, %v8247
    %v8292 = vadd.f32 %v8228, %v8249
    %v8293 = vadd.f32 %v8229, %v8251
    %v8294 = vadd.f32 %v8230, %v8253
    %v8295 = vadd.f32 %v8231, %v8255
    %v8296 = vadd.f32 %v8232, %v8257
    %v8297 = vadd.f32 %v8233, %v8259
    %v8298 = vadd.f32 %v8234, %v8261
    %v8299 = vadd.f32 %v8235, %v8263
    %v8300 = vadd.f32 %v8236, %v8265
    %v8301 = vadd.f32 %v8237, %v8267
    %v8302 = vadd.f32 %v8238, %v8269
    %v8303 = vadd.f32 %v8239, %v8271
    %8304 = vrot.lane.b32.xlu0 %v2992, 96
    %v8305 = vpop.permute.xlu0 %8304
    %8306 = vrot.lane.b32.xlu0 %v2994, 96
    %v8307 = vpop.permute.xlu0 %8306
    %8308 = vrot.lane.b32.xlu0 %v2997, 96
    %v8309 = vpop.permute.xlu0 %8308
    %8310 = vrot.lane.b32.xlu0 %v2999, 96
    %v8311 = vpop.permute.xlu0 %8310
    %8312 = vrot.lane.b32.xlu0 %v3002, 96
    %v8313 = vpop.permute.xlu0 %8312
    %8314 = vrot.lane.b32.xlu0 %v3004, 96
    %v8315 = vpop.permute.xlu0 %8314
    %8316 = vrot.lane.b32.xlu0 %v3007, 96
    %v8317 = vpop.permute.xlu0 %8316
    %8318 = vrot.lane.b32.xlu0 %v3009, 96
    %v8319 = vpop.permute.xlu0 %8318
    %8320 = vrot.lane.b32.xlu0 %v3012, 96
    %v8321 = vpop.permute.xlu0 %8320
    %8322 = vrot.lane.b32.xlu0 %v3014, 96
    %v8323 = vpop.permute.xlu0 %8322
    %8324 = vrot.lane.b32.xlu0 %v3017, 96
    %v8325 = vpop.permute.xlu0 %8324
    %8326 = vrot.lane.b32.xlu0 %v3019, 96
    %v8327 = vpop.permute.xlu0 %8326
    %8328 = vrot.lane.b32.xlu0 %v3022, 96
    %v8329 = vpop.permute.xlu0 %8328
    %8330 = vrot.lane.b32.xlu0 %v3024, 96
    %v8331 = vpop.permute.xlu0 %8330
    %8332 = vrot.lane.b32.xlu0 %v3027, 96
    %v8333 = vpop.permute.xlu0 %8332
    %8334 = vrot.lane.b32.xlu0 %v3029, 96
    %v8335 = vpop.permute.xlu0 %8334
    %v8352 = vsel %vm3748, %v8305, %v7152
    %v8353 = vsel %vm3748, %v8307, %v7154
    %v8354 = vsel %vm3748, %v8309, %v7156
    %v8355 = vsel %vm3748, %v8311, %v7158
    %v8356 = vsel %vm3748, %v8313, %v7160
    %v8357 = vsel %vm3748, %v8315, %v7162
    %v8358 = vsel %vm3748, %v8317, %v7164
    %v8359 = vsel %vm3748, %v8319, %v7166
    %v8360 = vsel %vm3748, %v8321, %v7168
    %v8361 = vsel %vm3748, %v8323, %v7170
    %v8362 = vsel %vm3748, %v8325, %v7172
    %v8363 = vsel %vm3748, %v8327, %v7174
    %v8364 = vsel %vm3748, %v8329, %v7176
    %v8365 = vsel %vm3748, %v8331, %v7178
    %v8366 = vsel %vm3748, %v8333, %v7180
    %v8367 = vsel %vm3748, %v8335, %v7182
    %v8368 = vsel %vm1558, %v8352, %v5999
    %v8369 = vsel %vm1558, %v8353, %v6001
    %v8370 = vsel %vm1558, %v8354, %v6003
    %v8371 = vsel %vm1558, %v8355, %v6005
    %v8372 = vsel %vm1558, %v8356, %v6007
    %v8373 = vsel %vm1558, %v8357, %v6009
    %v8374 = vsel %vm1558, %v8358, %v6011
    %v8375 = vsel %vm1558, %v8359, %v6013
    %v8376 = vsel %vm1558, %v8360, %v6015
    %v8377 = vsel %vm1558, %v8361, %v6017
    %v8378 = vsel %vm1558, %v8362, %v6019
    %v8379 = vsel %vm1558, %v8363, %v6021
    %v8380 = vsel %vm1558, %v8364, %v6023
    %v8381 = vsel %vm1558, %v8365, %v6025
    %v8382 = vsel %vm1558, %v8366, %v6027
    %v8383 = vsel %vm1558, %v8367, %v6029
    %v8384 = vsel %vm3781, %v8368, %v4830
    %v8385 = vsel %vm3781, %v8369, %v4832
    %v8386 = vsel %vm3781, %v8370, %v4834
    %v8387 = vsel %vm3781, %v8371, %v4836
    %v8388 = vsel %vm3781, %v8372, %v4838
    %v8389 = vsel %vm3781, %v8373, %v4840
    %v8390 = vsel %vm3781, %v8374, %v4842
    %v8391 = vsel %vm3781, %v8375, %v4844
    %v8392 = vsel %vm3781, %v8376, %v4846
    %v8393 = vsel %vm3781, %v8377, %v4848
    %v8394 = vsel %vm3781, %v8378, %v4850
    %v8395 = vsel %vm3781, %v8379, %v4852
    %v8396 = vsel %vm3781, %v8380, %v4854
    %v8397 = vsel %vm3781, %v8381, %v4856
    %v8398 = vsel %vm3781, %v8382, %v4858
    %v8399 = vsel %vm3781, %v8383, %v4860
    %v8400 = vsel %vm2908, %v8384, %v2992
    %v8401 = vsel %vm2908, %v8385, %v2994
    %v8402 = vsel %vm2908, %v8386, %v2997
    %v8403 = vsel %vm2908, %v8387, %v2999
    %v8404 = vsel %vm2908, %v8388, %v3002
    %v8405 = vsel %vm2908, %v8389, %v3004
    %v8406 = vsel %vm2908, %v8390, %v3007
    %v8407 = vsel %vm2908, %v8391, %v3009
    %v8408 = vsel %vm2908, %v8392, %v3012
    %v8409 = vsel %vm2908, %v8393, %v3014
    %v8410 = vsel %vm2908, %v8394, %v3017
    %v8411 = vsel %vm2908, %v8395, %v3019
    %v8412 = vsel %vm2908, %v8396, %v3022
    %v8413 = vsel %vm2908, %v8397, %v3024
    %v8414 = vsel %vm2908, %v8398, %v3027
    %v8415 = vsel %vm2908, %v8399, %v3029
    %v8416 = vmul.f32 %v3174, %v8400
    %v8417 = vmul.f32 %v3176, %v8401
    %v8418 = vmul.f32 %v3179, %v8402
    %v8419 = vmul.f32 %v3181, %v8403
    %v8420 = vmul.f32 %v3184, %v8404
    %v8421 = vmul.f32 %v3186, %v8405
    %v8422 = vmul.f32 %v3189, %v8406
    %v8423 = vmul.f32 %v3191, %v8407
    %v8424 = vmul.f32 %v3194, %v8408
    %v8425 = vmul.f32 %v3196, %v8409
    %v8426 = vmul.f32 %v3199, %v8410
    %v8427 = vmul.f32 %v3201, %v8411
    %v8428 = vmul.f32 %v3204, %v8412
    %v8429 = vmul.f32 %v3206, %v8413
    %v8430 = vmul.f32 %v3209, %v8414
    %v8431 = vmul.f32 %v3211, %v8415
    %v8432 = vpack.c.bf16 %v8417, %v8416
    %v8433 = vpack.c.bf16 %v8419, %v8418
    %v8434 = vpack.c.bf16 %v8421, %v8420
    %v8435 = vpack.c.bf16 %v8423, %v8422
    %v8436 = vpack.c.bf16 %v8425, %v8424
    %v8437 = vpack.c.bf16 %v8427, %v8426
    %v8438 = vpack.c.bf16 %v8429, %v8428
    %v8439 = vpack.c.bf16 %v8431, %v8430
    %v8441 = vsel %vm3853, %v8432, 0
    %v8444 = vsel %vm3853, %v8433, 0
    %v8447 = vsel %vm3853, %v8434, 0
    %v8450 = vsel %vm3853, %v8435, 0
    %v8453 = vsel %vm3853, %v8436, 0
    %v8456 = vsel %vm3853, %v8437, 0
    %v8459 = vsel %vm3853, %v8438, 0
    %v8462 = vsel %vm3853, %v8439, 0
    %8464 = vmatpush.bf16.msra.mxu0 0
    %8465 = vmatpush.bf16.msra.mxu0 0
    %8466 = vmatpush.bf16.msra.mxu0 0
    %8467 = vmatpush.bf16.msra.mxu0 0
    %8468 = vmatpush.bf16.msra.mxu0 0
    %8469 = vmatpush.bf16.msra.mxu0 %v3880
    %8470 = vmatpush.bf16.msra.mxu0 %v3849
    %8471 = vmatpush.bf16.msra.mxu0 %v3848
    %8472 = vmatmul.bf16.gmra.mxu0 %v8441
    %v8473 = vpop.f32.mrf.mxu0
    %v8474 = vadd.f32 0.0, %v8473
    %v8475 = vpop.f32.mrf.mxu0
    %v8476 = vadd.f32 0.0, %v8475
    %8477 = vmatmul.bf16.gmra.mxu0 %v8444
    %v8478 = vpop.f32.mrf.mxu0
    %v8479 = vadd.f32 0.0, %v8478
    %v8480 = vpop.f32.mrf.mxu0
    %v8481 = vadd.f32 0.0, %v8480
    %8482 = vmatmul.bf16.gmra.mxu0 %v8447
    %v8483 = vpop.f32.mrf.mxu0
    %v8484 = vadd.f32 0.0, %v8483
    %v8485 = vpop.f32.mrf.mxu0
    %v8486 = vadd.f32 0.0, %v8485
    %8487 = vmatmul.bf16.gmra.mxu0 %v8450
    %v8488 = vpop.f32.mrf.mxu0
    %v8489 = vadd.f32 0.0, %v8488
    %v8490 = vpop.f32.mrf.mxu0
    %v8491 = vadd.f32 0.0, %v8490
    %8492 = vmatmul.bf16.gmra.mxu0 %v8453
    %v8493 = vpop.f32.mrf.mxu0
    %v8494 = vadd.f32 0.0, %v8493
    %v8495 = vpop.f32.mrf.mxu0
    %v8496 = vadd.f32 0.0, %v8495
    %8497 = vmatmul.bf16.gmra.mxu0 %v8456
    %v8498 = vpop.f32.mrf.mxu0
    %v8499 = vadd.f32 0.0, %v8498
    %v8500 = vpop.f32.mrf.mxu0
    %v8501 = vadd.f32 0.0, %v8500
    %8502 = vmatmul.bf16.gmra.mxu0 %v8459
    %v8503 = vpop.f32.mrf.mxu0
    %v8504 = vadd.f32 0.0, %v8503
    %v8505 = vpop.f32.mrf.mxu0
    %v8506 = vadd.f32 0.0, %v8505
    %8507 = vmatmul.bf16.gmra.mxu0 %v8462
    %v8508 = vpop.f32.mrf.mxu0
    %v8509 = vadd.f32 0.0, %v8508
    %v8510 = vpop.f32.mrf.mxu0
    %v8511 = vadd.f32 0.0, %v8510
    %8512 = vdwg.mxu0
    %v8513 = vmul.f32 %v8474, 0.35355338
    %v8514 = vmul.f32 %v8476, 0.35355338
    %v8515 = vmul.f32 %v8479, 0.35355338
    %v8516 = vmul.f32 %v8481, 0.35355338
    %v8517 = vmul.f32 %v8484, 0.35355338
    %v8518 = vmul.f32 %v8486, 0.35355338
    %v8519 = vmul.f32 %v8489, 0.35355338
    %v8520 = vmul.f32 %v8491, 0.35355338
    %v8521 = vmul.f32 %v8494, 0.35355338
    %v8522 = vmul.f32 %v8496, 0.35355338
    %v8523 = vmul.f32 %v8499, 0.35355338
    %v8524 = vmul.f32 %v8501, 0.35355338
    %v8525 = vmul.f32 %v8504, 0.35355338
    %v8526 = vmul.f32 %v8506, 0.35355338
    %v8527 = vmul.f32 %v8509, 0.35355338
    %v8528 = vmul.f32 %v8511, 0.35355338
    %v8529 = vsel %vm3947, %v8513, -inf
    %8530 = vmax.xlane.f32.xlu0 %v8529
    %v8531 = vpop.xlane.xlu0 %8530
    %v8532 = vsel %vm3947, %v8514, -inf
    %8533 = vmax.xlane.f32.xlu0 %v8532
    %v8534 = vpop.xlane.xlu0 %8533
    %v8535 = vsel %vm3947, %v8515, -inf
    %8536 = vmax.xlane.f32.xlu0 %v8535
    %v8537 = vpop.xlane.xlu0 %8536
    %v8538 = vsel %vm3947, %v8516, -inf
    %8539 = vmax.xlane.f32.xlu0 %v8538
    %v8540 = vpop.xlane.xlu0 %8539
    %v8541 = vsel %vm3947, %v8517, -inf
    %8542 = vmax.xlane.f32.xlu0 %v8541
    %v8543 = vpop.xlane.xlu0 %8542
    %v8544 = vsel %vm3947, %v8518, -inf
    %8545 = vmax.xlane.f32.xlu0 %v8544
    %v8546 = vpop.xlane.xlu0 %8545
    %v8547 = vsel %vm3947, %v8519, -inf
    %8548 = vmax.xlane.f32.xlu0 %v8547
    %v8549 = vpop.xlane.xlu0 %8548
    %v8550 = vsel %vm3947, %v8520, -inf
    %8551 = vmax.xlane.f32.xlu0 %v8550
    %v8552 = vpop.xlane.xlu0 %8551
    %v8553 = vsel %vm3947, %v8521, -inf
    %8554 = vmax.xlane.f32.xlu0 %v8553
    %v8555 = vpop.xlane.xlu0 %8554
    %v8556 = vsel %vm3947, %v8522, -inf
    %8557 = vmax.xlane.f32.xlu0 %v8556
    %v8558 = vpop.xlane.xlu0 %8557
    %v8559 = vsel %vm3947, %v8523, -inf
    %8560 = vmax.xlane.f32.xlu0 %v8559
    %v8561 = vpop.xlane.xlu0 %8560
    %v8562 = vsel %vm3947, %v8524, -inf
    %8563 = vmax.xlane.f32.xlu0 %v8562
    %v8564 = vpop.xlane.xlu0 %8563
    %v8565 = vsel %vm3947, %v8525, -inf
    %8566 = vmax.xlane.f32.xlu0 %v8565
    %v8567 = vpop.xlane.xlu0 %8566
    %v8568 = vsel %vm3947, %v8526, -inf
    %8569 = vmax.xlane.f32.xlu0 %v8568
    %v8570 = vpop.xlane.xlu0 %8569
    %v8571 = vsel %vm3947, %v8527, -inf
    %8572 = vmax.xlane.f32.xlu0 %v8571
    %v8573 = vpop.xlane.xlu0 %8572
    %v8574 = vsel %vm3947, %v8528, -inf
    %8575 = vmax.xlane.f32.xlu0 %v8574
    %v8576 = vpop.xlane.xlu0 %8575
    %v8577 = vsub.f32 %v8513, %v8531
    %v8578 = vsub.f32 %v8514, %v8534
    %v8579 = vsub.f32 %v8515, %v8537
    %v8580 = vsub.f32 %v8516, %v8540
    %v8581 = vsub.f32 %v8517, %v8543
    %v8582 = vsub.f32 %v8518, %v8546
    %v8583 = vsub.f32 %v8519, %v8549
    %v8584 = vsub.f32 %v8520, %v8552
    %v8585 = vsub.f32 %v8521, %v8555
    %v8586 = vsub.f32 %v8522, %v8558
    %v8587 = vsub.f32 %v8523, %v8561
    %v8588 = vsub.f32 %v8524, %v8564
    %v8589 = vsub.f32 %v8525, %v8567
    %v8590 = vsub.f32 %v8526, %v8570
    %v8591 = vsub.f32 %v8527, %v8573
    %v8592 = vsub.f32 %v8528, %v8576
    %v8593 = vmul.f32 %v8577, 1.442695
    %v8594 = vpow.pop %v8593
    %v8595 = vmul.f32 %v8578, 1.442695
    %v8596 = vpow.pop %v8595
    %v8597 = vmul.f32 %v8579, 1.442695
    %v8598 = vpow.pop %v8597
    %v8599 = vmul.f32 %v8580, 1.442695
    %v8600 = vpow.pop %v8599
    %v8601 = vmul.f32 %v8581, 1.442695
    %v8602 = vpow.pop %v8601
    %v8603 = vmul.f32 %v8582, 1.442695
    %v8604 = vpow.pop %v8603
    %v8605 = vmul.f32 %v8583, 1.442695
    %v8606 = vpow.pop %v8605
    %v8607 = vmul.f32 %v8584, 1.442695
    %v8608 = vpow.pop %v8607
    %v8609 = vmul.f32 %v8585, 1.442695
    %v8610 = vpow.pop %v8609
    %v8611 = vmul.f32 %v8586, 1.442695
    %v8612 = vpow.pop %v8611
    %v8613 = vmul.f32 %v8587, 1.442695
    %v8614 = vpow.pop %v8613
    %v8615 = vmul.f32 %v8588, 1.442695
    %v8616 = vpow.pop %v8615
    %v8617 = vmul.f32 %v8589, 1.442695
    %v8618 = vpow.pop %v8617
    %v8619 = vmul.f32 %v8590, 1.442695
    %v8620 = vpow.pop %v8619
    %v8621 = vmul.f32 %v8591, 1.442695
    %v8622 = vpow.pop %v8621
    %v8623 = vmul.f32 %v8592, 1.442695
    %v8624 = vpow.pop %v8623
    %v8625 = vsel %vm3947, %v8594, 0.0
    %8626 = vadd.xlane.f32.xlu0 %v8625
    %v8627 = vpop.xlane.xlu0 %8626
    %v8628 = vsel %vm3947, %v8596, 0.0
    %8629 = vadd.xlane.f32.xlu0 %v8628
    %v8630 = vpop.xlane.xlu0 %8629
    %v8631 = vsel %vm3947, %v8598, 0.0
    %8632 = vadd.xlane.f32.xlu0 %v8631
    %v8633 = vpop.xlane.xlu0 %8632
    %v8634 = vsel %vm3947, %v8600, 0.0
    %8635 = vadd.xlane.f32.xlu0 %v8634
    %v8636 = vpop.xlane.xlu0 %8635
    %v8637 = vsel %vm3947, %v8602, 0.0
    %8638 = vadd.xlane.f32.xlu0 %v8637
    %v8639 = vpop.xlane.xlu0 %8638
    %v8640 = vsel %vm3947, %v8604, 0.0
    %8641 = vadd.xlane.f32.xlu0 %v8640
    %v8642 = vpop.xlane.xlu0 %8641
    %v8643 = vsel %vm3947, %v8606, 0.0
    %8644 = vadd.xlane.f32.xlu0 %v8643
    %v8645 = vpop.xlane.xlu0 %8644
    %v8646 = vsel %vm3947, %v8608, 0.0
    %8647 = vadd.xlane.f32.xlu0 %v8646
    %v8648 = vpop.xlane.xlu0 %8647
    %v8649 = vsel %vm3947, %v8610, 0.0
    %8650 = vadd.xlane.f32.xlu0 %v8649
    %v8651 = vpop.xlane.xlu0 %8650
    %v8652 = vsel %vm3947, %v8612, 0.0
    %8653 = vadd.xlane.f32.xlu0 %v8652
    %v8654 = vpop.xlane.xlu0 %8653
    %v8655 = vsel %vm3947, %v8614, 0.0
    %8656 = vadd.xlane.f32.xlu0 %v8655
    %v8657 = vpop.xlane.xlu0 %8656
    %v8658 = vsel %vm3947, %v8616, 0.0
    %8659 = vadd.xlane.f32.xlu0 %v8658
    %v8660 = vpop.xlane.xlu0 %8659
    %v8661 = vsel %vm3947, %v8618, 0.0
    %8662 = vadd.xlane.f32.xlu0 %v8661
    %v8663 = vpop.xlane.xlu0 %8662
    %v8664 = vsel %vm3947, %v8620, 0.0
    %8665 = vadd.xlane.f32.xlu0 %v8664
    %v8666 = vpop.xlane.xlu0 %8665
    %v8667 = vsel %vm3947, %v8622, 0.0
    %8668 = vadd.xlane.f32.xlu0 %v8667
    %v8669 = vpop.xlane.xlu0 %8668
    %v8670 = vsel %vm3947, %v8624, 0.0
    %8671 = vadd.xlane.f32.xlu0 %v8670
    %v8672 = vpop.xlane.xlu0 %8671
    %v8673 = vrcp.pop %v8627
    %v8674 = vrcp.pop %v8630
    %v8675 = vrcp.pop %v8633
    %v8676 = vrcp.pop %v8636
    %v8677 = vrcp.pop %v8639
    %v8678 = vrcp.pop %v8642
    %v8679 = vrcp.pop %v8645
    %v8680 = vrcp.pop %v8648
    %v8681 = vrcp.pop %v8651
    %v8682 = vrcp.pop %v8654
    %v8683 = vrcp.pop %v8657
    %v8684 = vrcp.pop %v8660
    %v8685 = vrcp.pop %v8663
    %v8686 = vrcp.pop %v8666
    %v8687 = vrcp.pop %v8669
    %v8688 = vrcp.pop %v8672
    %v8689 = vmul.f32 %v8594, %v8673
    %v8690 = vmul.f32 %v8596, %v8674
    %v8691 = vmul.f32 %v8598, %v8675
    %v8692 = vmul.f32 %v8600, %v8676
    %v8693 = vmul.f32 %v8602, %v8677
    %v8694 = vmul.f32 %v8604, %v8678
    %v8695 = vmul.f32 %v8606, %v8679
    %v8696 = vmul.f32 %v8608, %v8680
    %v8697 = vmul.f32 %v8610, %v8681
    %v8698 = vmul.f32 %v8612, %v8682
    %v8699 = vmul.f32 %v8614, %v8683
    %v8700 = vmul.f32 %v8616, %v8684
    %v8701 = vmul.f32 %v8618, %v8685
    %v8702 = vmul.f32 %v8620, %v8686
    %v8703 = vmul.f32 %v8622, %v8687
    %v8704 = vmul.f32 %v8624, %v8688
    %8706 = vset.pattern.permute.xlu0 0
    %8707 = vperm.xlu0 %8706, %v8689
    %v8708 = vpop.permute.xlu0 %8707
    %8711 = vset.pattern.permute.xlu0 0
    %8712 = vperm.xlu0 %8711, %v8690
    %v8713 = vpop.permute.xlu0 %8712
    %8716 = vset.pattern.permute.xlu0 0
    %8717 = vperm.xlu0 %8716, %v8691
    %v8718 = vpop.permute.xlu0 %8717
    %8721 = vset.pattern.permute.xlu0 0
    %8722 = vperm.xlu0 %8721, %v8692
    %v8723 = vpop.permute.xlu0 %8722
    %8726 = vset.pattern.permute.xlu0 0
    %8727 = vperm.xlu0 %8726, %v8693
    %v8728 = vpop.permute.xlu0 %8727
    %8731 = vset.pattern.permute.xlu0 0
    %8732 = vperm.xlu0 %8731, %v8694
    %v8733 = vpop.permute.xlu0 %8732
    %8736 = vset.pattern.permute.xlu0 0
    %8737 = vperm.xlu0 %8736, %v8695
    %v8738 = vpop.permute.xlu0 %8737
    %8741 = vset.pattern.permute.xlu0 0
    %8742 = vperm.xlu0 %8741, %v8696
    %v8743 = vpop.permute.xlu0 %8742
    %8746 = vset.pattern.permute.xlu0 0
    %8747 = vperm.xlu0 %8746, %v8697
    %v8748 = vpop.permute.xlu0 %8747
    %8751 = vset.pattern.permute.xlu0 0
    %8752 = vperm.xlu0 %8751, %v8698
    %v8753 = vpop.permute.xlu0 %8752
    %8756 = vset.pattern.permute.xlu0 0
    %8757 = vperm.xlu0 %8756, %v8699
    %v8758 = vpop.permute.xlu0 %8757
    %8761 = vset.pattern.permute.xlu0 0
    %8762 = vperm.xlu0 %8761, %v8700
    %v8763 = vpop.permute.xlu0 %8762
    %8766 = vset.pattern.permute.xlu0 0
    %8767 = vperm.xlu0 %8766, %v8701
    %v8768 = vpop.permute.xlu0 %8767
    %8771 = vset.pattern.permute.xlu0 0
    %8772 = vperm.xlu0 %8771, %v8702
    %v8773 = vpop.permute.xlu0 %8772
    %8776 = vset.pattern.permute.xlu0 0
    %8777 = vperm.xlu0 %8776, %v8703
    %v8778 = vpop.permute.xlu0 %8777
    %8781 = vset.pattern.permute.xlu0 0
    %8782 = vperm.xlu0 %8781, %v8704
    %v8783 = vpop.permute.xlu0 %8782
    %v8785 = vmul.f32 %v8708, %v3398
    %v8786 = vmul.f32 %v8713, %v3400
    %v8787 = vmul.f32 %v8718, %v3403
    %v8788 = vmul.f32 %v8723, %v3405
    %v8789 = vmul.f32 %v8728, %v3408
    %v8790 = vmul.f32 %v8733, %v3410
    %v8791 = vmul.f32 %v8738, %v3413
    %v8792 = vmul.f32 %v8743, %v3415
    %v8793 = vmul.f32 %v8748, %v3418
    %v8794 = vmul.f32 %v8753, %v3420
    %v8795 = vmul.f32 %v8758, %v3423
    %v8796 = vmul.f32 %v8763, %v3425
    %v8797 = vmul.f32 %v8768, %v3428
    %v8798 = vmul.f32 %v8773, %v3430
    %v8799 = vmul.f32 %v8778, %v3433
    %v8800 = vmul.f32 %v8783, %v3435
    %8801 = vset.pattern.permute.xlu0 1
    %8802 = vperm.xlu0 %8801, %v8689
    %v8803 = vpop.permute.xlu0 %8802
    %8805 = vset.pattern.permute.xlu0 1
    %8806 = vperm.xlu0 %8805, %v8690
    %v8807 = vpop.permute.xlu0 %8806
    %8809 = vset.pattern.permute.xlu0 1
    %8810 = vperm.xlu0 %8809, %v8691
    %v8811 = vpop.permute.xlu0 %8810
    %8813 = vset.pattern.permute.xlu0 1
    %8814 = vperm.xlu0 %8813, %v8692
    %v8815 = vpop.permute.xlu0 %8814
    %8817 = vset.pattern.permute.xlu0 1
    %8818 = vperm.xlu0 %8817, %v8693
    %v8819 = vpop.permute.xlu0 %8818
    %8821 = vset.pattern.permute.xlu0 1
    %8822 = vperm.xlu0 %8821, %v8694
    %v8823 = vpop.permute.xlu0 %8822
    %8825 = vset.pattern.permute.xlu0 1
    %8826 = vperm.xlu0 %8825, %v8695
    %v8827 = vpop.permute.xlu0 %8826
    %8829 = vset.pattern.permute.xlu0 1
    %8830 = vperm.xlu0 %8829, %v8696
    %v8831 = vpop.permute.xlu0 %8830
    %8833 = vset.pattern.permute.xlu0 1
    %8834 = vperm.xlu0 %8833, %v8697
    %v8835 = vpop.permute.xlu0 %8834
    %8837 = vset.pattern.permute.xlu0 1
    %8838 = vperm.xlu0 %8837, %v8698
    %v8839 = vpop.permute.xlu0 %8838
    %8841 = vset.pattern.permute.xlu0 1
    %8842 = vperm.xlu0 %8841, %v8699
    %v8843 = vpop.permute.xlu0 %8842
    %8845 = vset.pattern.permute.xlu0 1
    %8846 = vperm.xlu0 %8845, %v8700
    %v8847 = vpop.permute.xlu0 %8846
    %8849 = vset.pattern.permute.xlu0 1
    %8850 = vperm.xlu0 %8849, %v8701
    %v8851 = vpop.permute.xlu0 %8850
    %8853 = vset.pattern.permute.xlu0 1
    %8854 = vperm.xlu0 %8853, %v8702
    %v8855 = vpop.permute.xlu0 %8854
    %8857 = vset.pattern.permute.xlu0 1
    %8858 = vperm.xlu0 %8857, %v8703
    %v8859 = vpop.permute.xlu0 %8858
    %8861 = vset.pattern.permute.xlu0 1
    %8862 = vperm.xlu0 %8861, %v8704
    %v8863 = vpop.permute.xlu0 %8862
    %v8865 = vmul.f32 %v8803, %v3398
    %v8866 = vmul.f32 %v8807, %v3400
    %v8867 = vmul.f32 %v8811, %v3403
    %v8868 = vmul.f32 %v8815, %v3405
    %v8869 = vmul.f32 %v8819, %v3408
    %v8870 = vmul.f32 %v8823, %v3410
    %v8871 = vmul.f32 %v8827, %v3413
    %v8872 = vmul.f32 %v8831, %v3415
    %v8873 = vmul.f32 %v8835, %v3418
    %v8874 = vmul.f32 %v8839, %v3420
    %v8875 = vmul.f32 %v8843, %v3423
    %v8876 = vmul.f32 %v8847, %v3425
    %v8877 = vmul.f32 %v8851, %v3428
    %v8878 = vmul.f32 %v8855, %v3430
    %v8879 = vmul.f32 %v8859, %v3433
    %v8880 = vmul.f32 %v8863, %v3435
    %8897 = vrot.lane.b32.xlu0 %v8865, 96
    %v8898 = vpop.permute.xlu0 %8897
    %8899 = vrot.lane.b32.xlu0 %v8866, 96
    %v8900 = vpop.permute.xlu0 %8899
    %8901 = vrot.lane.b32.xlu0 %v8867, 96
    %v8902 = vpop.permute.xlu0 %8901
    %8903 = vrot.lane.b32.xlu0 %v8868, 96
    %v8904 = vpop.permute.xlu0 %8903
    %8905 = vrot.lane.b32.xlu0 %v8869, 96
    %v8906 = vpop.permute.xlu0 %8905
    %8907 = vrot.lane.b32.xlu0 %v8870, 96
    %v8908 = vpop.permute.xlu0 %8907
    %8909 = vrot.lane.b32.xlu0 %v8871, 96
    %v8910 = vpop.permute.xlu0 %8909
    %8911 = vrot.lane.b32.xlu0 %v8872, 96
    %v8912 = vpop.permute.xlu0 %8911
    %8913 = vrot.lane.b32.xlu0 %v8873, 96
    %v8914 = vpop.permute.xlu0 %8913
    %8915 = vrot.lane.b32.xlu0 %v8874, 96
    %v8916 = vpop.permute.xlu0 %8915
    %8917 = vrot.lane.b32.xlu0 %v8875, 96
    %v8918 = vpop.permute.xlu0 %8917
    %8919 = vrot.lane.b32.xlu0 %v8876, 96
    %v8920 = vpop.permute.xlu0 %8919
    %8921 = vrot.lane.b32.xlu0 %v8877, 96
    %v8922 = vpop.permute.xlu0 %8921
    %8923 = vrot.lane.b32.xlu0 %v8878, 96
    %v8924 = vpop.permute.xlu0 %8923
    %8925 = vrot.lane.b32.xlu0 %v8879, 96
    %v8926 = vpop.permute.xlu0 %8925
    %8927 = vrot.lane.b32.xlu0 %v8880, 96
    %v8928 = vpop.permute.xlu0 %8927
    %v8945 = vadd.f32 %v8785, %v8898
    %v8946 = vadd.f32 %v8786, %v8900
    %v8947 = vadd.f32 %v8787, %v8902
    %v8948 = vadd.f32 %v8788, %v8904
    %v8949 = vadd.f32 %v8789, %v8906
    %v8950 = vadd.f32 %v8790, %v8908
    %v8951 = vadd.f32 %v8791, %v8910
    %v8952 = vadd.f32 %v8792, %v8912
    %v8953 = vadd.f32 %v8793, %v8914
    %v8954 = vadd.f32 %v8794, %v8916
    %v8955 = vadd.f32 %v8795, %v8918
    %v8956 = vadd.f32 %v8796, %v8920
    %v8957 = vadd.f32 %v8797, %v8922
    %v8958 = vadd.f32 %v8798, %v8924
    %v8959 = vadd.f32 %v8799, %v8926
    %v8960 = vadd.f32 %v8800, %v8928
    %8961 = vset.pattern.permute.xlu0 2
    %8962 = vperm.xlu0 %8961, %v8689
    %v8963 = vpop.permute.xlu0 %8962
    %8965 = vset.pattern.permute.xlu0 2
    %8966 = vperm.xlu0 %8965, %v8690
    %v8967 = vpop.permute.xlu0 %8966
    %8969 = vset.pattern.permute.xlu0 2
    %8970 = vperm.xlu0 %8969, %v8691
    %v8971 = vpop.permute.xlu0 %8970
    %8973 = vset.pattern.permute.xlu0 2
    %8974 = vperm.xlu0 %8973, %v8692
    %v8975 = vpop.permute.xlu0 %8974
    %8977 = vset.pattern.permute.xlu0 2
    %8978 = vperm.xlu0 %8977, %v8693
    %v8979 = vpop.permute.xlu0 %8978
    %8981 = vset.pattern.permute.xlu0 2
    %8982 = vperm.xlu0 %8981, %v8694
    %v8983 = vpop.permute.xlu0 %8982
    %8985 = vset.pattern.permute.xlu0 2
    %8986 = vperm.xlu0 %8985, %v8695
    %v8987 = vpop.permute.xlu0 %8986
    %8989 = vset.pattern.permute.xlu0 2
    %8990 = vperm.xlu0 %8989, %v8696
    %v8991 = vpop.permute.xlu0 %8990
    %8993 = vset.pattern.permute.xlu0 2
    %8994 = vperm.xlu0 %8993, %v8697
    %v8995 = vpop.permute.xlu0 %8994
    %8997 = vset.pattern.permute.xlu0 2
    %8998 = vperm.xlu0 %8997, %v8698
    %v8999 = vpop.permute.xlu0 %8998
    %9001 = vset.pattern.permute.xlu0 2
    %9002 = vperm.xlu0 %9001, %v8699
    %v9003 = vpop.permute.xlu0 %9002
    %9005 = vset.pattern.permute.xlu0 2
    %9006 = vperm.xlu0 %9005, %v8700
    %v9007 = vpop.permute.xlu0 %9006
    %9009 = vset.pattern.permute.xlu0 2
    %9010 = vperm.xlu0 %9009, %v8701
    %v9011 = vpop.permute.xlu0 %9010
    %9013 = vset.pattern.permute.xlu0 2
    %9014 = vperm.xlu0 %9013, %v8702
    %v9015 = vpop.permute.xlu0 %9014
    %9017 = vset.pattern.permute.xlu0 2
    %9018 = vperm.xlu0 %9017, %v8703
    %v9019 = vpop.permute.xlu0 %9018
    %9021 = vset.pattern.permute.xlu0 2
    %9022 = vperm.xlu0 %9021, %v8704
    %v9023 = vpop.permute.xlu0 %9022
    %v9025 = vmul.f32 %v8963, %v3398
    %v9026 = vmul.f32 %v8967, %v3400
    %v9027 = vmul.f32 %v8971, %v3403
    %v9028 = vmul.f32 %v8975, %v3405
    %v9029 = vmul.f32 %v8979, %v3408
    %v9030 = vmul.f32 %v8983, %v3410
    %v9031 = vmul.f32 %v8987, %v3413
    %v9032 = vmul.f32 %v8991, %v3415
    %v9033 = vmul.f32 %v8995, %v3418
    %v9034 = vmul.f32 %v8999, %v3420
    %v9035 = vmul.f32 %v9003, %v3423
    %v9036 = vmul.f32 %v9007, %v3425
    %v9037 = vmul.f32 %v9011, %v3428
    %v9038 = vmul.f32 %v9015, %v3430
    %v9039 = vmul.f32 %v9019, %v3433
    %v9040 = vmul.f32 %v9023, %v3435
    %9057 = vrot.lane.b32.xlu0 %v9025, 64
    %v9058 = vpop.permute.xlu0 %9057
    %9059 = vrot.lane.b32.xlu0 %v9026, 64
    %v9060 = vpop.permute.xlu0 %9059
    %9061 = vrot.lane.b32.xlu0 %v9027, 64
    %v9062 = vpop.permute.xlu0 %9061
    %9063 = vrot.lane.b32.xlu0 %v9028, 64
    %v9064 = vpop.permute.xlu0 %9063
    %9065 = vrot.lane.b32.xlu0 %v9029, 64
    %v9066 = vpop.permute.xlu0 %9065
    %9067 = vrot.lane.b32.xlu0 %v9030, 64
    %v9068 = vpop.permute.xlu0 %9067
    %9069 = vrot.lane.b32.xlu0 %v9031, 64
    %v9070 = vpop.permute.xlu0 %9069
    %9071 = vrot.lane.b32.xlu0 %v9032, 64
    %v9072 = vpop.permute.xlu0 %9071
    %9073 = vrot.lane.b32.xlu0 %v9033, 64
    %v9074 = vpop.permute.xlu0 %9073
    %9075 = vrot.lane.b32.xlu0 %v9034, 64
    %v9076 = vpop.permute.xlu0 %9075
    %9077 = vrot.lane.b32.xlu0 %v9035, 64
    %v9078 = vpop.permute.xlu0 %9077
    %9079 = vrot.lane.b32.xlu0 %v9036, 64
    %v9080 = vpop.permute.xlu0 %9079
    %9081 = vrot.lane.b32.xlu0 %v9037, 64
    %v9082 = vpop.permute.xlu0 %9081
    %9083 = vrot.lane.b32.xlu0 %v9038, 64
    %v9084 = vpop.permute.xlu0 %9083
    %9085 = vrot.lane.b32.xlu0 %v9039, 64
    %v9086 = vpop.permute.xlu0 %9085
    %9087 = vrot.lane.b32.xlu0 %v9040, 64
    %v9088 = vpop.permute.xlu0 %9087
    %v9105 = vadd.f32 %v8945, %v9058
    %v9106 = vadd.f32 %v8946, %v9060
    %v9107 = vadd.f32 %v8947, %v9062
    %v9108 = vadd.f32 %v8948, %v9064
    %v9109 = vadd.f32 %v8949, %v9066
    %v9110 = vadd.f32 %v8950, %v9068
    %v9111 = vadd.f32 %v8951, %v9070
    %v9112 = vadd.f32 %v8952, %v9072
    %v9113 = vadd.f32 %v8953, %v9074
    %v9114 = vadd.f32 %v8954, %v9076
    %v9115 = vadd.f32 %v8955, %v9078
    %v9116 = vadd.f32 %v8956, %v9080
    %v9117 = vadd.f32 %v8957, %v9082
    %v9118 = vadd.f32 %v8958, %v9084
    %v9119 = vadd.f32 %v8959, %v9086
    %v9120 = vadd.f32 %v8960, %v9088
    %9121 = vset.pattern.permute.xlu0 3
    %9122 = vperm.xlu0 %9121, %v8689
    %v9123 = vpop.permute.xlu0 %9122
    %9125 = vset.pattern.permute.xlu0 3
    %9126 = vperm.xlu0 %9125, %v8690
    %v9127 = vpop.permute.xlu0 %9126
    %9129 = vset.pattern.permute.xlu0 3
    %9130 = vperm.xlu0 %9129, %v8691
    %v9131 = vpop.permute.xlu0 %9130
    %9133 = vset.pattern.permute.xlu0 3
    %9134 = vperm.xlu0 %9133, %v8692
    %v9135 = vpop.permute.xlu0 %9134
    %9137 = vset.pattern.permute.xlu0 3
    %9138 = vperm.xlu0 %9137, %v8693
    %v9139 = vpop.permute.xlu0 %9138
    %9141 = vset.pattern.permute.xlu0 3
    %9142 = vperm.xlu0 %9141, %v8694
    %v9143 = vpop.permute.xlu0 %9142
    %9145 = vset.pattern.permute.xlu0 3
    %9146 = vperm.xlu0 %9145, %v8695
    %v9147 = vpop.permute.xlu0 %9146
    %9149 = vset.pattern.permute.xlu0 3
    %9150 = vperm.xlu0 %9149, %v8696
    %v9151 = vpop.permute.xlu0 %9150
    %9153 = vset.pattern.permute.xlu0 3
    %9154 = vperm.xlu0 %9153, %v8697
    %v9155 = vpop.permute.xlu0 %9154
    %9157 = vset.pattern.permute.xlu0 3
    %9158 = vperm.xlu0 %9157, %v8698
    %v9159 = vpop.permute.xlu0 %9158
    %9161 = vset.pattern.permute.xlu0 3
    %9162 = vperm.xlu0 %9161, %v8699
    %v9163 = vpop.permute.xlu0 %9162
    %9165 = vset.pattern.permute.xlu0 3
    %9166 = vperm.xlu0 %9165, %v8700
    %v9167 = vpop.permute.xlu0 %9166
    %9169 = vset.pattern.permute.xlu0 3
    %9170 = vperm.xlu0 %9169, %v8701
    %v9171 = vpop.permute.xlu0 %9170
    %9173 = vset.pattern.permute.xlu0 3
    %9174 = vperm.xlu0 %9173, %v8702
    %v9175 = vpop.permute.xlu0 %9174
    %9177 = vset.pattern.permute.xlu0 3
    %9178 = vperm.xlu0 %9177, %v8703
    %v9179 = vpop.permute.xlu0 %9178
    %9181 = vset.pattern.permute.xlu0 3
    %9182 = vperm.xlu0 %9181, %v8704
    %v9183 = vpop.permute.xlu0 %9182
    %v9185 = vmul.f32 %v9123, %v3398
    %v9186 = vmul.f32 %v9127, %v3400
    %v9187 = vmul.f32 %v9131, %v3403
    %v9188 = vmul.f32 %v9135, %v3405
    %v9189 = vmul.f32 %v9139, %v3408
    %v9190 = vmul.f32 %v9143, %v3410
    %v9191 = vmul.f32 %v9147, %v3413
    %v9192 = vmul.f32 %v9151, %v3415
    %v9193 = vmul.f32 %v9155, %v3418
    %v9194 = vmul.f32 %v9159, %v3420
    %v9195 = vmul.f32 %v9163, %v3423
    %v9196 = vmul.f32 %v9167, %v3425
    %v9197 = vmul.f32 %v9171, %v3428
    %v9198 = vmul.f32 %v9175, %v3430
    %v9199 = vmul.f32 %v9179, %v3433
    %v9200 = vmul.f32 %v9183, %v3435
    %9217 = vrot.lane.b32.xlu0 %v9185, 32
    %v9218 = vpop.permute.xlu0 %9217
    %9219 = vrot.lane.b32.xlu0 %v9186, 32
    %v9220 = vpop.permute.xlu0 %9219
    %9221 = vrot.lane.b32.xlu0 %v9187, 32
    %v9222 = vpop.permute.xlu0 %9221
    %9223 = vrot.lane.b32.xlu0 %v9188, 32
    %v9224 = vpop.permute.xlu0 %9223
    %9225 = vrot.lane.b32.xlu0 %v9189, 32
    %v9226 = vpop.permute.xlu0 %9225
    %9227 = vrot.lane.b32.xlu0 %v9190, 32
    %v9228 = vpop.permute.xlu0 %9227
    %9229 = vrot.lane.b32.xlu0 %v9191, 32
    %v9230 = vpop.permute.xlu0 %9229
    %9231 = vrot.lane.b32.xlu0 %v9192, 32
    %v9232 = vpop.permute.xlu0 %9231
    %9233 = vrot.lane.b32.xlu0 %v9193, 32
    %v9234 = vpop.permute.xlu0 %9233
    %9235 = vrot.lane.b32.xlu0 %v9194, 32
    %v9236 = vpop.permute.xlu0 %9235
    %9237 = vrot.lane.b32.xlu0 %v9195, 32
    %v9238 = vpop.permute.xlu0 %9237
    %9239 = vrot.lane.b32.xlu0 %v9196, 32
    %v9240 = vpop.permute.xlu0 %9239
    %9241 = vrot.lane.b32.xlu0 %v9197, 32
    %v9242 = vpop.permute.xlu0 %9241
    %9243 = vrot.lane.b32.xlu0 %v9198, 32
    %v9244 = vpop.permute.xlu0 %9243
    %9245 = vrot.lane.b32.xlu0 %v9199, 32
    %v9246 = vpop.permute.xlu0 %9245
    %9247 = vrot.lane.b32.xlu0 %v9200, 32
    %v9248 = vpop.permute.xlu0 %9247
    %v9265 = vadd.f32 %v9105, %v9218
    %v9266 = vadd.f32 %v9106, %v9220
    %v9267 = vadd.f32 %v9107, %v9222
    %v9268 = vadd.f32 %v9108, %v9224
    %v9269 = vadd.f32 %v9109, %v9226
    %v9270 = vadd.f32 %v9110, %v9228
    %v9271 = vadd.f32 %v9111, %v9230
    %v9272 = vadd.f32 %v9112, %v9232
    %v9273 = vadd.f32 %v9113, %v9234
    %v9274 = vadd.f32 %v9114, %v9236
    %v9275 = vadd.f32 %v9115, %v9238
    %v9276 = vadd.f32 %v9116, %v9240
    %v9277 = vadd.f32 %v9117, %v9242
    %v9278 = vadd.f32 %v9118, %v9244
    %v9279 = vadd.f32 %v9119, %v9246
    %v9280 = vadd.f32 %v9120, %v9248
    %9281 = vset.pattern.permute.xlu0 4
    %9282 = vperm.xlu0 %9281, %v8689
    %v9283 = vpop.permute.xlu0 %9282
    %9285 = vset.pattern.permute.xlu0 4
    %9286 = vperm.xlu0 %9285, %v8690
    %v9287 = vpop.permute.xlu0 %9286
    %9289 = vset.pattern.permute.xlu0 4
    %9290 = vperm.xlu0 %9289, %v8691
    %v9291 = vpop.permute.xlu0 %9290
    %9293 = vset.pattern.permute.xlu0 4
    %9294 = vperm.xlu0 %9293, %v8692
    %v9295 = vpop.permute.xlu0 %9294
    %9297 = vset.pattern.permute.xlu0 4
    %9298 = vperm.xlu0 %9297, %v8693
    %v9299 = vpop.permute.xlu0 %9298
    %9301 = vset.pattern.permute.xlu0 4
    %9302 = vperm.xlu0 %9301, %v8694
    %v9303 = vpop.permute.xlu0 %9302
    %9305 = vset.pattern.permute.xlu0 4
    %9306 = vperm.xlu0 %9305, %v8695
    %v9307 = vpop.permute.xlu0 %9306
    %9309 = vset.pattern.permute.xlu0 4
    %9310 = vperm.xlu0 %9309, %v8696
    %v9311 = vpop.permute.xlu0 %9310
    %9313 = vset.pattern.permute.xlu0 4
    %9314 = vperm.xlu0 %9313, %v8697
    %v9315 = vpop.permute.xlu0 %9314
    %9317 = vset.pattern.permute.xlu0 4
    %9318 = vperm.xlu0 %9317, %v8698
    %v9319 = vpop.permute.xlu0 %9318
    %9321 = vset.pattern.permute.xlu0 4
    %9322 = vperm.xlu0 %9321, %v8699
    %v9323 = vpop.permute.xlu0 %9322
    %9325 = vset.pattern.permute.xlu0 4
    %9326 = vperm.xlu0 %9325, %v8700
    %v9327 = vpop.permute.xlu0 %9326
    %9329 = vset.pattern.permute.xlu0 4
    %9330 = vperm.xlu0 %9329, %v8701
    %v9331 = vpop.permute.xlu0 %9330
    %9333 = vset.pattern.permute.xlu0 4
    %9334 = vperm.xlu0 %9333, %v8702
    %v9335 = vpop.permute.xlu0 %9334
    %9337 = vset.pattern.permute.xlu0 4
    %9338 = vperm.xlu0 %9337, %v8703
    %v9339 = vpop.permute.xlu0 %9338
    %9341 = vset.pattern.permute.xlu0 4
    %9342 = vperm.xlu0 %9341, %v8704
    %v9343 = vpop.permute.xlu0 %9342
    %v9345 = vmul.f32 %v9283, %v3496
    %v9346 = vmul.f32 %v9287, %v3498
    %v9347 = vmul.f32 %v9291, %v3501
    %v9348 = vmul.f32 %v9295, %v3503
    %v9349 = vmul.f32 %v9299, %v3506
    %v9350 = vmul.f32 %v9303, %v3508
    %v9351 = vmul.f32 %v9307, %v3511
    %v9352 = vmul.f32 %v9311, %v3513
    %v9353 = vmul.f32 %v9315, %v3516
    %v9354 = vmul.f32 %v9319, %v3518
    %v9355 = vmul.f32 %v9323, %v3521
    %v9356 = vmul.f32 %v9327, %v3523
    %v9357 = vmul.f32 %v9331, %v3526
    %v9358 = vmul.f32 %v9335, %v3528
    %v9359 = vmul.f32 %v9339, %v3531
    %v9360 = vmul.f32 %v9343, %v3533
    %v9361 = vadd.f32 %v9265, %v9345
    %v9362 = vadd.f32 %v9266, %v9346
    %v9363 = vadd.f32 %v9267, %v9347
    %v9364 = vadd.f32 %v9268, %v9348
    %v9365 = vadd.f32 %v9269, %v9349
    %v9366 = vadd.f32 %v9270, %v9350
    %v9367 = vadd.f32 %v9271, %v9351
    %v9368 = vadd.f32 %v9272, %v9352
    %v9369 = vadd.f32 %v9273, %v9353
    %v9370 = vadd.f32 %v9274, %v9354
    %v9371 = vadd.f32 %v9275, %v9355
    %v9372 = vadd.f32 %v9276, %v9356
    %v9373 = vadd.f32 %v9277, %v9357
    %v9374 = vadd.f32 %v9278, %v9358
    %v9375 = vadd.f32 %v9279, %v9359
    %v9376 = vadd.f32 %v9280, %v9360
    %v9377 = vmul.f32 %v4796, %v9361
    %v9378 = vmul.f32 %v4796, %v9362
    %v9379 = vmul.f32 %v4796, %v9363
    %v9380 = vmul.f32 %v4796, %v9364
    %v9381 = vmul.f32 %v4796, %v9365
    %v9382 = vmul.f32 %v4796, %v9366
    %v9383 = vmul.f32 %v4796, %v9367
    %v9384 = vmul.f32 %v4796, %v9368
    %v9385 = vmul.f32 %v4796, %v9369
    %v9386 = vmul.f32 %v4796, %v9370
    %v9387 = vmul.f32 %v4796, %v9371
    %v9388 = vmul.f32 %v4796, %v9372
    %v9389 = vmul.f32 %v4796, %v9373
    %v9390 = vmul.f32 %v4796, %v9374
    %v9391 = vmul.f32 %v4796, %v9375
    %v9392 = vmul.f32 %v4796, %v9376
    %v9393 = vadd.f32 %v9377, %v2745
    %v9394 = vadd.f32 %v9378, %v2747
    %v9395 = vadd.f32 %v9379, %v2749
    %v9396 = vadd.f32 %v9380, %v2751
    %v9397 = vadd.f32 %v9381, %v2753
    %v9398 = vadd.f32 %v9382, %v2755
    %v9399 = vadd.f32 %v9383, %v2757
    %v9400 = vadd.f32 %v9384, %v2759
    %v9401 = vadd.f32 %v9385, %v2761
    %v9402 = vadd.f32 %v9386, %v2763
    %v9403 = vadd.f32 %v9387, %v2765
    %v9404 = vadd.f32 %v9388, %v2767
    %v9405 = vadd.f32 %v9389, %v2769
    %v9406 = vadd.f32 %v9390, %v2771
    %v9407 = vadd.f32 %v9391, %v2773
    %v9408 = vadd.f32 %v9392, %v2775
    %9425 = vrot.lane.b32.xlu0 %v5982, 32
    %v9426 = vpop.permute.xlu0 %9425
    %9427 = vrot.lane.b32.xlu0 %v5983, 32
    %v9428 = vpop.permute.xlu0 %9427
    %9429 = vrot.lane.b32.xlu0 %v5984, 32
    %v9430 = vpop.permute.xlu0 %9429
    %9431 = vrot.lane.b32.xlu0 %v5985, 32
    %v9432 = vpop.permute.xlu0 %9431
    %9433 = vrot.lane.b32.xlu0 %v5986, 32
    %v9434 = vpop.permute.xlu0 %9433
    %9435 = vrot.lane.b32.xlu0 %v5987, 32
    %v9436 = vpop.permute.xlu0 %9435
    %9437 = vrot.lane.b32.xlu0 %v5988, 32
    %v9438 = vpop.permute.xlu0 %9437
    %9439 = vrot.lane.b32.xlu0 %v5989, 32
    %v9440 = vpop.permute.xlu0 %9439
    %9441 = vrot.lane.b32.xlu0 %v5990, 32
    %v9442 = vpop.permute.xlu0 %9441
    %9443 = vrot.lane.b32.xlu0 %v5991, 32
    %v9444 = vpop.permute.xlu0 %9443
    %9445 = vrot.lane.b32.xlu0 %v5992, 32
    %v9446 = vpop.permute.xlu0 %9445
    %9447 = vrot.lane.b32.xlu0 %v5993, 32
    %v9448 = vpop.permute.xlu0 %9447
    %9449 = vrot.lane.b32.xlu0 %v5994, 32
    %v9450 = vpop.permute.xlu0 %9449
    %9451 = vrot.lane.b32.xlu0 %v5995, 32
    %v9452 = vpop.permute.xlu0 %9451
    %9453 = vrot.lane.b32.xlu0 %v5996, 32
    %v9454 = vpop.permute.xlu0 %9453
    %9455 = vrot.lane.b32.xlu0 %v5997, 32
    %v9456 = vpop.permute.xlu0 %9455
    %9489 = vrot.lane.b32.xlu0 %v7135, 64
    %v9490 = vpop.permute.xlu0 %9489
    %9491 = vrot.lane.b32.xlu0 %v7136, 64
    %v9492 = vpop.permute.xlu0 %9491
    %9493 = vrot.lane.b32.xlu0 %v7137, 64
    %v9494 = vpop.permute.xlu0 %9493
    %9495 = vrot.lane.b32.xlu0 %v7138, 64
    %v9496 = vpop.permute.xlu0 %9495
    %9497 = vrot.lane.b32.xlu0 %v7139, 64
    %v9498 = vpop.permute.xlu0 %9497
    %9499 = vrot.lane.b32.xlu0 %v7140, 64
    %v9500 = vpop.permute.xlu0 %9499
    %9501 = vrot.lane.b32.xlu0 %v7141, 64
    %v9502 = vpop.permute.xlu0 %9501
    %9503 = vrot.lane.b32.xlu0 %v7142, 64
    %v9504 = vpop.permute.xlu0 %9503
    %9505 = vrot.lane.b32.xlu0 %v7143, 64
    %v9506 = vpop.permute.xlu0 %9505
    %9507 = vrot.lane.b32.xlu0 %v7144, 64
    %v9508 = vpop.permute.xlu0 %9507
    %9509 = vrot.lane.b32.xlu0 %v7145, 64
    %v9510 = vpop.permute.xlu0 %9509
    %9511 = vrot.lane.b32.xlu0 %v7146, 64
    %v9512 = vpop.permute.xlu0 %9511
    %9513 = vrot.lane.b32.xlu0 %v7147, 64
    %v9514 = vpop.permute.xlu0 %9513
    %9515 = vrot.lane.b32.xlu0 %v7148, 64
    %v9516 = vpop.permute.xlu0 %9515
    %9517 = vrot.lane.b32.xlu0 %v7149, 64
    %v9518 = vpop.permute.xlu0 %9517
    %9519 = vrot.lane.b32.xlu0 %v7150, 64
    %v9520 = vpop.permute.xlu0 %9519
    %9553 = vrot.lane.b32.xlu0 %v8288, 96
    %v9554 = vpop.permute.xlu0 %9553
    %9555 = vrot.lane.b32.xlu0 %v8289, 96
    %v9556 = vpop.permute.xlu0 %9555
    %9557 = vrot.lane.b32.xlu0 %v8290, 96
    %v9558 = vpop.permute.xlu0 %9557
    %9559 = vrot.lane.b32.xlu0 %v8291, 96
    %v9560 = vpop.permute.xlu0 %9559
    %9561 = vrot.lane.b32.xlu0 %v8292, 96
    %v9562 = vpop.permute.xlu0 %9561
    %9563 = vrot.lane.b32.xlu0 %v8293, 96
    %v9564 = vpop.permute.xlu0 %9563
    %9565 = vrot.lane.b32.xlu0 %v8294, 96
    %v9566 = vpop.permute.xlu0 %9565
    %9567 = vrot.lane.b32.xlu0 %v8295, 96
    %v9568 = vpop.permute.xlu0 %9567
    %9569 = vrot.lane.b32.xlu0 %v8296, 96
    %v9570 = vpop.permute.xlu0 %9569
    %9571 = vrot.lane.b32.xlu0 %v8297, 96
    %v9572 = vpop.permute.xlu0 %9571
    %9573 = vrot.lane.b32.xlu0 %v8298, 96
    %v9574 = vpop.permute.xlu0 %9573
    %9575 = vrot.lane.b32.xlu0 %v8299, 96
    %v9576 = vpop.permute.xlu0 %9575
    %9577 = vrot.lane.b32.xlu0 %v8300, 96
    %v9578 = vpop.permute.xlu0 %9577
    %9579 = vrot.lane.b32.xlu0 %v8301, 96
    %v9580 = vpop.permute.xlu0 %9579
    %9581 = vrot.lane.b32.xlu0 %v8302, 96
    %v9582 = vpop.permute.xlu0 %9581
    %9583 = vrot.lane.b32.xlu0 %v8303, 96
    %v9584 = vpop.permute.xlu0 %9583
    %v9601 = vsel %vm2908, %v4813, %v9426
    %v9602 = vsel %vm2908, %v4814, %v9428
    %v9603 = vsel %vm2908, %v4815, %v9430
    %v9604 = vsel %vm2908, %v4816, %v9432
    %v9605 = vsel %vm2908, %v4817, %v9434
    %v9606 = vsel %vm2908, %v4818, %v9436
    %v9607 = vsel %vm2908, %v4819, %v9438
    %v9608 = vsel %vm2908, %v4820, %v9440
    %v9609 = vsel %vm2908, %v4821, %v9442
    %v9610 = vsel %vm2908, %v4822, %v9444
    %v9611 = vsel %vm2908, %v4823, %v9446
    %v9612 = vsel %vm2908, %v4824, %v9448
    %v9613 = vsel %vm2908, %v4825, %v9450
    %v9614 = vsel %vm2908, %v4826, %v9452
    %v9615 = vsel %vm2908, %v4827, %v9454
    %v9616 = vsel %vm2908, %v4828, %v9456
    %v9617 = vsel %vm1632, %v9601, %v9490
    %v9618 = vsel %vm1632, %v9602, %v9492
    %v9619 = vsel %vm1632, %v9603, %v9494
    %v9620 = vsel %vm1632, %v9604, %v9496
    %v9621 = vsel %vm1632, %v9605, %v9498
    %v9622 = vsel %vm1632, %v9606, %v9500
    %v9623 = vsel %vm1632, %v9607, %v9502
    %v9624 = vsel %vm1632, %v9608, %v9504
    %v9625 = vsel %vm1632, %v9609, %v9506
    %v9626 = vsel %vm1632, %v9610, %v9508
    %v9627 = vsel %vm1632, %v9611, %v9510
    %v9628 = vsel %vm1632, %v9612, %v9512
    %v9629 = vsel %vm1632, %v9613, %v9514
    %v9630 = vsel %vm1632, %v9614, %v9516
    %v9631 = vsel %vm1632, %v9615, %v9518
    %v9632 = vsel %vm1632, %v9616, %v9520
    %v9633 = vsel %vm305, %v9617, %v9554
    %v9634 = vsel %vm305, %v9618, %v9556
    %v9635 = vsel %vm305, %v9619, %v9558
    %v9636 = vsel %vm305, %v9620, %v9560
    %v9637 = vsel %vm305, %v9621, %v9562
    %v9638 = vsel %vm305, %v9622, %v9564
    %v9639 = vsel %vm305, %v9623, %v9566
    %v9640 = vsel %vm305, %v9624, %v9568
    %v9641 = vsel %vm305, %v9625, %v9570
    %v9642 = vsel %vm305, %v9626, %v9572
    %v9643 = vsel %vm305, %v9627, %v9574
    %v9644 = vsel %vm305, %v9628, %v9576
    %v9645 = vsel %vm305, %v9629, %v9578
    %v9646 = vsel %vm305, %v9630, %v9580
    %v9647 = vsel %vm305, %v9631, %v9582
    %v9648 = vsel %vm305, %v9632, %v9584
    %v9649 = vpack.c.bf16 %v9634, %v9633
    %v9650 = vpack.c.bf16 %v9394, %v9393
    %v9651 = vpack.c.bf16 %v9636, %v9635
    %v9652 = vpack.c.bf16 %v9396, %v9395
    %v9653 = vpack.c.bf16 %v9638, %v9637
    %v9654 = vpack.c.bf16 %v9398, %v9397
    %v9655 = vpack.c.bf16 %v9640, %v9639
    %v9656 = vpack.c.bf16 %v9400, %v9399
    %v9657 = vpack.c.bf16 %v9642, %v9641
    %v9658 = vpack.c.bf16 %v9402, %v9401
    %v9659 = vpack.c.bf16 %v9644, %v9643
    %v9660 = vpack.c.bf16 %v9404, %v9403
    %v9661 = vpack.c.bf16 %v9646, %v9645
    %v9662 = vpack.c.bf16 %v9406, %v9405
    %v9663 = vpack.c.bf16 %v9648, %v9647
    %v9664 = vpack.c.bf16 %v9408, %v9407
    %v9665 = vld [vmem:[%s55] sm:$0xf]
    %v9666 = vld [vmem:[%s55 + $0x4] sm:$0xf]
    %v9667 = vld [vmem:[%s55 + $0x8] sm:$0xf]
    %v9668 = vld [vmem:[%s55 + $0xc] sm:$0xf]
    %v9669 = vld [vmem:[%s55 + $0x10] sm:$0xf]
    %v9670 = vld [vmem:[%s55 + $0x14] sm:$0xf]
    %v9671 = vld [vmem:[%s55 + $0x18] sm:$0xf]
    %v9672 = vld [vmem:[%s55 + $0x1c] sm:$0xf]
    %v9673 = vld [vmem:[%s55 + $0x20] sm:$0xf]
    %v9674 = vld [vmem:[%s55 + $0x24] sm:$0xf]
    %v9675 = vld [vmem:[%s55 + $0x28] sm:$0xf]
    %v9676 = vld [vmem:[%s55 + $0x2c] sm:$0xf]
    %v9677 = vld [vmem:[%s55 + $0x30] sm:$0xf]
    %v9678 = vld [vmem:[%s55 + $0x34] sm:$0xf]
    %v9679 = vld [vmem:[%s55 + $0x38] sm:$0xf]
    %v9680 = vld [vmem:[%s55 + $0x3c] sm:$0xf]
    %v9681 = vld [vmem:[%s55 + $0x40] sm:$0xf]
    %v9682 = vld [vmem:[%s55 + $0x44] sm:$0xf]
    %v9683 = vld [vmem:[%s55 + $0x48] sm:$0xf]
    %v9684 = vld [vmem:[%s55 + $0x4c] sm:$0xf]
    %v9685 = vld [vmem:[%s57] sm:$0x1]
    %v9687 = vperm.slane %v9685, 0
    %v9709 = vunpack.c.l.b16 %v9665
    %v9710 = vunpack.c.l.b16 %v9666
    %v9711 = vunpack.c.l.b16 %v9667
    %v9712 = vunpack.c.l.b16 %v9668
    %v9713 = vunpack.c.l.b16 %v9669
    %v9714 = vunpack.c.l.b16 %v9670
    %v9715 = vunpack.c.l.b16 %v9671
    %v9716 = vunpack.c.l.b16 %v9672
    %v9717 = vunpack.c.l.b16 %v9673
    %v9718 = vunpack.c.l.b16 %v9674
    %v9719 = vunpack.c.l.b16 %v9675
    %v9720 = vunpack.c.l.b16 %v9676
    %v9721 = vunpack.c.l.b16 %v9677
    %v9722 = vunpack.c.l.b16 %v9678
    %v9723 = vunpack.c.l.b16 %v9679
    %v9724 = vunpack.c.l.b16 %v9680
    %v9725 = vunpack.c.l.b16 %v9681
    %v9726 = vunpack.c.l.b16 %v9682
    %v9727 = vunpack.c.l.b16 %v9683
    %v9728 = vunpack.c.l.b16 %v9684
    %v9729 = vpack.c.b16 %v9710, %v9709
    %v9730 = vpack.c.b16 %v9712, %v9711
    %v9731 = vpack.c.b16 %v9714, %v9713
    %v9732 = vpack.c.b16 %v9716, %v9715
    %v9733 = vpack.c.b16 %v9718, %v9717
    %v9734 = vpack.c.b16 %v9720, %v9719
    %v9735 = vpack.c.b16 %v9722, %v9721
    %v9736 = vpack.c.b16 %v9724, %v9723
    %v9737 = vpack.c.b16 %v9726, %v9725
    %v9738 = vpack.c.b16 %v9728, %v9727
    %v9750 = vsel %vm2908, %v9650, 0
    %v9753 = vsel %vm2908, %v9652, 0
    %v9756 = vsel %vm2908, %v9654, 0
    %v9759 = vsel %vm2908, %v9656, 0
    %v9762 = vsel %vm2908, %v9658, 0
    %v9765 = vsel %vm2908, %v9660, 0
    %v9768 = vsel %vm2908, %v9662, 0
    %v9771 = vsel %vm2908, %v9664, 0
    %9773 = vmatpush.bf16.msra.mxu0 %v9736
    %9774 = vmatpush.bf16.msra.mxu0 %v9735
    %9775 = vmatpush.bf16.msra.mxu0 %v9734
    %9776 = vmatpush.bf16.msra.mxu0 %v9733
    %9777 = vmatpush.bf16.msra.mxu0 %v9732
    %9778 = vmatpush.bf16.msra.mxu0 %v9731
    %9779 = vmatpush.bf16.msra.mxu0 %v9730
    %9780 = vmatpush.bf16.msra.mxu0 %v9729
    %9781 = vmatmul.bf16.gmra.mxu0 %v9649
    %v9782 = vpop.f32.mrf.mxu0
    %v9783 = vadd.f32 %v9687, %v9782
    %v9784 = vpop.f32.mrf.mxu0
    %v9785 = vadd.f32 %v9687, %v9784
    %9786 = vmatmul.bf16.gmra.mxu0 %v9651
    %v9787 = vpop.f32.mrf.mxu0
    %v9788 = vadd.f32 %v9687, %v9787
    %v9789 = vpop.f32.mrf.mxu0
    %v9790 = vadd.f32 %v9687, %v9789
    %9791 = vmatmul.bf16.gmra.mxu0 %v9653
    %v9792 = vpop.f32.mrf.mxu0
    %v9793 = vadd.f32 %v9687, %v9792
    %v9794 = vpop.f32.mrf.mxu0
    %v9795 = vadd.f32 %v9687, %v9794
    %9796 = vmatmul.bf16.gmra.mxu0 %v9655
    %v9797 = vpop.f32.mrf.mxu0
    %v9798 = vadd.f32 %v9687, %v9797
    %v9799 = vpop.f32.mrf.mxu0
    %v9800 = vadd.f32 %v9687, %v9799
    %9801 = vmatmul.bf16.gmra.mxu0 %v9657
    %v9802 = vpop.f32.mrf.mxu0
    %v9803 = vadd.f32 %v9687, %v9802
    %v9804 = vpop.f32.mrf.mxu0
    %v9805 = vadd.f32 %v9687, %v9804
    %9806 = vmatmul.bf16.gmra.mxu0 %v9659
    %v9807 = vpop.f32.mrf.mxu0
    %v9808 = vadd.f32 %v9687, %v9807
    %v9809 = vpop.f32.mrf.mxu0
    %v9810 = vadd.f32 %v9687, %v9809
    %9811 = vmatmul.bf16.gmra.mxu0 %v9661
    %v9812 = vpop.f32.mrf.mxu0
    %v9813 = vadd.f32 %v9687, %v9812
    %v9814 = vpop.f32.mrf.mxu0
    %v9815 = vadd.f32 %v9687, %v9814
    %9816 = vmatmul.bf16.gmra.mxu0 %v9663
    %v9817 = vpop.f32.mrf.mxu0
    %v9818 = vadd.f32 %v9687, %v9817
    %v9819 = vpop.f32.mrf.mxu0
    %v9820 = vadd.f32 %v9687, %v9819
    %9821 = vdwg.mxu0
    %9822 = vmatpush.bf16.msra.mxu0 0
    %9823 = vmatpush.bf16.msra.mxu0 0
    %9824 = vmatpush.bf16.msra.mxu0 0
    %9825 = vmatpush.bf16.msra.mxu0 0
    %9826 = vmatpush.bf16.msra.mxu0 0
    %9827 = vmatpush.bf16.msra.mxu0 0
    %9828 = vmatpush.bf16.msra.mxu0 %v9738
    %9829 = vmatpush.bf16.msra.mxu0 %v9737
    %9830 = vmatmul.bf16.gmra.mxu0 %v9750
    %v9831 = vpop.f32.mrf.mxu0
    %v9832 = vadd.f32 %v9783, %v9831
    %v9833 = vpop.f32.mrf.mxu0
    %v9834 = vadd.f32 %v9785, %v9833
    %9835 = vmatmul.bf16.gmra.mxu0 %v9753
    %v9836 = vpop.f32.mrf.mxu0
    %v9837 = vadd.f32 %v9788, %v9836
    %v9838 = vpop.f32.mrf.mxu0
    %v9839 = vadd.f32 %v9790, %v9838
    %9840 = vmatmul.bf16.gmra.mxu0 %v9756
    %v9841 = vpop.f32.mrf.mxu0
    %v9842 = vadd.f32 %v9793, %v9841
    %v9843 = vpop.f32.mrf.mxu0
    %v9844 = vadd.f32 %v9795, %v9843
    %9845 = vmatmul.bf16.gmra.mxu0 %v9759
    %v9846 = vpop.f32.mrf.mxu0
    %v9847 = vadd.f32 %v9798, %v9846
    %v9848 = vpop.f32.mrf.mxu0
    %v9849 = vadd.f32 %v9800, %v9848
    %9850 = vmatmul.bf16.gmra.mxu0 %v9762
    %v9851 = vpop.f32.mrf.mxu0
    %v9852 = vadd.f32 %v9803, %v9851
    %v9853 = vpop.f32.mrf.mxu0
    %v9854 = vadd.f32 %v9805, %v9853
    %9855 = vmatmul.bf16.gmra.mxu0 %v9765
    %v9856 = vpop.f32.mrf.mxu0
    %v9857 = vadd.f32 %v9808, %v9856
    %v9858 = vpop.f32.mrf.mxu0
    %v9859 = vadd.f32 %v9810, %v9858
    %9860 = vmatmul.bf16.gmra.mxu0 %v9768
    %v9861 = vpop.f32.mrf.mxu0
    %v9862 = vadd.f32 %v9813, %v9861
    %v9863 = vpop.f32.mrf.mxu0
    %v9864 = vadd.f32 %v9815, %v9863
    %9865 = vmatmul.bf16.gmra.mxu0 %v9771
    %v9866 = vpop.f32.mrf.mxu0
    %v9867 = vadd.f32 %v9818, %v9866
    %v9868 = vpop.f32.mrf.mxu0
    %v9869 = vadd.f32 %v9820, %v9868
    %9870 = vdwg.mxu0
    %v9871 = vld [vmem:[%s5] sm:$0xf]
    %v9872 = vld [vmem:[%s5 + $0x4] sm:$0xf]
    %v9873 = vld [vmem:[%s5 + $0x8] sm:$0xf]
    %v9874 = vld [vmem:[%s5 + $0xc] sm:$0xf]
    %v9875 = vld [vmem:[%s5 + $0x10] sm:$0xf]
    %v9876 = vld [vmem:[%s5 + $0x14] sm:$0xf]
    %v9877 = vld [vmem:[%s5 + $0x18] sm:$0xf]
    %v9878 = vld [vmem:[%s5 + $0x1c] sm:$0xf]
    %v9879 = vld [vmem:[%s5 + $0x20] sm:$0xf]
    %v9880 = vld [vmem:[%s5 + $0x24] sm:$0xf]
    %v9881 = vld [vmem:[%s5 + $0x28] sm:$0xf]
    %v9882 = vld [vmem:[%s5 + $0x2c] sm:$0xf]
    %v9883 = vld [vmem:[%s5 + $0x30] sm:$0xf]
    %v9884 = vld [vmem:[%s5 + $0x34] sm:$0xf]
    %v9885 = vld [vmem:[%s5 + $0x38] sm:$0xf]
    %v9886 = vld [vmem:[%s5 + $0x3c] sm:$0xf]
    %v9887 = vld [vmem:[%s59] sm:$0xf]
    %v9888 = vld [vmem:[%s59 + $0x4] sm:$0xf]
    %v9889 = vld [vmem:[%s59 + $0x8] sm:$0xf]
    %v9890 = vld [vmem:[%s59 + $0xc] sm:$0xf]
    %v9907 = vunpack.c.l.b16 %v9871
    %v9908 = vunpack.c.l.b16 %v9872
    %v9909 = vunpack.c.l.b16 %v9873
    %v9910 = vunpack.c.l.b16 %v9874
    %v9911 = vunpack.c.l.b16 %v9875
    %v9912 = vunpack.c.l.b16 %v9876
    %v9913 = vunpack.c.l.b16 %v9877
    %v9914 = vunpack.c.l.b16 %v9878
    %v9915 = vunpack.c.l.b16 %v9879
    %v9916 = vunpack.c.l.b16 %v9880
    %v9917 = vunpack.c.l.b16 %v9881
    %v9918 = vunpack.c.l.b16 %v9882
    %v9919 = vunpack.c.l.b16 %v9883
    %v9920 = vunpack.c.l.b16 %v9884
    %v9921 = vunpack.c.l.b16 %v9885
    %v9922 = vunpack.c.l.b16 %v9886
    %v9923 = vpack.c.b16 %v9908, %v9907
    %v9924 = vpack.c.b16 %v9910, %v9909
    %v9925 = vpack.c.b16 %v9912, %v9911
    %v9926 = vpack.c.b16 %v9914, %v9913
    %v9927 = vpack.c.b16 %v9916, %v9915
    %v9928 = vpack.c.b16 %v9918, %v9917
    %v9929 = vpack.c.b16 %v9920, %v9919
    %v9930 = vpack.c.b16 %v9922, %v9921
    %v9935 = vunpack.c.l.b16 %v9887
    %v9936 = vunpack.c.l.b16 %v9888
    %v9937 = vunpack.c.l.b16 %v9889
    %v9938 = vunpack.c.l.b16 %v9890
    %v9939 = vpack.c.b16 %v9936, %v9935
    %v9940 = vpack.c.b16 %v9938, %v9937
    %v9944 = vsel %vm2908, %v9923, 0
    %v9947 = vsel %vm2908, %v9924, 0
    %v9950 = vsel %vm2908, %v9925, 0
    %v9953 = vsel %vm2908, %v9926, 0
    %v9956 = vsel %vm2908, %v9927, 0
    %v9959 = vsel %vm2908, %v9928, 0
    %v9962 = vsel %vm2908, %v9929, 0
    %v9965 = vsel %vm2908, %v9930, 0
    %9967 = vmatpush.bf16.msra.mxu0 0
    %9968 = vmatpush.bf16.msra.mxu0 0
    %9969 = vmatpush.bf16.msra.mxu0 0
    %9970 = vmatpush.bf16.msra.mxu0 0
    %9971 = vmatpush.bf16.msra.mxu0 0
    %9972 = vmatpush.bf16.msra.mxu0 0
    %9973 = vmatpush.bf16.msra.mxu0 %v9940
    %9974 = vmatpush.bf16.msra.mxu0 %v9939
    %9975 = vmatmul.bf16.gmra.mxu0 %v9944
    %v9976 = vpop.f32.mrf.mxu0
    %v9977 = vadd.f32 0.0, %v9976
    %v9978 = vpop.f32.mrf.mxu0
    %v9979 = vadd.f32 0.0, %v9978
    %9980 = vmatmul.bf16.gmra.mxu0 %v9947
    %v9981 = vpop.f32.mrf.mxu0
    %v9982 = vadd.f32 0.0, %v9981
    %v9983 = vpop.f32.mrf.mxu0
    %v9984 = vadd.f32 0.0, %v9983
    %9985 = vmatmul.bf16.gmra.mxu0 %v9950
    %v9986 = vpop.f32.mrf.mxu0
    %v9987 = vadd.f32 0.0, %v9986
    %v9988 = vpop.f32.mrf.mxu0
    %v9989 = vadd.f32 0.0, %v9988
    %9990 = vmatmul.bf16.gmra.mxu0 %v9953
    %v9991 = vpop.f32.mrf.mxu0
    %v9992 = vadd.f32 0.0, %v9991
    %v9993 = vpop.f32.mrf.mxu0
    %v9994 = vadd.f32 0.0, %v9993
    %9995 = vmatmul.bf16.gmra.mxu0 %v9956
    %v9996 = vpop.f32.mrf.mxu0
    %v9997 = vadd.f32 0.0, %v9996
    %v9998 = vpop.f32.mrf.mxu0
    %v9999 = vadd.f32 0.0, %v9998
    %10000 = vmatmul.bf16.gmra.mxu0 %v9959
    %v10001 = vpop.f32.mrf.mxu0
    %v10002 = vadd.f32 0.0, %v10001
    %v10003 = vpop.f32.mrf.mxu0
    %v10004 = vadd.f32 0.0, %v10003
    %10005 = vmatmul.bf16.gmra.mxu0 %v9962
    %v10006 = vpop.f32.mrf.mxu0
    %v10007 = vadd.f32 0.0, %v10006
    %v10008 = vpop.f32.mrf.mxu0
    %v10009 = vadd.f32 0.0, %v10008
    %10010 = vmatmul.bf16.gmra.mxu0 %v9965
    %v10011 = vpop.f32.mrf.mxu0
    %v10012 = vadd.f32 0.0, %v10011
    %v10013 = vpop.f32.mrf.mxu0
    %v10014 = vadd.f32 0.0, %v10013
    %10015 = vdwg.mxu0
    %v10016 = vadd.f32 %v9832, %v9977
    %v10017 = vadd.f32 %v9834, %v9979
    %v10018 = vadd.f32 %v9837, %v9982
    %v10019 = vadd.f32 %v9839, %v9984
    %v10020 = vadd.f32 %v9842, %v9987
    %v10021 = vadd.f32 %v9844, %v9989
    %v10022 = vadd.f32 %v9847, %v9992
    %v10023 = vadd.f32 %v9849, %v9994
    %v10024 = vadd.f32 %v9852, %v9997
    %v10025 = vadd.f32 %v9854, %v9999
    %v10026 = vadd.f32 %v9857, %v10002
    %v10027 = vadd.f32 %v9859, %v10004
    %v10028 = vadd.f32 %v9862, %v10007
    %v10029 = vadd.f32 %v9864, %v10009
    %v10030 = vadd.f32 %v9867, %v10012
    %v10031 = vadd.f32 %v9869, %v10014
    %vm10032 = vcmp.ge.f32.partialorder %v10016, 0.0
    %vm10033 = vcmp.ge.f32.partialorder %v10017, 0.0
    %vm10034 = vcmp.ge.f32.partialorder %v10018, 0.0
    %vm10035 = vcmp.ge.f32.partialorder %v10019, 0.0
    %vm10036 = vcmp.ge.f32.partialorder %v10020, 0.0
    %vm10037 = vcmp.ge.f32.partialorder %v10021, 0.0
    %vm10038 = vcmp.ge.f32.partialorder %v10022, 0.0
    %vm10039 = vcmp.ge.f32.partialorder %v10023, 0.0
    %vm10040 = vcmp.ge.f32.partialorder %v10024, 0.0
    %vm10041 = vcmp.ge.f32.partialorder %v10025, 0.0
    %vm10042 = vcmp.ge.f32.partialorder %v10026, 0.0
    %vm10043 = vcmp.ge.f32.partialorder %v10027, 0.0
    %vm10044 = vcmp.ge.f32.partialorder %v10028, 0.0
    %vm10045 = vcmp.ge.f32.partialorder %v10029, 0.0
    %vm10046 = vcmp.ge.f32.partialorder %v10030, 0.0
    %vm10047 = vcmp.ge.f32.partialorder %v10031, 0.0
    %v10048 = vstv %s194
    %v10049 = vmul.f32 %v10048, %v10016
    %v10050 = vmul.f32 %v10048, %v10017
    %v10051 = vmul.f32 %v10048, %v10018
    %v10052 = vmul.f32 %v10048, %v10019
    %v10053 = vmul.f32 %v10048, %v10020
    %v10054 = vmul.f32 %v10048, %v10021
    %v10055 = vmul.f32 %v10048, %v10022
    %v10056 = vmul.f32 %v10048, %v10023
    %v10057 = vmul.f32 %v10048, %v10024
    %v10058 = vmul.f32 %v10048, %v10025
    %v10059 = vmul.f32 %v10048, %v10026
    %v10060 = vmul.f32 %v10048, %v10027
    %v10061 = vmul.f32 %v10048, %v10028
    %v10062 = vmul.f32 %v10048, %v10029
    %v10063 = vmul.f32 %v10048, %v10030
    %v10064 = vmul.f32 %v10048, %v10031
    %v10065 = vsel %vm10032, %v10016, %v10049
    %v10066 = vsel %vm10033, %v10017, %v10050
    %v10067 = vsel %vm10034, %v10018, %v10051
    %v10068 = vsel %vm10035, %v10019, %v10052
    %v10069 = vsel %vm10036, %v10020, %v10053
    %v10070 = vsel %vm10037, %v10021, %v10054
    %v10071 = vsel %vm10038, %v10022, %v10055
    %v10072 = vsel %vm10039, %v10023, %v10056
    %v10073 = vsel %vm10040, %v10024, %v10057
    %v10074 = vsel %vm10041, %v10025, %v10058
    %v10075 = vsel %vm10042, %v10026, %v10059
    %v10076 = vsel %vm10043, %v10027, %v10060
    %v10077 = vsel %vm10044, %v10028, %v10061
    %v10078 = vsel %vm10045, %v10029, %v10062
    %v10079 = vsel %vm10046, %v10030, %v10063
    %v10080 = vsel %vm10047, %v10031, %v10064
    %v10081 = vpack.c.bf16 %v10066, %v10065
    %v10082 = vpack.c.bf16 %v10068, %v10067
    %v10083 = vpack.c.bf16 %v10070, %v10069
    %v10084 = vpack.c.bf16 %v10072, %v10071
    %v10085 = vpack.c.bf16 %v10074, %v10073
    %v10086 = vpack.c.bf16 %v10076, %v10075
    %v10087 = vpack.c.bf16 %v10078, %v10077
    %v10088 = vpack.c.bf16 %v10080, %v10079
    %v10089 = vld [vmem:[%s61] sm:$0xf]
    %v10090 = vld [vmem:[%s61 + $0x4] sm:$0xf]
    %v10091 = vld [vmem:[%s61 + $0x8] sm:$0xf]
    %v10092 = vld [vmem:[%s61 + $0xc] sm:$0xf]
    %v10097 = vunpack.c.l.b16 %v10089
    %v10098 = vunpack.c.l.b16 %v10090
    %v10099 = vunpack.c.l.b16 %v10091
    %v10100 = vunpack.c.l.b16 %v10092
    %v10101 = vpack.c.b16 %v10098, %v10097
    %v10102 = vpack.c.b16 %v10100, %v10099
    %v10106 = vsel %vm2908, %v10081, 0
    %v10109 = vsel %vm2908, %v10082, 0
    %v10112 = vsel %vm2908, %v10083, 0
    %v10115 = vsel %vm2908, %v10084, 0
    %v10118 = vsel %vm2908, %v10085, 0
    %v10121 = vsel %vm2908, %v10086, 0
    %v10124 = vsel %vm2908, %v10087, 0
    %v10127 = vsel %vm2908, %v10088, 0
    %10129 = vmatpush.bf16.msra.mxu0 0
    %10130 = vmatpush.bf16.msra.mxu0 0
    %10131 = vmatpush.bf16.msra.mxu0 0
    %10132 = vmatpush.bf16.msra.mxu0 0
    %10133 = vmatpush.bf16.msra.mxu0 0
    %10134 = vmatpush.bf16.msra.mxu0 0
    %10135 = vmatpush.bf16.msra.mxu0 %v10102
    %10136 = vmatpush.bf16.msra.mxu0 %v10101
    %10137 = vmatmul.bf16.gmra.mxu0 %v10106
    %v10138 = vpop.f32.mrf.mxu0
    %v10139 = vadd.f32 0.0, %v10138
    %v10140 = vpop.f32.mrf.mxu0
    %v10141 = vadd.f32 0.0, %v10140
    %10142 = vmatmul.bf16.gmra.mxu0 %v10109
    %v10143 = vpop.f32.mrf.mxu0
    %v10144 = vadd.f32 0.0, %v10143
    %v10145 = vpop.f32.mrf.mxu0
    %v10146 = vadd.f32 0.0, %v10145
    %10147 = vmatmul.bf16.gmra.mxu0 %v10112
    %v10148 = vpop.f32.mrf.mxu0
    %v10149 = vadd.f32 0.0, %v10148
    %v10150 = vpop.f32.mrf.mxu0
    %v10151 = vadd.f32 0.0, %v10150
    %10152 = vmatmul.bf16.gmra.mxu0 %v10115
    %v10153 = vpop.f32.mrf.mxu0
    %v10154 = vadd.f32 0.0, %v10153
    %v10155 = vpop.f32.mrf.mxu0
    %v10156 = vadd.f32 0.0, %v10155
    %10157 = vmatmul.bf16.gmra.mxu0 %v10118
    %v10158 = vpop.f32.mrf.mxu0
    %v10159 = vadd.f32 0.0, %v10158
    %v10160 = vpop.f32.mrf.mxu0
    %v10161 = vadd.f32 0.0, %v10160
    %10162 = vmatmul.bf16.gmra.mxu0 %v10121
    %v10163 = vpop.f32.mrf.mxu0
    %v10164 = vadd.f32 0.0, %v10163
    %v10165 = vpop.f32.mrf.mxu0
    %v10166 = vadd.f32 0.0, %v10165
    %10167 = vmatmul.bf16.gmra.mxu0 %v10124
    %v10168 = vpop.f32.mrf.mxu0
    %v10169 = vadd.f32 0.0, %v10168
    %v10170 = vpop.f32.mrf.mxu0
    %v10171 = vadd.f32 0.0, %v10170
    %10172 = vmatmul.bf16.gmra.mxu0 %v10127
    %v10173 = vpop.f32.mrf.mxu0
    %v10174 = vadd.f32 0.0, %v10173
    %v10175 = vpop.f32.mrf.mxu0
    %v10176 = vadd.f32 0.0, %v10175
    %10177 = vdwg.mxu0
    %v10178 = vld [vmem:[%s63] sm:$0x1]
    %v10180 = vperm.slane %v10178, 0
    %v10182 = vmul.f32 %v10139, %v10180
    %v10183 = vmul.f32 %v10141, %v10180
    %v10184 = vmul.f32 %v10144, %v10180
    %v10185 = vmul.f32 %v10146, %v10180
    %v10186 = vmul.f32 %v10149, %v10180
    %v10187 = vmul.f32 %v10151, %v10180
    %v10188 = vmul.f32 %v10154, %v10180
    %v10189 = vmul.f32 %v10156, %v10180
    %v10190 = vmul.f32 %v10159, %v10180
    %v10191 = vmul.f32 %v10161, %v10180
    %v10192 = vmul.f32 %v10164, %v10180
    %v10193 = vmul.f32 %v10166, %v10180
    %v10194 = vmul.f32 %v10169, %v10180
    %v10195 = vmul.f32 %v10171, %v10180
    %v10196 = vmul.f32 %v10174, %v10180
    %v10197 = vmul.f32 %v10176, %v10180
    %v10198 = vld [vmem:[%s65] sm:$0x1]
    %v10200 = vperm.slane %v10198, 0
    %v10202 = vadd.f32 %v10182, %v10200
    %v10203 = vadd.f32 %v10183, %v10200
    %v10204 = vadd.f32 %v10184, %v10200
    %v10205 = vadd.f32 %v10185, %v10200
    %v10206 = vadd.f32 %v10186, %v10200
    %v10207 = vadd.f32 %v10187, %v10200
    %v10208 = vadd.f32 %v10188, %v10200
    %v10209 = vadd.f32 %v10189, %v10200
    %v10210 = vadd.f32 %v10190, %v10200
    %v10211 = vadd.f32 %v10191, %v10200
    %v10212 = vadd.f32 %v10192, %v10200
    %v10213 = vadd.f32 %v10193, %v10200
    %v10214 = vadd.f32 %v10194, %v10200
    %v10215 = vadd.f32 %v10195, %v10200
    %v10216 = vadd.f32 %v10196, %v10200
    %v10217 = vadd.f32 %v10197, %v10200
    %vm10218 = vcmp.ge.f32.partialorder %v10202, 0.0
    %vm10219 = vcmp.ge.f32.partialorder %v10203, 0.0
    %vm10220 = vcmp.ge.f32.partialorder %v10204, 0.0
    %vm10221 = vcmp.ge.f32.partialorder %v10205, 0.0
    %vm10222 = vcmp.ge.f32.partialorder %v10206, 0.0
    %vm10223 = vcmp.ge.f32.partialorder %v10207, 0.0
    %vm10224 = vcmp.ge.f32.partialorder %v10208, 0.0
    %vm10225 = vcmp.ge.f32.partialorder %v10209, 0.0
    %vm10226 = vcmp.ge.f32.partialorder %v10210, 0.0
    %vm10227 = vcmp.ge.f32.partialorder %v10211, 0.0
    %vm10228 = vcmp.ge.f32.partialorder %v10212, 0.0
    %vm10229 = vcmp.ge.f32.partialorder %v10213, 0.0
    %vm10230 = vcmp.ge.f32.partialorder %v10214, 0.0
    %vm10231 = vcmp.ge.f32.partialorder %v10215, 0.0
    %vm10232 = vcmp.ge.f32.partialorder %v10216, 0.0
    %vm10233 = vcmp.ge.f32.partialorder %v10217, 0.0
    %v10234 = vstv %s195
    %v10235 = vmul.f32 %v10234, %v10202
    %v10236 = vmul.f32 %v10234, %v10203
    %v10237 = vmul.f32 %v10234, %v10204
    %v10238 = vmul.f32 %v10234, %v10205
    %v10239 = vmul.f32 %v10234, %v10206
    %v10240 = vmul.f32 %v10234, %v10207
    %v10241 = vmul.f32 %v10234, %v10208
    %v10242 = vmul.f32 %v10234, %v10209
    %v10243 = vmul.f32 %v10234, %v10210
    %v10244 = vmul.f32 %v10234, %v10211
    %v10245 = vmul.f32 %v10234, %v10212
    %v10246 = vmul.f32 %v10234, %v10213
    %v10247 = vmul.f32 %v10234, %v10214
    %v10248 = vmul.f32 %v10234, %v10215
    %v10249 = vmul.f32 %v10234, %v10216
    %v10250 = vmul.f32 %v10234, %v10217
    %v10251 = vsel %vm10218, %v10202, %v10235
    %v10252 = vsel %vm10219, %v10203, %v10236
    %v10253 = vsel %vm10220, %v10204, %v10237
    %v10254 = vsel %vm10221, %v10205, %v10238
    %v10255 = vsel %vm10222, %v10206, %v10239
    %v10256 = vsel %vm10223, %v10207, %v10240
    %v10257 = vsel %vm10224, %v10208, %v10241
    %v10258 = vsel %vm10225, %v10209, %v10242
    %v10259 = vsel %vm10226, %v10210, %v10243
    %v10260 = vsel %vm10227, %v10211, %v10244
    %v10261 = vsel %vm10228, %v10212, %v10245
    %v10262 = vsel %vm10229, %v10213, %v10246
    %v10263 = vsel %vm10230, %v10214, %v10247
    %v10264 = vsel %vm10231, %v10215, %v10248
    %v10265 = vsel %vm10232, %v10216, %v10249
    %v10266 = vsel %vm10233, %v10217, %v10250
    %v10267 = vpack.c.bf16 %v10252, %v10251
    %v10268 = vpack.c.bf16 %v10254, %v10253
    %v10269 = vpack.c.bf16 %v10256, %v10255
    %v10270 = vpack.c.bf16 %v10258, %v10257
    %v10271 = vpack.c.bf16 %v10260, %v10259
    %v10272 = vpack.c.bf16 %v10262, %v10261
    %v10273 = vpack.c.bf16 %v10264, %v10263
    %v10274 = vpack.c.bf16 %v10266, %v10265
    %v10275 = vld [vmem:[%s67] sm:$0xf]
    %v10276 = vld [vmem:[%s67 + $0x4] sm:$0xf]
    %v10277 = vld [vmem:[%s67 + $0x8] sm:$0xf]
    %v10278 = vld [vmem:[%s67 + $0xc] sm:$0xf]
    %v10283 = vunpack.c.l.b16 %v10275
    %v10284 = vunpack.c.l.b16 %v10276
    %v10285 = vunpack.c.l.b16 %v10277
    %v10286 = vunpack.c.l.b16 %v10278
    %v10287 = vpack.c.b16 %v10284, %v10283
    %v10288 = vpack.c.b16 %v10286, %v10285
    %v10292 = vsel %vm2908, %v10267, 0
    %v10295 = vsel %vm2908, %v10268, 0
    %v10298 = vsel %vm2908, %v10269, 0
    %v10301 = vsel %vm2908, %v10270, 0
    %v10304 = vsel %vm2908, %v10271, 0
    %v10307 = vsel %vm2908, %v10272, 0
    %v10310 = vsel %vm2908, %v10273, 0
    %v10313 = vsel %vm2908, %v10274, 0
    %10315 = vmatpush.bf16.msra.mxu0 0
    %10316 = vmatpush.bf16.msra.mxu0 0
    %10317 = vmatpush.bf16.msra.mxu0 0
    %10318 = vmatpush.bf16.msra.mxu0 0
    %10319 = vmatpush.bf16.msra.mxu0 0
    %10320 = vmatpush.bf16.msra.mxu0 0
    %10321 = vmatpush.bf16.msra.mxu0 %v10288
    %10322 = vmatpush.bf16.msra.mxu0 %v10287
    %10323 = vmatmul.bf16.gmra.mxu0 %v10292
    %v10324 = vpop.f32.mrf.mxu0
    %v10325 = vadd.f32 0.0, %v10324
    %v10326 = vpop.f32.mrf.mxu0
    %v10327 = vadd.f32 0.0, %v10326
    %10328 = vmatmul.bf16.gmra.mxu0 %v10295
    %v10329 = vpop.f32.mrf.mxu0
    %v10330 = vadd.f32 0.0, %v10329
    %v10331 = vpop.f32.mrf.mxu0
    %v10332 = vadd.f32 0.0, %v10331
    %10333 = vmatmul.bf16.gmra.mxu0 %v10298
    %v10334 = vpop.f32.mrf.mxu0
    %v10335 = vadd.f32 0.0, %v10334
    %v10336 = vpop.f32.mrf.mxu0
    %v10337 = vadd.f32 0.0, %v10336
    %10338 = vmatmul.bf16.gmra.mxu0 %v10301
    %v10339 = vpop.f32.mrf.mxu0
    %v10340 = vadd.f32 0.0, %v10339
    %v10341 = vpop.f32.mrf.mxu0
    %v10342 = vadd.f32 0.0, %v10341
    %10343 = vmatmul.bf16.gmra.mxu0 %v10304
    %v10344 = vpop.f32.mrf.mxu0
    %v10345 = vadd.f32 0.0, %v10344
    %v10346 = vpop.f32.mrf.mxu0
    %v10347 = vadd.f32 0.0, %v10346
    %10348 = vmatmul.bf16.gmra.mxu0 %v10307
    %v10349 = vpop.f32.mrf.mxu0
    %v10350 = vadd.f32 0.0, %v10349
    %v10351 = vpop.f32.mrf.mxu0
    %v10352 = vadd.f32 0.0, %v10351
    %10353 = vmatmul.bf16.gmra.mxu0 %v10310
    %v10354 = vpop.f32.mrf.mxu0
    %v10355 = vadd.f32 0.0, %v10354
    %v10356 = vpop.f32.mrf.mxu0
    %v10357 = vadd.f32 0.0, %v10356
    %10358 = vmatmul.bf16.gmra.mxu0 %v10313
    %v10359 = vpop.f32.mrf.mxu0
    %v10360 = vadd.f32 0.0, %v10359
    %v10361 = vpop.f32.mrf.mxu0
    %v10362 = vadd.f32 0.0, %v10361
    %10363 = vdwg.mxu0
    %v10364 = vld [vmem:[%s69] sm:$0x1]
    %v10366 = vperm.slane %v10364, 0
    %v10368 = vmul.f32 %v10325, %v10366
    %v10369 = vmul.f32 %v10327, %v10366
    %v10370 = vmul.f32 %v10330, %v10366
    %v10371 = vmul.f32 %v10332, %v10366
    %v10372 = vmul.f32 %v10335, %v10366
    %v10373 = vmul.f32 %v10337, %v10366
    %v10374 = vmul.f32 %v10340, %v10366
    %v10375 = vmul.f32 %v10342, %v10366
    %v10376 = vmul.f32 %v10345, %v10366
    %v10377 = vmul.f32 %v10347, %v10366
    %v10378 = vmul.f32 %v10350, %v10366
    %v10379 = vmul.f32 %v10352, %v10366
    %v10380 = vmul.f32 %v10355, %v10366
    %v10381 = vmul.f32 %v10357, %v10366
    %v10382 = vmul.f32 %v10360, %v10366
    %v10383 = vmul.f32 %v10362, %v10366
    %v10384 = vld [vmem:[%s71] sm:$0x1]
    %v10386 = vperm.slane %v10384, 0
    %v10388 = vadd.f32 %v10368, %v10386
    %v10389 = vadd.f32 %v10369, %v10386
    %v10390 = vadd.f32 %v10370, %v10386
    %v10391 = vadd.f32 %v10371, %v10386
    %v10392 = vadd.f32 %v10372, %v10386
    %v10393 = vadd.f32 %v10373, %v10386
    %v10394 = vadd.f32 %v10374, %v10386
    %v10395 = vadd.f32 %v10375, %v10386
    %v10396 = vadd.f32 %v10376, %v10386
    %v10397 = vadd.f32 %v10377, %v10386
    %v10398 = vadd.f32 %v10378, %v10386
    %v10399 = vadd.f32 %v10379, %v10386
    %v10400 = vadd.f32 %v10380, %v10386
    %v10401 = vadd.f32 %v10381, %v10386
    %v10402 = vadd.f32 %v10382, %v10386
    %v10403 = vadd.f32 %v10383, %v10386
    %v10404 = vld [vmem:[%s7] sm:$0xf]
    %v10405 = vld [vmem:[%s7 + $0x4] sm:$0xf]
    %v10406 = vld [vmem:[%s7 + $0x8] sm:$0xf]
    %v10407 = vld [vmem:[%s7 + $0xc] sm:$0xf]
    %v10408 = vld [vmem:[%s7 + $0x10] sm:$0xf]
    %v10409 = vld [vmem:[%s7 + $0x14] sm:$0xf]
    %v10410 = vld [vmem:[%s7 + $0x18] sm:$0xf]
    %v10411 = vld [vmem:[%s7 + $0x1c] sm:$0xf]
    %v10412 = vld [vmem:[%s7 + $0x20] sm:$0xf]
    %v10413 = vld [vmem:[%s7 + $0x24] sm:$0xf]
    %v10414 = vld [vmem:[%s7 + $0x28] sm:$0xf]
    %v10415 = vld [vmem:[%s7 + $0x2c] sm:$0xf]
    %v10416 = vld [vmem:[%s7 + $0x30] sm:$0xf]
    %v10417 = vld [vmem:[%s7 + $0x34] sm:$0xf]
    %v10418 = vld [vmem:[%s7 + $0x38] sm:$0xf]
    %v10419 = vld [vmem:[%s7 + $0x3c] sm:$0xf]
    %v10420 = vld [vmem:[%s73] sm:$0xf]
    %v10437 = vunpack.c.l.b16 %v10404
    %v10438 = vunpack.c.l.b16 %v10405
    %v10439 = vunpack.c.l.b16 %v10406
    %v10440 = vunpack.c.l.b16 %v10407
    %v10441 = vunpack.c.l.b16 %v10408
    %v10442 = vunpack.c.l.b16 %v10409
    %v10443 = vunpack.c.l.b16 %v10410
    %v10444 = vunpack.c.l.b16 %v10411
    %v10445 = vunpack.c.l.b16 %v10412
    %v10446 = vunpack.c.l.b16 %v10413
    %v10447 = vunpack.c.l.b16 %v10414
    %v10448 = vunpack.c.l.b16 %v10415
    %v10449 = vunpack.c.l.b16 %v10416
    %v10450 = vunpack.c.l.b16 %v10417
    %v10451 = vunpack.c.l.b16 %v10418
    %v10452 = vunpack.c.l.b16 %v10419
    %v10453 = vpack.c.b16 %v10438, %v10437
    %v10454 = vpack.c.b16 %v10440, %v10439
    %v10455 = vpack.c.b16 %v10442, %v10441
    %v10456 = vpack.c.b16 %v10444, %v10443
    %v10457 = vpack.c.b16 %v10446, %v10445
    %v10458 = vpack.c.b16 %v10448, %v10447
    %v10459 = vpack.c.b16 %v10450, %v10449
    %v10460 = vpack.c.b16 %v10452, %v10451
    %v10462 = vsel %vm3748, %v10453, 0
    %v10465 = vsel %vm3748, %v10454, 0
    %v10468 = vsel %vm3748, %v10455, 0
    %v10471 = vsel %vm3748, %v10456, 0
    %v10474 = vsel %vm3748, %v10457, 0
    %v10477 = vsel %vm3748, %v10458, 0
    %v10480 = vsel %vm3748, %v10459, 0
    %v10483 = vsel %vm3748, %v10460, 0
    %v10486 = vsel %vm3878, %v10420, 0
    %10488 = vmatpush.bf16.msra.mxu0 0
    %10489 = vmatpush.bf16.msra.mxu0 0
    %10490 = vmatpush.bf16.msra.mxu0 0
    %10491 = vmatpush.bf16.msra.mxu0 0
    %10492 = vmatpush.bf16.msra.mxu0 0
    %10493 = vmatpush.bf16.msra.mxu0 0
    %10494 = vmatpush.bf16.msra.mxu0 0
    %10495 = vmatpush.bf16.msra.mxu0 %v10486
    %10496 = vmatmul.bf16.gmra.mxu0 %v10462
    %v10497 = vpop.f32.mrf.mxu0
    %v10498 = vadd.f32 0.0, %v10497
    %v10499 = vpop.f32.mrf.mxu0
    %v10500 = vadd.f32 0.0, %v10499
    %10501 = vmatmul.bf16.gmra.mxu0 %v10465
    %v10502 = vpop.f32.mrf.mxu0
    %v10503 = vadd.f32 0.0, %v10502
    %v10504 = vpop.f32.mrf.mxu0
    %v10505 = vadd.f32 0.0, %v10504
    %10506 = vmatmul.bf16.gmra.mxu0 %v10468
    %v10507 = vpop.f32.mrf.mxu0
    %v10508 = vadd.f32 0.0, %v10507
    %v10509 = vpop.f32.mrf.mxu0
    %v10510 = vadd.f32 0.0, %v10509
    %10511 = vmatmul.bf16.gmra.mxu0 %v10471
    %v10512 = vpop.f32.mrf.mxu0
    %v10513 = vadd.f32 0.0, %v10512
    %v10514 = vpop.f32.mrf.mxu0
    %v10515 = vadd.f32 0.0, %v10514
    %10516 = vmatmul.bf16.gmra.mxu0 %v10474
    %v10517 = vpop.f32.mrf.mxu0
    %v10518 = vadd.f32 0.0, %v10517
    %v10519 = vpop.f32.mrf.mxu0
    %v10520 = vadd.f32 0.0, %v10519
    %10521 = vmatmul.bf16.gmra.mxu0 %v10477
    %v10522 = vpop.f32.mrf.mxu0
    %v10523 = vadd.f32 0.0, %v10522
    %v10524 = vpop.f32.mrf.mxu0
    %v10525 = vadd.f32 0.0, %v10524
    %10526 = vmatmul.bf16.gmra.mxu0 %v10480
    %v10527 = vpop.f32.mrf.mxu0
    %v10528 = vadd.f32 0.0, %v10527
    %v10529 = vpop.f32.mrf.mxu0
    %v10530 = vadd.f32 0.0, %v10529
    %10531 = vmatmul.bf16.gmra.mxu0 %v10483
    %v10532 = vpop.f32.mrf.mxu0
    %v10533 = vadd.f32 0.0, %v10532
    %v10534 = vpop.f32.mrf.mxu0
    %v10535 = vadd.f32 0.0, %v10534
    %10536 = vdwg.mxu0
    %v10537 = vld [vmem:[%s75] sm:$0x1]
    %v10539 = vperm.slane %v10537, 0
    %v10541 = vmul.f32 %v10498, %v10539
    %v10542 = vmul.f32 %v10500, %v10539
    %v10543 = vmul.f32 %v10503, %v10539
    %v10544 = vmul.f32 %v10505, %v10539
    %v10545 = vmul.f32 %v10508, %v10539
    %v10546 = vmul.f32 %v10510, %v10539
    %v10547 = vmul.f32 %v10513, %v10539
    %v10548 = vmul.f32 %v10515, %v10539
    %v10549 = vmul.f32 %v10518, %v10539
    %v10550 = vmul.f32 %v10520, %v10539
    %v10551 = vmul.f32 %v10523, %v10539
    %v10552 = vmul.f32 %v10525, %v10539
    %v10553 = vmul.f32 %v10528, %v10539
    %v10554 = vmul.f32 %v10530, %v10539
    %v10555 = vmul.f32 %v10533, %v10539
    %v10556 = vmul.f32 %v10535, %v10539
    %v10557 = vld [vmem:[%s77] sm:$0x1]
    %v10559 = vperm.slane %v10557, 0
    %v10561 = vadd.f32 %v10541, %v10559
    %v10562 = vadd.f32 %v10542, %v10559
    %v10563 = vadd.f32 %v10543, %v10559
    %v10564 = vadd.f32 %v10544, %v10559
    %v10565 = vadd.f32 %v10545, %v10559
    %v10566 = vadd.f32 %v10546, %v10559
    %v10567 = vadd.f32 %v10547, %v10559
    %v10568 = vadd.f32 %v10548, %v10559
    %v10569 = vadd.f32 %v10549, %v10559
    %v10570 = vadd.f32 %v10550, %v10559
    %v10571 = vadd.f32 %v10551, %v10559
    %v10572 = vadd.f32 %v10552, %v10559
    %v10573 = vadd.f32 %v10553, %v10559
    %v10574 = vadd.f32 %v10554, %v10559
    %v10575 = vadd.f32 %v10555, %v10559
    %v10576 = vadd.f32 %v10556, %v10559
    %vm10577 = vcmp.ge.f32.partialorder %v10561, 0.0
    %vm10578 = vcmp.ge.f32.partialorder %v10562, 0.0
    %vm10579 = vcmp.ge.f32.partialorder %v10563, 0.0
    %vm10580 = vcmp.ge.f32.partialorder %v10564, 0.0
    %vm10581 = vcmp.ge.f32.partialorder %v10565, 0.0
    %vm10582 = vcmp.ge.f32.partialorder %v10566, 0.0
    %vm10583 = vcmp.ge.f32.partialorder %v10567, 0.0
    %vm10584 = vcmp.ge.f32.partialorder %v10568, 0.0
    %vm10585 = vcmp.ge.f32.partialorder %v10569, 0.0
    %vm10586 = vcmp.ge.f32.partialorder %v10570, 0.0
    %vm10587 = vcmp.ge.f32.partialorder %v10571, 0.0
    %vm10588 = vcmp.ge.f32.partialorder %v10572, 0.0
    %vm10589 = vcmp.ge.f32.partialorder %v10573, 0.0
    %vm10590 = vcmp.ge.f32.partialorder %v10574, 0.0
    %vm10591 = vcmp.ge.f32.partialorder %v10575, 0.0
    %vm10592 = vcmp.ge.f32.partialorder %v10576, 0.0
    %v10593 = vstv %s196
    %v10594 = vmul.f32 %v10593, %v10561
    %v10595 = vmul.f32 %v10593, %v10562
    %v10596 = vmul.f32 %v10593, %v10563
    %v10597 = vmul.f32 %v10593, %v10564
    %v10598 = vmul.f32 %v10593, %v10565
    %v10599 = vmul.f32 %v10593, %v10566
    %v10600 = vmul.f32 %v10593, %v10567
    %v10601 = vmul.f32 %v10593, %v10568
    %v10602 = vmul.f32 %v10593, %v10569
    %v10603 = vmul.f32 %v10593, %v10570
    %v10604 = vmul.f32 %v10593, %v10571
    %v10605 = vmul.f32 %v10593, %v10572
    %v10606 = vmul.f32 %v10593, %v10573
    %v10607 = vmul.f32 %v10593, %v10574
    %v10608 = vmul.f32 %v10593, %v10575
    %v10609 = vmul.f32 %v10593, %v10576
    %v10610 = vsel %vm10577, %v10561, %v10594
    %v10611 = vsel %vm10578, %v10562, %v10595
    %v10612 = vsel %vm10579, %v10563, %v10596
    %v10613 = vsel %vm10580, %v10564, %v10597
    %v10614 = vsel %vm10581, %v10565, %v10598
    %v10615 = vsel %vm10582, %v10566, %v10599
    %v10616 = vsel %vm10583, %v10567, %v10600
    %v10617 = vsel %vm10584, %v10568, %v10601
    %v10618 = vsel %vm10585, %v10569, %v10602
    %v10619 = vsel %vm10586, %v10570, %v10603
    %v10620 = vsel %vm10587, %v10571, %v10604
    %v10621 = vsel %vm10588, %v10572, %v10605
    %v10622 = vsel %vm10589, %v10573, %v10606
    %v10623 = vsel %vm10590, %v10574, %v10607
    %v10624 = vsel %vm10591, %v10575, %v10608
    %v10625 = vsel %vm10592, %v10576, %v10609
    %v10626 = vpack.c.bf16 %v10611, %v10610
    %v10627 = vpack.c.bf16 %v10613, %v10612
    %v10628 = vpack.c.bf16 %v10615, %v10614
    %v10629 = vpack.c.bf16 %v10617, %v10616
    %v10630 = vpack.c.bf16 %v10619, %v10618
    %v10631 = vpack.c.bf16 %v10621, %v10620
    %v10632 = vpack.c.bf16 %v10623, %v10622
    %v10633 = vpack.c.bf16 %v10625, %v10624
    %v10634 = vld [vmem:[%s79] sm:$0xf]
    %v10635 = vld [vmem:[%s79 + $0x4] sm:$0xf]
    %v10636 = vld [vmem:[%s79 + $0x8] sm:$0xf]
    %v10637 = vld [vmem:[%s79 + $0xc] sm:$0xf]
    %v10638 = vld [vmem:[%s81] sm:$0x1]
    %v10640 = vperm.slane %v10638, 0
    %v10646 = vunpack.c.l.b16 %v10634
    %v10647 = vunpack.c.l.b16 %v10635
    %v10648 = vunpack.c.l.b16 %v10636
    %v10649 = vunpack.c.l.b16 %v10637
    %v10650 = vpack.c.b16 %v10647, %v10646
    %v10651 = vpack.c.b16 %v10649, %v10648
    %v10655 = vsel %vm2908, %v10626, 0
    %v10658 = vsel %vm2908, %v10627, 0
    %v10661 = vsel %vm2908, %v10628, 0
    %v10664 = vsel %vm2908, %v10629, 0
    %v10667 = vsel %vm2908, %v10630, 0
    %v10670 = vsel %vm2908, %v10631, 0
    %v10673 = vsel %vm2908, %v10632, 0
    %v10676 = vsel %vm2908, %v10633, 0
    %10678 = vmatpush.bf16.msra.mxu0 0
    %10679 = vmatpush.bf16.msra.mxu0 0
    %10680 = vmatpush.bf16.msra.mxu0 0
    %10681 = vmatpush.bf16.msra.mxu0 0
    %10682 = vmatpush.bf16.msra.mxu0 0
    %10683 = vmatpush.bf16.msra.mxu0 0
    %10684 = vmatpush.bf16.msra.mxu0 %v10651
    %10685 = vmatpush.bf16.msra.mxu0 %v10650
    %10686 = vmatmul.bf16.gmra.mxu0 %v10655
    %v10687 = vpop.f32.mrf.mxu0
    %v10688 = vadd.f32 %v10640, %v10687
    %v10689 = vpop.f32.mrf.mxu0
    %v10690 = vadd.f32 %v10640, %v10689
    %10691 = vmatmul.bf16.gmra.mxu0 %v10658
    %v10692 = vpop.f32.mrf.mxu0
    %v10693 = vadd.f32 %v10640, %v10692
    %v10694 = vpop.f32.mrf.mxu0
    %v10695 = vadd.f32 %v10640, %v10694
    %10696 = vmatmul.bf16.gmra.mxu0 %v10661
    %v10697 = vpop.f32.mrf.mxu0
    %v10698 = vadd.f32 %v10640, %v10697
    %v10699 = vpop.f32.mrf.mxu0
    %v10700 = vadd.f32 %v10640, %v10699
    %10701 = vmatmul.bf16.gmra.mxu0 %v10664
    %v10702 = vpop.f32.mrf.mxu0
    %v10703 = vadd.f32 %v10640, %v10702
    %v10704 = vpop.f32.mrf.mxu0
    %v10705 = vadd.f32 %v10640, %v10704
    %10706 = vmatmul.bf16.gmra.mxu0 %v10667
    %v10707 = vpop.f32.mrf.mxu0
    %v10708 = vadd.f32 %v10640, %v10707
    %v10709 = vpop.f32.mrf.mxu0
    %v10710 = vadd.f32 %v10640, %v10709
    %10711 = vmatmul.bf16.gmra.mxu0 %v10670
    %v10712 = vpop.f32.mrf.mxu0
    %v10713 = vadd.f32 %v10640, %v10712
    %v10714 = vpop.f32.mrf.mxu0
    %v10715 = vadd.f32 %v10640, %v10714
    %10716 = vmatmul.bf16.gmra.mxu0 %v10673
    %v10717 = vpop.f32.mrf.mxu0
    %v10718 = vadd.f32 %v10640, %v10717
    %v10719 = vpop.f32.mrf.mxu0
    %v10720 = vadd.f32 %v10640, %v10719
    %10721 = vmatmul.bf16.gmra.mxu0 %v10676
    %v10722 = vpop.f32.mrf.mxu0
    %v10723 = vadd.f32 %v10640, %v10722
    %v10724 = vpop.f32.mrf.mxu0
    %v10725 = vadd.f32 %v10640, %v10724
    %10726 = vdwg.mxu0
    %v10727 = vadd.f32 %v10388, %v10688
    %v10728 = vadd.f32 %v10389, %v10690
    %v10729 = vadd.f32 %v10390, %v10693
    %v10730 = vadd.f32 %v10391, %v10695
    %v10731 = vadd.f32 %v10392, %v10698
    %v10732 = vadd.f32 %v10393, %v10700
    %v10733 = vadd.f32 %v10394, %v10703
    %v10734 = vadd.f32 %v10395, %v10705
    %v10735 = vadd.f32 %v10396, %v10708
    %v10736 = vadd.f32 %v10397, %v10710
    %v10737 = vadd.f32 %v10398, %v10713
    %v10738 = vadd.f32 %v10399, %v10715
    %v10739 = vadd.f32 %v10400, %v10718
    %v10740 = vadd.f32 %v10401, %v10720
    %v10741 = vadd.f32 %v10402, %v10723
    %v10742 = vadd.f32 %v10403, %v10725
    %10743 = vst [vmem:[#allocation5] sm:$0xff] %v10727
    %10744 = vst [vmem:[#allocation5 + $0x8] sm:$0xff] %v10728
    %10745 = vst [vmem:[#allocation5 + $0x10] sm:$0xff] %v10729
    %10746 = vst [vmem:[#allocation5 + $0x18] sm:$0xff] %v10730
    %10747 = vst [vmem:[#allocation5 + $0x20] sm:$0xff] %v10731
    %10748 = vst [vmem:[#allocation5 + $0x28] sm:$0xff] %v10732
    %10749 = vst [vmem:[#allocation5 + $0x30] sm:$0xff] %v10733
    %10750 = vst [vmem:[#allocation5 + $0x38] sm:$0xff] %v10734
    %10751 = vst [vmem:[#allocation5 + $0x40] sm:$0xff] %v10735
    %10752 = vst [vmem:[#allocation5 + $0x48] sm:$0xff] %v10736
    %10753 = vst [vmem:[#allocation5 + $0x50] sm:$0xff] %v10737
    %10754 = vst [vmem:[#allocation5 + $0x58] sm:$0xff] %v10738
    %10755 = vst [vmem:[#allocation5 + $0x60] sm:$0xff] %v10739
    %10756 = vst [vmem:[#allocation5 + $0x68] sm:$0xff] %v10740
    %10757 = vst [vmem:[#allocation5 + $0x70] sm:$0xff] %v10741
    %10758 = vst [vmem:[#allocation5 + $0x78] sm:$0xff] %v10742
    // Predicated region
    $region174: #{tpu_custom_call.1} parent=1 // pred_check
      _
    $region175: #{tpu_custom_call.1} parent=1 // pred_check_branch
      %10760 = sbr.rel (0) target = $region177
    $region176: #{tpu_custom_call.1} parent=1 // pred_region
      %10762 = vsyncadd [#allocation3], 0
      %s10763 = sshll.u32 [#allocation5], 4
      %s10764 = int_to_ptr.vmem [resolvable:$true] %s10763
      %s10765 = sshll.u32 %s85, 4
      %s10766 = int_to_ptr.hbm [resolvable:$true] %s10765
      %10771 = dma.vmem_to_hbm [thread:$0]  %s10764, 2048, %s10766, [#allocation3], 128, 128, 8
    $region177: #{tpu_custom_call.1} parent=1 // pred_fallthru
      _
    // Predicated region
    $region178: #{tpu_custom_call.1} parent=1 // pred_check
      _
    $region179: #{tpu_custom_call.1} parent=1 // pred_check_branch
      %10773 = sbr.rel (0) target = $region181
    $region180: #{tpu_custom_call.1} parent=1 // pred_region
      %10775 = dma.done [#allocation3], 2048
    $region181: #{tpu_custom_call.1} parent=1 // pred_fallthru
      _
    %10776 = vsyncpa [#allocation3], 1
    %10777 = vsyncpa [#allocation4], 1

</llo_original>
